<compile_context>
chip_gen: v6e
topology: v6e:2x2x1
jax: 0.10.0
libtpu: 0.0.40
codegen_flags: <defaults>
</compile_context>

<pallas_src>
from functools import lru_cache, partial

import numpy as np
import jax
import jax.numpy as jnp
from jax.experimental import pallas as pl
from jax.experimental.pallas import tpu as pltpu

C = 256      # channels (== fc1 in_features)
H = W = 28
P = H * W    # 784 flattened spatial positions
HID = 512    # fc1 out_features / fc2 in_features


def _round_up(n, m):
    return ((n + m - 1) // m) * m


# ----------------------------------------------------------------------------
# Kernel body
# ----------------------------------------------------------------------------
def part_kernel(x_ref, w1t_ref, b1_ref, w2t_ref, b2_ref, gt_ref, o_ref):
    x = x_ref[...]                                                    # (TB, C, P) f32

    # --- F.avg_pool2d(x, 28, 28) + view(B, -1): global spatial mean per channel.
    # Lane (last-axis) reduction -> (TB, C); routes to the XLU, keeps MXU free.
    pooled = jnp.mean(x, axis=-1)                                     # (TB, C)

    # --- tanh(fc1(.)) -> fc2(.) -> sigmoid  (batched M=TB MXU matmuls)
    h = jnp.tanh(jnp.dot(pooled, w1t_ref[...],
                         preferred_element_type=jnp.float32) + b1_ref[...])   # (TB, HID)
    y = jnp.dot(h, w2t_ref[...],
                preferred_element_type=jnp.float32) + b2_ref[...]             # (TB, C)
    s = jax.nn.sigmoid(y)                                                     # (TB, C)

    # --- F.interpolate(..., (1, 784), mode='bilinear', align_corners=True):
    # height axis is 1 -> 1, so it is a 1-D linear upsample C -> P expressed as
    # a matmul with the precomputed matrix G^T.  G^T is pre-scaled by 0.1 / C,
    # folding the "* 0.1" and the channel-mean 1/C into the weights.
    interp = jnp.dot(s, gt_ref[...], preferred_element_type=jnp.float32)      # (TB, P)

    # --- x * conv_matrix followed by averaging over the channel axis:
    #   z[b, p] = (0.1 / C) * interp_raw[b, p] * sum_c x[b, c, p]
    # TODO(synk): the PyTorch code calls F.avg_pool2d with kernel (1, 512) on a
    # width-256 tensor, which raises at runtime; we implement the evident
    # intent (average over the 256 channels).
    chan_sum = jnp.sum(x, axis=1)                                             # (TB, P)
    z = interp * chan_sum                                                     # (TB, P)

    # --- softmax over the 784 positions (torch dim=1), then exp/+1/log/*4.
    # Denominator reciprocal goes to the EUP (approx) -> off the VALU slot.
    z = z - jnp.max(z, axis=-1, keepdims=True)
    e = jnp.exp(z)
    inv_denom = pl.reciprocal(jnp.sum(e, axis=-1, keepdims=True), approx=True)
    sm = e * inv_denom
    o_ref[...] = jnp.log(jnp.exp(sm) + 1.0) * 4.0                             # (TB, P)


# ----------------------------------------------------------------------------
# Host-side precomputation / configuration
# ----------------------------------------------------------------------------
@lru_cache(maxsize=None)
def _interp_matrix_T(n_in, n_out, scale):
    """G^T (n_in, n_out): linear-interp (align_corners=True) weights mapping
    length n_in -> n_out, pre-scaled by `scale`.  Built once in numpy on host."""
    pos = np.arange(n_out, dtype=np.float64) * ((n_in - 1) / (n_out - 1))
    i0 = np.floor(pos).astype(np.int64)
    i1 = np.minimum(i0 + 1, n_in - 1)
    fr = pos - i0
    G = np.zeros((n_out, n_in), dtype=np.float64)
    rows = np.arange(n_out)
    np.add.at(G, (rows, i0), 1.0 - fr)
    np.add.at(G, (rows, i1), fr)
    return jnp.asarray((G * scale).T.astype(np.float32))              # (n_in, n_out)


def _probe_copy_kernel(a_ref, o_ref):
    o_ref[...] = a_ref[...]


@lru_cache(maxsize=None)
def _single_buffer_supported():
    """True iff this JAX/Mosaic build accepts pipeline_mode=pl.Buffered(1)
    (single-buffering for grid-invariant operands).  Probed with a tiny kernel
    once so the main kernel never risks a compile failure on older builds."""
    try:
        f = pl.pallas_call(
            _probe_copy_kernel,
            out_shape=jax.ShapeDtypeStruct((8, 128), jnp.float32),
            grid=(1,),
            in_specs=[pl.BlockSpec((8, 128), lambda i: (0, 0),
                                   pipeline_mode=pl.Buffered(1))],
            out_specs=pl.BlockSpec((8, 128), lambda i: (0, 0)),
        )
        jax.block_until_ready(f(jnp.zeros((8, 128), jnp.float32)))
        return True
    except Exception:
        return False


@lru_cache(maxsize=None)
def _device_kind():
    try:
        return jax.devices()[0].device_kind.lower()
    except Exception:
        return ""


def _device_config(batch):
    """Pick (tb, vmem_limit_bytes, core_parallel) per TPU generation."""
    kind = _device_kind()
    if "v5e" in kind or "v5 lite" in kind or "v5lite" in kind:
        # v5e: default scoped VMEM is only 16 MiB; 2x7.0 MiB x-buffers + consts
        # need an explicit (still modest) limit.
        tb_target, vmem = 8, 28 << 20
    elif "v6" in kind:
        # v6e: 128 MiB VMEM -> bigger batch slab halves per-step pipeline
        # overhead of this HBM-bound kernel.
        tb_target, vmem = 16, 64 << 20
    elif "v7" in kind:
        # v7x: 64 MiB VMEM per TensorCore -> keep TB=8, stay well under.
        tb_target, vmem = 8, 40 << 20
    else:
        tb_target, vmem = 8, 40 << 20
    tb = min(tb_target, _round_up(max(batch, 1), 8))
    grid_len = _round_up(batch, tb) // tb
    # Only v7x has 2 TensorCores; CORE_PARALLEL shards the batch grid axis
    # across them (plain "parallel" does not change codegen).  Needs >= 2 steps.
    core_parallel = ("v7" in kind) and grid_len >= 2
    return tb, vmem, core_parallel


# ----------------------------------------------------------------------------
# Forward
# ----------------------------------------------------------------------------
@partial(jax.jit,
         static_argnames=("tb", "vmem_limit", "core_parallel",
                          "single_buffer_consts"))
def _part_forward_impl(x, w1, b1, w2, b2, gt, *, tb, vmem_limit,
                       core_parallel, single_buffer_consts):
    B = x.shape[0]
    b_pad = _round_up(B, tb)
    x_flat = x.reshape(B, C, P)
    if b_pad != B:
        # Zero-pad the batch so it divides the block size; padded rows produce
        # finite garbage that is sliced off below.
        x_flat = jnp.pad(x_flat, ((0, b_pad - B), (0, 0), (0, 0)))

    w1t = w1.T                                # (C, HID)
    w2t = w2.T                                # (HID, C)
    b1_2d = b1.reshape(1, HID)
    b2_2d = b2.reshape(1, C)

    const_kwargs = (dict(pipeline_mode=pl.Buffered(1))
                    if single_buffer_consts else {})

    def cspec(shape):
        zeros = (0,) * len(shape)
        return pl.BlockSpec(shape, lambda b, _z=zeros: _z, **const_kwargs)

    dim_sem = (pltpu.CORE_PARALLEL,) if core_parallel else ("parallel",)

    # Advisory cost estimate: the kernel is HBM-bandwidth bound (~1.6 FLOP/B).
    cost = pl.CostEstimate(
        flops=int(2 * b_pad * C * P            # pooled + channel-sum reductions
                  + 4 * b_pad * C * HID        # fc1 + fc2
                  + 2 * b_pad * C * P          # interpolation matmul
                  + 8 * b_pad * P),            # elementwise epilogue
        transcendentals=int(b_pad * (HID + C + 3 * P)),
        bytes_accessed=int(4 * (b_pad * C * P + b_pad * P
                                + C * HID + HID + HID * C + C + C * P)),
    )

    out = pl.pallas_call(
        part_kernel,
        out_shape=jax.ShapeDtypeStruct((b_pad, P), jnp.float32),
        grid_spec=pltpu.PrefetchScalarGridSpec(
            num_scalar_prefetch=0,
            grid=(b_pad // tb,),
            in_specs=[
                pl.BlockSpec((tb, C, P), lambda b: (b, 0, 0)),   # x slab (TB batches)
                cspec((C, HID)),                                 # fc1 weight (transposed)
                cspec((1, HID)),                                 # fc1 bias
                cspec((HID, C)),                                 # fc2 weight (transposed)
                cspec((1, C)),                                   # fc2 bias
                cspec((C, P)),                                   # scaled interp matrix G^T
            ],
            out_specs=pl.BlockSpec((tb, P), lambda b: (b, 0)),   # lane/sublane-dense out
        ),
        compiler_params=pltpu.CompilerParams(
            dimension_semantics=dim_sem,
            vmem_limit_bytes=vmem_limit,
        ),
        cost_estimate=cost,
    )(x_flat, w1t, b1_2d, w2t, b2_2d, gt)
    return out[:B].reshape(B, H, W)


def part_forward(x, w1, b1, w2, b2):
    tb, vmem_limit, core_parallel = _device_config(int(x.shape[0]))
    gt = _interp_matrix_T(C, P, 0.1 / C)      # (C, P), 0.1 and 1/C folded in
    return _part_forward_impl(
        x, w1, b1, w2, b2, gt,
        tb=tb, vmem_limit=vmem_limit, core_parallel=core_parallel,
        single_buffer_consts=_single_buffer_supported())


# ----------------------------------------------------------------------------
# Pure-JAX reference (mirrors the PyTorch forward, same channel-mean choice)
# ----------------------------------------------------------------------------
def part_reference(x, w1, b1, w2, b2):
    B = x.shape[0]
    conv_matrix = jnp.transpose(x.reshape(B, C, 1, P), (0, 3, 2, 1))  # (B, P, 1, C)
    p = jnp.mean(x, axis=(2, 3))                                      # (B, C)
    h = jnp.tanh(p @ w1.T + b1)
    y = h @ w2.T + b2
    s = jax.nn.sigmoid(y)                                             # (B, C)
    pos = jnp.arange(P, dtype=jnp.float32) * ((C - 1) / (P - 1))
    i0 = jnp.floor(pos).astype(jnp.int32)
    i1 = jnp.minimum(i0 + 1, C - 1)
    fr = pos - i0.astype(jnp.float32)
    interp = s[:, i0] * (1.0 - fr) + s[:, i1] * fr                    # (B, P)
    prod = interp[:, :, None, None] * conv_matrix                     # (B, P, 1, C)
    avg = jnp.mean(prod, axis=3, keepdims=True)                       # (B, P, 1, 1)
    z = avg * 0.1
    sm = jax.nn.softmax(z, axis=1)
    out = jnp.log(jnp.exp(sm) + 1.0) * 4.0
    return out.reshape(B, H, W)


if __name__ == "__main__":
    key = jax.random.PRNGKey(0)
    kx, k1, k2, k3, k4 = jax.random.split(key, 5)
    B = 2
    x = jax.random.normal(kx, (B, C, H, W), dtype=jnp.float32)

    # Deterministic param init (PyTorch Linear default: U(-1/sqrt(fan_in), 1/sqrt(fan_in)))
    bound1 = 1.0 / (C ** 0.5)
    w1 = jax.random.uniform(k1, (HID, C), jnp.float32, -bound1, bound1)
    b1 = jax.random.uniform(k2, (HID,), jnp.float32, -bound1, bound1)
    bound2 = 1.0 / (HID ** 0.5)
    w2 = jax.random.uniform(k3, (C, HID), jnp.float32, -bound2, bound2)
    b2 = jax.random.uniform(k4, (C,), jnp.float32, -bound2, bound2)

    out = jax.block_until_ready(part_forward(x, w1, b1, w2, b2))
    ref = jax.block_until_ready(part_reference(x, w1, b1, w2, b2))

    assert out.shape == (B, 28, 28) and out.dtype == jnp.float32
    # Tolerance accounts for the approx (EUP) reciprocal in the softmax denom.
    assert jnp.allclose(out, ref, atol=5e-5, rtol=5e-5), float(jnp.max(jnp.abs(out - ref)))
    print("KERNEL_OK")
</pallas_src>

<mosaic_0001>
module attributes {stable_mosaic.version = 11 : i64} {
  func.func @_probe_copy_kernel(%arg0: i32, %arg1: memref<8x128xf32, #tpu.memory_space<vmem>>, %arg2: memref<8x128xf32, #tpu.memory_space<vmem>>) attributes {dimension_semantics = [#tpu.dimension_semantics<arbitrary>], iteration_bounds = array<i64: 1>, scalar_prefetch = 0 : i64, scratch_operands = 0 : i64, tpu.core_type = #tpu.core_type<tc>, window_params = [{pipeline_mode = #tpu.pipeline_mode<synchronous>, transform_indices = @transform_0, window_bounds = array<i64: 8, 128>}, {pipeline_mode = #tpu.pipeline_mode<synchronous>, transform_indices = @transform_1, window_bounds = array<i64: 8, 128>}]} {
    %c0 = arith.constant 0 : index
    %c0_0 = arith.constant 0 : index
    %0 = vector.load %arg1[%c0, %c0_0] : memref<8x128xf32, #tpu.memory_space<vmem>>, vector<8x128xf32>
    %c0_1 = arith.constant 0 : index
    %c0_2 = arith.constant 0 : index
    %1 = vector.load %arg2[%c0_1, %c0_2] : memref<8x128xf32, #tpu.memory_space<vmem>>, vector<8x128xf32>
    tpu.vector_store %arg2[%c0_1, %c0_2], %0 {strides = array<i32>} : memref<8x128xf32, #tpu.memory_space<vmem>>, vector<8x128xf32>,
    return
  }
  func.func @transform_0(%arg0: i32) -> (i32, i32) {
    %c0_i32 = arith.constant 0 : i32
    %c0_i32_0 = arith.constant 0 : i32
    %c0_i32_1 = arith.constant 0 : i32
    return %c0_i32, %c0_i32_0 : i32, i32
  }
  func.func @transform_1(%arg0: i32) -> (i32, i32) {
    %c0_i32 = arith.constant 0 : i32
    %c0_i32_0 = arith.constant 0 : i32
    %c0_i32_1 = arith.constant 0 : i32
    return %c0_i32, %c0_i32_0 : i32, i32
  }
}

module attributes {stable_mosaic.version = 11 : i64} {
  func.func @part_kernel(%arg0: i32, %arg1: memref<8x256x784xf32, #tpu.memory_space<vmem>>, %arg2: memref<256x512xf32, #tpu.memory_space<vmem>>, %arg3: memref<1x512xf32, #tpu.memory_space<vmem>>, %arg4: memref<512x256xf32, #tpu.memory_space<vmem>>, %arg5: memref<1x256xf32, #tpu.memory_space<vmem>>, %arg6: memref<256x784xf32, #tpu.memory_space<vmem>>, %arg7: memref<8x784xf32, #tpu.memory_space<vmem>>) attributes {dimension_semantics = [#tpu.dimension_semantics<parallel>], iteration_bounds = array<i64: 1>, scalar_prefetch = 0 : i64, scratch_operands = 0 : i64, tpu.core_type = #tpu.core_type<tc>, window_params = [{transform_indices = @transform_0, window_bounds = array<i64: 8, 256, 784>}, {pipeline_mode = #tpu.pipeline_mode<synchronous>, transform_indices = @transform_1, window_bounds = array<i64: 256, 512>}, {pipeline_mode = #tpu.pipeline_mode<synchronous>, transform_indices = @transform_2, window_bounds = array<i64: 1, 512>}, {pipeline_mode = #tpu.pipeline_mode<synchronous>, transform_indices = @transform_3, window_bounds = array<i64: 512, 256>}, {pipeline_mode = #tpu.pipeline_mode<synchronous>, transform_indices = @transform_4, window_bounds = array<i64: 1, 256>}, {pipeline_mode = #tpu.pipeline_mode<synchronous>, transform_indices = @transform_5, window_bounds = array<i64: 256, 784>}, {transform_indices = @transform_6, window_bounds = array<i64: 8, 784>}]} {
    %c0 = arith.constant 0 : index
    %c0_0 = arith.constant 0 : index
    %c0_1 = arith.constant 0 : index
    %0 = vector.load %arg1[%c0, %c0_0, %c0_1] : memref<8x256x784xf32, #tpu.memory_space<vmem>>, vector<8x256x784xf32>
    %cst = arith.constant dense<0.000000e+00> : vector<8x256xf32>
    %1 = vector.multi_reduction <add>, %0, %cst [2] : vector<8x256x784xf32> to vector<8x256xf32>
    %cst_2 = arith.constant 7.840000e+02 : f32
    %2 = vector.broadcast %cst_2 : f32 to vector<8x256xf32>
    %3 = arith.divf %1, %2 : vector<8x256xf32>
    %c0_3 = arith.constant 0 : index
    %c0_4 = arith.constant 0 : index
    %4 = vector.load %arg2[%c0_3, %c0_4] : memref<256x512xf32, #tpu.memory_space<vmem>>, vector<256x512xf32>
    %cst_5 = arith.constant dense<0.000000e+00> : vector<8x512xf32>
    %5 = tpu.matmul %3, %4, %cst_5 {dimension_numbers = #tpu.dot_dimension_numbers<[1], [0], [0], [1], [0, 0, 1, 1], [], []>} : vector<8x256xf32>, vector<256x512xf32>, vector<8x512xf32> -> vector<8x512xf32>
    %c0_6 = arith.constant 0 : index
    %c0_7 = arith.constant 0 : index
    %6 = vector.load %arg3[%c0_6, %c0_7] : memref<1x512xf32, #tpu.memory_space<vmem>>, vector<1x512xf32>
    %7 = vector.broadcast %6 : vector<1x512xf32> to vector<8x512xf32>
    %8 = arith.addf %5, %7 : vector<8x512xf32>
    %9 = math.tanh %8 : vector<8x512xf32>
    %c0_8 = arith.constant 0 : index
    %c0_9 = arith.constant 0 : index
    %10 = vector.load %arg4[%c0_8, %c0_9] : memref<512x256xf32, #tpu.memory_space<vmem>>, vector<512x256xf32>
    %cst_10 = arith.constant dense<0.000000e+00> : vector<8x256xf32>
    %11 = tpu.matmul %9, %10, %cst_10 {dimension_numbers = #tpu.dot_dimension_numbers<[1], [0], [0], [1], [0, 0, 1, 1], [], []>} : vector<8x512xf32>, vector<512x256xf32>, vector<8x256xf32> -> vector<8x256xf32>
    %c0_11 = arith.constant 0 : index
    %c0_12 = arith.constant 0 : index
    %12 = vector.load %arg5[%c0_11, %c0_12] : memref<1x256xf32, #tpu.memory_space<vmem>>, vector<1x256xf32>
    %13 = vector.broadcast %12 : vector<1x256xf32> to vector<8x256xf32>
    %14 = arith.addf %11, %13 : vector<8x256xf32>
    %15 = arith.negf %14 : vector<8x256xf32>
    %16 = math.exp %15 : vector<8x256xf32>
    %cst_13 = arith.constant 1.000000e+00 : f32
    %17 = vector.broadcast %cst_13 : f32 to vector<8x256xf32>
    %18 = arith.addf %17, %16 : vector<8x256xf32>
    %19 = arith.divf %17, %18 : vector<8x256xf32>
    %c0_14 = arith.constant 0 : index
    %c0_15 = arith.constant 0 : index
    %20 = vector.load %arg6[%c0_14, %c0_15] : memref<256x784xf32, #tpu.memory_space<vmem>>, vector<256x784xf32>
    %cst_16 = arith.constant dense<0.000000e+00> : vector<8x784xf32>
    %21 = tpu.matmul %19, %20, %cst_16 {dimension_numbers = #tpu.dot_dimension_numbers<[1], [0], [0], [1], [0, 0, 1, 1], [], []>} : vector<8x256xf32>, vector<256x784xf32>, vector<8x784xf32> -> vector<8x784xf32>
    %cst_17 = arith.constant dense<0.000000e+00> : vector<8x784xf32>
    %22 = vector.multi_reduction <add>, %0, %cst_17 [1] : vector<8x256x784xf32> to vector<8x784xf32>
    %23 = arith.mulf %21, %22 : vector<8x784xf32>
    %cst_18 = arith.constant dense<0xFF800000> : vector<8xf32>
    %24 = vector.multi_reduction <maximumf>, %23, %cst_18 [1] : vector<8x784xf32> to vector<8xf32>
    %25 = vector.shape_cast %24 : vector<8xf32> to vector<8x1xf32>
    %26 = vector.broadcast %25 : vector<8x1xf32> to vector<8x784xf32>
    %27 = arith.subf %23, %26 : vector<8x784xf32>
    %28 = math.exp %27 : vector<8x784xf32>
    %cst_19 = arith.constant dense<0.000000e+00> : vector<8xf32>
    %29 = vector.multi_reduction <add>, %28, %cst_19 [1] : vector<8x784xf32> to vector<8xf32>
    %30 = vector.shape_cast %29 : vector<8xf32> to vector<8x1xf32>
    %31 = tpu.reciprocal %30 {approx = true} : vector<8x1xf32> -> vector<8x1xf32>
    %32 = vector.broadcast %31 : vector<8x1xf32> to vector<8x784xf32>
    %33 = arith.mulf %28, %32 : vector<8x784xf32>
    %34 = math.exp %33 : vector<8x784xf32>
    %cst_20 = arith.constant 1.000000e+00 : f32
    %35 = vector.broadcast %cst_20 : f32 to vector<8x784xf32>
    %36 = arith.addf %34, %35 : vector<8x784xf32>
    %37 = math.log %36 : vector<8x784xf32>
    %cst_21 = arith.constant 4.000000e+00 : f32
    %38 = vector.broadcast %cst_21 : f32 to vector<8x784xf32>
    %39 = arith.mulf %37, %38 : vector<8x784xf32>
    %c0_22 = arith.constant 0 : index
    %c0_23 = arith.constant 0 : index
    %40 = vector.load %arg7[%c0_22, %c0_23] : memref<8x784xf32, #tpu.memory_space<vmem>>, vector<8x784xf32>
    tpu.vector_store %arg7[%c0_22, %c0_23], %39 {strides = array<i32>} : memref<8x784xf32, #tpu.memory_space<vmem>>, vector<8x784xf32>,
    return
  }
  func.func @transform_0(%arg0: i32) -> (i32, i32, i32) {
    %c0_i32 = arith.constant 0 : i32
    %c0_i32_0 = arith.constant 0 : i32
    %c0_i32_1 = arith.constant 0 : i32
    return %arg0, %c0_i32, %c0_i32_0 : i32, i32, i32
  }
  func.func @transform_1(%arg0: i32) -> (i32, i32) {
    %c0_i32 = arith.constant 0 : i32
    %c0_i32_0 = arith.constant 0 : i32
    %c0_i32_1 = arith.constant 0 : i32
    return %c0_i32, %c0_i32_0 : i32, i32
  }
  func.func @transform_2(%arg0: i32) -> (i32, i32) {
    %c0_i32 = arith.constant 0 : i32
    %c0_i32_0 = arith.constant 0 : i32
    %c0_i32_1 = arith.constant 0 : i32
    return %c0_i32, %c0_i32_0 : i32, i32
  }
  func.func @transform_3(%arg0: i32) -> (i32, i32) {
    %c0_i32 = arith.constant 0 : i32
    %c0_i32_0 = arith.constant 0 : i32
    %c0_i32_1 = arith.constant 0 : i32
    return %c0_i32, %c0_i32_0 : i32, i32
  }
  func.func @transform_4(%arg0: i32) -> (i32, i32) {
    %c0_i32 = arith.constant 0 : i32
    %c0_i32_0 = arith.constant 0 : i32
    %c0_i32_1 = arith.constant 0 : i32
    return %c0_i32, %c0_i32_0 : i32, i32
  }
  func.func @transform_5(%arg0: i32) -> (i32, i32) {
    %c0_i32 = arith.constant 0 : i32
    %c0_i32_0 = arith.constant 0 : i32
    %c0_i32_1 = arith.constant 0 : i32
    return %c0_i32, %c0_i32_0 : i32, i32
  }
  func.func @transform_6(%arg0: i32) -> (i32, i32) {
    %c0_i32 = arith.constant 0 : i32
    %c0_i32_0 = arith.constant 0 : i32
    return %arg0, %c0_i32 : i32, i32
  }
}

</mosaic_0001>

<llo_original>
// kernel: tpu_custom_call.1
$region0: #{tpu_custom_call.1}
  #allocation0 [shape = 'u32[]', space=smem, size = 0x4, offset = 0x4, fixed_abs, tag = 'smem constant byte address 0x4 - core index']
  #allocation1 [shape = 'u32[144,128]{1,0:T(1,128)}', space=vmem, size = 0x12000, scoped, tag = 'internal scratch']
  %s0 = inlined_call_operand.hbm [shape: f32[8,128], index: 0, kind: input, shape index: {}]
  %s1 = inlined_call_operand.hbm [shape: f32[8,128], index: 1, kind: output, shape index: {}]
  %s2 = sld [smem:[#allocation0]]
  $region18: #{tpu_custom_call.1} parent=0
    _
  %s4 = ssub.s32 1, %s2
  %s5 = scalar_select 0, %s4, %s2
  $region1: #{tpu_custom_call.1} parent=0
    #allocation2 [shape = 'u8[4096]{0}', space=vmem, size = 0x1000, scoped, tag = 'input window, operand 0, single buffered']
    #allocation3 [shape = 's32[1]{0}', space=sflag, size = 0x4, scoped, tag = 'scoped memory for tpu_custom_call.1']
    #allocation4 [shape = 's32[1]{0}', space=sflag, size = 0x4, scoped, tag = 'scoped memory for tpu_custom_call.1']
    #allocation5 [shape = 'u8[4096]{0}', space=vmem, size = 0x1000, scoped, tag = 'output window, operand 0, single buffered']
    %6 = vsyncpa [#allocation3], 0
    %7 = vsyncpa [#allocation4], 0
    // Predicated region
    $region2: #{tpu_custom_call.1} parent=1 // pred_check
      _
    $region3: #{tpu_custom_call.1} parent=1 // pred_check_branch
      %9 = sbr.rel (0) target = $region5
    $region4: #{tpu_custom_call.1} parent=1 // pred_region
      %s11 = ssub.s32 128, 128
      %12 = vsyncadd [#allocation3], %s11
      %s14 = sshll.u32 [#allocation2], 4
      %s15 = int_to_ptr.vmem [resolvable:$true] %s14
      %17 = dma.hbm_to_vmem [thread:$0]  %s0, 128, %s15, [#allocation3]
    $region5: #{tpu_custom_call.1} parent=1 // pred_fallthru
      _
    // Predicated region
    $region6: #{tpu_custom_call.1} parent=1 // pred_check
      _
    $region7: #{tpu_custom_call.1} parent=1 // pred_check_branch
      %19 = sbr.rel (0) target = $region9
    $region8: #{tpu_custom_call.1} parent=1 // pred_region
      %20 = dma.done [#allocation3], 128
    $region9: #{tpu_custom_call.1} parent=1 // pred_fallthru
      _
    %v21 = vld [vmem:[#allocation2] sm:$0xff]
    %22 = vst [vmem:[#allocation5] sm:$0xff] %v21
    // Predicated region
    $region10: #{tpu_custom_call.1} parent=1 // pred_check
      _
    $region11: #{tpu_custom_call.1} parent=1 // pred_check_branch
      %24 = sbr.rel (0) target = $region13
    $region12: #{tpu_custom_call.1} parent=1 // pred_region
      %s26 = ssub.s32 128, 128
      %27 = vsyncadd [#allocation4], %s26
      %s29 = sshll.u32 [#allocation5], 4
      %s30 = int_to_ptr.vmem [resolvable:$true] %s29
      %32 = dma.vmem_to_hbm [thread:$0]  %s30, 128, %s1, [#allocation4]
    $region13: #{tpu_custom_call.1} parent=1 // pred_fallthru
      _
    // Predicated region
    $region14: #{tpu_custom_call.1} parent=1 // pred_check
      _
    $region15: #{tpu_custom_call.1} parent=1 // pred_check_branch
      %34 = sbr.rel (0) target = $region17
    $region16: #{tpu_custom_call.1} parent=1 // pred_region
      %35 = dma.done [#allocation4], 128
    $region17: #{tpu_custom_call.1} parent=1 // pred_fallthru
      _
    %36 = vsyncpa [#allocation3], 1
    %37 = vsyncpa [#allocation4], 1

// kernel: _part_forward_impl.1
$region0: #{_part_forward_impl.1}
  #allocation0 [shape = 'u32[]', space=smem, size = 0x4, offset = 0x4, fixed_abs, tag = 'smem constant byte address 0x4 - core index']
  #allocation1 [shape = 'u32[144,128]{1,0:T(1,128)}', space=vmem, size = 0x12000, scoped, tag = 'internal scratch']
  %s0 = inlined_call_operand.vmem [shape: f32[8,256,784], index: 0, kind: input, shape index: {}]
  %s1 = inlined_call_operand.vmem [shape: f32[256,512], index: 1, kind: input, shape index: {}]
  %s2 = inlined_call_operand.vmem [shape: f32[1,512], index: 2, kind: input, shape index: {}]
  %s3 = inlined_call_operand.vmem [shape: f32[512,256], index: 3, kind: input, shape index: {}]
  %s4 = inlined_call_operand.vmem [shape: f32[1,256], index: 4, kind: input, shape index: {}]
  %s5 = inlined_call_operand.vmem [shape: f32[256,784], index: 5, kind: input, shape index: {}]
  %s6 = inlined_call_operand.vmem [shape: f32[8,784], index: 6, kind: output, shape index: {}]
  %s7 = sld [smem:[#allocation0]]
  $region34: #{_part_forward_impl.1} parent=0
    _
  %s9 = ssub.s32 1, %s7
  %s10 = scalar_select 0, %s9, %s7
  // Predicated region
  $region2: #{_part_forward_impl.1} parent=0 // pred_check
    _
  $region3: #{_part_forward_impl.1} parent=0 // pred_check_branch
    %12 = sbr.rel (0) target = $region5
  $region4: #{_part_forward_impl.1} parent=0 // pred_region
    _
  $region5: #{_part_forward_impl.1} parent=0 // pred_fallthru
    _
  // Predicated region
  $region6: #{_part_forward_impl.1} parent=0 // pred_check
    _
  $region7: #{_part_forward_impl.1} parent=0 // pred_check_branch
    %14 = sbr.rel (0) target = $region9
  $region8: #{_part_forward_impl.1} parent=0 // pred_region
    _
  $region9: #{_part_forward_impl.1} parent=0 // pred_fallthru
    _
  // Predicated region
  $region10: #{_part_forward_impl.1} parent=0 // pred_check
    _
  $region11: #{_part_forward_impl.1} parent=0 // pred_check_branch
    %16 = sbr.rel (0) target = $region13
  $region12: #{_part_forward_impl.1} parent=0 // pred_region
    _
  $region13: #{_part_forward_impl.1} parent=0 // pred_fallthru
    _
  // Predicated region
  $region14: #{_part_forward_impl.1} parent=0 // pred_check
    _
  $region15: #{_part_forward_impl.1} parent=0 // pred_check_branch
    %18 = sbr.rel (0) target = $region17
  $region16: #{_part_forward_impl.1} parent=0 // pred_region
    _
  $region17: #{_part_forward_impl.1} parent=0 // pred_fallthru
    _
  // Predicated region
  $region18: #{_part_forward_impl.1} parent=0 // pred_check
    _
  $region19: #{_part_forward_impl.1} parent=0 // pred_check_branch
    %20 = sbr.rel (0) target = $region21
  $region20: #{_part_forward_impl.1} parent=0 // pred_region
    _
  $region21: #{_part_forward_impl.1} parent=0 // pred_fallthru
    _
  // Predicated region
  $region22: #{_part_forward_impl.1} parent=0 // pred_check
    _
  $region23: #{_part_forward_impl.1} parent=0 // pred_check_branch
    %22 = sbr.rel (0) target = $region25
  $region24: #{_part_forward_impl.1} parent=0 // pred_region
    _
  $region25: #{_part_forward_impl.1} parent=0 // pred_fallthru
    _
  %v23 = vld [vmem:[%s0] sm:$0xff]
  %v24 = vld [vmem:[%s0 + $0x8] sm:$0xff]
  %v25 = vld [vmem:[%s0 + $0x10] sm:$0xff]
  %v26 = vld [vmem:[%s0 + $0x18] sm:$0xff]
  %v27 = vld [vmem:[%s0 + $0x20] sm:$0xff]
  %v28 = vld [vmem:[%s0 + $0x28] sm:$0xff]
  %v29 = vld [vmem:[%s0 + $0x30] sm:$0xff]
  %v30 = vld [vmem:[%s0 + $0x38] sm:$0xff]
  %v31 = vld [vmem:[%s0 + $0x40] sm:$0xff]
  %v32 = vld [vmem:[%s0 + $0x48] sm:$0xff]
  %v33 = vld [vmem:[%s0 + $0x50] sm:$0xff]
  %v34 = vld [vmem:[%s0 + $0x58] sm:$0xff]
  %v35 = vld [vmem:[%s0 + $0x60] sm:$0xff]
  %v36 = vld [vmem:[%s0 + $0x68] sm:$0xff]
  %v37 = vld [vmem:[%s0 + $0x70] sm:$0xff]
  %v38 = vld [vmem:[%s0 + $0x78] sm:$0xff]
  %v39 = vld [vmem:[%s0 + $0x80] sm:$0xff]
  %v40 = vld [vmem:[%s0 + $0x88] sm:$0xff]
  %v41 = vld [vmem:[%s0 + $0x90] sm:$0xff]
  %v42 = vld [vmem:[%s0 + $0x98] sm:$0xff]
  %v43 = vld [vmem:[%s0 + $0xa0] sm:$0xff]
  %v44 = vld [vmem:[%s0 + $0xa8] sm:$0xff]
  %v45 = vld [vmem:[%s0 + $0xb0] sm:$0xff]
  %v46 = vld [vmem:[%s0 + $0xb8] sm:$0xff]
  %v47 = vld [vmem:[%s0 + $0xc0] sm:$0xff]
  %v48 = vld [vmem:[%s0 + $0xc8] sm:$0xff]
  %v49 = vld [vmem:[%s0 + $0xd0] sm:$0xff]
  %v50 = vld [vmem:[%s0 + $0xd8] sm:$0xff]
  %v51 = vld [vmem:[%s0 + $0xe0] sm:$0xff]
  %v52 = vld [vmem:[%s0 + $0xe8] sm:$0xff]
  %v53 = vld [vmem:[%s0 + $0xf0] sm:$0xff]
  %v54 = vld [vmem:[%s0 + $0xf8] sm:$0xff]
  %v55 = vld [vmem:[%s0 + $0x100] sm:$0xff]
  %v56 = vld [vmem:[%s0 + $0x108] sm:$0xff]
  %v57 = vld [vmem:[%s0 + $0x110] sm:$0xff]
  %v58 = vld [vmem:[%s0 + $0x118] sm:$0xff]
  %v59 = vld [vmem:[%s0 + $0x120] sm:$0xff]
  %v60 = vld [vmem:[%s0 + $0x128] sm:$0xff]
  %v61 = vld [vmem:[%s0 + $0x130] sm:$0xff]
  %v62 = vld [vmem:[%s0 + $0x138] sm:$0xff]
  %v63 = vld [vmem:[%s0 + $0x140] sm:$0xff]
  %v64 = vld [vmem:[%s0 + $0x148] sm:$0xff]
  %v65 = vld [vmem:[%s0 + $0x150] sm:$0xff]
  %v66 = vld [vmem:[%s0 + $0x158] sm:$0xff]
  %v67 = vld [vmem:[%s0 + $0x160] sm:$0xff]
  %v68 = vld [vmem:[%s0 + $0x168] sm:$0xff]
  %v69 = vld [vmem:[%s0 + $0x170] sm:$0xff]
  %v70 = vld [vmem:[%s0 + $0x178] sm:$0xff]
  %v71 = vld [vmem:[%s0 + $0x180] sm:$0xff]
  %v72 = vld [vmem:[%s0 + $0x188] sm:$0xff]
  %v73 = vld [vmem:[%s0 + $0x190] sm:$0xff]
  %v74 = vld [vmem:[%s0 + $0x198] sm:$0xff]
  %v75 = vld [vmem:[%s0 + $0x1a0] sm:$0xff]
  %v76 = vld [vmem:[%s0 + $0x1a8] sm:$0xff]
  %v77 = vld [vmem:[%s0 + $0x1b0] sm:$0xff]
  %v78 = vld [vmem:[%s0 + $0x1b8] sm:$0xff]
  %v79 = vld [vmem:[%s0 + $0x1c0] sm:$0xff]
  %v80 = vld [vmem:[%s0 + $0x1c8] sm:$0xff]
  %v81 = vld [vmem:[%s0 + $0x1d0] sm:$0xff]
  %v82 = vld [vmem:[%s0 + $0x1d8] sm:$0xff]
  %v83 = vld [vmem:[%s0 + $0x1e0] sm:$0xff]
  %v84 = vld [vmem:[%s0 + $0x1e8] sm:$0xff]
  %v85 = vld [vmem:[%s0 + $0x1f0] sm:$0xff]
  %v86 = vld [vmem:[%s0 + $0x1f8] sm:$0xff]
  %v87 = vld [vmem:[%s0 + $0x200] sm:$0xff]
  %v88 = vld [vmem:[%s0 + $0x208] sm:$0xff]
  %v89 = vld [vmem:[%s0 + $0x210] sm:$0xff]
  %v90 = vld [vmem:[%s0 + $0x218] sm:$0xff]
  %v91 = vld [vmem:[%s0 + $0x220] sm:$0xff]
  %v92 = vld [vmem:[%s0 + $0x228] sm:$0xff]
  %v93 = vld [vmem:[%s0 + $0x230] sm:$0xff]
  %v94 = vld [vmem:[%s0 + $0x238] sm:$0xff]
  %v95 = vld [vmem:[%s0 + $0x240] sm:$0xff]
  %v96 = vld [vmem:[%s0 + $0x248] sm:$0xff]
  %v97 = vld [vmem:[%s0 + $0x250] sm:$0xff]
  %v98 = vld [vmem:[%s0 + $0x258] sm:$0xff]
  %v99 = vld [vmem:[%s0 + $0x260] sm:$0xff]
  %v100 = vld [vmem:[%s0 + $0x268] sm:$0xff]
  %v101 = vld [vmem:[%s0 + $0x270] sm:$0xff]
  %v102 = vld [vmem:[%s0 + $0x278] sm:$0xff]
  %v103 = vld [vmem:[%s0 + $0x280] sm:$0xff]
  %v104 = vld [vmem:[%s0 + $0x288] sm:$0xff]
  %v105 = vld [vmem:[%s0 + $0x290] sm:$0xff]
  %v106 = vld [vmem:[%s0 + $0x298] sm:$0xff]
  %v107 = vld [vmem:[%s0 + $0x2a0] sm:$0xff]
  %v108 = vld [vmem:[%s0 + $0x2a8] sm:$0xff]
  %v109 = vld [vmem:[%s0 + $0x2b0] sm:$0xff]
  %v110 = vld [vmem:[%s0 + $0x2b8] sm:$0xff]
  %v111 = vld [vmem:[%s0 + $0x2c0] sm:$0xff]
  %v112 = vld [vmem:[%s0 + $0x2c8] sm:$0xff]
  %v113 = vld [vmem:[%s0 + $0x2d0] sm:$0xff]
  %v114 = vld [vmem:[%s0 + $0x2d8] sm:$0xff]
  %v115 = vld [vmem:[%s0 + $0x2e0] sm:$0xff]
  %v116 = vld [vmem:[%s0 + $0x2e8] sm:$0xff]
  %v117 = vld [vmem:[%s0 + $0x2f0] sm:$0xff]
  %v118 = vld [vmem:[%s0 + $0x2f8] sm:$0xff]
  %v119 = vld [vmem:[%s0 + $0x300] sm:$0xff]
  %v120 = vld [vmem:[%s0 + $0x308] sm:$0xff]
  %v121 = vld [vmem:[%s0 + $0x310] sm:$0xff]
  %v122 = vld [vmem:[%s0 + $0x318] sm:$0xff]
  %v123 = vld [vmem:[%s0 + $0x320] sm:$0xff]
  %v124 = vld [vmem:[%s0 + $0x328] sm:$0xff]
  %v125 = vld [vmem:[%s0 + $0x330] sm:$0xff]
  %v126 = vld [vmem:[%s0 + $0x338] sm:$0xff]
  %v127 = vld [vmem:[%s0 + $0x340] sm:$0xff]
  %v128 = vld [vmem:[%s0 + $0x348] sm:$0xff]
  %v129 = vld [vmem:[%s0 + $0x350] sm:$0xff]
  %v130 = vld [vmem:[%s0 + $0x358] sm:$0xff]
  %v131 = vld [vmem:[%s0 + $0x360] sm:$0xff]
  %v132 = vld [vmem:[%s0 + $0x368] sm:$0xff]
  %v133 = vld [vmem:[%s0 + $0x370] sm:$0xff]
  %v134 = vld [vmem:[%s0 + $0x378] sm:$0xff]
  %v135 = vld [vmem:[%s0 + $0x380] sm:$0xff]
  %v136 = vld [vmem:[%s0 + $0x388] sm:$0xff]
  %v137 = vld [vmem:[%s0 + $0x390] sm:$0xff]
  %v138 = vld [vmem:[%s0 + $0x398] sm:$0xff]
  %v139 = vld [vmem:[%s0 + $0x3a0] sm:$0xff]
  %v140 = vld [vmem:[%s0 + $0x3a8] sm:$0xff]
  %v141 = vld [vmem:[%s0 + $0x3b0] sm:$0xff]
  %v142 = vld [vmem:[%s0 + $0x3b8] sm:$0xff]
  %v143 = vld [vmem:[%s0 + $0x3c0] sm:$0xff]
  %v144 = vld [vmem:[%s0 + $0x3c8] sm:$0xff]
  %v145 = vld [vmem:[%s0 + $0x3d0] sm:$0xff]
  %v146 = vld [vmem:[%s0 + $0x3d8] sm:$0xff]
  %v147 = vld [vmem:[%s0 + $0x3e0] sm:$0xff]
  %v148 = vld [vmem:[%s0 + $0x3e8] sm:$0xff]
  %v149 = vld [vmem:[%s0 + $0x3f0] sm:$0xff]
  %v150 = vld [vmem:[%s0 + $0x3f8] sm:$0xff]
  %v151 = vld [vmem:[%s0 + $0x400] sm:$0xff]
  %v152 = vld [vmem:[%s0 + $0x408] sm:$0xff]
  %v153 = vld [vmem:[%s0 + $0x410] sm:$0xff]
  %v154 = vld [vmem:[%s0 + $0x418] sm:$0xff]
  %v155 = vld [vmem:[%s0 + $0x420] sm:$0xff]
  %v156 = vld [vmem:[%s0 + $0x428] sm:$0xff]
  %v157 = vld [vmem:[%s0 + $0x430] sm:$0xff]
  %v158 = vld [vmem:[%s0 + $0x438] sm:$0xff]
  %v159 = vld [vmem:[%s0 + $0x440] sm:$0xff]
  %v160 = vld [vmem:[%s0 + $0x448] sm:$0xff]
  %v161 = vld [vmem:[%s0 + $0x450] sm:$0xff]
  %v162 = vld [vmem:[%s0 + $0x458] sm:$0xff]
  %v163 = vld [vmem:[%s0 + $0x460] sm:$0xff]
  %v164 = vld [vmem:[%s0 + $0x468] sm:$0xff]
  %v165 = vld [vmem:[%s0 + $0x470] sm:$0xff]
  %v166 = vld [vmem:[%s0 + $0x478] sm:$0xff]
  %v167 = vld [vmem:[%s0 + $0x480] sm:$0xff]
  %v168 = vld [vmem:[%s0 + $0x488] sm:$0xff]
  %v169 = vld [vmem:[%s0 + $0x490] sm:$0xff]
  %v170 = vld [vmem:[%s0 + $0x498] sm:$0xff]
  %v171 = vld [vmem:[%s0 + $0x4a0] sm:$0xff]
  %v172 = vld [vmem:[%s0 + $0x4a8] sm:$0xff]
  %v173 = vld [vmem:[%s0 + $0x4b0] sm:$0xff]
  %v174 = vld [vmem:[%s0 + $0x4b8] sm:$0xff]
  %v175 = vld [vmem:[%s0 + $0x4c0] sm:$0xff]
  %v176 = vld [vmem:[%s0 + $0x4c8] sm:$0xff]
  %v177 = vld [vmem:[%s0 + $0x4d0] sm:$0xff]
  %v178 = vld [vmem:[%s0 + $0x4d8] sm:$0xff]
  %v179 = vld [vmem:[%s0 + $0x4e0] sm:$0xff]
  %v180 = vld [vmem:[%s0 + $0x4e8] sm:$0xff]
  %v181 = vld [vmem:[%s0 + $0x4f0] sm:$0xff]
  %v182 = vld [vmem:[%s0 + $0x4f8] sm:$0xff]
  %v183 = vld [vmem:[%s0 + $0x500] sm:$0xff]
  %v184 = vld [vmem:[%s0 + $0x508] sm:$0xff]
  %v185 = vld [vmem:[%s0 + $0x510] sm:$0xff]
  %v186 = vld [vmem:[%s0 + $0x518] sm:$0xff]
  %v187 = vld [vmem:[%s0 + $0x520] sm:$0xff]
  %v188 = vld [vmem:[%s0 + $0x528] sm:$0xff]
  %v189 = vld [vmem:[%s0 + $0x530] sm:$0xff]
  %v190 = vld [vmem:[%s0 + $0x538] sm:$0xff]
  %v191 = vld [vmem:[%s0 + $0x540] sm:$0xff]
  %v192 = vld [vmem:[%s0 + $0x548] sm:$0xff]
  %v193 = vld [vmem:[%s0 + $0x550] sm:$0xff]
  %v194 = vld [vmem:[%s0 + $0x558] sm:$0xff]
  %v195 = vld [vmem:[%s0 + $0x560] sm:$0xff]
  %v196 = vld [vmem:[%s0 + $0x568] sm:$0xff]
  %v197 = vld [vmem:[%s0 + $0x570] sm:$0xff]
  %v198 = vld [vmem:[%s0 + $0x578] sm:$0xff]
  %v199 = vld [vmem:[%s0 + $0x580] sm:$0xff]
  %v200 = vld [vmem:[%s0 + $0x588] sm:$0xff]
  %v201 = vld [vmem:[%s0 + $0x590] sm:$0xff]
  %v202 = vld [vmem:[%s0 + $0x598] sm:$0xff]
  %v203 = vld [vmem:[%s0 + $0x5a0] sm:$0xff]
  %v204 = vld [vmem:[%s0 + $0x5a8] sm:$0xff]
  %v205 = vld [vmem:[%s0 + $0x5b0] sm:$0xff]
  %v206 = vld [vmem:[%s0 + $0x5b8] sm:$0xff]
  %v207 = vld [vmem:[%s0 + $0x5c0] sm:$0xff]
  %v208 = vld [vmem:[%s0 + $0x5c8] sm:$0xff]
  %v209 = vld [vmem:[%s0 + $0x5d0] sm:$0xff]
  %v210 = vld [vmem:[%s0 + $0x5d8] sm:$0xff]
  %v211 = vld [vmem:[%s0 + $0x5e0] sm:$0xff]
  %v212 = vld [vmem:[%s0 + $0x5e8] sm:$0xff]
  %v213 = vld [vmem:[%s0 + $0x5f0] sm:$0xff]
  %v214 = vld [vmem:[%s0 + $0x5f8] sm:$0xff]
  %v215 = vld [vmem:[%s0 + $0x600] sm:$0xff]
  %v216 = vld [vmem:[%s0 + $0x608] sm:$0xff]
  %v217 = vld [vmem:[%s0 + $0x610] sm:$0xff]
  %v218 = vld [vmem:[%s0 + $0x618] sm:$0xff]
  %v219 = vld [vmem:[%s0 + $0x620] sm:$0xff]
  %v220 = vld [vmem:[%s0 + $0x628] sm:$0xff]
  %v221 = vld [vmem:[%s0 + $0x630] sm:$0xff]
  %v222 = vld [vmem:[%s0 + $0x638] sm:$0xff]
  %v223 = vld [vmem:[%s0 + $0x640] sm:$0xff]
  %v224 = vld [vmem:[%s0 + $0x648] sm:$0xff]
  %v225 = vld [vmem:[%s0 + $0x650] sm:$0xff]
  %v226 = vld [vmem:[%s0 + $0x658] sm:$0xff]
  %v227 = vld [vmem:[%s0 + $0x660] sm:$0xff]
  %v228 = vld [vmem:[%s0 + $0x668] sm:$0xff]
  %v229 = vld [vmem:[%s0 + $0x670] sm:$0xff]
  %v230 = vld [vmem:[%s0 + $0x678] sm:$0xff]
  %v231 = vld [vmem:[%s0 + $0x680] sm:$0xff]
  %v232 = vld [vmem:[%s0 + $0x688] sm:$0xff]
  %v233 = vld [vmem:[%s0 + $0x690] sm:$0xff]
  %v234 = vld [vmem:[%s0 + $0x698] sm:$0xff]
  %v235 = vld [vmem:[%s0 + $0x6a0] sm:$0xff]
  %v236 = vld [vmem:[%s0 + $0x6a8] sm:$0xff]
  %v237 = vld [vmem:[%s0 + $0x6b0] sm:$0xff]
  %v238 = vld [vmem:[%s0 + $0x6b8] sm:$0xff]
  %v239 = vld [vmem:[%s0 + $0x6c0] sm:$0xff]
  %v240 = vld [vmem:[%s0 + $0x6c8] sm:$0xff]
  %v241 = vld [vmem:[%s0 + $0x6d0] sm:$0xff]
  %v242 = vld [vmem:[%s0 + $0x6d8] sm:$0xff]
  %v243 = vld [vmem:[%s0 + $0x6e0] sm:$0xff]
  %v244 = vld [vmem:[%s0 + $0x6e8] sm:$0xff]
  %v245 = vld [vmem:[%s0 + $0x6f0] sm:$0xff]
  %v246 = vld [vmem:[%s0 + $0x6f8] sm:$0xff]
  %v247 = vld [vmem:[%s0 + $0x700] sm:$0xff]
  %v248 = vld [vmem:[%s0 + $0x708] sm:$0xff]
  %v249 = vld [vmem:[%s0 + $0x710] sm:$0xff]
  %v250 = vld [vmem:[%s0 + $0x718] sm:$0xff]
  %v251 = vld [vmem:[%s0 + $0x720] sm:$0xff]
  %v252 = vld [vmem:[%s0 + $0x728] sm:$0xff]
  %v253 = vld [vmem:[%s0 + $0x730] sm:$0xff]
  %v254 = vld [vmem:[%s0 + $0x738] sm:$0xff]
  %v255 = vld [vmem:[%s0 + $0x740] sm:$0xff]
  %v256 = vld [vmem:[%s0 + $0x748] sm:$0xff]
  %v257 = vld [vmem:[%s0 + $0x750] sm:$0xff]
  %v258 = vld [vmem:[%s0 + $0x758] sm:$0xff]
  %v259 = vld [vmem:[%s0 + $0x760] sm:$0xff]
  %v260 = vld [vmem:[%s0 + $0x768] sm:$0xff]
  %v261 = vld [vmem:[%s0 + $0x770] sm:$0xff]
  %v262 = vld [vmem:[%s0 + $0x778] sm:$0xff]
  %v263 = vld [vmem:[%s0 + $0x780] sm:$0xff]
  %v264 = vld [vmem:[%s0 + $0x788] sm:$0xff]
  %v265 = vld [vmem:[%s0 + $0x790] sm:$0xff]
  %v266 = vld [vmem:[%s0 + $0x798] sm:$0xff]
  %v267 = vld [vmem:[%s0 + $0x7a0] sm:$0xff]
  %v268 = vld [vmem:[%s0 + $0x7a8] sm:$0xff]
  %v269 = vld [vmem:[%s0 + $0x7b0] sm:$0xff]
  %v270 = vld [vmem:[%s0 + $0x7b8] sm:$0xff]
  %v271 = vld [vmem:[%s0 + $0x7c0] sm:$0xff]
  %v272 = vld [vmem:[%s0 + $0x7c8] sm:$0xff]
  %v273 = vld [vmem:[%s0 + $0x7d0] sm:$0xff]
  %v274 = vld [vmem:[%s0 + $0x7d8] sm:$0xff]
  %v275 = vld [vmem:[%s0 + $0x7e0] sm:$0xff]
  %v276 = vld [vmem:[%s0 + $0x7e8] sm:$0xff]
  %v277 = vld [vmem:[%s0 + $0x7f0] sm:$0xff]
  %v278 = vld [vmem:[%s0 + $0x7f8] sm:$0xff]
  %v279 = vld [vmem:[%s0 + $0x800] sm:$0xff]
  %v280 = vld [vmem:[%s0 + $0x808] sm:$0xff]
  %v281 = vld [vmem:[%s0 + $0x810] sm:$0xff]
  %v282 = vld [vmem:[%s0 + $0x818] sm:$0xff]
  %v283 = vld [vmem:[%s0 + $0x820] sm:$0xff]
  %v284 = vld [vmem:[%s0 + $0x828] sm:$0xff]
  %v285 = vld [vmem:[%s0 + $0x830] sm:$0xff]
  %v286 = vld [vmem:[%s0 + $0x838] sm:$0xff]
  %v287 = vld [vmem:[%s0 + $0x840] sm:$0xff]
  %v288 = vld [vmem:[%s0 + $0x848] sm:$0xff]
  %v289 = vld [vmem:[%s0 + $0x850] sm:$0xff]
  %v290 = vld [vmem:[%s0 + $0x858] sm:$0xff]
  %v291 = vld [vmem:[%s0 + $0x860] sm:$0xff]
  %v292 = vld [vmem:[%s0 + $0x868] sm:$0xff]
  %v293 = vld [vmem:[%s0 + $0x870] sm:$0xff]
  %v294 = vld [vmem:[%s0 + $0x878] sm:$0xff]
  %v295 = vld [vmem:[%s0 + $0x880] sm:$0xff]
  %v296 = vld [vmem:[%s0 + $0x888] sm:$0xff]
  %v297 = vld [vmem:[%s0 + $0x890] sm:$0xff]
  %v298 = vld [vmem:[%s0 + $0x898] sm:$0xff]
  %v299 = vld [vmem:[%s0 + $0x8a0] sm:$0xff]
  %v300 = vld [vmem:[%s0 + $0x8a8] sm:$0xff]
  %v301 = vld [vmem:[%s0 + $0x8b0] sm:$0xff]
  %v302 = vld [vmem:[%s0 + $0x8b8] sm:$0xff]
  %v303 = vld [vmem:[%s0 + $0x8c0] sm:$0xff]
  %v304 = vld [vmem:[%s0 + $0x8c8] sm:$0xff]
  %v305 = vld [vmem:[%s0 + $0x8d0] sm:$0xff]
  %v306 = vld [vmem:[%s0 + $0x8d8] sm:$0xff]
  %v307 = vld [vmem:[%s0 + $0x8e0] sm:$0xff]
  %v308 = vld [vmem:[%s0 + $0x8e8] sm:$0xff]
  %v309 = vld [vmem:[%s0 + $0x8f0] sm:$0xff]
  %v310 = vld [vmem:[%s0 + $0x8f8] sm:$0xff]
  %v311 = vld [vmem:[%s0 + $0x900] sm:$0xff]
  %v312 = vld [vmem:[%s0 + $0x908] sm:$0xff]
  %v313 = vld [vmem:[%s0 + $0x910] sm:$0xff]
  %v314 = vld [vmem:[%s0 + $0x918] sm:$0xff]
  %v315 = vld [vmem:[%s0 + $0x920] sm:$0xff]
  %v316 = vld [vmem:[%s0 + $0x928] sm:$0xff]
  %v317 = vld [vmem:[%s0 + $0x930] sm:$0xff]
  %v318 = vld [vmem:[%s0 + $0x938] sm:$0xff]
  %v319 = vld [vmem:[%s0 + $0x940] sm:$0xff]
  %v320 = vld [vmem:[%s0 + $0x948] sm:$0xff]
  %v321 = vld [vmem:[%s0 + $0x950] sm:$0xff]
  %v322 = vld [vmem:[%s0 + $0x958] sm:$0xff]
  %v323 = vld [vmem:[%s0 + $0x960] sm:$0xff]
  %v324 = vld [vmem:[%s0 + $0x968] sm:$0xff]
  %v325 = vld [vmem:[%s0 + $0x970] sm:$0xff]
  %v326 = vld [vmem:[%s0 + $0x978] sm:$0xff]
  %v327 = vld [vmem:[%s0 + $0x980] sm:$0xff]
  %v328 = vld [vmem:[%s0 + $0x988] sm:$0xff]
  %v329 = vld [vmem:[%s0 + $0x990] sm:$0xff]
  %v330 = vld [vmem:[%s0 + $0x998] sm:$0xff]
  %v331 = vld [vmem:[%s0 + $0x9a0] sm:$0xff]
  %v332 = vld [vmem:[%s0 + $0x9a8] sm:$0xff]
  %v333 = vld [vmem:[%s0 + $0x9b0] sm:$0xff]
  %v334 = vld [vmem:[%s0 + $0x9b8] sm:$0xff]
  %v335 = vld [vmem:[%s0 + $0x9c0] sm:$0xff]
  %v336 = vld [vmem:[%s0 + $0x9c8] sm:$0xff]
  %v337 = vld [vmem:[%s0 + $0x9d0] sm:$0xff]
  %v338 = vld [vmem:[%s0 + $0x9d8] sm:$0xff]
  %v339 = vld [vmem:[%s0 + $0x9e0] sm:$0xff]
  %v340 = vld [vmem:[%s0 + $0x9e8] sm:$0xff]
  %v341 = vld [vmem:[%s0 + $0x9f0] sm:$0xff]
  %v342 = vld [vmem:[%s0 + $0x9f8] sm:$0xff]
  %v343 = vld [vmem:[%s0 + $0xa00] sm:$0xff]
  %v344 = vld [vmem:[%s0 + $0xa08] sm:$0xff]
  %v345 = vld [vmem:[%s0 + $0xa10] sm:$0xff]
  %v346 = vld [vmem:[%s0 + $0xa18] sm:$0xff]
  %v347 = vld [vmem:[%s0 + $0xa20] sm:$0xff]
  %v348 = vld [vmem:[%s0 + $0xa28] sm:$0xff]
  %v349 = vld [vmem:[%s0 + $0xa30] sm:$0xff]
  %v350 = vld [vmem:[%s0 + $0xa38] sm:$0xff]
  %v351 = vld [vmem:[%s0 + $0xa40] sm:$0xff]
  %v352 = vld [vmem:[%s0 + $0xa48] sm:$0xff]
  %v353 = vld [vmem:[%s0 + $0xa50] sm:$0xff]
  %v354 = vld [vmem:[%s0 + $0xa58] sm:$0xff]
  %v355 = vld [vmem:[%s0 + $0xa60] sm:$0xff]
  %v356 = vld [vmem:[%s0 + $0xa68] sm:$0xff]
  %v357 = vld [vmem:[%s0 + $0xa70] sm:$0xff]
  %v358 = vld [vmem:[%s0 + $0xa78] sm:$0xff]
  %v359 = vld [vmem:[%s0 + $0xa80] sm:$0xff]
  %v360 = vld [vmem:[%s0 + $0xa88] sm:$0xff]
  %v361 = vld [vmem:[%s0 + $0xa90] sm:$0xff]
  %v362 = vld [vmem:[%s0 + $0xa98] sm:$0xff]
  %v363 = vld [vmem:[%s0 + $0xaa0] sm:$0xff]
  %v364 = vld [vmem:[%s0 + $0xaa8] sm:$0xff]
  %v365 = vld [vmem:[%s0 + $0xab0] sm:$0xff]
  %v366 = vld [vmem:[%s0 + $0xab8] sm:$0xff]
  %v367 = vld [vmem:[%s0 + $0xac0] sm:$0xff]
  %v368 = vld [vmem:[%s0 + $0xac8] sm:$0xff]
  %v369 = vld [vmem:[%s0 + $0xad0] sm:$0xff]
  %v370 = vld [vmem:[%s0 + $0xad8] sm:$0xff]
  %v371 = vld [vmem:[%s0 + $0xae0] sm:$0xff]
  %v372 = vld [vmem:[%s0 + $0xae8] sm:$0xff]
  %v373 = vld [vmem:[%s0 + $0xaf0] sm:$0xff]
  %v374 = vld [vmem:[%s0 + $0xaf8] sm:$0xff]
  %v375 = vld [vmem:[%s0 + $0xb00] sm:$0xff]
  %v376 = vld [vmem:[%s0 + $0xb08] sm:$0xff]
  %v377 = vld [vmem:[%s0 + $0xb10] sm:$0xff]
  %v378 = vld [vmem:[%s0 + $0xb18] sm:$0xff]
  %v379 = vld [vmem:[%s0 + $0xb20] sm:$0xff]
  %v380 = vld [vmem:[%s0 + $0xb28] sm:$0xff]
  %v381 = vld [vmem:[%s0 + $0xb30] sm:$0xff]
  %v382 = vld [vmem:[%s0 + $0xb38] sm:$0xff]
  %v383 = vld [vmem:[%s0 + $0xb40] sm:$0xff]
  %v384 = vld [vmem:[%s0 + $0xb48] sm:$0xff]
  %v385 = vld [vmem:[%s0 + $0xb50] sm:$0xff]
  %v386 = vld [vmem:[%s0 + $0xb58] sm:$0xff]
  %v387 = vld [vmem:[%s0 + $0xb60] sm:$0xff]
  %v388 = vld [vmem:[%s0 + $0xb68] sm:$0xff]
  %v389 = vld [vmem:[%s0 + $0xb70] sm:$0xff]
  %v390 = vld [vmem:[%s0 + $0xb78] sm:$0xff]
  %v391 = vld [vmem:[%s0 + $0xb80] sm:$0xff]
  %v392 = vld [vmem:[%s0 + $0xb88] sm:$0xff]
  %v393 = vld [vmem:[%s0 + $0xb90] sm:$0xff]
  %v394 = vld [vmem:[%s0 + $0xb98] sm:$0xff]
  %v395 = vld [vmem:[%s0 + $0xba0] sm:$0xff]
  %v396 = vld [vmem:[%s0 + $0xba8] sm:$0xff]
  %v397 = vld [vmem:[%s0 + $0xbb0] sm:$0xff]
  %v398 = vld [vmem:[%s0 + $0xbb8] sm:$0xff]
  %v399 = vld [vmem:[%s0 + $0xbc0] sm:$0xff]
  %v400 = vld [vmem:[%s0 + $0xbc8] sm:$0xff]
  %v401 = vld [vmem:[%s0 + $0xbd0] sm:$0xff]
  %v402 = vld [vmem:[%s0 + $0xbd8] sm:$0xff]
  %v403 = vld [vmem:[%s0 + $0xbe0] sm:$0xff]
  %v404 = vld [vmem:[%s0 + $0xbe8] sm:$0xff]
  %v405 = vld [vmem:[%s0 + $0xbf0] sm:$0xff]
  %v406 = vld [vmem:[%s0 + $0xbf8] sm:$0xff]
  %v407 = vld [vmem:[%s0 + $0xc00] sm:$0xff]
  %v408 = vld [vmem:[%s0 + $0xc08] sm:$0xff]
  %v409 = vld [vmem:[%s0 + $0xc10] sm:$0xff]
  %v410 = vld [vmem:[%s0 + $0xc18] sm:$0xff]
  %v411 = vld [vmem:[%s0 + $0xc20] sm:$0xff]
  %v412 = vld [vmem:[%s0 + $0xc28] sm:$0xff]
  %v413 = vld [vmem:[%s0 + $0xc30] sm:$0xff]
  %v414 = vld [vmem:[%s0 + $0xc38] sm:$0xff]
  %v415 = vld [vmem:[%s0 + $0xc40] sm:$0xff]
  %v416 = vld [vmem:[%s0 + $0xc48] sm:$0xff]
  %v417 = vld [vmem:[%s0 + $0xc50] sm:$0xff]
  %v418 = vld [vmem:[%s0 + $0xc58] sm:$0xff]
  %v419 = vld [vmem:[%s0 + $0xc60] sm:$0xff]
  %v420 = vld [vmem:[%s0 + $0xc68] sm:$0xff]
  %v421 = vld [vmem:[%s0 + $0xc70] sm:$0xff]
  %v422 = vld [vmem:[%s0 + $0xc78] sm:$0xff]
  %v423 = vld [vmem:[%s0 + $0xc80] sm:$0xff]
  %v424 = vld [vmem:[%s0 + $0xc88] sm:$0xff]
  %v425 = vld [vmem:[%s0 + $0xc90] sm:$0xff]
  %v426 = vld [vmem:[%s0 + $0xc98] sm:$0xff]
  %v427 = vld [vmem:[%s0 + $0xca0] sm:$0xff]
  %v428 = vld [vmem:[%s0 + $0xca8] sm:$0xff]
  %v429 = vld [vmem:[%s0 + $0xcb0] sm:$0xff]
  %v430 = vld [vmem:[%s0 + $0xcb8] sm:$0xff]
  %v431 = vld [vmem:[%s0 + $0xcc0] sm:$0xff]
  %v432 = vld [vmem:[%s0 + $0xcc8] sm:$0xff]
  %v433 = vld [vmem:[%s0 + $0xcd0] sm:$0xff]
  %v434 = vld [vmem:[%s0 + $0xcd8] sm:$0xff]
  %v435 = vld [vmem:[%s0 + $0xce0] sm:$0xff]
  %v436 = vld [vmem:[%s0 + $0xce8] sm:$0xff]
  %v437 = vld [vmem:[%s0 + $0xcf0] sm:$0xff]
  %v438 = vld [vmem:[%s0 + $0xcf8] sm:$0xff]
  %v439 = vld [vmem:[%s0 + $0xd00] sm:$0xff]
  %v440 = vld [vmem:[%s0 + $0xd08] sm:$0xff]
  %v441 = vld [vmem:[%s0 + $0xd10] sm:$0xff]
  %v442 = vld [vmem:[%s0 + $0xd18] sm:$0xff]
  %v443 = vld [vmem:[%s0 + $0xd20] sm:$0xff]
  %v444 = vld [vmem:[%s0 + $0xd28] sm:$0xff]
  %v445 = vld [vmem:[%s0 + $0xd30] sm:$0xff]
  %v446 = vld [vmem:[%s0 + $0xd38] sm:$0xff]
  %v447 = vld [vmem:[%s0 + $0xd40] sm:$0xff]
  %v448 = vld [vmem:[%s0 + $0xd48] sm:$0xff]
  %v449 = vld [vmem:[%s0 + $0xd50] sm:$0xff]
  %v450 = vld [vmem:[%s0 + $0xd58] sm:$0xff]
  %v451 = vld [vmem:[%s0 + $0xd60] sm:$0xff]
  %v452 = vld [vmem:[%s0 + $0xd68] sm:$0xff]
  %v453 = vld [vmem:[%s0 + $0xd70] sm:$0xff]
  %v454 = vld [vmem:[%s0 + $0xd78] sm:$0xff]
  %v455 = vld [vmem:[%s0 + $0xd80] sm:$0xff]
  %v456 = vld [vmem:[%s0 + $0xd88] sm:$0xff]
  %v457 = vld [vmem:[%s0 + $0xd90] sm:$0xff]
  %v458 = vld [vmem:[%s0 + $0xd98] sm:$0xff]
  %v459 = vld [vmem:[%s0 + $0xda0] sm:$0xff]
  %v460 = vld [vmem:[%s0 + $0xda8] sm:$0xff]
  %v461 = vld [vmem:[%s0 + $0xdb0] sm:$0xff]
  %v462 = vld [vmem:[%s0 + $0xdb8] sm:$0xff]
  %v463 = vld [vmem:[%s0 + $0xdc0] sm:$0xff]
  %v464 = vld [vmem:[%s0 + $0xdc8] sm:$0xff]
  %v465 = vld [vmem:[%s0 + $0xdd0] sm:$0xff]
  %v466 = vld [vmem:[%s0 + $0xdd8] sm:$0xff]
  %v467 = vld [vmem:[%s0 + $0xde0] sm:$0xff]
  %v468 = vld [vmem:[%s0 + $0xde8] sm:$0xff]
  %v469 = vld [vmem:[%s0 + $0xdf0] sm:$0xff]
  %v470 = vld [vmem:[%s0 + $0xdf8] sm:$0xff]
  %v471 = vld [vmem:[%s0 + $0xe00] sm:$0xff]
  %v472 = vld [vmem:[%s0 + $0xe08] sm:$0xff]
  %v473 = vld [vmem:[%s0 + $0xe10] sm:$0xff]
  %v474 = vld [vmem:[%s0 + $0xe18] sm:$0xff]
  %v475 = vld [vmem:[%s0 + $0xe20] sm:$0xff]
  %v476 = vld [vmem:[%s0 + $0xe28] sm:$0xff]
  %v477 = vld [vmem:[%s0 + $0xe30] sm:$0xff]
  %v478 = vld [vmem:[%s0 + $0xe38] sm:$0xff]
  %v479 = vld [vmem:[%s0 + $0xe40] sm:$0xff]
  %v480 = vld [vmem:[%s0 + $0xe48] sm:$0xff]
  %v481 = vld [vmem:[%s0 + $0xe50] sm:$0xff]
  %v482 = vld [vmem:[%s0 + $0xe58] sm:$0xff]
  %v483 = vld [vmem:[%s0 + $0xe60] sm:$0xff]
  %v484 = vld [vmem:[%s0 + $0xe68] sm:$0xff]
  %v485 = vld [vmem:[%s0 + $0xe70] sm:$0xff]
  %v486 = vld [vmem:[%s0 + $0xe78] sm:$0xff]
  %v487 = vld [vmem:[%s0 + $0xe80] sm:$0xff]
  %v488 = vld [vmem:[%s0 + $0xe88] sm:$0xff]
  %v489 = vld [vmem:[%s0 + $0xe90] sm:$0xff]
  %v490 = vld [vmem:[%s0 + $0xe98] sm:$0xff]
  %v491 = vld [vmem:[%s0 + $0xea0] sm:$0xff]
  %v492 = vld [vmem:[%s0 + $0xea8] sm:$0xff]
  %v493 = vld [vmem:[%s0 + $0xeb0] sm:$0xff]
  %v494 = vld [vmem:[%s0 + $0xeb8] sm:$0xff]
  %v495 = vld [vmem:[%s0 + $0xec0] sm:$0xff]
  %v496 = vld [vmem:[%s0 + $0xec8] sm:$0xff]
  %v497 = vld [vmem:[%s0 + $0xed0] sm:$0xff]
  %v498 = vld [vmem:[%s0 + $0xed8] sm:$0xff]
  %v499 = vld [vmem:[%s0 + $0xee0] sm:$0xff]
  %v500 = vld [vmem:[%s0 + $0xee8] sm:$0xff]
  %v501 = vld [vmem:[%s0 + $0xef0] sm:$0xff]
  %v502 = vld [vmem:[%s0 + $0xef8] sm:$0xff]
  %v503 = vld [vmem:[%s0 + $0xf00] sm:$0xff]
  %v504 = vld [vmem:[%s0 + $0xf08] sm:$0xff]
  %v505 = vld [vmem:[%s0 + $0xf10] sm:$0xff]
  %v506 = vld [vmem:[%s0 + $0xf18] sm:$0xff]
  %v507 = vld [vmem:[%s0 + $0xf20] sm:$0xff]
  %v508 = vld [vmem:[%s0 + $0xf28] sm:$0xff]
  %v509 = vld [vmem:[%s0 + $0xf30] sm:$0xff]
  %v510 = vld [vmem:[%s0 + $0xf38] sm:$0xff]
  %v511 = vld [vmem:[%s0 + $0xf40] sm:$0xff]
  %v512 = vld [vmem:[%s0 + $0xf48] sm:$0xff]
  %v513 = vld [vmem:[%s0 + $0xf50] sm:$0xff]
  %v514 = vld [vmem:[%s0 + $0xf58] sm:$0xff]
  %v515 = vld [vmem:[%s0 + $0xf60] sm:$0xff]
  %v516 = vld [vmem:[%s0 + $0xf68] sm:$0xff]
  %v517 = vld [vmem:[%s0 + $0xf70] sm:$0xff]
  %v518 = vld [vmem:[%s0 + $0xf78] sm:$0xff]
  %v519 = vld [vmem:[%s0 + $0xf80] sm:$0xff]
  %v520 = vld [vmem:[%s0 + $0xf88] sm:$0xff]
  %v521 = vld [vmem:[%s0 + $0xf90] sm:$0xff]
  %v522 = vld [vmem:[%s0 + $0xf98] sm:$0xff]
  %v523 = vld [vmem:[%s0 + $0xfa0] sm:$0xff]
  %v524 = vld [vmem:[%s0 + $0xfa8] sm:$0xff]
  %v525 = vld [vmem:[%s0 + $0xfb0] sm:$0xff]
  %v526 = vld [vmem:[%s0 + $0xfb8] sm:$0xff]
  %v527 = vld [vmem:[%s0 + $0xfc0] sm:$0xff]
  %v528 = vld [vmem:[%s0 + $0xfc8] sm:$0xff]
  %v529 = vld [vmem:[%s0 + $0xfd0] sm:$0xff]
  %v530 = vld [vmem:[%s0 + $0xfd8] sm:$0xff]
  %v531 = vld [vmem:[%s0 + $0xfe0] sm:$0xff]
  %v532 = vld [vmem:[%s0 + $0xfe8] sm:$0xff]
  %v533 = vld [vmem:[%s0 + $0xff0] sm:$0xff]
  %v534 = vld [vmem:[%s0 + $0xff8] sm:$0xff]
  %v535 = vld [vmem:[%s0 + $0x1000] sm:$0xff]
  %v536 = vld [vmem:[%s0 + $0x1008] sm:$0xff]
  %v537 = vld [vmem:[%s0 + $0x1010] sm:$0xff]
  %v538 = vld [vmem:[%s0 + $0x1018] sm:$0xff]
  %v539 = vld [vmem:[%s0 + $0x1020] sm:$0xff]
  %v540 = vld [vmem:[%s0 + $0x1028] sm:$0xff]
  %v541 = vld [vmem:[%s0 + $0x1030] sm:$0xff]
  %v542 = vld [vmem:[%s0 + $0x1038] sm:$0xff]
  %v543 = vld [vmem:[%s0 + $0x1040] sm:$0xff]
  %v544 = vld [vmem:[%s0 + $0x1048] sm:$0xff]
  %v545 = vld [vmem:[%s0 + $0x1050] sm:$0xff]
  %v546 = vld [vmem:[%s0 + $0x1058] sm:$0xff]
  %v547 = vld [vmem:[%s0 + $0x1060] sm:$0xff]
  %v548 = vld [vmem:[%s0 + $0x1068] sm:$0xff]
  %v549 = vld [vmem:[%s0 + $0x1070] sm:$0xff]
  %v550 = vld [vmem:[%s0 + $0x1078] sm:$0xff]
  %v551 = vld [vmem:[%s0 + $0x1080] sm:$0xff]
  %v552 = vld [vmem:[%s0 + $0x1088] sm:$0xff]
  %v553 = vld [vmem:[%s0 + $0x1090] sm:$0xff]
  %v554 = vld [vmem:[%s0 + $0x1098] sm:$0xff]
  %v555 = vld [vmem:[%s0 + $0x10a0] sm:$0xff]
  %v556 = vld [vmem:[%s0 + $0x10a8] sm:$0xff]
  %v557 = vld [vmem:[%s0 + $0x10b0] sm:$0xff]
  %v558 = vld [vmem:[%s0 + $0x10b8] sm:$0xff]
  %v559 = vld [vmem:[%s0 + $0x10c0] sm:$0xff]
  %v560 = vld [vmem:[%s0 + $0x10c8] sm:$0xff]
  %v561 = vld [vmem:[%s0 + $0x10d0] sm:$0xff]
  %v562 = vld [vmem:[%s0 + $0x10d8] sm:$0xff]
  %v563 = vld [vmem:[%s0 + $0x10e0] sm:$0xff]
  %v564 = vld [vmem:[%s0 + $0x10e8] sm:$0xff]
  %v565 = vld [vmem:[%s0 + $0x10f0] sm:$0xff]
  %v566 = vld [vmem:[%s0 + $0x10f8] sm:$0xff]
  %v567 = vld [vmem:[%s0 + $0x1100] sm:$0xff]
  %v568 = vld [vmem:[%s0 + $0x1108] sm:$0xff]
  %v569 = vld [vmem:[%s0 + $0x1110] sm:$0xff]
  %v570 = vld [vmem:[%s0 + $0x1118] sm:$0xff]
  %v571 = vld [vmem:[%s0 + $0x1120] sm:$0xff]
  %v572 = vld [vmem:[%s0 + $0x1128] sm:$0xff]
  %v573 = vld [vmem:[%s0 + $0x1130] sm:$0xff]
  %v574 = vld [vmem:[%s0 + $0x1138] sm:$0xff]
  %v575 = vld [vmem:[%s0 + $0x1140] sm:$0xff]
  %v576 = vld [vmem:[%s0 + $0x1148] sm:$0xff]
  %v577 = vld [vmem:[%s0 + $0x1150] sm:$0xff]
  %v578 = vld [vmem:[%s0 + $0x1158] sm:$0xff]
  %v579 = vld [vmem:[%s0 + $0x1160] sm:$0xff]
  %v580 = vld [vmem:[%s0 + $0x1168] sm:$0xff]
  %v581 = vld [vmem:[%s0 + $0x1170] sm:$0xff]
  %v582 = vld [vmem:[%s0 + $0x1178] sm:$0xff]
  %v583 = vld [vmem:[%s0 + $0x1180] sm:$0xff]
  %v584 = vld [vmem:[%s0 + $0x1188] sm:$0xff]
  %v585 = vld [vmem:[%s0 + $0x1190] sm:$0xff]
  %v586 = vld [vmem:[%s0 + $0x1198] sm:$0xff]
  %v587 = vld [vmem:[%s0 + $0x11a0] sm:$0xff]
  %v588 = vld [vmem:[%s0 + $0x11a8] sm:$0xff]
  %v589 = vld [vmem:[%s0 + $0x11b0] sm:$0xff]
  %v590 = vld [vmem:[%s0 + $0x11b8] sm:$0xff]
  %v591 = vld [vmem:[%s0 + $0x11c0] sm:$0xff]
  %v592 = vld [vmem:[%s0 + $0x11c8] sm:$0xff]
  %v593 = vld [vmem:[%s0 + $0x11d0] sm:$0xff]
  %v594 = vld [vmem:[%s0 + $0x11d8] sm:$0xff]
  %v595 = vld [vmem:[%s0 + $0x11e0] sm:$0xff]
  %v596 = vld [vmem:[%s0 + $0x11e8] sm:$0xff]
  %v597 = vld [vmem:[%s0 + $0x11f0] sm:$0xff]
  %v598 = vld [vmem:[%s0 + $0x11f8] sm:$0xff]
  %v599 = vld [vmem:[%s0 + $0x1200] sm:$0xff]
  %v600 = vld [vmem:[%s0 + $0x1208] sm:$0xff]
  %v601 = vld [vmem:[%s0 + $0x1210] sm:$0xff]
  %v602 = vld [vmem:[%s0 + $0x1218] sm:$0xff]
  %v603 = vld [vmem:[%s0 + $0x1220] sm:$0xff]
  %v604 = vld [vmem:[%s0 + $0x1228] sm:$0xff]
  %v605 = vld [vmem:[%s0 + $0x1230] sm:$0xff]
  %v606 = vld [vmem:[%s0 + $0x1238] sm:$0xff]
  %v607 = vld [vmem:[%s0 + $0x1240] sm:$0xff]
  %v608 = vld [vmem:[%s0 + $0x1248] sm:$0xff]
  %v609 = vld [vmem:[%s0 + $0x1250] sm:$0xff]
  %v610 = vld [vmem:[%s0 + $0x1258] sm:$0xff]
  %v611 = vld [vmem:[%s0 + $0x1260] sm:$0xff]
  %v612 = vld [vmem:[%s0 + $0x1268] sm:$0xff]
  %v613 = vld [vmem:[%s0 + $0x1270] sm:$0xff]
  %v614 = vld [vmem:[%s0 + $0x1278] sm:$0xff]
  %v615 = vld [vmem:[%s0 + $0x1280] sm:$0xff]
  %v616 = vld [vmem:[%s0 + $0x1288] sm:$0xff]
  %v617 = vld [vmem:[%s0 + $0x1290] sm:$0xff]
  %v618 = vld [vmem:[%s0 + $0x1298] sm:$0xff]
  %v619 = vld [vmem:[%s0 + $0x12a0] sm:$0xff]
  %v620 = vld [vmem:[%s0 + $0x12a8] sm:$0xff]
  %v621 = vld [vmem:[%s0 + $0x12b0] sm:$0xff]
  %v622 = vld [vmem:[%s0 + $0x12b8] sm:$0xff]
  %v623 = vld [vmem:[%s0 + $0x12c0] sm:$0xff]
  %v624 = vld [vmem:[%s0 + $0x12c8] sm:$0xff]
  %v625 = vld [vmem:[%s0 + $0x12d0] sm:$0xff]
  %v626 = vld [vmem:[%s0 + $0x12d8] sm:$0xff]
  %v627 = vld [vmem:[%s0 + $0x12e0] sm:$0xff]
  %v628 = vld [vmem:[%s0 + $0x12e8] sm:$0xff]
  %v629 = vld [vmem:[%s0 + $0x12f0] sm:$0xff]
  %v630 = vld [vmem:[%s0 + $0x12f8] sm:$0xff]
  %v631 = vld [vmem:[%s0 + $0x1300] sm:$0xff]
  %v632 = vld [vmem:[%s0 + $0x1308] sm:$0xff]
  %v633 = vld [vmem:[%s0 + $0x1310] sm:$0xff]
  %v634 = vld [vmem:[%s0 + $0x1318] sm:$0xff]
  %v635 = vld [vmem:[%s0 + $0x1320] sm:$0xff]
  %v636 = vld [vmem:[%s0 + $0x1328] sm:$0xff]
  %v637 = vld [vmem:[%s0 + $0x1330] sm:$0xff]
  %v638 = vld [vmem:[%s0 + $0x1338] sm:$0xff]
  %v639 = vld [vmem:[%s0 + $0x1340] sm:$0xff]
  %v640 = vld [vmem:[%s0 + $0x1348] sm:$0xff]
  %v641 = vld [vmem:[%s0 + $0x1350] sm:$0xff]
  %v642 = vld [vmem:[%s0 + $0x1358] sm:$0xff]
  %v643 = vld [vmem:[%s0 + $0x1360] sm:$0xff]
  %v644 = vld [vmem:[%s0 + $0x1368] sm:$0xff]
  %v645 = vld [vmem:[%s0 + $0x1370] sm:$0xff]
  %v646 = vld [vmem:[%s0 + $0x1378] sm:$0xff]
  %v647 = vld [vmem:[%s0 + $0x1380] sm:$0xff]
  %v648 = vld [vmem:[%s0 + $0x1388] sm:$0xff]
  %v649 = vld [vmem:[%s0 + $0x1390] sm:$0xff]
  %v650 = vld [vmem:[%s0 + $0x1398] sm:$0xff]
  %v651 = vld [vmem:[%s0 + $0x13a0] sm:$0xff]
  %v652 = vld [vmem:[%s0 + $0x13a8] sm:$0xff]
  %v653 = vld [vmem:[%s0 + $0x13b0] sm:$0xff]
  %v654 = vld [vmem:[%s0 + $0x13b8] sm:$0xff]
  %v655 = vld [vmem:[%s0 + $0x13c0] sm:$0xff]
  %v656 = vld [vmem:[%s0 + $0x13c8] sm:$0xff]
  %v657 = vld [vmem:[%s0 + $0x13d0] sm:$0xff]
  %v658 = vld [vmem:[%s0 + $0x13d8] sm:$0xff]
  %v659 = vld [vmem:[%s0 + $0x13e0] sm:$0xff]
  %v660 = vld [vmem:[%s0 + $0x13e8] sm:$0xff]
  %v661 = vld [vmem:[%s0 + $0x13f0] sm:$0xff]
  %v662 = vld [vmem:[%s0 + $0x13f8] sm:$0xff]
  %v663 = vld [vmem:[%s0 + $0x1400] sm:$0xff]
  %v664 = vld [vmem:[%s0 + $0x1408] sm:$0xff]
  %v665 = vld [vmem:[%s0 + $0x1410] sm:$0xff]
  %v666 = vld [vmem:[%s0 + $0x1418] sm:$0xff]
  %v667 = vld [vmem:[%s0 + $0x1420] sm:$0xff]
  %v668 = vld [vmem:[%s0 + $0x1428] sm:$0xff]
  %v669 = vld [vmem:[%s0 + $0x1430] sm:$0xff]
  %v670 = vld [vmem:[%s0 + $0x1438] sm:$0xff]
  %v671 = vld [vmem:[%s0 + $0x1440] sm:$0xff]
  %v672 = vld [vmem:[%s0 + $0x1448] sm:$0xff]
  %v673 = vld [vmem:[%s0 + $0x1450] sm:$0xff]
  %v674 = vld [vmem:[%s0 + $0x1458] sm:$0xff]
  %v675 = vld [vmem:[%s0 + $0x1460] sm:$0xff]
  %v676 = vld [vmem:[%s0 + $0x1468] sm:$0xff]
  %v677 = vld [vmem:[%s0 + $0x1470] sm:$0xff]
  %v678 = vld [vmem:[%s0 + $0x1478] sm:$0xff]
  %v679 = vld [vmem:[%s0 + $0x1480] sm:$0xff]
  %v680 = vld [vmem:[%s0 + $0x1488] sm:$0xff]
  %v681 = vld [vmem:[%s0 + $0x1490] sm:$0xff]
  %v682 = vld [vmem:[%s0 + $0x1498] sm:$0xff]
  %v683 = vld [vmem:[%s0 + $0x14a0] sm:$0xff]
  %v684 = vld [vmem:[%s0 + $0x14a8] sm:$0xff]
  %v685 = vld [vmem:[%s0 + $0x14b0] sm:$0xff]
  %v686 = vld [vmem:[%s0 + $0x14b8] sm:$0xff]
  %v687 = vld [vmem:[%s0 + $0x14c0] sm:$0xff]
  %v688 = vld [vmem:[%s0 + $0x14c8] sm:$0xff]
  %v689 = vld [vmem:[%s0 + $0x14d0] sm:$0xff]
  %v690 = vld [vmem:[%s0 + $0x14d8] sm:$0xff]
  %v691 = vld [vmem:[%s0 + $0x14e0] sm:$0xff]
  %v692 = vld [vmem:[%s0 + $0x14e8] sm:$0xff]
  %v693 = vld [vmem:[%s0 + $0x14f0] sm:$0xff]
  %v694 = vld [vmem:[%s0 + $0x14f8] sm:$0xff]
  %v695 = vld [vmem:[%s0 + $0x1500] sm:$0xff]
  %v696 = vld [vmem:[%s0 + $0x1508] sm:$0xff]
  %v697 = vld [vmem:[%s0 + $0x1510] sm:$0xff]
  %v698 = vld [vmem:[%s0 + $0x1518] sm:$0xff]
  %v699 = vld [vmem:[%s0 + $0x1520] sm:$0xff]
  %v700 = vld [vmem:[%s0 + $0x1528] sm:$0xff]
  %v701 = vld [vmem:[%s0 + $0x1530] sm:$0xff]
  %v702 = vld [vmem:[%s0 + $0x1538] sm:$0xff]
  %v703 = vld [vmem:[%s0 + $0x1540] sm:$0xff]
  %v704 = vld [vmem:[%s0 + $0x1548] sm:$0xff]
  %v705 = vld [vmem:[%s0 + $0x1550] sm:$0xff]
  %v706 = vld [vmem:[%s0 + $0x1558] sm:$0xff]
  %v707 = vld [vmem:[%s0 + $0x1560] sm:$0xff]
  %v708 = vld [vmem:[%s0 + $0x1568] sm:$0xff]
  %v709 = vld [vmem:[%s0 + $0x1570] sm:$0xff]
  %v710 = vld [vmem:[%s0 + $0x1578] sm:$0xff]
  %v711 = vld [vmem:[%s0 + $0x1580] sm:$0xff]
  %v712 = vld [vmem:[%s0 + $0x1588] sm:$0xff]
  %v713 = vld [vmem:[%s0 + $0x1590] sm:$0xff]
  %v714 = vld [vmem:[%s0 + $0x1598] sm:$0xff]
  %v715 = vld [vmem:[%s0 + $0x15a0] sm:$0xff]
  %v716 = vld [vmem:[%s0 + $0x15a8] sm:$0xff]
  %v717 = vld [vmem:[%s0 + $0x15b0] sm:$0xff]
  %v718 = vld [vmem:[%s0 + $0x15b8] sm:$0xff]
  %v719 = vld [vmem:[%s0 + $0x15c0] sm:$0xff]
  %v720 = vld [vmem:[%s0 + $0x15c8] sm:$0xff]
  %v721 = vld [vmem:[%s0 + $0x15d0] sm:$0xff]
  %v722 = vld [vmem:[%s0 + $0x15d8] sm:$0xff]
  %v723 = vld [vmem:[%s0 + $0x15e0] sm:$0xff]
  %v724 = vld [vmem:[%s0 + $0x15e8] sm:$0xff]
  %v725 = vld [vmem:[%s0 + $0x15f0] sm:$0xff]
  %v726 = vld [vmem:[%s0 + $0x15f8] sm:$0xff]
  %v727 = vld [vmem:[%s0 + $0x1600] sm:$0xff]
  %v728 = vld [vmem:[%s0 + $0x1608] sm:$0xff]
  %v729 = vld [vmem:[%s0 + $0x1610] sm:$0xff]
  %v730 = vld [vmem:[%s0 + $0x1618] sm:$0xff]
  %v731 = vld [vmem:[%s0 + $0x1620] sm:$0xff]
  %v732 = vld [vmem:[%s0 + $0x1628] sm:$0xff]
  %v733 = vld [vmem:[%s0 + $0x1630] sm:$0xff]
  %v734 = vld [vmem:[%s0 + $0x1638] sm:$0xff]
  %v735 = vld [vmem:[%s0 + $0x1640] sm:$0xff]
  %v736 = vld [vmem:[%s0 + $0x1648] sm:$0xff]
  %v737 = vld [vmem:[%s0 + $0x1650] sm:$0xff]
  %v738 = vld [vmem:[%s0 + $0x1658] sm:$0xff]
  %v739 = vld [vmem:[%s0 + $0x1660] sm:$0xff]
  %v740 = vld [vmem:[%s0 + $0x1668] sm:$0xff]
  %v741 = vld [vmem:[%s0 + $0x1670] sm:$0xff]
  %v742 = vld [vmem:[%s0 + $0x1678] sm:$0xff]
  %v743 = vld [vmem:[%s0 + $0x1680] sm:$0xff]
  %v744 = vld [vmem:[%s0 + $0x1688] sm:$0xff]
  %v745 = vld [vmem:[%s0 + $0x1690] sm:$0xff]
  %v746 = vld [vmem:[%s0 + $0x1698] sm:$0xff]
  %v747 = vld [vmem:[%s0 + $0x16a0] sm:$0xff]
  %v748 = vld [vmem:[%s0 + $0x16a8] sm:$0xff]
  %v749 = vld [vmem:[%s0 + $0x16b0] sm:$0xff]
  %v750 = vld [vmem:[%s0 + $0x16b8] sm:$0xff]
  %v751 = vld [vmem:[%s0 + $0x16c0] sm:$0xff]
  %v752 = vld [vmem:[%s0 + $0x16c8] sm:$0xff]
  %v753 = vld [vmem:[%s0 + $0x16d0] sm:$0xff]
  %v754 = vld [vmem:[%s0 + $0x16d8] sm:$0xff]
  %v755 = vld [vmem:[%s0 + $0x16e0] sm:$0xff]
  %v756 = vld [vmem:[%s0 + $0x16e8] sm:$0xff]
  %v757 = vld [vmem:[%s0 + $0x16f0] sm:$0xff]
  %v758 = vld [vmem:[%s0 + $0x16f8] sm:$0xff]
  %v759 = vld [vmem:[%s0 + $0x1700] sm:$0xff]
  %v760 = vld [vmem:[%s0 + $0x1708] sm:$0xff]
  %v761 = vld [vmem:[%s0 + $0x1710] sm:$0xff]
  %v762 = vld [vmem:[%s0 + $0x1718] sm:$0xff]
  %v763 = vld [vmem:[%s0 + $0x1720] sm:$0xff]
  %v764 = vld [vmem:[%s0 + $0x1728] sm:$0xff]
  %v765 = vld [vmem:[%s0 + $0x1730] sm:$0xff]
  %v766 = vld [vmem:[%s0 + $0x1738] sm:$0xff]
  %v767 = vld [vmem:[%s0 + $0x1740] sm:$0xff]
  %v768 = vld [vmem:[%s0 + $0x1748] sm:$0xff]
  %v769 = vld [vmem:[%s0 + $0x1750] sm:$0xff]
  %v770 = vld [vmem:[%s0 + $0x1758] sm:$0xff]
  %v771 = vld [vmem:[%s0 + $0x1760] sm:$0xff]
  %v772 = vld [vmem:[%s0 + $0x1768] sm:$0xff]
  %v773 = vld [vmem:[%s0 + $0x1770] sm:$0xff]
  %v774 = vld [vmem:[%s0 + $0x1778] sm:$0xff]
  %v775 = vld [vmem:[%s0 + $0x1780] sm:$0xff]
  %v776 = vld [vmem:[%s0 + $0x1788] sm:$0xff]
  %v777 = vld [vmem:[%s0 + $0x1790] sm:$0xff]
  %v778 = vld [vmem:[%s0 + $0x1798] sm:$0xff]
  %v779 = vld [vmem:[%s0 + $0x17a0] sm:$0xff]
  %v780 = vld [vmem:[%s0 + $0x17a8] sm:$0xff]
  %v781 = vld [vmem:[%s0 + $0x17b0] sm:$0xff]
  %v782 = vld [vmem:[%s0 + $0x17b8] sm:$0xff]
  %v783 = vld [vmem:[%s0 + $0x17c0] sm:$0xff]
  %v784 = vld [vmem:[%s0 + $0x17c8] sm:$0xff]
  %v785 = vld [vmem:[%s0 + $0x17d0] sm:$0xff]
  %v786 = vld [vmem:[%s0 + $0x17d8] sm:$0xff]
  %v787 = vld [vmem:[%s0 + $0x17e0] sm:$0xff]
  %v788 = vld [vmem:[%s0 + $0x17e8] sm:$0xff]
  %v789 = vld [vmem:[%s0 + $0x17f0] sm:$0xff]
  %v790 = vld [vmem:[%s0 + $0x17f8] sm:$0xff]
  %v791 = vld [vmem:[%s0 + $0x1800] sm:$0xff]
  %v792 = vld [vmem:[%s0 + $0x1808] sm:$0xff]
  %v793 = vld [vmem:[%s0 + $0x1810] sm:$0xff]
  %v794 = vld [vmem:[%s0 + $0x1818] sm:$0xff]
  %v795 = vld [vmem:[%s0 + $0x1820] sm:$0xff]
  %v796 = vld [vmem:[%s0 + $0x1828] sm:$0xff]
  %v797 = vld [vmem:[%s0 + $0x1830] sm:$0xff]
  %v798 = vld [vmem:[%s0 + $0x1838] sm:$0xff]
  %v799 = vld [vmem:[%s0 + $0x1840] sm:$0xff]
  %v800 = vld [vmem:[%s0 + $0x1848] sm:$0xff]
  %v801 = vld [vmem:[%s0 + $0x1850] sm:$0xff]
  %v802 = vld [vmem:[%s0 + $0x1858] sm:$0xff]
  %v803 = vld [vmem:[%s0 + $0x1860] sm:$0xff]
  %v804 = vld [vmem:[%s0 + $0x1868] sm:$0xff]
  %v805 = vld [vmem:[%s0 + $0x1870] sm:$0xff]
  %v806 = vld [vmem:[%s0 + $0x1878] sm:$0xff]
  %v807 = vld [vmem:[%s0 + $0x1880] sm:$0xff]
  %v808 = vld [vmem:[%s0 + $0x1888] sm:$0xff]
  %v809 = vld [vmem:[%s0 + $0x1890] sm:$0xff]
  %v810 = vld [vmem:[%s0 + $0x1898] sm:$0xff]
  %v811 = vld [vmem:[%s0 + $0x18a0] sm:$0xff]
  %v812 = vld [vmem:[%s0 + $0x18a8] sm:$0xff]
  %v813 = vld [vmem:[%s0 + $0x18b0] sm:$0xff]
  %v814 = vld [vmem:[%s0 + $0x18b8] sm:$0xff]
  %v815 = vld [vmem:[%s0 + $0x18c0] sm:$0xff]
  %v816 = vld [vmem:[%s0 + $0x18c8] sm:$0xff]
  %v817 = vld [vmem:[%s0 + $0x18d0] sm:$0xff]
  %v818 = vld [vmem:[%s0 + $0x18d8] sm:$0xff]
  %v819 = vld [vmem:[%s0 + $0x18e0] sm:$0xff]
  %v820 = vld [vmem:[%s0 + $0x18e8] sm:$0xff]
  %v821 = vld [vmem:[%s0 + $0x18f0] sm:$0xff]
  %v822 = vld [vmem:[%s0 + $0x18f8] sm:$0xff]
  %v823 = vld [vmem:[%s0 + $0x1900] sm:$0xff]
  %v824 = vld [vmem:[%s0 + $0x1908] sm:$0xff]
  %v825 = vld [vmem:[%s0 + $0x1910] sm:$0xff]
  %v826 = vld [vmem:[%s0 + $0x1918] sm:$0xff]
  %v827 = vld [vmem:[%s0 + $0x1920] sm:$0xff]
  %v828 = vld [vmem:[%s0 + $0x1928] sm:$0xff]
  %v829 = vld [vmem:[%s0 + $0x1930] sm:$0xff]
  %v830 = vld [vmem:[%s0 + $0x1938] sm:$0xff]
  %v831 = vld [vmem:[%s0 + $0x1940] sm:$0xff]
  %v832 = vld [vmem:[%s0 + $0x1948] sm:$0xff]
  %v833 = vld [vmem:[%s0 + $0x1950] sm:$0xff]
  %v834 = vld [vmem:[%s0 + $0x1958] sm:$0xff]
  %v835 = vld [vmem:[%s0 + $0x1960] sm:$0xff]
  %v836 = vld [vmem:[%s0 + $0x1968] sm:$0xff]
  %v837 = vld [vmem:[%s0 + $0x1970] sm:$0xff]
  %v838 = vld [vmem:[%s0 + $0x1978] sm:$0xff]
  %v839 = vld [vmem:[%s0 + $0x1980] sm:$0xff]
  %v840 = vld [vmem:[%s0 + $0x1988] sm:$0xff]
  %v841 = vld [vmem:[%s0 + $0x1990] sm:$0xff]
  %v842 = vld [vmem:[%s0 + $0x1998] sm:$0xff]
  %v843 = vld [vmem:[%s0 + $0x19a0] sm:$0xff]
  %v844 = vld [vmem:[%s0 + $0x19a8] sm:$0xff]
  %v845 = vld [vmem:[%s0 + $0x19b0] sm:$0xff]
  %v846 = vld [vmem:[%s0 + $0x19b8] sm:$0xff]
  %v847 = vld [vmem:[%s0 + $0x19c0] sm:$0xff]
  %v848 = vld [vmem:[%s0 + $0x19c8] sm:$0xff]
  %v849 = vld [vmem:[%s0 + $0x19d0] sm:$0xff]
  %v850 = vld [vmem:[%s0 + $0x19d8] sm:$0xff]
  %v851 = vld [vmem:[%s0 + $0x19e0] sm:$0xff]
  %v852 = vld [vmem:[%s0 + $0x19e8] sm:$0xff]
  %v853 = vld [vmem:[%s0 + $0x19f0] sm:$0xff]
  %v854 = vld [vmem:[%s0 + $0x19f8] sm:$0xff]
  %v855 = vld [vmem:[%s0 + $0x1a00] sm:$0xff]
  %v856 = vld [vmem:[%s0 + $0x1a08] sm:$0xff]
  %v857 = vld [vmem:[%s0 + $0x1a10] sm:$0xff]
  %v858 = vld [vmem:[%s0 + $0x1a18] sm:$0xff]
  %v859 = vld [vmem:[%s0 + $0x1a20] sm:$0xff]
  %v860 = vld [vmem:[%s0 + $0x1a28] sm:$0xff]
  %v861 = vld [vmem:[%s0 + $0x1a30] sm:$0xff]
  %v862 = vld [vmem:[%s0 + $0x1a38] sm:$0xff]
  %v863 = vld [vmem:[%s0 + $0x1a40] sm:$0xff]
  %v864 = vld [vmem:[%s0 + $0x1a48] sm:$0xff]
  %v865 = vld [vmem:[%s0 + $0x1a50] sm:$0xff]
  %v866 = vld [vmem:[%s0 + $0x1a58] sm:$0xff]
  %v867 = vld [vmem:[%s0 + $0x1a60] sm:$0xff]
  %v868 = vld [vmem:[%s0 + $0x1a68] sm:$0xff]
  %v869 = vld [vmem:[%s0 + $0x1a70] sm:$0xff]
  %v870 = vld [vmem:[%s0 + $0x1a78] sm:$0xff]
  %v871 = vld [vmem:[%s0 + $0x1a80] sm:$0xff]
  %v872 = vld [vmem:[%s0 + $0x1a88] sm:$0xff]
  %v873 = vld [vmem:[%s0 + $0x1a90] sm:$0xff]
  %v874 = vld [vmem:[%s0 + $0x1a98] sm:$0xff]
  %v875 = vld [vmem:[%s0 + $0x1aa0] sm:$0xff]
  %v876 = vld [vmem:[%s0 + $0x1aa8] sm:$0xff]
  %v877 = vld [vmem:[%s0 + $0x1ab0] sm:$0xff]
  %v878 = vld [vmem:[%s0 + $0x1ab8] sm:$0xff]
  %v879 = vld [vmem:[%s0 + $0x1ac0] sm:$0xff]
  %v880 = vld [vmem:[%s0 + $0x1ac8] sm:$0xff]
  %v881 = vld [vmem:[%s0 + $0x1ad0] sm:$0xff]
  %v882 = vld [vmem:[%s0 + $0x1ad8] sm:$0xff]
  %v883 = vld [vmem:[%s0 + $0x1ae0] sm:$0xff]
  %v884 = vld [vmem:[%s0 + $0x1ae8] sm:$0xff]
  %v885 = vld [vmem:[%s0 + $0x1af0] sm:$0xff]
  %v886 = vld [vmem:[%s0 + $0x1af8] sm:$0xff]
  %v887 = vld [vmem:[%s0 + $0x1b00] sm:$0xff]
  %v888 = vld [vmem:[%s0 + $0x1b08] sm:$0xff]
  %v889 = vld [vmem:[%s0 + $0x1b10] sm:$0xff]
  %v890 = vld [vmem:[%s0 + $0x1b18] sm:$0xff]
  %v891 = vld [vmem:[%s0 + $0x1b20] sm:$0xff]
  %v892 = vld [vmem:[%s0 + $0x1b28] sm:$0xff]
  %v893 = vld [vmem:[%s0 + $0x1b30] sm:$0xff]
  %v894 = vld [vmem:[%s0 + $0x1b38] sm:$0xff]
  %v895 = vld [vmem:[%s0 + $0x1b40] sm:$0xff]
  %v896 = vld [vmem:[%s0 + $0x1b48] sm:$0xff]
  %v897 = vld [vmem:[%s0 + $0x1b50] sm:$0xff]
  %v898 = vld [vmem:[%s0 + $0x1b58] sm:$0xff]
  %v899 = vld [vmem:[%s0 + $0x1b60] sm:$0xff]
  %v900 = vld [vmem:[%s0 + $0x1b68] sm:$0xff]
  %v901 = vld [vmem:[%s0 + $0x1b70] sm:$0xff]
  %v902 = vld [vmem:[%s0 + $0x1b78] sm:$0xff]
  %v903 = vld [vmem:[%s0 + $0x1b80] sm:$0xff]
  %v904 = vld [vmem:[%s0 + $0x1b88] sm:$0xff]
  %v905 = vld [vmem:[%s0 + $0x1b90] sm:$0xff]
  %v906 = vld [vmem:[%s0 + $0x1b98] sm:$0xff]
  %v907 = vld [vmem:[%s0 + $0x1ba0] sm:$0xff]
  %v908 = vld [vmem:[%s0 + $0x1ba8] sm:$0xff]
  %v909 = vld [vmem:[%s0 + $0x1bb0] sm:$0xff]
  %v910 = vld [vmem:[%s0 + $0x1bb8] sm:$0xff]
  %v911 = vld [vmem:[%s0 + $0x1bc0] sm:$0xff]
  %v912 = vld [vmem:[%s0 + $0x1bc8] sm:$0xff]
  %v913 = vld [vmem:[%s0 + $0x1bd0] sm:$0xff]
  %v914 = vld [vmem:[%s0 + $0x1bd8] sm:$0xff]
  %v915 = vld [vmem:[%s0 + $0x1be0] sm:$0xff]
  %v916 = vld [vmem:[%s0 + $0x1be8] sm:$0xff]
  %v917 = vld [vmem:[%s0 + $0x1bf0] sm:$0xff]
  %v918 = vld [vmem:[%s0 + $0x1bf8] sm:$0xff]
  %v919 = vld [vmem:[%s0 + $0x1c00] sm:$0xff]
  %v920 = vld [vmem:[%s0 + $0x1c08] sm:$0xff]
  %v921 = vld [vmem:[%s0 + $0x1c10] sm:$0xff]
  %v922 = vld [vmem:[%s0 + $0x1c18] sm:$0xff]
  %v923 = vld [vmem:[%s0 + $0x1c20] sm:$0xff]
  %v924 = vld [vmem:[%s0 + $0x1c28] sm:$0xff]
  %v925 = vld [vmem:[%s0 + $0x1c30] sm:$0xff]
  %v926 = vld [vmem:[%s0 + $0x1c38] sm:$0xff]
  %v927 = vld [vmem:[%s0 + $0x1c40] sm:$0xff]
  %v928 = vld [vmem:[%s0 + $0x1c48] sm:$0xff]
  %v929 = vld [vmem:[%s0 + $0x1c50] sm:$0xff]
  %v930 = vld [vmem:[%s0 + $0x1c58] sm:$0xff]
  %v931 = vld [vmem:[%s0 + $0x1c60] sm:$0xff]
  %v932 = vld [vmem:[%s0 + $0x1c68] sm:$0xff]
  %v933 = vld [vmem:[%s0 + $0x1c70] sm:$0xff]
  %v934 = vld [vmem:[%s0 + $0x1c78] sm:$0xff]
  %v935 = vld [vmem:[%s0 + $0x1c80] sm:$0xff]
  %v936 = vld [vmem:[%s0 + $0x1c88] sm:$0xff]
  %v937 = vld [vmem:[%s0 + $0x1c90] sm:$0xff]
  %v938 = vld [vmem:[%s0 + $0x1c98] sm:$0xff]
  %v939 = vld [vmem:[%s0 + $0x1ca0] sm:$0xff]
  %v940 = vld [vmem:[%s0 + $0x1ca8] sm:$0xff]
  %v941 = vld [vmem:[%s0 + $0x1cb0] sm:$0xff]
  %v942 = vld [vmem:[%s0 + $0x1cb8] sm:$0xff]
  %v943 = vld [vmem:[%s0 + $0x1cc0] sm:$0xff]
  %v944 = vld [vmem:[%s0 + $0x1cc8] sm:$0xff]
  %v945 = vld [vmem:[%s0 + $0x1cd0] sm:$0xff]
  %v946 = vld [vmem:[%s0 + $0x1cd8] sm:$0xff]
  %v947 = vld [vmem:[%s0 + $0x1ce0] sm:$0xff]
  %v948 = vld [vmem:[%s0 + $0x1ce8] sm:$0xff]
  %v949 = vld [vmem:[%s0 + $0x1cf0] sm:$0xff]
  %v950 = vld [vmem:[%s0 + $0x1cf8] sm:$0xff]
  %v951 = vld [vmem:[%s0 + $0x1d00] sm:$0xff]
  %v952 = vld [vmem:[%s0 + $0x1d08] sm:$0xff]
  %v953 = vld [vmem:[%s0 + $0x1d10] sm:$0xff]
  %v954 = vld [vmem:[%s0 + $0x1d18] sm:$0xff]
  %v955 = vld [vmem:[%s0 + $0x1d20] sm:$0xff]
  %v956 = vld [vmem:[%s0 + $0x1d28] sm:$0xff]
  %v957 = vld [vmem:[%s0 + $0x1d30] sm:$0xff]
  %v958 = vld [vmem:[%s0 + $0x1d38] sm:$0xff]
  %v959 = vld [vmem:[%s0 + $0x1d40] sm:$0xff]
  %v960 = vld [vmem:[%s0 + $0x1d48] sm:$0xff]
  %v961 = vld [vmem:[%s0 + $0x1d50] sm:$0xff]
  %v962 = vld [vmem:[%s0 + $0x1d58] sm:$0xff]
  %v963 = vld [vmem:[%s0 + $0x1d60] sm:$0xff]
  %v964 = vld [vmem:[%s0 + $0x1d68] sm:$0xff]
  %v965 = vld [vmem:[%s0 + $0x1d70] sm:$0xff]
  %v966 = vld [vmem:[%s0 + $0x1d78] sm:$0xff]
  %v967 = vld [vmem:[%s0 + $0x1d80] sm:$0xff]
  %v968 = vld [vmem:[%s0 + $0x1d88] sm:$0xff]
  %v969 = vld [vmem:[%s0 + $0x1d90] sm:$0xff]
  %v970 = vld [vmem:[%s0 + $0x1d98] sm:$0xff]
  %v971 = vld [vmem:[%s0 + $0x1da0] sm:$0xff]
  %v972 = vld [vmem:[%s0 + $0x1da8] sm:$0xff]
  %v973 = vld [vmem:[%s0 + $0x1db0] sm:$0xff]
  %v974 = vld [vmem:[%s0 + $0x1db8] sm:$0xff]
  %v975 = vld [vmem:[%s0 + $0x1dc0] sm:$0xff]
  %v976 = vld [vmem:[%s0 + $0x1dc8] sm:$0xff]
  %v977 = vld [vmem:[%s0 + $0x1dd0] sm:$0xff]
  %v978 = vld [vmem:[%s0 + $0x1dd8] sm:$0xff]
  %v979 = vld [vmem:[%s0 + $0x1de0] sm:$0xff]
  %v980 = vld [vmem:[%s0 + $0x1de8] sm:$0xff]
  %v981 = vld [vmem:[%s0 + $0x1df0] sm:$0xff]
  %v982 = vld [vmem:[%s0 + $0x1df8] sm:$0xff]
  %v983 = vld [vmem:[%s0 + $0x1e00] sm:$0xff]
  %v984 = vld [vmem:[%s0 + $0x1e08] sm:$0xff]
  %v985 = vld [vmem:[%s0 + $0x1e10] sm:$0xff]
  %v986 = vld [vmem:[%s0 + $0x1e18] sm:$0xff]
  %v987 = vld [vmem:[%s0 + $0x1e20] sm:$0xff]
  %v988 = vld [vmem:[%s0 + $0x1e28] sm:$0xff]
  %v989 = vld [vmem:[%s0 + $0x1e30] sm:$0xff]
  %v990 = vld [vmem:[%s0 + $0x1e38] sm:$0xff]
  %v991 = vld [vmem:[%s0 + $0x1e40] sm:$0xff]
  %v992 = vld [vmem:[%s0 + $0x1e48] sm:$0xff]
  %v993 = vld [vmem:[%s0 + $0x1e50] sm:$0xff]
  %v994 = vld [vmem:[%s0 + $0x1e58] sm:$0xff]
  %v995 = vld [vmem:[%s0 + $0x1e60] sm:$0xff]
  %v996 = vld [vmem:[%s0 + $0x1e68] sm:$0xff]
  %v997 = vld [vmem:[%s0 + $0x1e70] sm:$0xff]
  %v998 = vld [vmem:[%s0 + $0x1e78] sm:$0xff]
  %v999 = vld [vmem:[%s0 + $0x1e80] sm:$0xff]
  %v1000 = vld [vmem:[%s0 + $0x1e88] sm:$0xff]
  %v1001 = vld [vmem:[%s0 + $0x1e90] sm:$0xff]
  %v1002 = vld [vmem:[%s0 + $0x1e98] sm:$0xff]
  %v1003 = vld [vmem:[%s0 + $0x1ea0] sm:$0xff]
  %v1004 = vld [vmem:[%s0 + $0x1ea8] sm:$0xff]
  %v1005 = vld [vmem:[%s0 + $0x1eb0] sm:$0xff]
  %v1006 = vld [vmem:[%s0 + $0x1eb8] sm:$0xff]
  %v1007 = vld [vmem:[%s0 + $0x1ec0] sm:$0xff]
  %v1008 = vld [vmem:[%s0 + $0x1ec8] sm:$0xff]
  %v1009 = vld [vmem:[%s0 + $0x1ed0] sm:$0xff]
  %v1010 = vld [vmem:[%s0 + $0x1ed8] sm:$0xff]
  %v1011 = vld [vmem:[%s0 + $0x1ee0] sm:$0xff]
  %v1012 = vld [vmem:[%s0 + $0x1ee8] sm:$0xff]
  %v1013 = vld [vmem:[%s0 + $0x1ef0] sm:$0xff]
  %v1014 = vld [vmem:[%s0 + $0x1ef8] sm:$0xff]
  %v1015 = vld [vmem:[%s0 + $0x1f00] sm:$0xff]
  %v1016 = vld [vmem:[%s0 + $0x1f08] sm:$0xff]
  %v1017 = vld [vmem:[%s0 + $0x1f10] sm:$0xff]
  %v1018 = vld [vmem:[%s0 + $0x1f18] sm:$0xff]
  %v1019 = vld [vmem:[%s0 + $0x1f20] sm:$0xff]
  %v1020 = vld [vmem:[%s0 + $0x1f28] sm:$0xff]
  %v1021 = vld [vmem:[%s0 + $0x1f30] sm:$0xff]
  %v1022 = vld [vmem:[%s0 + $0x1f38] sm:$0xff]
  %v1023 = vld [vmem:[%s0 + $0x1f40] sm:$0xff]
  %v1024 = vld [vmem:[%s0 + $0x1f48] sm:$0xff]
  %v1025 = vld [vmem:[%s0 + $0x1f50] sm:$0xff]
  %v1026 = vld [vmem:[%s0 + $0x1f58] sm:$0xff]
  %v1027 = vld [vmem:[%s0 + $0x1f60] sm:$0xff]
  %v1028 = vld [vmem:[%s0 + $0x1f68] sm:$0xff]
  %v1029 = vld [vmem:[%s0 + $0x1f70] sm:$0xff]
  %v1030 = vld [vmem:[%s0 + $0x1f78] sm:$0xff]
  %v1031 = vld [vmem:[%s0 + $0x1f80] sm:$0xff]
  %v1032 = vld [vmem:[%s0 + $0x1f88] sm:$0xff]
  %v1033 = vld [vmem:[%s0 + $0x1f90] sm:$0xff]
  %v1034 = vld [vmem:[%s0 + $0x1f98] sm:$0xff]
  %v1035 = vld [vmem:[%s0 + $0x1fa0] sm:$0xff]
  %v1036 = vld [vmem:[%s0 + $0x1fa8] sm:$0xff]
  %v1037 = vld [vmem:[%s0 + $0x1fb0] sm:$0xff]
  %v1038 = vld [vmem:[%s0 + $0x1fb8] sm:$0xff]
  %v1039 = vld [vmem:[%s0 + $0x1fc0] sm:$0xff]
  %v1040 = vld [vmem:[%s0 + $0x1fc8] sm:$0xff]
  %v1041 = vld [vmem:[%s0 + $0x1fd0] sm:$0xff]
  %v1042 = vld [vmem:[%s0 + $0x1fd8] sm:$0xff]
  %v1043 = vld [vmem:[%s0 + $0x1fe0] sm:$0xff]
  %v1044 = vld [vmem:[%s0 + $0x1fe8] sm:$0xff]
  %v1045 = vld [vmem:[%s0 + $0x1ff0] sm:$0xff]
  %v1046 = vld [vmem:[%s0 + $0x1ff8] sm:$0xff]
  %v1047 = vld [vmem:[%s0 + $0x2000] sm:$0xff]
  %v1048 = vld [vmem:[%s0 + $0x2008] sm:$0xff]
  %v1049 = vld [vmem:[%s0 + $0x2010] sm:$0xff]
  %v1050 = vld [vmem:[%s0 + $0x2018] sm:$0xff]
  %v1051 = vld [vmem:[%s0 + $0x2020] sm:$0xff]
  %v1052 = vld [vmem:[%s0 + $0x2028] sm:$0xff]
  %v1053 = vld [vmem:[%s0 + $0x2030] sm:$0xff]
  %v1054 = vld [vmem:[%s0 + $0x2038] sm:$0xff]
  %v1055 = vld [vmem:[%s0 + $0x2040] sm:$0xff]
  %v1056 = vld [vmem:[%s0 + $0x2048] sm:$0xff]
  %v1057 = vld [vmem:[%s0 + $0x2050] sm:$0xff]
  %v1058 = vld [vmem:[%s0 + $0x2058] sm:$0xff]
  %v1059 = vld [vmem:[%s0 + $0x2060] sm:$0xff]
  %v1060 = vld [vmem:[%s0 + $0x2068] sm:$0xff]
  %v1061 = vld [vmem:[%s0 + $0x2070] sm:$0xff]
  %v1062 = vld [vmem:[%s0 + $0x2078] sm:$0xff]
  %v1063 = vld [vmem:[%s0 + $0x2080] sm:$0xff]
  %v1064 = vld [vmem:[%s0 + $0x2088] sm:$0xff]
  %v1065 = vld [vmem:[%s0 + $0x2090] sm:$0xff]
  %v1066 = vld [vmem:[%s0 + $0x2098] sm:$0xff]
  %v1067 = vld [vmem:[%s0 + $0x20a0] sm:$0xff]
  %v1068 = vld [vmem:[%s0 + $0x20a8] sm:$0xff]
  %v1069 = vld [vmem:[%s0 + $0x20b0] sm:$0xff]
  %v1070 = vld [vmem:[%s0 + $0x20b8] sm:$0xff]
  %v1071 = vld [vmem:[%s0 + $0x20c0] sm:$0xff]
  %v1072 = vld [vmem:[%s0 + $0x20c8] sm:$0xff]
  %v1073 = vld [vmem:[%s0 + $0x20d0] sm:$0xff]
  %v1074 = vld [vmem:[%s0 + $0x20d8] sm:$0xff]
  %v1075 = vld [vmem:[%s0 + $0x20e0] sm:$0xff]
  %v1076 = vld [vmem:[%s0 + $0x20e8] sm:$0xff]
  %v1077 = vld [vmem:[%s0 + $0x20f0] sm:$0xff]
  %v1078 = vld [vmem:[%s0 + $0x20f8] sm:$0xff]
  %v1079 = vld [vmem:[%s0 + $0x2100] sm:$0xff]
  %v1080 = vld [vmem:[%s0 + $0x2108] sm:$0xff]
  %v1081 = vld [vmem:[%s0 + $0x2110] sm:$0xff]
  %v1082 = vld [vmem:[%s0 + $0x2118] sm:$0xff]
  %v1083 = vld [vmem:[%s0 + $0x2120] sm:$0xff]
  %v1084 = vld [vmem:[%s0 + $0x2128] sm:$0xff]
  %v1085 = vld [vmem:[%s0 + $0x2130] sm:$0xff]
  %v1086 = vld [vmem:[%s0 + $0x2138] sm:$0xff]
  %v1087 = vld [vmem:[%s0 + $0x2140] sm:$0xff]
  %v1088 = vld [vmem:[%s0 + $0x2148] sm:$0xff]
  %v1089 = vld [vmem:[%s0 + $0x2150] sm:$0xff]
  %v1090 = vld [vmem:[%s0 + $0x2158] sm:$0xff]
  %v1091 = vld [vmem:[%s0 + $0x2160] sm:$0xff]
  %v1092 = vld [vmem:[%s0 + $0x2168] sm:$0xff]
  %v1093 = vld [vmem:[%s0 + $0x2170] sm:$0xff]
  %v1094 = vld [vmem:[%s0 + $0x2178] sm:$0xff]
  %v1095 = vld [vmem:[%s0 + $0x2180] sm:$0xff]
  %v1096 = vld [vmem:[%s0 + $0x2188] sm:$0xff]
  %v1097 = vld [vmem:[%s0 + $0x2190] sm:$0xff]
  %v1098 = vld [vmem:[%s0 + $0x2198] sm:$0xff]
  %v1099 = vld [vmem:[%s0 + $0x21a0] sm:$0xff]
  %v1100 = vld [vmem:[%s0 + $0x21a8] sm:$0xff]
  %v1101 = vld [vmem:[%s0 + $0x21b0] sm:$0xff]
  %v1102 = vld [vmem:[%s0 + $0x21b8] sm:$0xff]
  %v1103 = vld [vmem:[%s0 + $0x21c0] sm:$0xff]
  %v1104 = vld [vmem:[%s0 + $0x21c8] sm:$0xff]
  %v1105 = vld [vmem:[%s0 + $0x21d0] sm:$0xff]
  %v1106 = vld [vmem:[%s0 + $0x21d8] sm:$0xff]
  %v1107 = vld [vmem:[%s0 + $0x21e0] sm:$0xff]
  %v1108 = vld [vmem:[%s0 + $0x21e8] sm:$0xff]
  %v1109 = vld [vmem:[%s0 + $0x21f0] sm:$0xff]
  %v1110 = vld [vmem:[%s0 + $0x21f8] sm:$0xff]
  %v1111 = vld [vmem:[%s0 + $0x2200] sm:$0xff]
  %v1112 = vld [vmem:[%s0 + $0x2208] sm:$0xff]
  %v1113 = vld [vmem:[%s0 + $0x2210] sm:$0xff]
  %v1114 = vld [vmem:[%s0 + $0x2218] sm:$0xff]
  %v1115 = vld [vmem:[%s0 + $0x2220] sm:$0xff]
  %v1116 = vld [vmem:[%s0 + $0x2228] sm:$0xff]
  %v1117 = vld [vmem:[%s0 + $0x2230] sm:$0xff]
  %v1118 = vld [vmem:[%s0 + $0x2238] sm:$0xff]
  %v1119 = vld [vmem:[%s0 + $0x2240] sm:$0xff]
  %v1120 = vld [vmem:[%s0 + $0x2248] sm:$0xff]
  %v1121 = vld [vmem:[%s0 + $0x2250] sm:$0xff]
  %v1122 = vld [vmem:[%s0 + $0x2258] sm:$0xff]
  %v1123 = vld [vmem:[%s0 + $0x2260] sm:$0xff]
  %v1124 = vld [vmem:[%s0 + $0x2268] sm:$0xff]
  %v1125 = vld [vmem:[%s0 + $0x2270] sm:$0xff]
  %v1126 = vld [vmem:[%s0 + $0x2278] sm:$0xff]
  %v1127 = vld [vmem:[%s0 + $0x2280] sm:$0xff]
  %v1128 = vld [vmem:[%s0 + $0x2288] sm:$0xff]
  %v1129 = vld [vmem:[%s0 + $0x2290] sm:$0xff]
  %v1130 = vld [vmem:[%s0 + $0x2298] sm:$0xff]
  %v1131 = vld [vmem:[%s0 + $0x22a0] sm:$0xff]
  %v1132 = vld [vmem:[%s0 + $0x22a8] sm:$0xff]
  %v1133 = vld [vmem:[%s0 + $0x22b0] sm:$0xff]
  %v1134 = vld [vmem:[%s0 + $0x22b8] sm:$0xff]
  %v1135 = vld [vmem:[%s0 + $0x22c0] sm:$0xff]
  %v1136 = vld [vmem:[%s0 + $0x22c8] sm:$0xff]
  %v1137 = vld [vmem:[%s0 + $0x22d0] sm:$0xff]
  %v1138 = vld [vmem:[%s0 + $0x22d8] sm:$0xff]
  %v1139 = vld [vmem:[%s0 + $0x22e0] sm:$0xff]
  %v1140 = vld [vmem:[%s0 + $0x22e8] sm:$0xff]
  %v1141 = vld [vmem:[%s0 + $0x22f0] sm:$0xff]
  %v1142 = vld [vmem:[%s0 + $0x22f8] sm:$0xff]
  %v1143 = vld [vmem:[%s0 + $0x2300] sm:$0xff]
  %v1144 = vld [vmem:[%s0 + $0x2308] sm:$0xff]
  %v1145 = vld [vmem:[%s0 + $0x2310] sm:$0xff]
  %v1146 = vld [vmem:[%s0 + $0x2318] sm:$0xff]
  %v1147 = vld [vmem:[%s0 + $0x2320] sm:$0xff]
  %v1148 = vld [vmem:[%s0 + $0x2328] sm:$0xff]
  %v1149 = vld [vmem:[%s0 + $0x2330] sm:$0xff]
  %v1150 = vld [vmem:[%s0 + $0x2338] sm:$0xff]
  %v1151 = vld [vmem:[%s0 + $0x2340] sm:$0xff]
  %v1152 = vld [vmem:[%s0 + $0x2348] sm:$0xff]
  %v1153 = vld [vmem:[%s0 + $0x2350] sm:$0xff]
  %v1154 = vld [vmem:[%s0 + $0x2358] sm:$0xff]
  %v1155 = vld [vmem:[%s0 + $0x2360] sm:$0xff]
  %v1156 = vld [vmem:[%s0 + $0x2368] sm:$0xff]
  %v1157 = vld [vmem:[%s0 + $0x2370] sm:$0xff]
  %v1158 = vld [vmem:[%s0 + $0x2378] sm:$0xff]
  %v1159 = vld [vmem:[%s0 + $0x2380] sm:$0xff]
  %v1160 = vld [vmem:[%s0 + $0x2388] sm:$0xff]
  %v1161 = vld [vmem:[%s0 + $0x2390] sm:$0xff]
  %v1162 = vld [vmem:[%s0 + $0x2398] sm:$0xff]
  %v1163 = vld [vmem:[%s0 + $0x23a0] sm:$0xff]
  %v1164 = vld [vmem:[%s0 + $0x23a8] sm:$0xff]
  %v1165 = vld [vmem:[%s0 + $0x23b0] sm:$0xff]
  %v1166 = vld [vmem:[%s0 + $0x23b8] sm:$0xff]
  %v1167 = vld [vmem:[%s0 + $0x23c0] sm:$0xff]
  %v1168 = vld [vmem:[%s0 + $0x23c8] sm:$0xff]
  %v1169 = vld [vmem:[%s0 + $0x23d0] sm:$0xff]
  %v1170 = vld [vmem:[%s0 + $0x23d8] sm:$0xff]
  %v1171 = vld [vmem:[%s0 + $0x23e0] sm:$0xff]
  %v1172 = vld [vmem:[%s0 + $0x23e8] sm:$0xff]
  %v1173 = vld [vmem:[%s0 + $0x23f0] sm:$0xff]
  %v1174 = vld [vmem:[%s0 + $0x23f8] sm:$0xff]
  %v1175 = vld [vmem:[%s0 + $0x2400] sm:$0xff]
  %v1176 = vld [vmem:[%s0 + $0x2408] sm:$0xff]
  %v1177 = vld [vmem:[%s0 + $0x2410] sm:$0xff]
  %v1178 = vld [vmem:[%s0 + $0x2418] sm:$0xff]
  %v1179 = vld [vmem:[%s0 + $0x2420] sm:$0xff]
  %v1180 = vld [vmem:[%s0 + $0x2428] sm:$0xff]
  %v1181 = vld [vmem:[%s0 + $0x2430] sm:$0xff]
  %v1182 = vld [vmem:[%s0 + $0x2438] sm:$0xff]
  %v1183 = vld [vmem:[%s0 + $0x2440] sm:$0xff]
  %v1184 = vld [vmem:[%s0 + $0x2448] sm:$0xff]
  %v1185 = vld [vmem:[%s0 + $0x2450] sm:$0xff]
  %v1186 = vld [vmem:[%s0 + $0x2458] sm:$0xff]
  %v1187 = vld [vmem:[%s0 + $0x2460] sm:$0xff]
  %v1188 = vld [vmem:[%s0 + $0x2468] sm:$0xff]
  %v1189 = vld [vmem:[%s0 + $0x2470] sm:$0xff]
  %v1190 = vld [vmem:[%s0 + $0x2478] sm:$0xff]
  %v1191 = vld [vmem:[%s0 + $0x2480] sm:$0xff]
  %v1192 = vld [vmem:[%s0 + $0x2488] sm:$0xff]
  %v1193 = vld [vmem:[%s0 + $0x2490] sm:$0xff]
  %v1194 = vld [vmem:[%s0 + $0x2498] sm:$0xff]
  %v1195 = vld [vmem:[%s0 + $0x24a0] sm:$0xff]
  %v1196 = vld [vmem:[%s0 + $0x24a8] sm:$0xff]
  %v1197 = vld [vmem:[%s0 + $0x24b0] sm:$0xff]
  %v1198 = vld [vmem:[%s0 + $0x24b8] sm:$0xff]
  %v1199 = vld [vmem:[%s0 + $0x24c0] sm:$0xff]
  %v1200 = vld [vmem:[%s0 + $0x24c8] sm:$0xff]
  %v1201 = vld [vmem:[%s0 + $0x24d0] sm:$0xff]
  %v1202 = vld [vmem:[%s0 + $0x24d8] sm:$0xff]
  %v1203 = vld [vmem:[%s0 + $0x24e0] sm:$0xff]
  %v1204 = vld [vmem:[%s0 + $0x24e8] sm:$0xff]
  %v1205 = vld [vmem:[%s0 + $0x24f0] sm:$0xff]
  %v1206 = vld [vmem:[%s0 + $0x24f8] sm:$0xff]
  %v1207 = vld [vmem:[%s0 + $0x2500] sm:$0xff]
  %v1208 = vld [vmem:[%s0 + $0x2508] sm:$0xff]
  %v1209 = vld [vmem:[%s0 + $0x2510] sm:$0xff]
  %v1210 = vld [vmem:[%s0 + $0x2518] sm:$0xff]
  %v1211 = vld [vmem:[%s0 + $0x2520] sm:$0xff]
  %v1212 = vld [vmem:[%s0 + $0x2528] sm:$0xff]
  %v1213 = vld [vmem:[%s0 + $0x2530] sm:$0xff]
  %v1214 = vld [vmem:[%s0 + $0x2538] sm:$0xff]
  %v1215 = vld [vmem:[%s0 + $0x2540] sm:$0xff]
  %v1216 = vld [vmem:[%s0 + $0x2548] sm:$0xff]
  %v1217 = vld [vmem:[%s0 + $0x2550] sm:$0xff]
  %v1218 = vld [vmem:[%s0 + $0x2558] sm:$0xff]
  %v1219 = vld [vmem:[%s0 + $0x2560] sm:$0xff]
  %v1220 = vld [vmem:[%s0 + $0x2568] sm:$0xff]
  %v1221 = vld [vmem:[%s0 + $0x2570] sm:$0xff]
  %v1222 = vld [vmem:[%s0 + $0x2578] sm:$0xff]
  %v1223 = vld [vmem:[%s0 + $0x2580] sm:$0xff]
  %v1224 = vld [vmem:[%s0 + $0x2588] sm:$0xff]
  %v1225 = vld [vmem:[%s0 + $0x2590] sm:$0xff]
  %v1226 = vld [vmem:[%s0 + $0x2598] sm:$0xff]
  %v1227 = vld [vmem:[%s0 + $0x25a0] sm:$0xff]
  %v1228 = vld [vmem:[%s0 + $0x25a8] sm:$0xff]
  %v1229 = vld [vmem:[%s0 + $0x25b0] sm:$0xff]
  %v1230 = vld [vmem:[%s0 + $0x25b8] sm:$0xff]
  %v1231 = vld [vmem:[%s0 + $0x25c0] sm:$0xff]
  %v1232 = vld [vmem:[%s0 + $0x25c8] sm:$0xff]
  %v1233 = vld [vmem:[%s0 + $0x25d0] sm:$0xff]
  %v1234 = vld [vmem:[%s0 + $0x25d8] sm:$0xff]
  %v1235 = vld [vmem:[%s0 + $0x25e0] sm:$0xff]
  %v1236 = vld [vmem:[%s0 + $0x25e8] sm:$0xff]
  %v1237 = vld [vmem:[%s0 + $0x25f0] sm:$0xff]
  %v1238 = vld [vmem:[%s0 + $0x25f8] sm:$0xff]
  %v1239 = vld [vmem:[%s0 + $0x2600] sm:$0xff]
  %v1240 = vld [vmem:[%s0 + $0x2608] sm:$0xff]
  %v1241 = vld [vmem:[%s0 + $0x2610] sm:$0xff]
  %v1242 = vld [vmem:[%s0 + $0x2618] sm:$0xff]
  %v1243 = vld [vmem:[%s0 + $0x2620] sm:$0xff]
  %v1244 = vld [vmem:[%s0 + $0x2628] sm:$0xff]
  %v1245 = vld [vmem:[%s0 + $0x2630] sm:$0xff]
  %v1246 = vld [vmem:[%s0 + $0x2638] sm:$0xff]
  %v1247 = vld [vmem:[%s0 + $0x2640] sm:$0xff]
  %v1248 = vld [vmem:[%s0 + $0x2648] sm:$0xff]
  %v1249 = vld [vmem:[%s0 + $0x2650] sm:$0xff]
  %v1250 = vld [vmem:[%s0 + $0x2658] sm:$0xff]
  %v1251 = vld [vmem:[%s0 + $0x2660] sm:$0xff]
  %v1252 = vld [vmem:[%s0 + $0x2668] sm:$0xff]
  %v1253 = vld [vmem:[%s0 + $0x2670] sm:$0xff]
  %v1254 = vld [vmem:[%s0 + $0x2678] sm:$0xff]
  %v1255 = vld [vmem:[%s0 + $0x2680] sm:$0xff]
  %v1256 = vld [vmem:[%s0 + $0x2688] sm:$0xff]
  %v1257 = vld [vmem:[%s0 + $0x2690] sm:$0xff]
  %v1258 = vld [vmem:[%s0 + $0x2698] sm:$0xff]
  %v1259 = vld [vmem:[%s0 + $0x26a0] sm:$0xff]
  %v1260 = vld [vmem:[%s0 + $0x26a8] sm:$0xff]
  %v1261 = vld [vmem:[%s0 + $0x26b0] sm:$0xff]
  %v1262 = vld [vmem:[%s0 + $0x26b8] sm:$0xff]
  %v1263 = vld [vmem:[%s0 + $0x26c0] sm:$0xff]
  %v1264 = vld [vmem:[%s0 + $0x26c8] sm:$0xff]
  %v1265 = vld [vmem:[%s0 + $0x26d0] sm:$0xff]
  %v1266 = vld [vmem:[%s0 + $0x26d8] sm:$0xff]
  %v1267 = vld [vmem:[%s0 + $0x26e0] sm:$0xff]
  %v1268 = vld [vmem:[%s0 + $0x26e8] sm:$0xff]
  %v1269 = vld [vmem:[%s0 + $0x26f0] sm:$0xff]
  %v1270 = vld [vmem:[%s0 + $0x26f8] sm:$0xff]
  %v1271 = vld [vmem:[%s0 + $0x2700] sm:$0xff]
  %v1272 = vld [vmem:[%s0 + $0x2708] sm:$0xff]
  %v1273 = vld [vmem:[%s0 + $0x2710] sm:$0xff]
  %v1274 = vld [vmem:[%s0 + $0x2718] sm:$0xff]
  %v1275 = vld [vmem:[%s0 + $0x2720] sm:$0xff]
  %v1276 = vld [vmem:[%s0 + $0x2728] sm:$0xff]
  %v1277 = vld [vmem:[%s0 + $0x2730] sm:$0xff]
  %v1278 = vld [vmem:[%s0 + $0x2738] sm:$0xff]
  %v1279 = vld [vmem:[%s0 + $0x2740] sm:$0xff]
  %v1280 = vld [vmem:[%s0 + $0x2748] sm:$0xff]
  %v1281 = vld [vmem:[%s0 + $0x2750] sm:$0xff]
  %v1282 = vld [vmem:[%s0 + $0x2758] sm:$0xff]
  %v1283 = vld [vmem:[%s0 + $0x2760] sm:$0xff]
  %v1284 = vld [vmem:[%s0 + $0x2768] sm:$0xff]
  %v1285 = vld [vmem:[%s0 + $0x2770] sm:$0xff]
  %v1286 = vld [vmem:[%s0 + $0x2778] sm:$0xff]
  %v1287 = vld [vmem:[%s0 + $0x2780] sm:$0xff]
  %v1288 = vld [vmem:[%s0 + $0x2788] sm:$0xff]
  %v1289 = vld [vmem:[%s0 + $0x2790] sm:$0xff]
  %v1290 = vld [vmem:[%s0 + $0x2798] sm:$0xff]
  %v1291 = vld [vmem:[%s0 + $0x27a0] sm:$0xff]
  %v1292 = vld [vmem:[%s0 + $0x27a8] sm:$0xff]
  %v1293 = vld [vmem:[%s0 + $0x27b0] sm:$0xff]
  %v1294 = vld [vmem:[%s0 + $0x27b8] sm:$0xff]
  %v1295 = vld [vmem:[%s0 + $0x27c0] sm:$0xff]
  %v1296 = vld [vmem:[%s0 + $0x27c8] sm:$0xff]
  %v1297 = vld [vmem:[%s0 + $0x27d0] sm:$0xff]
  %v1298 = vld [vmem:[%s0 + $0x27d8] sm:$0xff]
  %v1299 = vld [vmem:[%s0 + $0x27e0] sm:$0xff]
  %v1300 = vld [vmem:[%s0 + $0x27e8] sm:$0xff]
  %v1301 = vld [vmem:[%s0 + $0x27f0] sm:$0xff]
  %v1302 = vld [vmem:[%s0 + $0x27f8] sm:$0xff]
  %v1303 = vld [vmem:[%s0 + $0x2800] sm:$0xff]
  %v1304 = vld [vmem:[%s0 + $0x2808] sm:$0xff]
  %v1305 = vld [vmem:[%s0 + $0x2810] sm:$0xff]
  %v1306 = vld [vmem:[%s0 + $0x2818] sm:$0xff]
  %v1307 = vld [vmem:[%s0 + $0x2820] sm:$0xff]
  %v1308 = vld [vmem:[%s0 + $0x2828] sm:$0xff]
  %v1309 = vld [vmem:[%s0 + $0x2830] sm:$0xff]
  %v1310 = vld [vmem:[%s0 + $0x2838] sm:$0xff]
  %v1311 = vld [vmem:[%s0 + $0x2840] sm:$0xff]
  %v1312 = vld [vmem:[%s0 + $0x2848] sm:$0xff]
  %v1313 = vld [vmem:[%s0 + $0x2850] sm:$0xff]
  %v1314 = vld [vmem:[%s0 + $0x2858] sm:$0xff]
  %v1315 = vld [vmem:[%s0 + $0x2860] sm:$0xff]
  %v1316 = vld [vmem:[%s0 + $0x2868] sm:$0xff]
  %v1317 = vld [vmem:[%s0 + $0x2870] sm:$0xff]
  %v1318 = vld [vmem:[%s0 + $0x2878] sm:$0xff]
  %v1319 = vld [vmem:[%s0 + $0x2880] sm:$0xff]
  %v1320 = vld [vmem:[%s0 + $0x2888] sm:$0xff]
  %v1321 = vld [vmem:[%s0 + $0x2890] sm:$0xff]
  %v1322 = vld [vmem:[%s0 + $0x2898] sm:$0xff]
  %v1323 = vld [vmem:[%s0 + $0x28a0] sm:$0xff]
  %v1324 = vld [vmem:[%s0 + $0x28a8] sm:$0xff]
  %v1325 = vld [vmem:[%s0 + $0x28b0] sm:$0xff]
  %v1326 = vld [vmem:[%s0 + $0x28b8] sm:$0xff]
  %v1327 = vld [vmem:[%s0 + $0x28c0] sm:$0xff]
  %v1328 = vld [vmem:[%s0 + $0x28c8] sm:$0xff]
  %v1329 = vld [vmem:[%s0 + $0x28d0] sm:$0xff]
  %v1330 = vld [vmem:[%s0 + $0x28d8] sm:$0xff]
  %v1331 = vld [vmem:[%s0 + $0x28e0] sm:$0xff]
  %v1332 = vld [vmem:[%s0 + $0x28e8] sm:$0xff]
  %v1333 = vld [vmem:[%s0 + $0x28f0] sm:$0xff]
  %v1334 = vld [vmem:[%s0 + $0x28f8] sm:$0xff]
  %v1335 = vld [vmem:[%s0 + $0x2900] sm:$0xff]
  %v1336 = vld [vmem:[%s0 + $0x2908] sm:$0xff]
  %v1337 = vld [vmem:[%s0 + $0x2910] sm:$0xff]
  %v1338 = vld [vmem:[%s0 + $0x2918] sm:$0xff]
  %v1339 = vld [vmem:[%s0 + $0x2920] sm:$0xff]
  %v1340 = vld [vmem:[%s0 + $0x2928] sm:$0xff]
  %v1341 = vld [vmem:[%s0 + $0x2930] sm:$0xff]
  %v1342 = vld [vmem:[%s0 + $0x2938] sm:$0xff]
  %v1343 = vld [vmem:[%s0 + $0x2940] sm:$0xff]
  %v1344 = vld [vmem:[%s0 + $0x2948] sm:$0xff]
  %v1345 = vld [vmem:[%s0 + $0x2950] sm:$0xff]
  %v1346 = vld [vmem:[%s0 + $0x2958] sm:$0xff]
  %v1347 = vld [vmem:[%s0 + $0x2960] sm:$0xff]
  %v1348 = vld [vmem:[%s0 + $0x2968] sm:$0xff]
  %v1349 = vld [vmem:[%s0 + $0x2970] sm:$0xff]
  %v1350 = vld [vmem:[%s0 + $0x2978] sm:$0xff]
  %v1351 = vld [vmem:[%s0 + $0x2980] sm:$0xff]
  %v1352 = vld [vmem:[%s0 + $0x2988] sm:$0xff]
  %v1353 = vld [vmem:[%s0 + $0x2990] sm:$0xff]
  %v1354 = vld [vmem:[%s0 + $0x2998] sm:$0xff]
  %v1355 = vld [vmem:[%s0 + $0x29a0] sm:$0xff]
  %v1356 = vld [vmem:[%s0 + $0x29a8] sm:$0xff]
  %v1357 = vld [vmem:[%s0 + $0x29b0] sm:$0xff]
  %v1358 = vld [vmem:[%s0 + $0x29b8] sm:$0xff]
  %v1359 = vld [vmem:[%s0 + $0x29c0] sm:$0xff]
  %v1360 = vld [vmem:[%s0 + $0x29c8] sm:$0xff]
  %v1361 = vld [vmem:[%s0 + $0x29d0] sm:$0xff]
  %v1362 = vld [vmem:[%s0 + $0x29d8] sm:$0xff]
  %v1363 = vld [vmem:[%s0 + $0x29e0] sm:$0xff]
  %v1364 = vld [vmem:[%s0 + $0x29e8] sm:$0xff]
  %v1365 = vld [vmem:[%s0 + $0x29f0] sm:$0xff]
  %v1366 = vld [vmem:[%s0 + $0x29f8] sm:$0xff]
  %v1367 = vld [vmem:[%s0 + $0x2a00] sm:$0xff]
  %v1368 = vld [vmem:[%s0 + $0x2a08] sm:$0xff]
  %v1369 = vld [vmem:[%s0 + $0x2a10] sm:$0xff]
  %v1370 = vld [vmem:[%s0 + $0x2a18] sm:$0xff]
  %v1371 = vld [vmem:[%s0 + $0x2a20] sm:$0xff]
  %v1372 = vld [vmem:[%s0 + $0x2a28] sm:$0xff]
  %v1373 = vld [vmem:[%s0 + $0x2a30] sm:$0xff]
  %v1374 = vld [vmem:[%s0 + $0x2a38] sm:$0xff]
  %v1375 = vld [vmem:[%s0 + $0x2a40] sm:$0xff]
  %v1376 = vld [vmem:[%s0 + $0x2a48] sm:$0xff]
  %v1377 = vld [vmem:[%s0 + $0x2a50] sm:$0xff]
  %v1378 = vld [vmem:[%s0 + $0x2a58] sm:$0xff]
  %v1379 = vld [vmem:[%s0 + $0x2a60] sm:$0xff]
  %v1380 = vld [vmem:[%s0 + $0x2a68] sm:$0xff]
  %v1381 = vld [vmem:[%s0 + $0x2a70] sm:$0xff]
  %v1382 = vld [vmem:[%s0 + $0x2a78] sm:$0xff]
  %v1383 = vld [vmem:[%s0 + $0x2a80] sm:$0xff]
  %v1384 = vld [vmem:[%s0 + $0x2a88] sm:$0xff]
  %v1385 = vld [vmem:[%s0 + $0x2a90] sm:$0xff]
  %v1386 = vld [vmem:[%s0 + $0x2a98] sm:$0xff]
  %v1387 = vld [vmem:[%s0 + $0x2aa0] sm:$0xff]
  %v1388 = vld [vmem:[%s0 + $0x2aa8] sm:$0xff]
  %v1389 = vld [vmem:[%s0 + $0x2ab0] sm:$0xff]
  %v1390 = vld [vmem:[%s0 + $0x2ab8] sm:$0xff]
  %v1391 = vld [vmem:[%s0 + $0x2ac0] sm:$0xff]
  %v1392 = vld [vmem:[%s0 + $0x2ac8] sm:$0xff]
  %v1393 = vld [vmem:[%s0 + $0x2ad0] sm:$0xff]
  %v1394 = vld [vmem:[%s0 + $0x2ad8] sm:$0xff]
  %v1395 = vld [vmem:[%s0 + $0x2ae0] sm:$0xff]
  %v1396 = vld [vmem:[%s0 + $0x2ae8] sm:$0xff]
  %v1397 = vld [vmem:[%s0 + $0x2af0] sm:$0xff]
  %v1398 = vld [vmem:[%s0 + $0x2af8] sm:$0xff]
  %v1399 = vld [vmem:[%s0 + $0x2b00] sm:$0xff]
  %v1400 = vld [vmem:[%s0 + $0x2b08] sm:$0xff]
  %v1401 = vld [vmem:[%s0 + $0x2b10] sm:$0xff]
  %v1402 = vld [vmem:[%s0 + $0x2b18] sm:$0xff]
  %v1403 = vld [vmem:[%s0 + $0x2b20] sm:$0xff]
  %v1404 = vld [vmem:[%s0 + $0x2b28] sm:$0xff]
  %v1405 = vld [vmem:[%s0 + $0x2b30] sm:$0xff]
  %v1406 = vld [vmem:[%s0 + $0x2b38] sm:$0xff]
  %v1407 = vld [vmem:[%s0 + $0x2b40] sm:$0xff]
  %v1408 = vld [vmem:[%s0 + $0x2b48] sm:$0xff]
  %v1409 = vld [vmem:[%s0 + $0x2b50] sm:$0xff]
  %v1410 = vld [vmem:[%s0 + $0x2b58] sm:$0xff]
  %v1411 = vld [vmem:[%s0 + $0x2b60] sm:$0xff]
  %v1412 = vld [vmem:[%s0 + $0x2b68] sm:$0xff]
  %v1413 = vld [vmem:[%s0 + $0x2b70] sm:$0xff]
  %v1414 = vld [vmem:[%s0 + $0x2b78] sm:$0xff]
  %v1415 = vld [vmem:[%s0 + $0x2b80] sm:$0xff]
  %v1416 = vld [vmem:[%s0 + $0x2b88] sm:$0xff]
  %v1417 = vld [vmem:[%s0 + $0x2b90] sm:$0xff]
  %v1418 = vld [vmem:[%s0 + $0x2b98] sm:$0xff]
  %v1419 = vld [vmem:[%s0 + $0x2ba0] sm:$0xff]
  %v1420 = vld [vmem:[%s0 + $0x2ba8] sm:$0xff]
  %v1421 = vld [vmem:[%s0 + $0x2bb0] sm:$0xff]
  %v1422 = vld [vmem:[%s0 + $0x2bb8] sm:$0xff]
  %v1423 = vld [vmem:[%s0 + $0x2bc0] sm:$0xff]
  %v1424 = vld [vmem:[%s0 + $0x2bc8] sm:$0xff]
  %v1425 = vld [vmem:[%s0 + $0x2bd0] sm:$0xff]
  %v1426 = vld [vmem:[%s0 + $0x2bd8] sm:$0xff]
  %v1427 = vld [vmem:[%s0 + $0x2be0] sm:$0xff]
  %v1428 = vld [vmem:[%s0 + $0x2be8] sm:$0xff]
  %v1429 = vld [vmem:[%s0 + $0x2bf0] sm:$0xff]
  %v1430 = vld [vmem:[%s0 + $0x2bf8] sm:$0xff]
  %v1431 = vld [vmem:[%s0 + $0x2c00] sm:$0xff]
  %v1432 = vld [vmem:[%s0 + $0x2c08] sm:$0xff]
  %v1433 = vld [vmem:[%s0 + $0x2c10] sm:$0xff]
  %v1434 = vld [vmem:[%s0 + $0x2c18] sm:$0xff]
  %v1435 = vld [vmem:[%s0 + $0x2c20] sm:$0xff]
  %v1436 = vld [vmem:[%s0 + $0x2c28] sm:$0xff]
  %v1437 = vld [vmem:[%s0 + $0x2c30] sm:$0xff]
  %v1438 = vld [vmem:[%s0 + $0x2c38] sm:$0xff]
  %v1439 = vld [vmem:[%s0 + $0x2c40] sm:$0xff]
  %v1440 = vld [vmem:[%s0 + $0x2c48] sm:$0xff]
  %v1441 = vld [vmem:[%s0 + $0x2c50] sm:$0xff]
  %v1442 = vld [vmem:[%s0 + $0x2c58] sm:$0xff]
  %v1443 = vld [vmem:[%s0 + $0x2c60] sm:$0xff]
  %v1444 = vld [vmem:[%s0 + $0x2c68] sm:$0xff]
  %v1445 = vld [vmem:[%s0 + $0x2c70] sm:$0xff]
  %v1446 = vld [vmem:[%s0 + $0x2c78] sm:$0xff]
  %v1447 = vld [vmem:[%s0 + $0x2c80] sm:$0xff]
  %v1448 = vld [vmem:[%s0 + $0x2c88] sm:$0xff]
  %v1449 = vld [vmem:[%s0 + $0x2c90] sm:$0xff]
  %v1450 = vld [vmem:[%s0 + $0x2c98] sm:$0xff]
  %v1451 = vld [vmem:[%s0 + $0x2ca0] sm:$0xff]
  %v1452 = vld [vmem:[%s0 + $0x2ca8] sm:$0xff]
  %v1453 = vld [vmem:[%s0 + $0x2cb0] sm:$0xff]
  %v1454 = vld [vmem:[%s0 + $0x2cb8] sm:$0xff]
  %v1455 = vld [vmem:[%s0 + $0x2cc0] sm:$0xff]
  %v1456 = vld [vmem:[%s0 + $0x2cc8] sm:$0xff]
  %v1457 = vld [vmem:[%s0 + $0x2cd0] sm:$0xff]
  %v1458 = vld [vmem:[%s0 + $0x2cd8] sm:$0xff]
  %v1459 = vld [vmem:[%s0 + $0x2ce0] sm:$0xff]
  %v1460 = vld [vmem:[%s0 + $0x2ce8] sm:$0xff]
  %v1461 = vld [vmem:[%s0 + $0x2cf0] sm:$0xff]
  %v1462 = vld [vmem:[%s0 + $0x2cf8] sm:$0xff]
  %v1463 = vld [vmem:[%s0 + $0x2d00] sm:$0xff]
  %v1464 = vld [vmem:[%s0 + $0x2d08] sm:$0xff]
  %v1465 = vld [vmem:[%s0 + $0x2d10] sm:$0xff]
  %v1466 = vld [vmem:[%s0 + $0x2d18] sm:$0xff]
  %v1467 = vld [vmem:[%s0 + $0x2d20] sm:$0xff]
  %v1468 = vld [vmem:[%s0 + $0x2d28] sm:$0xff]
  %v1469 = vld [vmem:[%s0 + $0x2d30] sm:$0xff]
  %v1470 = vld [vmem:[%s0 + $0x2d38] sm:$0xff]
  %v1471 = vld [vmem:[%s0 + $0x2d40] sm:$0xff]
  %v1472 = vld [vmem:[%s0 + $0x2d48] sm:$0xff]
  %v1473 = vld [vmem:[%s0 + $0x2d50] sm:$0xff]
  %v1474 = vld [vmem:[%s0 + $0x2d58] sm:$0xff]
  %v1475 = vld [vmem:[%s0 + $0x2d60] sm:$0xff]
  %v1476 = vld [vmem:[%s0 + $0x2d68] sm:$0xff]
  %v1477 = vld [vmem:[%s0 + $0x2d70] sm:$0xff]
  %v1478 = vld [vmem:[%s0 + $0x2d78] sm:$0xff]
  %v1479 = vld [vmem:[%s0 + $0x2d80] sm:$0xff]
  %v1480 = vld [vmem:[%s0 + $0x2d88] sm:$0xff]
  %v1481 = vld [vmem:[%s0 + $0x2d90] sm:$0xff]
  %v1482 = vld [vmem:[%s0 + $0x2d98] sm:$0xff]
  %v1483 = vld [vmem:[%s0 + $0x2da0] sm:$0xff]
  %v1484 = vld [vmem:[%s0 + $0x2da8] sm:$0xff]
  %v1485 = vld [vmem:[%s0 + $0x2db0] sm:$0xff]
  %v1486 = vld [vmem:[%s0 + $0x2db8] sm:$0xff]
  %v1487 = vld [vmem:[%s0 + $0x2dc0] sm:$0xff]
  %v1488 = vld [vmem:[%s0 + $0x2dc8] sm:$0xff]
  %v1489 = vld [vmem:[%s0 + $0x2dd0] sm:$0xff]
  %v1490 = vld [vmem:[%s0 + $0x2dd8] sm:$0xff]
  %v1491 = vld [vmem:[%s0 + $0x2de0] sm:$0xff]
  %v1492 = vld [vmem:[%s0 + $0x2de8] sm:$0xff]
  %v1493 = vld [vmem:[%s0 + $0x2df0] sm:$0xff]
  %v1494 = vld [vmem:[%s0 + $0x2df8] sm:$0xff]
  %v1495 = vld [vmem:[%s0 + $0x2e00] sm:$0xff]
  %v1496 = vld [vmem:[%s0 + $0x2e08] sm:$0xff]
  %v1497 = vld [vmem:[%s0 + $0x2e10] sm:$0xff]
  %v1498 = vld [vmem:[%s0 + $0x2e18] sm:$0xff]
  %v1499 = vld [vmem:[%s0 + $0x2e20] sm:$0xff]
  %v1500 = vld [vmem:[%s0 + $0x2e28] sm:$0xff]
  %v1501 = vld [vmem:[%s0 + $0x2e30] sm:$0xff]
  %v1502 = vld [vmem:[%s0 + $0x2e38] sm:$0xff]
  %v1503 = vld [vmem:[%s0 + $0x2e40] sm:$0xff]
  %v1504 = vld [vmem:[%s0 + $0x2e48] sm:$0xff]
  %v1505 = vld [vmem:[%s0 + $0x2e50] sm:$0xff]
  %v1506 = vld [vmem:[%s0 + $0x2e58] sm:$0xff]
  %v1507 = vld [vmem:[%s0 + $0x2e60] sm:$0xff]
  %v1508 = vld [vmem:[%s0 + $0x2e68] sm:$0xff]
  %v1509 = vld [vmem:[%s0 + $0x2e70] sm:$0xff]
  %v1510 = vld [vmem:[%s0 + $0x2e78] sm:$0xff]
  %v1511 = vld [vmem:[%s0 + $0x2e80] sm:$0xff]
  %v1512 = vld [vmem:[%s0 + $0x2e88] sm:$0xff]
  %v1513 = vld [vmem:[%s0 + $0x2e90] sm:$0xff]
  %v1514 = vld [vmem:[%s0 + $0x2e98] sm:$0xff]
  %v1515 = vld [vmem:[%s0 + $0x2ea0] sm:$0xff]
  %v1516 = vld [vmem:[%s0 + $0x2ea8] sm:$0xff]
  %v1517 = vld [vmem:[%s0 + $0x2eb0] sm:$0xff]
  %v1518 = vld [vmem:[%s0 + $0x2eb8] sm:$0xff]
  %v1519 = vld [vmem:[%s0 + $0x2ec0] sm:$0xff]
  %v1520 = vld [vmem:[%s0 + $0x2ec8] sm:$0xff]
  %v1521 = vld [vmem:[%s0 + $0x2ed0] sm:$0xff]
  %v1522 = vld [vmem:[%s0 + $0x2ed8] sm:$0xff]
  %v1523 = vld [vmem:[%s0 + $0x2ee0] sm:$0xff]
  %v1524 = vld [vmem:[%s0 + $0x2ee8] sm:$0xff]
  %v1525 = vld [vmem:[%s0 + $0x2ef0] sm:$0xff]
  %v1526 = vld [vmem:[%s0 + $0x2ef8] sm:$0xff]
  %v1527 = vld [vmem:[%s0 + $0x2f00] sm:$0xff]
  %v1528 = vld [vmem:[%s0 + $0x2f08] sm:$0xff]
  %v1529 = vld [vmem:[%s0 + $0x2f10] sm:$0xff]
  %v1530 = vld [vmem:[%s0 + $0x2f18] sm:$0xff]
  %v1531 = vld [vmem:[%s0 + $0x2f20] sm:$0xff]
  %v1532 = vld [vmem:[%s0 + $0x2f28] sm:$0xff]
  %v1533 = vld [vmem:[%s0 + $0x2f30] sm:$0xff]
  %v1534 = vld [vmem:[%s0 + $0x2f38] sm:$0xff]
  %v1535 = vld [vmem:[%s0 + $0x2f40] sm:$0xff]
  %v1536 = vld [vmem:[%s0 + $0x2f48] sm:$0xff]
  %v1537 = vld [vmem:[%s0 + $0x2f50] sm:$0xff]
  %v1538 = vld [vmem:[%s0 + $0x2f58] sm:$0xff]
  %v1539 = vld [vmem:[%s0 + $0x2f60] sm:$0xff]
  %v1540 = vld [vmem:[%s0 + $0x2f68] sm:$0xff]
  %v1541 = vld [vmem:[%s0 + $0x2f70] sm:$0xff]
  %v1542 = vld [vmem:[%s0 + $0x2f78] sm:$0xff]
  %v1543 = vld [vmem:[%s0 + $0x2f80] sm:$0xff]
  %v1544 = vld [vmem:[%s0 + $0x2f88] sm:$0xff]
  %v1545 = vld [vmem:[%s0 + $0x2f90] sm:$0xff]
  %v1546 = vld [vmem:[%s0 + $0x2f98] sm:$0xff]
  %v1547 = vld [vmem:[%s0 + $0x2fa0] sm:$0xff]
  %v1548 = vld [vmem:[%s0 + $0x2fa8] sm:$0xff]
  %v1549 = vld [vmem:[%s0 + $0x2fb0] sm:$0xff]
  %v1550 = vld [vmem:[%s0 + $0x2fb8] sm:$0xff]
  %v1551 = vld [vmem:[%s0 + $0x2fc0] sm:$0xff]
  %v1552 = vld [vmem:[%s0 + $0x2fc8] sm:$0xff]
  %v1553 = vld [vmem:[%s0 + $0x2fd0] sm:$0xff]
  %v1554 = vld [vmem:[%s0 + $0x2fd8] sm:$0xff]
  %v1555 = vld [vmem:[%s0 + $0x2fe0] sm:$0xff]
  %v1556 = vld [vmem:[%s0 + $0x2fe8] sm:$0xff]
  %v1557 = vld [vmem:[%s0 + $0x2ff0] sm:$0xff]
  %v1558 = vld [vmem:[%s0 + $0x2ff8] sm:$0xff]
  %v1559 = vld [vmem:[%s0 + $0x3000] sm:$0xff]
  %v1560 = vld [vmem:[%s0 + $0x3008] sm:$0xff]
  %v1561 = vld [vmem:[%s0 + $0x3010] sm:$0xff]
  %v1562 = vld [vmem:[%s0 + $0x3018] sm:$0xff]
  %v1563 = vld [vmem:[%s0 + $0x3020] sm:$0xff]
  %v1564 = vld [vmem:[%s0 + $0x3028] sm:$0xff]
  %v1565 = vld [vmem:[%s0 + $0x3030] sm:$0xff]
  %v1566 = vld [vmem:[%s0 + $0x3038] sm:$0xff]
  %v1567 = vld [vmem:[%s0 + $0x3040] sm:$0xff]
  %v1568 = vld [vmem:[%s0 + $0x3048] sm:$0xff]
  %v1569 = vld [vmem:[%s0 + $0x3050] sm:$0xff]
  %v1570 = vld [vmem:[%s0 + $0x3058] sm:$0xff]
  %v1571 = vld [vmem:[%s0 + $0x3060] sm:$0xff]
  %v1572 = vld [vmem:[%s0 + $0x3068] sm:$0xff]
  %v1573 = vld [vmem:[%s0 + $0x3070] sm:$0xff]
  %v1574 = vld [vmem:[%s0 + $0x3078] sm:$0xff]
  %v1575 = vld [vmem:[%s0 + $0x3080] sm:$0xff]
  %v1576 = vld [vmem:[%s0 + $0x3088] sm:$0xff]
  %v1577 = vld [vmem:[%s0 + $0x3090] sm:$0xff]
  %v1578 = vld [vmem:[%s0 + $0x3098] sm:$0xff]
  %v1579 = vld [vmem:[%s0 + $0x30a0] sm:$0xff]
  %v1580 = vld [vmem:[%s0 + $0x30a8] sm:$0xff]
  %v1581 = vld [vmem:[%s0 + $0x30b0] sm:$0xff]
  %v1582 = vld [vmem:[%s0 + $0x30b8] sm:$0xff]
  %v1583 = vld [vmem:[%s0 + $0x30c0] sm:$0xff]
  %v1584 = vld [vmem:[%s0 + $0x30c8] sm:$0xff]
  %v1585 = vld [vmem:[%s0 + $0x30d0] sm:$0xff]
  %v1586 = vld [vmem:[%s0 + $0x30d8] sm:$0xff]
  %v1587 = vld [vmem:[%s0 + $0x30e0] sm:$0xff]
  %v1588 = vld [vmem:[%s0 + $0x30e8] sm:$0xff]
  %v1589 = vld [vmem:[%s0 + $0x30f0] sm:$0xff]
  %v1590 = vld [vmem:[%s0 + $0x30f8] sm:$0xff]
  %v1591 = vld [vmem:[%s0 + $0x3100] sm:$0xff]
  %v1592 = vld [vmem:[%s0 + $0x3108] sm:$0xff]
  %v1593 = vld [vmem:[%s0 + $0x3110] sm:$0xff]
  %v1594 = vld [vmem:[%s0 + $0x3118] sm:$0xff]
  %v1595 = vld [vmem:[%s0 + $0x3120] sm:$0xff]
  %v1596 = vld [vmem:[%s0 + $0x3128] sm:$0xff]
  %v1597 = vld [vmem:[%s0 + $0x3130] sm:$0xff]
  %v1598 = vld [vmem:[%s0 + $0x3138] sm:$0xff]
  %v1599 = vld [vmem:[%s0 + $0x3140] sm:$0xff]
  %v1600 = vld [vmem:[%s0 + $0x3148] sm:$0xff]
  %v1601 = vld [vmem:[%s0 + $0x3150] sm:$0xff]
  %v1602 = vld [vmem:[%s0 + $0x3158] sm:$0xff]
  %v1603 = vld [vmem:[%s0 + $0x3160] sm:$0xff]
  %v1604 = vld [vmem:[%s0 + $0x3168] sm:$0xff]
  %v1605 = vld [vmem:[%s0 + $0x3170] sm:$0xff]
  %v1606 = vld [vmem:[%s0 + $0x3178] sm:$0xff]
  %v1607 = vld [vmem:[%s0 + $0x3180] sm:$0xff]
  %v1608 = vld [vmem:[%s0 + $0x3188] sm:$0xff]
  %v1609 = vld [vmem:[%s0 + $0x3190] sm:$0xff]
  %v1610 = vld [vmem:[%s0 + $0x3198] sm:$0xff]
  %v1611 = vld [vmem:[%s0 + $0x31a0] sm:$0xff]
  %v1612 = vld [vmem:[%s0 + $0x31a8] sm:$0xff]
  %v1613 = vld [vmem:[%s0 + $0x31b0] sm:$0xff]
  %v1614 = vld [vmem:[%s0 + $0x31b8] sm:$0xff]
  %v1615 = vld [vmem:[%s0 + $0x31c0] sm:$0xff]
  %v1616 = vld [vmem:[%s0 + $0x31c8] sm:$0xff]
  %v1617 = vld [vmem:[%s0 + $0x31d0] sm:$0xff]
  %v1618 = vld [vmem:[%s0 + $0x31d8] sm:$0xff]
  %v1619 = vld [vmem:[%s0 + $0x31e0] sm:$0xff]
  %v1620 = vld [vmem:[%s0 + $0x31e8] sm:$0xff]
  %v1621 = vld [vmem:[%s0 + $0x31f0] sm:$0xff]
  %v1622 = vld [vmem:[%s0 + $0x31f8] sm:$0xff]
  %v1623 = vld [vmem:[%s0 + $0x3200] sm:$0xff]
  %v1624 = vld [vmem:[%s0 + $0x3208] sm:$0xff]
  %v1625 = vld [vmem:[%s0 + $0x3210] sm:$0xff]
  %v1626 = vld [vmem:[%s0 + $0x3218] sm:$0xff]
  %v1627 = vld [vmem:[%s0 + $0x3220] sm:$0xff]
  %v1628 = vld [vmem:[%s0 + $0x3228] sm:$0xff]
  %v1629 = vld [vmem:[%s0 + $0x3230] sm:$0xff]
  %v1630 = vld [vmem:[%s0 + $0x3238] sm:$0xff]
  %v1631 = vld [vmem:[%s0 + $0x3240] sm:$0xff]
  %v1632 = vld [vmem:[%s0 + $0x3248] sm:$0xff]
  %v1633 = vld [vmem:[%s0 + $0x3250] sm:$0xff]
  %v1634 = vld [vmem:[%s0 + $0x3258] sm:$0xff]
  %v1635 = vld [vmem:[%s0 + $0x3260] sm:$0xff]
  %v1636 = vld [vmem:[%s0 + $0x3268] sm:$0xff]
  %v1637 = vld [vmem:[%s0 + $0x3270] sm:$0xff]
  %v1638 = vld [vmem:[%s0 + $0x3278] sm:$0xff]
  %v1639 = vld [vmem:[%s0 + $0x3280] sm:$0xff]
  %v1640 = vld [vmem:[%s0 + $0x3288] sm:$0xff]
  %v1641 = vld [vmem:[%s0 + $0x3290] sm:$0xff]
  %v1642 = vld [vmem:[%s0 + $0x3298] sm:$0xff]
  %v1643 = vld [vmem:[%s0 + $0x32a0] sm:$0xff]
  %v1644 = vld [vmem:[%s0 + $0x32a8] sm:$0xff]
  %v1645 = vld [vmem:[%s0 + $0x32b0] sm:$0xff]
  %v1646 = vld [vmem:[%s0 + $0x32b8] sm:$0xff]
  %v1647 = vld [vmem:[%s0 + $0x32c0] sm:$0xff]
  %v1648 = vld [vmem:[%s0 + $0x32c8] sm:$0xff]
  %v1649 = vld [vmem:[%s0 + $0x32d0] sm:$0xff]
  %v1650 = vld [vmem:[%s0 + $0x32d8] sm:$0xff]
  %v1651 = vld [vmem:[%s0 + $0x32e0] sm:$0xff]
  %v1652 = vld [vmem:[%s0 + $0x32e8] sm:$0xff]
  %v1653 = vld [vmem:[%s0 + $0x32f0] sm:$0xff]
  %v1654 = vld [vmem:[%s0 + $0x32f8] sm:$0xff]
  %v1655 = vld [vmem:[%s0 + $0x3300] sm:$0xff]
  %v1656 = vld [vmem:[%s0 + $0x3308] sm:$0xff]
  %v1657 = vld [vmem:[%s0 + $0x3310] sm:$0xff]
  %v1658 = vld [vmem:[%s0 + $0x3318] sm:$0xff]
  %v1659 = vld [vmem:[%s0 + $0x3320] sm:$0xff]
  %v1660 = vld [vmem:[%s0 + $0x3328] sm:$0xff]
  %v1661 = vld [vmem:[%s0 + $0x3330] sm:$0xff]
  %v1662 = vld [vmem:[%s0 + $0x3338] sm:$0xff]
  %v1663 = vld [vmem:[%s0 + $0x3340] sm:$0xff]
  %v1664 = vld [vmem:[%s0 + $0x3348] sm:$0xff]
  %v1665 = vld [vmem:[%s0 + $0x3350] sm:$0xff]
  %v1666 = vld [vmem:[%s0 + $0x3358] sm:$0xff]
  %v1667 = vld [vmem:[%s0 + $0x3360] sm:$0xff]
  %v1668 = vld [vmem:[%s0 + $0x3368] sm:$0xff]
  %v1669 = vld [vmem:[%s0 + $0x3370] sm:$0xff]
  %v1670 = vld [vmem:[%s0 + $0x3378] sm:$0xff]
  %v1671 = vld [vmem:[%s0 + $0x3380] sm:$0xff]
  %v1672 = vld [vmem:[%s0 + $0x3388] sm:$0xff]
  %v1673 = vld [vmem:[%s0 + $0x3390] sm:$0xff]
  %v1674 = vld [vmem:[%s0 + $0x3398] sm:$0xff]
  %v1675 = vld [vmem:[%s0 + $0x33a0] sm:$0xff]
  %v1676 = vld [vmem:[%s0 + $0x33a8] sm:$0xff]
  %v1677 = vld [vmem:[%s0 + $0x33b0] sm:$0xff]
  %v1678 = vld [vmem:[%s0 + $0x33b8] sm:$0xff]
  %v1679 = vld [vmem:[%s0 + $0x33c0] sm:$0xff]
  %v1680 = vld [vmem:[%s0 + $0x33c8] sm:$0xff]
  %v1681 = vld [vmem:[%s0 + $0x33d0] sm:$0xff]
  %v1682 = vld [vmem:[%s0 + $0x33d8] sm:$0xff]
  %v1683 = vld [vmem:[%s0 + $0x33e0] sm:$0xff]
  %v1684 = vld [vmem:[%s0 + $0x33e8] sm:$0xff]
  %v1685 = vld [vmem:[%s0 + $0x33f0] sm:$0xff]
  %v1686 = vld [vmem:[%s0 + $0x33f8] sm:$0xff]
  %v1687 = vld [vmem:[%s0 + $0x3400] sm:$0xff]
  %v1688 = vld [vmem:[%s0 + $0x3408] sm:$0xff]
  %v1689 = vld [vmem:[%s0 + $0x3410] sm:$0xff]
  %v1690 = vld [vmem:[%s0 + $0x3418] sm:$0xff]
  %v1691 = vld [vmem:[%s0 + $0x3420] sm:$0xff]
  %v1692 = vld [vmem:[%s0 + $0x3428] sm:$0xff]
  %v1693 = vld [vmem:[%s0 + $0x3430] sm:$0xff]
  %v1694 = vld [vmem:[%s0 + $0x3438] sm:$0xff]
  %v1695 = vld [vmem:[%s0 + $0x3440] sm:$0xff]
  %v1696 = vld [vmem:[%s0 + $0x3448] sm:$0xff]
  %v1697 = vld [vmem:[%s0 + $0x3450] sm:$0xff]
  %v1698 = vld [vmem:[%s0 + $0x3458] sm:$0xff]
  %v1699 = vld [vmem:[%s0 + $0x3460] sm:$0xff]
  %v1700 = vld [vmem:[%s0 + $0x3468] sm:$0xff]
  %v1701 = vld [vmem:[%s0 + $0x3470] sm:$0xff]
  %v1702 = vld [vmem:[%s0 + $0x3478] sm:$0xff]
  %v1703 = vld [vmem:[%s0 + $0x3480] sm:$0xff]
  %v1704 = vld [vmem:[%s0 + $0x3488] sm:$0xff]
  %v1705 = vld [vmem:[%s0 + $0x3490] sm:$0xff]
  %v1706 = vld [vmem:[%s0 + $0x3498] sm:$0xff]
  %v1707 = vld [vmem:[%s0 + $0x34a0] sm:$0xff]
  %v1708 = vld [vmem:[%s0 + $0x34a8] sm:$0xff]
  %v1709 = vld [vmem:[%s0 + $0x34b0] sm:$0xff]
  %v1710 = vld [vmem:[%s0 + $0x34b8] sm:$0xff]
  %v1711 = vld [vmem:[%s0 + $0x34c0] sm:$0xff]
  %v1712 = vld [vmem:[%s0 + $0x34c8] sm:$0xff]
  %v1713 = vld [vmem:[%s0 + $0x34d0] sm:$0xff]
  %v1714 = vld [vmem:[%s0 + $0x34d8] sm:$0xff]
  %v1715 = vld [vmem:[%s0 + $0x34e0] sm:$0xff]
  %v1716 = vld [vmem:[%s0 + $0x34e8] sm:$0xff]
  %v1717 = vld [vmem:[%s0 + $0x34f0] sm:$0xff]
  %v1718 = vld [vmem:[%s0 + $0x34f8] sm:$0xff]
  %v1719 = vld [vmem:[%s0 + $0x3500] sm:$0xff]
  %v1720 = vld [vmem:[%s0 + $0x3508] sm:$0xff]
  %v1721 = vld [vmem:[%s0 + $0x3510] sm:$0xff]
  %v1722 = vld [vmem:[%s0 + $0x3518] sm:$0xff]
  %v1723 = vld [vmem:[%s0 + $0x3520] sm:$0xff]
  %v1724 = vld [vmem:[%s0 + $0x3528] sm:$0xff]
  %v1725 = vld [vmem:[%s0 + $0x3530] sm:$0xff]
  %v1726 = vld [vmem:[%s0 + $0x3538] sm:$0xff]
  %v1727 = vld [vmem:[%s0 + $0x3540] sm:$0xff]
  %v1728 = vld [vmem:[%s0 + $0x3548] sm:$0xff]
  %v1729 = vld [vmem:[%s0 + $0x3550] sm:$0xff]
  %v1730 = vld [vmem:[%s0 + $0x3558] sm:$0xff]
  %v1731 = vld [vmem:[%s0 + $0x3560] sm:$0xff]
  %v1732 = vld [vmem:[%s0 + $0x3568] sm:$0xff]
  %v1733 = vld [vmem:[%s0 + $0x3570] sm:$0xff]
  %v1734 = vld [vmem:[%s0 + $0x3578] sm:$0xff]
  %v1735 = vld [vmem:[%s0 + $0x3580] sm:$0xff]
  %v1736 = vld [vmem:[%s0 + $0x3588] sm:$0xff]
  %v1737 = vld [vmem:[%s0 + $0x3590] sm:$0xff]
  %v1738 = vld [vmem:[%s0 + $0x3598] sm:$0xff]
  %v1739 = vld [vmem:[%s0 + $0x35a0] sm:$0xff]
  %v1740 = vld [vmem:[%s0 + $0x35a8] sm:$0xff]
  %v1741 = vld [vmem:[%s0 + $0x35b0] sm:$0xff]
  %v1742 = vld [vmem:[%s0 + $0x35b8] sm:$0xff]
  %v1743 = vld [vmem:[%s0 + $0x35c0] sm:$0xff]
  %v1744 = vld [vmem:[%s0 + $0x35c8] sm:$0xff]
  %v1745 = vld [vmem:[%s0 + $0x35d0] sm:$0xff]
  %v1746 = vld [vmem:[%s0 + $0x35d8] sm:$0xff]
  %v1747 = vld [vmem:[%s0 + $0x35e0] sm:$0xff]
  %v1748 = vld [vmem:[%s0 + $0x35e8] sm:$0xff]
  %v1749 = vld [vmem:[%s0 + $0x35f0] sm:$0xff]
  %v1750 = vld [vmem:[%s0 + $0x35f8] sm:$0xff]
  %v1751 = vld [vmem:[%s0 + $0x3600] sm:$0xff]
  %v1752 = vld [vmem:[%s0 + $0x3608] sm:$0xff]
  %v1753 = vld [vmem:[%s0 + $0x3610] sm:$0xff]
  %v1754 = vld [vmem:[%s0 + $0x3618] sm:$0xff]
  %v1755 = vld [vmem:[%s0 + $0x3620] sm:$0xff]
  %v1756 = vld [vmem:[%s0 + $0x3628] sm:$0xff]
  %v1757 = vld [vmem:[%s0 + $0x3630] sm:$0xff]
  %v1758 = vld [vmem:[%s0 + $0x3638] sm:$0xff]
  %v1759 = vld [vmem:[%s0 + $0x3640] sm:$0xff]
  %v1760 = vld [vmem:[%s0 + $0x3648] sm:$0xff]
  %v1761 = vld [vmem:[%s0 + $0x3650] sm:$0xff]
  %v1762 = vld [vmem:[%s0 + $0x3658] sm:$0xff]
  %v1763 = vld [vmem:[%s0 + $0x3660] sm:$0xff]
  %v1764 = vld [vmem:[%s0 + $0x3668] sm:$0xff]
  %v1765 = vld [vmem:[%s0 + $0x3670] sm:$0xff]
  %v1766 = vld [vmem:[%s0 + $0x3678] sm:$0xff]
  %v1767 = vld [vmem:[%s0 + $0x3680] sm:$0xff]
  %v1768 = vld [vmem:[%s0 + $0x3688] sm:$0xff]
  %v1769 = vld [vmem:[%s0 + $0x3690] sm:$0xff]
  %v1770 = vld [vmem:[%s0 + $0x3698] sm:$0xff]
  %v1771 = vld [vmem:[%s0 + $0x36a0] sm:$0xff]
  %v1772 = vld [vmem:[%s0 + $0x36a8] sm:$0xff]
  %v1773 = vld [vmem:[%s0 + $0x36b0] sm:$0xff]
  %v1774 = vld [vmem:[%s0 + $0x36b8] sm:$0xff]
  %v1775 = vld [vmem:[%s0 + $0x36c0] sm:$0xff]
  %v1776 = vld [vmem:[%s0 + $0x36c8] sm:$0xff]
  %v1777 = vld [vmem:[%s0 + $0x36d0] sm:$0xff]
  %v1778 = vld [vmem:[%s0 + $0x36d8] sm:$0xff]
  %v1779 = vld [vmem:[%s0 + $0x36e0] sm:$0xff]
  %v1780 = vld [vmem:[%s0 + $0x36e8] sm:$0xff]
  %v1781 = vld [vmem:[%s0 + $0x36f0] sm:$0xff]
  %v1782 = vld [vmem:[%s0 + $0x36f8] sm:$0xff]
  %v1783 = vld [vmem:[%s0 + $0x3700] sm:$0xff]
  %v1784 = vld [vmem:[%s0 + $0x3708] sm:$0xff]
  %v1785 = vld [vmem:[%s0 + $0x3710] sm:$0xff]
  %v1786 = vld [vmem:[%s0 + $0x3718] sm:$0xff]
  %v1787 = vld [vmem:[%s0 + $0x3720] sm:$0xff]
  %v1788 = vld [vmem:[%s0 + $0x3728] sm:$0xff]
  %v1789 = vld [vmem:[%s0 + $0x3730] sm:$0xff]
  %v1790 = vld [vmem:[%s0 + $0x3738] sm:$0xff]
  %v1791 = vld [vmem:[%s0 + $0x3740] sm:$0xff]
  %v1792 = vld [vmem:[%s0 + $0x3748] sm:$0xff]
  %v1793 = vld [vmem:[%s0 + $0x3750] sm:$0xff]
  %v1794 = vld [vmem:[%s0 + $0x3758] sm:$0xff]
  %v1795 = vld [vmem:[%s0 + $0x3760] sm:$0xff]
  %v1796 = vld [vmem:[%s0 + $0x3768] sm:$0xff]
  %v1797 = vld [vmem:[%s0 + $0x3770] sm:$0xff]
  %v1798 = vld [vmem:[%s0 + $0x3778] sm:$0xff]
  %v1799 = vld [vmem:[%s0 + $0x3780] sm:$0xff]
  %v1800 = vld [vmem:[%s0 + $0x3788] sm:$0xff]
  %v1801 = vld [vmem:[%s0 + $0x3790] sm:$0xff]
  %v1802 = vld [vmem:[%s0 + $0x3798] sm:$0xff]
  %v1803 = vld [vmem:[%s0 + $0x37a0] sm:$0xff]
  %v1804 = vld [vmem:[%s0 + $0x37a8] sm:$0xff]
  %v1805 = vld [vmem:[%s0 + $0x37b0] sm:$0xff]
  %v1806 = vld [vmem:[%s0 + $0x37b8] sm:$0xff]
  %v1807 = vld [vmem:[%s0 + $0x37c0] sm:$0xff]
  %v1808 = vld [vmem:[%s0 + $0x37c8] sm:$0xff]
  %v1809 = vld [vmem:[%s0 + $0x37d0] sm:$0xff]
  %v1810 = vld [vmem:[%s0 + $0x37d8] sm:$0xff]
  %v1811 = vld [vmem:[%s0 + $0x37e0] sm:$0xff]
  %v1812 = vld [vmem:[%s0 + $0x37e8] sm:$0xff]
  %v1813 = vld [vmem:[%s0 + $0x37f0] sm:$0xff]
  %v1814 = vld [vmem:[%s0 + $0x37f8] sm:$0xff]
  %v1815 = vadd.f32 %v23, %v24
  %v1816 = vadd.f32 %v1815, %v25
  %v1817 = vadd.f32 %v1816, %v26
  %v1818 = vadd.f32 %v1817, %v27
  %v1819 = vadd.f32 %v1818, %v28
  %vm1820 = vcmask 130048
  %v1821 = vsel %vm1820, %v29, 0.0
  %v1822 = vadd.f32 %v1819, %v1821
  %1823 = vadd.xlane.f32.xlu0 %v1822
  %v1824 = vpop.xlane.xlu0 %1823
  %v1825 = vadd.f32 %v30, %v31
  %v1826 = vadd.f32 %v1825, %v32
  %v1827 = vadd.f32 %v1826, %v33
  %v1828 = vadd.f32 %v1827, %v34
  %v1829 = vadd.f32 %v1828, %v35
  %v1830 = vsel %vm1820, %v36, 0.0
  %v1831 = vadd.f32 %v1829, %v1830
  %1832 = vadd.xlane.f32.xlu0 %v1831
  %v1833 = vpop.xlane.xlu0 %1832
  %v1834 = vadd.f32 %v37, %v38
  %v1835 = vadd.f32 %v1834, %v39
  %v1836 = vadd.f32 %v1835, %v40
  %v1837 = vadd.f32 %v1836, %v41
  %v1838 = vadd.f32 %v1837, %v42
  %v1839 = vsel %vm1820, %v43, 0.0
  %v1840 = vadd.f32 %v1838, %v1839
  %1841 = vadd.xlane.f32.xlu0 %v1840
  %v1842 = vpop.xlane.xlu0 %1841
  %v1843 = vadd.f32 %v44, %v45
  %v1844 = vadd.f32 %v1843, %v46
  %v1845 = vadd.f32 %v1844, %v47
  %v1846 = vadd.f32 %v1845, %v48
  %v1847 = vadd.f32 %v1846, %v49
  %v1848 = vsel %vm1820, %v50, 0.0
  %v1849 = vadd.f32 %v1847, %v1848
  %1850 = vadd.xlane.f32.xlu0 %v1849
  %v1851 = vpop.xlane.xlu0 %1850
  %v1852 = vadd.f32 %v51, %v52
  %v1853 = vadd.f32 %v1852, %v53
  %v1854 = vadd.f32 %v1853, %v54
  %v1855 = vadd.f32 %v1854, %v55
  %v1856 = vadd.f32 %v1855, %v56
  %v1857 = vsel %vm1820, %v57, 0.0
  %v1858 = vadd.f32 %v1856, %v1857
  %1859 = vadd.xlane.f32.xlu0 %v1858
  %v1860 = vpop.xlane.xlu0 %1859
  %v1861 = vadd.f32 %v58, %v59
  %v1862 = vadd.f32 %v1861, %v60
  %v1863 = vadd.f32 %v1862, %v61
  %v1864 = vadd.f32 %v1863, %v62
  %v1865 = vadd.f32 %v1864, %v63
  %v1866 = vsel %vm1820, %v64, 0.0
  %v1867 = vadd.f32 %v1865, %v1866
  %1868 = vadd.xlane.f32.xlu0 %v1867
  %v1869 = vpop.xlane.xlu0 %1868
  %v1870 = vadd.f32 %v65, %v66
  %v1871 = vadd.f32 %v1870, %v67
  %v1872 = vadd.f32 %v1871, %v68
  %v1873 = vadd.f32 %v1872, %v69
  %v1874 = vadd.f32 %v1873, %v70
  %v1875 = vsel %vm1820, %v71, 0.0
  %v1876 = vadd.f32 %v1874, %v1875
  %1877 = vadd.xlane.f32.xlu0 %v1876
  %v1878 = vpop.xlane.xlu0 %1877
  %v1879 = vadd.f32 %v72, %v73
  %v1880 = vadd.f32 %v1879, %v74
  %v1881 = vadd.f32 %v1880, %v75
  %v1882 = vadd.f32 %v1881, %v76
  %v1883 = vadd.f32 %v1882, %v77
  %v1884 = vsel %vm1820, %v78, 0.0
  %v1885 = vadd.f32 %v1883, %v1884
  %1886 = vadd.xlane.f32.xlu0 %v1885
  %v1887 = vpop.xlane.xlu0 %1886
  %v1888 = vadd.f32 %v79, %v80
  %v1889 = vadd.f32 %v1888, %v81
  %v1890 = vadd.f32 %v1889, %v82
  %v1891 = vadd.f32 %v1890, %v83
  %v1892 = vadd.f32 %v1891, %v84
  %v1893 = vsel %vm1820, %v85, 0.0
  %v1894 = vadd.f32 %v1892, %v1893
  %1895 = vadd.xlane.f32.xlu0 %v1894
  %v1896 = vpop.xlane.xlu0 %1895
  %v1897 = vadd.f32 %v86, %v87
  %v1898 = vadd.f32 %v1897, %v88
  %v1899 = vadd.f32 %v1898, %v89
  %v1900 = vadd.f32 %v1899, %v90
  %v1901 = vadd.f32 %v1900, %v91
  %v1902 = vsel %vm1820, %v92, 0.0
  %v1903 = vadd.f32 %v1901, %v1902
  %1904 = vadd.xlane.f32.xlu0 %v1903
  %v1905 = vpop.xlane.xlu0 %1904
  %v1906 = vadd.f32 %v93, %v94
  %v1907 = vadd.f32 %v1906, %v95
  %v1908 = vadd.f32 %v1907, %v96
  %v1909 = vadd.f32 %v1908, %v97
  %v1910 = vadd.f32 %v1909, %v98
  %v1911 = vsel %vm1820, %v99, 0.0
  %v1912 = vadd.f32 %v1910, %v1911
  %1913 = vadd.xlane.f32.xlu0 %v1912
  %v1914 = vpop.xlane.xlu0 %1913
  %v1915 = vadd.f32 %v100, %v101
  %v1916 = vadd.f32 %v1915, %v102
  %v1917 = vadd.f32 %v1916, %v103
  %v1918 = vadd.f32 %v1917, %v104
  %v1919 = vadd.f32 %v1918, %v105
  %v1920 = vsel %vm1820, %v106, 0.0
  %v1921 = vadd.f32 %v1919, %v1920
  %1922 = vadd.xlane.f32.xlu0 %v1921
  %v1923 = vpop.xlane.xlu0 %1922
  %v1924 = vadd.f32 %v107, %v108
  %v1925 = vadd.f32 %v1924, %v109
  %v1926 = vadd.f32 %v1925, %v110
  %v1927 = vadd.f32 %v1926, %v111
  %v1928 = vadd.f32 %v1927, %v112
  %v1929 = vsel %vm1820, %v113, 0.0
  %v1930 = vadd.f32 %v1928, %v1929
  %1931 = vadd.xlane.f32.xlu0 %v1930
  %v1932 = vpop.xlane.xlu0 %1931
  %v1933 = vadd.f32 %v114, %v115
  %v1934 = vadd.f32 %v1933, %v116
  %v1935 = vadd.f32 %v1934, %v117
  %v1936 = vadd.f32 %v1935, %v118
  %v1937 = vadd.f32 %v1936, %v119
  %v1938 = vsel %vm1820, %v120, 0.0
  %v1939 = vadd.f32 %v1937, %v1938
  %1940 = vadd.xlane.f32.xlu0 %v1939
  %v1941 = vpop.xlane.xlu0 %1940
  %v1942 = vadd.f32 %v121, %v122
  %v1943 = vadd.f32 %v1942, %v123
  %v1944 = vadd.f32 %v1943, %v124
  %v1945 = vadd.f32 %v1944, %v125
  %v1946 = vadd.f32 %v1945, %v126
  %v1947 = vsel %vm1820, %v127, 0.0
  %v1948 = vadd.f32 %v1946, %v1947
  %1949 = vadd.xlane.f32.xlu0 %v1948
  %v1950 = vpop.xlane.xlu0 %1949
  %v1951 = vadd.f32 %v128, %v129
  %v1952 = vadd.f32 %v1951, %v130
  %v1953 = vadd.f32 %v1952, %v131
  %v1954 = vadd.f32 %v1953, %v132
  %v1955 = vadd.f32 %v1954, %v133
  %v1956 = vsel %vm1820, %v134, 0.0
  %v1957 = vadd.f32 %v1955, %v1956
  %1958 = vadd.xlane.f32.xlu0 %v1957
  %v1959 = vpop.xlane.xlu0 %1958
  %v1960 = vadd.f32 %v135, %v136
  %v1961 = vadd.f32 %v1960, %v137
  %v1962 = vadd.f32 %v1961, %v138
  %v1963 = vadd.f32 %v1962, %v139
  %v1964 = vadd.f32 %v1963, %v140
  %v1965 = vsel %vm1820, %v141, 0.0
  %v1966 = vadd.f32 %v1964, %v1965
  %1967 = vadd.xlane.f32.xlu0 %v1966
  %v1968 = vpop.xlane.xlu0 %1967
  %v1969 = vadd.f32 %v142, %v143
  %v1970 = vadd.f32 %v1969, %v144
  %v1971 = vadd.f32 %v1970, %v145
  %v1972 = vadd.f32 %v1971, %v146
  %v1973 = vadd.f32 %v1972, %v147
  %v1974 = vsel %vm1820, %v148, 0.0
  %v1975 = vadd.f32 %v1973, %v1974
  %1976 = vadd.xlane.f32.xlu0 %v1975
  %v1977 = vpop.xlane.xlu0 %1976
  %v1978 = vadd.f32 %v149, %v150
  %v1979 = vadd.f32 %v1978, %v151
  %v1980 = vadd.f32 %v1979, %v152
  %v1981 = vadd.f32 %v1980, %v153
  %v1982 = vadd.f32 %v1981, %v154
  %v1983 = vsel %vm1820, %v155, 0.0
  %v1984 = vadd.f32 %v1982, %v1983
  %1985 = vadd.xlane.f32.xlu0 %v1984
  %v1986 = vpop.xlane.xlu0 %1985
  %v1987 = vadd.f32 %v156, %v157
  %v1988 = vadd.f32 %v1987, %v158
  %v1989 = vadd.f32 %v1988, %v159
  %v1990 = vadd.f32 %v1989, %v160
  %v1991 = vadd.f32 %v1990, %v161
  %v1992 = vsel %vm1820, %v162, 0.0
  %v1993 = vadd.f32 %v1991, %v1992
  %1994 = vadd.xlane.f32.xlu0 %v1993
  %v1995 = vpop.xlane.xlu0 %1994
  %v1996 = vadd.f32 %v163, %v164
  %v1997 = vadd.f32 %v1996, %v165
  %v1998 = vadd.f32 %v1997, %v166
  %v1999 = vadd.f32 %v1998, %v167
  %v2000 = vadd.f32 %v1999, %v168
  %v2001 = vsel %vm1820, %v169, 0.0
  %v2002 = vadd.f32 %v2000, %v2001
  %2003 = vadd.xlane.f32.xlu0 %v2002
  %v2004 = vpop.xlane.xlu0 %2003
  %v2005 = vadd.f32 %v170, %v171
  %v2006 = vadd.f32 %v2005, %v172
  %v2007 = vadd.f32 %v2006, %v173
  %v2008 = vadd.f32 %v2007, %v174
  %v2009 = vadd.f32 %v2008, %v175
  %v2010 = vsel %vm1820, %v176, 0.0
  %v2011 = vadd.f32 %v2009, %v2010
  %2012 = vadd.xlane.f32.xlu0 %v2011
  %v2013 = vpop.xlane.xlu0 %2012
  %v2014 = vadd.f32 %v177, %v178
  %v2015 = vadd.f32 %v2014, %v179
  %v2016 = vadd.f32 %v2015, %v180
  %v2017 = vadd.f32 %v2016, %v181
  %v2018 = vadd.f32 %v2017, %v182
  %v2019 = vsel %vm1820, %v183, 0.0
  %v2020 = vadd.f32 %v2018, %v2019
  %2021 = vadd.xlane.f32.xlu0 %v2020
  %v2022 = vpop.xlane.xlu0 %2021
  %v2023 = vadd.f32 %v184, %v185
  %v2024 = vadd.f32 %v2023, %v186
  %v2025 = vadd.f32 %v2024, %v187
  %v2026 = vadd.f32 %v2025, %v188
  %v2027 = vadd.f32 %v2026, %v189
  %v2028 = vsel %vm1820, %v190, 0.0
  %v2029 = vadd.f32 %v2027, %v2028
  %2030 = vadd.xlane.f32.xlu0 %v2029
  %v2031 = vpop.xlane.xlu0 %2030
  %v2032 = vadd.f32 %v191, %v192
  %v2033 = vadd.f32 %v2032, %v193
  %v2034 = vadd.f32 %v2033, %v194
  %v2035 = vadd.f32 %v2034, %v195
  %v2036 = vadd.f32 %v2035, %v196
  %v2037 = vsel %vm1820, %v197, 0.0
  %v2038 = vadd.f32 %v2036, %v2037
  %2039 = vadd.xlane.f32.xlu0 %v2038
  %v2040 = vpop.xlane.xlu0 %2039
  %v2041 = vadd.f32 %v198, %v199
  %v2042 = vadd.f32 %v2041, %v200
  %v2043 = vadd.f32 %v2042, %v201
  %v2044 = vadd.f32 %v2043, %v202
  %v2045 = vadd.f32 %v2044, %v203
  %v2046 = vsel %vm1820, %v204, 0.0
  %v2047 = vadd.f32 %v2045, %v2046
  %2048 = vadd.xlane.f32.xlu0 %v2047
  %v2049 = vpop.xlane.xlu0 %2048
  %v2050 = vadd.f32 %v205, %v206
  %v2051 = vadd.f32 %v2050, %v207
  %v2052 = vadd.f32 %v2051, %v208
  %v2053 = vadd.f32 %v2052, %v209
  %v2054 = vadd.f32 %v2053, %v210
  %v2055 = vsel %vm1820, %v211, 0.0
  %v2056 = vadd.f32 %v2054, %v2055
  %2057 = vadd.xlane.f32.xlu0 %v2056
  %v2058 = vpop.xlane.xlu0 %2057
  %v2059 = vadd.f32 %v212, %v213
  %v2060 = vadd.f32 %v2059, %v214
  %v2061 = vadd.f32 %v2060, %v215
  %v2062 = vadd.f32 %v2061, %v216
  %v2063 = vadd.f32 %v2062, %v217
  %v2064 = vsel %vm1820, %v218, 0.0
  %v2065 = vadd.f32 %v2063, %v2064
  %2066 = vadd.xlane.f32.xlu0 %v2065
  %v2067 = vpop.xlane.xlu0 %2066
  %v2068 = vadd.f32 %v219, %v220
  %v2069 = vadd.f32 %v2068, %v221
  %v2070 = vadd.f32 %v2069, %v222
  %v2071 = vadd.f32 %v2070, %v223
  %v2072 = vadd.f32 %v2071, %v224
  %v2073 = vsel %vm1820, %v225, 0.0
  %v2074 = vadd.f32 %v2072, %v2073
  %2075 = vadd.xlane.f32.xlu0 %v2074
  %v2076 = vpop.xlane.xlu0 %2075
  %v2077 = vadd.f32 %v226, %v227
  %v2078 = vadd.f32 %v2077, %v228
  %v2079 = vadd.f32 %v2078, %v229
  %v2080 = vadd.f32 %v2079, %v230
  %v2081 = vadd.f32 %v2080, %v231
  %v2082 = vsel %vm1820, %v232, 0.0
  %v2083 = vadd.f32 %v2081, %v2082
  %2084 = vadd.xlane.f32.xlu0 %v2083
  %v2085 = vpop.xlane.xlu0 %2084
  %v2086 = vadd.f32 %v233, %v234
  %v2087 = vadd.f32 %v2086, %v235
  %v2088 = vadd.f32 %v2087, %v236
  %v2089 = vadd.f32 %v2088, %v237
  %v2090 = vadd.f32 %v2089, %v238
  %v2091 = vsel %vm1820, %v239, 0.0
  %v2092 = vadd.f32 %v2090, %v2091
  %2093 = vadd.xlane.f32.xlu0 %v2092
  %v2094 = vpop.xlane.xlu0 %2093
  %v2095 = vadd.f32 %v240, %v241
  %v2096 = vadd.f32 %v2095, %v242
  %v2097 = vadd.f32 %v2096, %v243
  %v2098 = vadd.f32 %v2097, %v244
  %v2099 = vadd.f32 %v2098, %v245
  %v2100 = vsel %vm1820, %v246, 0.0
  %v2101 = vadd.f32 %v2099, %v2100
  %2102 = vadd.xlane.f32.xlu0 %v2101
  %v2103 = vpop.xlane.xlu0 %2102
  %v2104 = vadd.f32 %v247, %v248
  %v2105 = vadd.f32 %v2104, %v249
  %v2106 = vadd.f32 %v2105, %v250
  %v2107 = vadd.f32 %v2106, %v251
  %v2108 = vadd.f32 %v2107, %v252
  %v2109 = vsel %vm1820, %v253, 0.0
  %v2110 = vadd.f32 %v2108, %v2109
  %2111 = vadd.xlane.f32.xlu0 %v2110
  %v2112 = vpop.xlane.xlu0 %2111
  %v2113 = vadd.f32 %v254, %v255
  %v2114 = vadd.f32 %v2113, %v256
  %v2115 = vadd.f32 %v2114, %v257
  %v2116 = vadd.f32 %v2115, %v258
  %v2117 = vadd.f32 %v2116, %v259
  %v2118 = vsel %vm1820, %v260, 0.0
  %v2119 = vadd.f32 %v2117, %v2118
  %2120 = vadd.xlane.f32.xlu0 %v2119
  %v2121 = vpop.xlane.xlu0 %2120
  %v2122 = vadd.f32 %v261, %v262
  %v2123 = vadd.f32 %v2122, %v263
  %v2124 = vadd.f32 %v2123, %v264
  %v2125 = vadd.f32 %v2124, %v265
  %v2126 = vadd.f32 %v2125, %v266
  %v2127 = vsel %vm1820, %v267, 0.0
  %v2128 = vadd.f32 %v2126, %v2127
  %2129 = vadd.xlane.f32.xlu0 %v2128
  %v2130 = vpop.xlane.xlu0 %2129
  %v2131 = vadd.f32 %v268, %v269
  %v2132 = vadd.f32 %v2131, %v270
  %v2133 = vadd.f32 %v2132, %v271
  %v2134 = vadd.f32 %v2133, %v272
  %v2135 = vadd.f32 %v2134, %v273
  %v2136 = vsel %vm1820, %v274, 0.0
  %v2137 = vadd.f32 %v2135, %v2136
  %2138 = vadd.xlane.f32.xlu0 %v2137
  %v2139 = vpop.xlane.xlu0 %2138
  %v2140 = vadd.f32 %v275, %v276
  %v2141 = vadd.f32 %v2140, %v277
  %v2142 = vadd.f32 %v2141, %v278
  %v2143 = vadd.f32 %v2142, %v279
  %v2144 = vadd.f32 %v2143, %v280
  %v2145 = vsel %vm1820, %v281, 0.0
  %v2146 = vadd.f32 %v2144, %v2145
  %2147 = vadd.xlane.f32.xlu0 %v2146
  %v2148 = vpop.xlane.xlu0 %2147
  %v2149 = vadd.f32 %v282, %v283
  %v2150 = vadd.f32 %v2149, %v284
  %v2151 = vadd.f32 %v2150, %v285
  %v2152 = vadd.f32 %v2151, %v286
  %v2153 = vadd.f32 %v2152, %v287
  %v2154 = vsel %vm1820, %v288, 0.0
  %v2155 = vadd.f32 %v2153, %v2154
  %2156 = vadd.xlane.f32.xlu0 %v2155
  %v2157 = vpop.xlane.xlu0 %2156
  %v2158 = vadd.f32 %v289, %v290
  %v2159 = vadd.f32 %v2158, %v291
  %v2160 = vadd.f32 %v2159, %v292
  %v2161 = vadd.f32 %v2160, %v293
  %v2162 = vadd.f32 %v2161, %v294
  %v2163 = vsel %vm1820, %v295, 0.0
  %v2164 = vadd.f32 %v2162, %v2163
  %2165 = vadd.xlane.f32.xlu0 %v2164
  %v2166 = vpop.xlane.xlu0 %2165
  %v2167 = vadd.f32 %v296, %v297
  %v2168 = vadd.f32 %v2167, %v298
  %v2169 = vadd.f32 %v2168, %v299
  %v2170 = vadd.f32 %v2169, %v300
  %v2171 = vadd.f32 %v2170, %v301
  %v2172 = vsel %vm1820, %v302, 0.0
  %v2173 = vadd.f32 %v2171, %v2172
  %2174 = vadd.xlane.f32.xlu0 %v2173
  %v2175 = vpop.xlane.xlu0 %2174
  %v2176 = vadd.f32 %v303, %v304
  %v2177 = vadd.f32 %v2176, %v305
  %v2178 = vadd.f32 %v2177, %v306
  %v2179 = vadd.f32 %v2178, %v307
  %v2180 = vadd.f32 %v2179, %v308
  %v2181 = vsel %vm1820, %v309, 0.0
  %v2182 = vadd.f32 %v2180, %v2181
  %2183 = vadd.xlane.f32.xlu0 %v2182
  %v2184 = vpop.xlane.xlu0 %2183
  %v2185 = vadd.f32 %v310, %v311
  %v2186 = vadd.f32 %v2185, %v312
  %v2187 = vadd.f32 %v2186, %v313
  %v2188 = vadd.f32 %v2187, %v314
  %v2189 = vadd.f32 %v2188, %v315
  %v2190 = vsel %vm1820, %v316, 0.0
  %v2191 = vadd.f32 %v2189, %v2190
  %2192 = vadd.xlane.f32.xlu0 %v2191
  %v2193 = vpop.xlane.xlu0 %2192
  %v2194 = vadd.f32 %v317, %v318
  %v2195 = vadd.f32 %v2194, %v319
  %v2196 = vadd.f32 %v2195, %v320
  %v2197 = vadd.f32 %v2196, %v321
  %v2198 = vadd.f32 %v2197, %v322
  %v2199 = vsel %vm1820, %v323, 0.0
  %v2200 = vadd.f32 %v2198, %v2199
  %2201 = vadd.xlane.f32.xlu0 %v2200
  %v2202 = vpop.xlane.xlu0 %2201
  %v2203 = vadd.f32 %v324, %v325
  %v2204 = vadd.f32 %v2203, %v326
  %v2205 = vadd.f32 %v2204, %v327
  %v2206 = vadd.f32 %v2205, %v328
  %v2207 = vadd.f32 %v2206, %v329
  %v2208 = vsel %vm1820, %v330, 0.0
  %v2209 = vadd.f32 %v2207, %v2208
  %2210 = vadd.xlane.f32.xlu0 %v2209
  %v2211 = vpop.xlane.xlu0 %2210
  %v2212 = vadd.f32 %v331, %v332
  %v2213 = vadd.f32 %v2212, %v333
  %v2214 = vadd.f32 %v2213, %v334
  %v2215 = vadd.f32 %v2214, %v335
  %v2216 = vadd.f32 %v2215, %v336
  %v2217 = vsel %vm1820, %v337, 0.0
  %v2218 = vadd.f32 %v2216, %v2217
  %2219 = vadd.xlane.f32.xlu0 %v2218
  %v2220 = vpop.xlane.xlu0 %2219
  %v2221 = vadd.f32 %v338, %v339
  %v2222 = vadd.f32 %v2221, %v340
  %v2223 = vadd.f32 %v2222, %v341
  %v2224 = vadd.f32 %v2223, %v342
  %v2225 = vadd.f32 %v2224, %v343
  %v2226 = vsel %vm1820, %v344, 0.0
  %v2227 = vadd.f32 %v2225, %v2226
  %2228 = vadd.xlane.f32.xlu0 %v2227
  %v2229 = vpop.xlane.xlu0 %2228
  %v2230 = vadd.f32 %v345, %v346
  %v2231 = vadd.f32 %v2230, %v347
  %v2232 = vadd.f32 %v2231, %v348
  %v2233 = vadd.f32 %v2232, %v349
  %v2234 = vadd.f32 %v2233, %v350
  %v2235 = vsel %vm1820, %v351, 0.0
  %v2236 = vadd.f32 %v2234, %v2235
  %2237 = vadd.xlane.f32.xlu0 %v2236
  %v2238 = vpop.xlane.xlu0 %2237
  %v2239 = vadd.f32 %v352, %v353
  %v2240 = vadd.f32 %v2239, %v354
  %v2241 = vadd.f32 %v2240, %v355
  %v2242 = vadd.f32 %v2241, %v356
  %v2243 = vadd.f32 %v2242, %v357
  %v2244 = vsel %vm1820, %v358, 0.0
  %v2245 = vadd.f32 %v2243, %v2244
  %2246 = vadd.xlane.f32.xlu0 %v2245
  %v2247 = vpop.xlane.xlu0 %2246
  %v2248 = vadd.f32 %v359, %v360
  %v2249 = vadd.f32 %v2248, %v361
  %v2250 = vadd.f32 %v2249, %v362
  %v2251 = vadd.f32 %v2250, %v363
  %v2252 = vadd.f32 %v2251, %v364
  %v2253 = vsel %vm1820, %v365, 0.0
  %v2254 = vadd.f32 %v2252, %v2253
  %2255 = vadd.xlane.f32.xlu0 %v2254
  %v2256 = vpop.xlane.xlu0 %2255
  %v2257 = vadd.f32 %v366, %v367
  %v2258 = vadd.f32 %v2257, %v368
  %v2259 = vadd.f32 %v2258, %v369
  %v2260 = vadd.f32 %v2259, %v370
  %v2261 = vadd.f32 %v2260, %v371
  %v2262 = vsel %vm1820, %v372, 0.0
  %v2263 = vadd.f32 %v2261, %v2262
  %2264 = vadd.xlane.f32.xlu0 %v2263
  %v2265 = vpop.xlane.xlu0 %2264
  %v2266 = vadd.f32 %v373, %v374
  %v2267 = vadd.f32 %v2266, %v375
  %v2268 = vadd.f32 %v2267, %v376
  %v2269 = vadd.f32 %v2268, %v377
  %v2270 = vadd.f32 %v2269, %v378
  %v2271 = vsel %vm1820, %v379, 0.0
  %v2272 = vadd.f32 %v2270, %v2271
  %2273 = vadd.xlane.f32.xlu0 %v2272
  %v2274 = vpop.xlane.xlu0 %2273
  %v2275 = vadd.f32 %v380, %v381
  %v2276 = vadd.f32 %v2275, %v382
  %v2277 = vadd.f32 %v2276, %v383
  %v2278 = vadd.f32 %v2277, %v384
  %v2279 = vadd.f32 %v2278, %v385
  %v2280 = vsel %vm1820, %v386, 0.0
  %v2281 = vadd.f32 %v2279, %v2280
  %2282 = vadd.xlane.f32.xlu0 %v2281
  %v2283 = vpop.xlane.xlu0 %2282
  %v2284 = vadd.f32 %v387, %v388
  %v2285 = vadd.f32 %v2284, %v389
  %v2286 = vadd.f32 %v2285, %v390
  %v2287 = vadd.f32 %v2286, %v391
  %v2288 = vadd.f32 %v2287, %v392
  %v2289 = vsel %vm1820, %v393, 0.0
  %v2290 = vadd.f32 %v2288, %v2289
  %2291 = vadd.xlane.f32.xlu0 %v2290
  %v2292 = vpop.xlane.xlu0 %2291
  %v2293 = vadd.f32 %v394, %v395
  %v2294 = vadd.f32 %v2293, %v396
  %v2295 = vadd.f32 %v2294, %v397
  %v2296 = vadd.f32 %v2295, %v398
  %v2297 = vadd.f32 %v2296, %v399
  %v2298 = vsel %vm1820, %v400, 0.0
  %v2299 = vadd.f32 %v2297, %v2298
  %2300 = vadd.xlane.f32.xlu0 %v2299
  %v2301 = vpop.xlane.xlu0 %2300
  %v2302 = vadd.f32 %v401, %v402
  %v2303 = vadd.f32 %v2302, %v403
  %v2304 = vadd.f32 %v2303, %v404
  %v2305 = vadd.f32 %v2304, %v405
  %v2306 = vadd.f32 %v2305, %v406
  %v2307 = vsel %vm1820, %v407, 0.0
  %v2308 = vadd.f32 %v2306, %v2307
  %2309 = vadd.xlane.f32.xlu0 %v2308
  %v2310 = vpop.xlane.xlu0 %2309
  %v2311 = vadd.f32 %v408, %v409
  %v2312 = vadd.f32 %v2311, %v410
  %v2313 = vadd.f32 %v2312, %v411
  %v2314 = vadd.f32 %v2313, %v412
  %v2315 = vadd.f32 %v2314, %v413
  %v2316 = vsel %vm1820, %v414, 0.0
  %v2317 = vadd.f32 %v2315, %v2316
  %2318 = vadd.xlane.f32.xlu0 %v2317
  %v2319 = vpop.xlane.xlu0 %2318
  %v2320 = vadd.f32 %v415, %v416
  %v2321 = vadd.f32 %v2320, %v417
  %v2322 = vadd.f32 %v2321, %v418
  %v2323 = vadd.f32 %v2322, %v419
  %v2324 = vadd.f32 %v2323, %v420
  %v2325 = vsel %vm1820, %v421, 0.0
  %v2326 = vadd.f32 %v2324, %v2325
  %2327 = vadd.xlane.f32.xlu0 %v2326
  %v2328 = vpop.xlane.xlu0 %2327
  %v2329 = vadd.f32 %v422, %v423
  %v2330 = vadd.f32 %v2329, %v424
  %v2331 = vadd.f32 %v2330, %v425
  %v2332 = vadd.f32 %v2331, %v426
  %v2333 = vadd.f32 %v2332, %v427
  %v2334 = vsel %vm1820, %v428, 0.0
  %v2335 = vadd.f32 %v2333, %v2334
  %2336 = vadd.xlane.f32.xlu0 %v2335
  %v2337 = vpop.xlane.xlu0 %2336
  %v2338 = vadd.f32 %v429, %v430
  %v2339 = vadd.f32 %v2338, %v431
  %v2340 = vadd.f32 %v2339, %v432
  %v2341 = vadd.f32 %v2340, %v433
  %v2342 = vadd.f32 %v2341, %v434
  %v2343 = vsel %vm1820, %v435, 0.0
  %v2344 = vadd.f32 %v2342, %v2343
  %2345 = vadd.xlane.f32.xlu0 %v2344
  %v2346 = vpop.xlane.xlu0 %2345
  %v2347 = vadd.f32 %v436, %v437
  %v2348 = vadd.f32 %v2347, %v438
  %v2349 = vadd.f32 %v2348, %v439
  %v2350 = vadd.f32 %v2349, %v440
  %v2351 = vadd.f32 %v2350, %v441
  %v2352 = vsel %vm1820, %v442, 0.0
  %v2353 = vadd.f32 %v2351, %v2352
  %2354 = vadd.xlane.f32.xlu0 %v2353
  %v2355 = vpop.xlane.xlu0 %2354
  %v2356 = vadd.f32 %v443, %v444
  %v2357 = vadd.f32 %v2356, %v445
  %v2358 = vadd.f32 %v2357, %v446
  %v2359 = vadd.f32 %v2358, %v447
  %v2360 = vadd.f32 %v2359, %v448
  %v2361 = vsel %vm1820, %v449, 0.0
  %v2362 = vadd.f32 %v2360, %v2361
  %2363 = vadd.xlane.f32.xlu0 %v2362
  %v2364 = vpop.xlane.xlu0 %2363
  %v2365 = vadd.f32 %v450, %v451
  %v2366 = vadd.f32 %v2365, %v452
  %v2367 = vadd.f32 %v2366, %v453
  %v2368 = vadd.f32 %v2367, %v454
  %v2369 = vadd.f32 %v2368, %v455
  %v2370 = vsel %vm1820, %v456, 0.0
  %v2371 = vadd.f32 %v2369, %v2370
  %2372 = vadd.xlane.f32.xlu0 %v2371
  %v2373 = vpop.xlane.xlu0 %2372
  %v2374 = vadd.f32 %v457, %v458
  %v2375 = vadd.f32 %v2374, %v459
  %v2376 = vadd.f32 %v2375, %v460
  %v2377 = vadd.f32 %v2376, %v461
  %v2378 = vadd.f32 %v2377, %v462
  %v2379 = vsel %vm1820, %v463, 0.0
  %v2380 = vadd.f32 %v2378, %v2379
  %2381 = vadd.xlane.f32.xlu0 %v2380
  %v2382 = vpop.xlane.xlu0 %2381
  %v2383 = vadd.f32 %v464, %v465
  %v2384 = vadd.f32 %v2383, %v466
  %v2385 = vadd.f32 %v2384, %v467
  %v2386 = vadd.f32 %v2385, %v468
  %v2387 = vadd.f32 %v2386, %v469
  %v2388 = vsel %vm1820, %v470, 0.0
  %v2389 = vadd.f32 %v2387, %v2388
  %2390 = vadd.xlane.f32.xlu0 %v2389
  %v2391 = vpop.xlane.xlu0 %2390
  %v2392 = vadd.f32 %v471, %v472
  %v2393 = vadd.f32 %v2392, %v473
  %v2394 = vadd.f32 %v2393, %v474
  %v2395 = vadd.f32 %v2394, %v475
  %v2396 = vadd.f32 %v2395, %v476
  %v2397 = vsel %vm1820, %v477, 0.0
  %v2398 = vadd.f32 %v2396, %v2397
  %2399 = vadd.xlane.f32.xlu0 %v2398
  %v2400 = vpop.xlane.xlu0 %2399
  %v2401 = vadd.f32 %v478, %v479
  %v2402 = vadd.f32 %v2401, %v480
  %v2403 = vadd.f32 %v2402, %v481
  %v2404 = vadd.f32 %v2403, %v482
  %v2405 = vadd.f32 %v2404, %v483
  %v2406 = vsel %vm1820, %v484, 0.0
  %v2407 = vadd.f32 %v2405, %v2406
  %2408 = vadd.xlane.f32.xlu0 %v2407
  %v2409 = vpop.xlane.xlu0 %2408
  %v2410 = vadd.f32 %v485, %v486
  %v2411 = vadd.f32 %v2410, %v487
  %v2412 = vadd.f32 %v2411, %v488
  %v2413 = vadd.f32 %v2412, %v489
  %v2414 = vadd.f32 %v2413, %v490
  %v2415 = vsel %vm1820, %v491, 0.0
  %v2416 = vadd.f32 %v2414, %v2415
  %2417 = vadd.xlane.f32.xlu0 %v2416
  %v2418 = vpop.xlane.xlu0 %2417
  %v2419 = vadd.f32 %v492, %v493
  %v2420 = vadd.f32 %v2419, %v494
  %v2421 = vadd.f32 %v2420, %v495
  %v2422 = vadd.f32 %v2421, %v496
  %v2423 = vadd.f32 %v2422, %v497
  %v2424 = vsel %vm1820, %v498, 0.0
  %v2425 = vadd.f32 %v2423, %v2424
  %2426 = vadd.xlane.f32.xlu0 %v2425
  %v2427 = vpop.xlane.xlu0 %2426
  %v2428 = vadd.f32 %v499, %v500
  %v2429 = vadd.f32 %v2428, %v501
  %v2430 = vadd.f32 %v2429, %v502
  %v2431 = vadd.f32 %v2430, %v503
  %v2432 = vadd.f32 %v2431, %v504
  %v2433 = vsel %vm1820, %v505, 0.0
  %v2434 = vadd.f32 %v2432, %v2433
  %2435 = vadd.xlane.f32.xlu0 %v2434
  %v2436 = vpop.xlane.xlu0 %2435
  %v2437 = vadd.f32 %v506, %v507
  %v2438 = vadd.f32 %v2437, %v508
  %v2439 = vadd.f32 %v2438, %v509
  %v2440 = vadd.f32 %v2439, %v510
  %v2441 = vadd.f32 %v2440, %v511
  %v2442 = vsel %vm1820, %v512, 0.0
  %v2443 = vadd.f32 %v2441, %v2442
  %2444 = vadd.xlane.f32.xlu0 %v2443
  %v2445 = vpop.xlane.xlu0 %2444
  %v2446 = vadd.f32 %v513, %v514
  %v2447 = vadd.f32 %v2446, %v515
  %v2448 = vadd.f32 %v2447, %v516
  %v2449 = vadd.f32 %v2448, %v517
  %v2450 = vadd.f32 %v2449, %v518
  %v2451 = vsel %vm1820, %v519, 0.0
  %v2452 = vadd.f32 %v2450, %v2451
  %2453 = vadd.xlane.f32.xlu0 %v2452
  %v2454 = vpop.xlane.xlu0 %2453
  %v2455 = vadd.f32 %v520, %v521
  %v2456 = vadd.f32 %v2455, %v522
  %v2457 = vadd.f32 %v2456, %v523
  %v2458 = vadd.f32 %v2457, %v524
  %v2459 = vadd.f32 %v2458, %v525
  %v2460 = vsel %vm1820, %v526, 0.0
  %v2461 = vadd.f32 %v2459, %v2460
  %2462 = vadd.xlane.f32.xlu0 %v2461
  %v2463 = vpop.xlane.xlu0 %2462
  %v2464 = vadd.f32 %v527, %v528
  %v2465 = vadd.f32 %v2464, %v529
  %v2466 = vadd.f32 %v2465, %v530
  %v2467 = vadd.f32 %v2466, %v531
  %v2468 = vadd.f32 %v2467, %v532
  %v2469 = vsel %vm1820, %v533, 0.0
  %v2470 = vadd.f32 %v2468, %v2469
  %2471 = vadd.xlane.f32.xlu0 %v2470
  %v2472 = vpop.xlane.xlu0 %2471
  %v2473 = vadd.f32 %v534, %v535
  %v2474 = vadd.f32 %v2473, %v536
  %v2475 = vadd.f32 %v2474, %v537
  %v2476 = vadd.f32 %v2475, %v538
  %v2477 = vadd.f32 %v2476, %v539
  %v2478 = vsel %vm1820, %v540, 0.0
  %v2479 = vadd.f32 %v2477, %v2478
  %2480 = vadd.xlane.f32.xlu0 %v2479
  %v2481 = vpop.xlane.xlu0 %2480
  %v2482 = vadd.f32 %v541, %v542
  %v2483 = vadd.f32 %v2482, %v543
  %v2484 = vadd.f32 %v2483, %v544
  %v2485 = vadd.f32 %v2484, %v545
  %v2486 = vadd.f32 %v2485, %v546
  %v2487 = vsel %vm1820, %v547, 0.0
  %v2488 = vadd.f32 %v2486, %v2487
  %2489 = vadd.xlane.f32.xlu0 %v2488
  %v2490 = vpop.xlane.xlu0 %2489
  %v2491 = vadd.f32 %v548, %v549
  %v2492 = vadd.f32 %v2491, %v550
  %v2493 = vadd.f32 %v2492, %v551
  %v2494 = vadd.f32 %v2493, %v552
  %v2495 = vadd.f32 %v2494, %v553
  %v2496 = vsel %vm1820, %v554, 0.0
  %v2497 = vadd.f32 %v2495, %v2496
  %2498 = vadd.xlane.f32.xlu0 %v2497
  %v2499 = vpop.xlane.xlu0 %2498
  %v2500 = vadd.f32 %v555, %v556
  %v2501 = vadd.f32 %v2500, %v557
  %v2502 = vadd.f32 %v2501, %v558
  %v2503 = vadd.f32 %v2502, %v559
  %v2504 = vadd.f32 %v2503, %v560
  %v2505 = vsel %vm1820, %v561, 0.0
  %v2506 = vadd.f32 %v2504, %v2505
  %2507 = vadd.xlane.f32.xlu0 %v2506
  %v2508 = vpop.xlane.xlu0 %2507
  %v2509 = vadd.f32 %v562, %v563
  %v2510 = vadd.f32 %v2509, %v564
  %v2511 = vadd.f32 %v2510, %v565
  %v2512 = vadd.f32 %v2511, %v566
  %v2513 = vadd.f32 %v2512, %v567
  %v2514 = vsel %vm1820, %v568, 0.0
  %v2515 = vadd.f32 %v2513, %v2514
  %2516 = vadd.xlane.f32.xlu0 %v2515
  %v2517 = vpop.xlane.xlu0 %2516
  %v2518 = vadd.f32 %v569, %v570
  %v2519 = vadd.f32 %v2518, %v571
  %v2520 = vadd.f32 %v2519, %v572
  %v2521 = vadd.f32 %v2520, %v573
  %v2522 = vadd.f32 %v2521, %v574
  %v2523 = vsel %vm1820, %v575, 0.0
  %v2524 = vadd.f32 %v2522, %v2523
  %2525 = vadd.xlane.f32.xlu0 %v2524
  %v2526 = vpop.xlane.xlu0 %2525
  %v2527 = vadd.f32 %v576, %v577
  %v2528 = vadd.f32 %v2527, %v578
  %v2529 = vadd.f32 %v2528, %v579
  %v2530 = vadd.f32 %v2529, %v580
  %v2531 = vadd.f32 %v2530, %v581
  %v2532 = vsel %vm1820, %v582, 0.0
  %v2533 = vadd.f32 %v2531, %v2532
  %2534 = vadd.xlane.f32.xlu0 %v2533
  %v2535 = vpop.xlane.xlu0 %2534
  %v2536 = vadd.f32 %v583, %v584
  %v2537 = vadd.f32 %v2536, %v585
  %v2538 = vadd.f32 %v2537, %v586
  %v2539 = vadd.f32 %v2538, %v587
  %v2540 = vadd.f32 %v2539, %v588
  %v2541 = vsel %vm1820, %v589, 0.0
  %v2542 = vadd.f32 %v2540, %v2541
  %2543 = vadd.xlane.f32.xlu0 %v2542
  %v2544 = vpop.xlane.xlu0 %2543
  %v2545 = vadd.f32 %v590, %v591
  %v2546 = vadd.f32 %v2545, %v592
  %v2547 = vadd.f32 %v2546, %v593
  %v2548 = vadd.f32 %v2547, %v594
  %v2549 = vadd.f32 %v2548, %v595
  %v2550 = vsel %vm1820, %v596, 0.0
  %v2551 = vadd.f32 %v2549, %v2550
  %2552 = vadd.xlane.f32.xlu0 %v2551
  %v2553 = vpop.xlane.xlu0 %2552
  %v2554 = vadd.f32 %v597, %v598
  %v2555 = vadd.f32 %v2554, %v599
  %v2556 = vadd.f32 %v2555, %v600
  %v2557 = vadd.f32 %v2556, %v601
  %v2558 = vadd.f32 %v2557, %v602
  %v2559 = vsel %vm1820, %v603, 0.0
  %v2560 = vadd.f32 %v2558, %v2559
  %2561 = vadd.xlane.f32.xlu0 %v2560
  %v2562 = vpop.xlane.xlu0 %2561
  %v2563 = vadd.f32 %v604, %v605
  %v2564 = vadd.f32 %v2563, %v606
  %v2565 = vadd.f32 %v2564, %v607
  %v2566 = vadd.f32 %v2565, %v608
  %v2567 = vadd.f32 %v2566, %v609
  %v2568 = vsel %vm1820, %v610, 0.0
  %v2569 = vadd.f32 %v2567, %v2568
  %2570 = vadd.xlane.f32.xlu0 %v2569
  %v2571 = vpop.xlane.xlu0 %2570
  %v2572 = vadd.f32 %v611, %v612
  %v2573 = vadd.f32 %v2572, %v613
  %v2574 = vadd.f32 %v2573, %v614
  %v2575 = vadd.f32 %v2574, %v615
  %v2576 = vadd.f32 %v2575, %v616
  %v2577 = vsel %vm1820, %v617, 0.0
  %v2578 = vadd.f32 %v2576, %v2577
  %2579 = vadd.xlane.f32.xlu0 %v2578
  %v2580 = vpop.xlane.xlu0 %2579
  %v2581 = vadd.f32 %v618, %v619
  %v2582 = vadd.f32 %v2581, %v620
  %v2583 = vadd.f32 %v2582, %v621
  %v2584 = vadd.f32 %v2583, %v622
  %v2585 = vadd.f32 %v2584, %v623
  %v2586 = vsel %vm1820, %v624, 0.0
  %v2587 = vadd.f32 %v2585, %v2586
  %2588 = vadd.xlane.f32.xlu0 %v2587
  %v2589 = vpop.xlane.xlu0 %2588
  %v2590 = vadd.f32 %v625, %v626
  %v2591 = vadd.f32 %v2590, %v627
  %v2592 = vadd.f32 %v2591, %v628
  %v2593 = vadd.f32 %v2592, %v629
  %v2594 = vadd.f32 %v2593, %v630
  %v2595 = vsel %vm1820, %v631, 0.0
  %v2596 = vadd.f32 %v2594, %v2595
  %2597 = vadd.xlane.f32.xlu0 %v2596
  %v2598 = vpop.xlane.xlu0 %2597
  %v2599 = vadd.f32 %v632, %v633
  %v2600 = vadd.f32 %v2599, %v634
  %v2601 = vadd.f32 %v2600, %v635
  %v2602 = vadd.f32 %v2601, %v636
  %v2603 = vadd.f32 %v2602, %v637
  %v2604 = vsel %vm1820, %v638, 0.0
  %v2605 = vadd.f32 %v2603, %v2604
  %2606 = vadd.xlane.f32.xlu0 %v2605
  %v2607 = vpop.xlane.xlu0 %2606
  %v2608 = vadd.f32 %v639, %v640
  %v2609 = vadd.f32 %v2608, %v641
  %v2610 = vadd.f32 %v2609, %v642
  %v2611 = vadd.f32 %v2610, %v643
  %v2612 = vadd.f32 %v2611, %v644
  %v2613 = vsel %vm1820, %v645, 0.0
  %v2614 = vadd.f32 %v2612, %v2613
  %2615 = vadd.xlane.f32.xlu0 %v2614
  %v2616 = vpop.xlane.xlu0 %2615
  %v2617 = vadd.f32 %v646, %v647
  %v2618 = vadd.f32 %v2617, %v648
  %v2619 = vadd.f32 %v2618, %v649
  %v2620 = vadd.f32 %v2619, %v650
  %v2621 = vadd.f32 %v2620, %v651
  %v2622 = vsel %vm1820, %v652, 0.0
  %v2623 = vadd.f32 %v2621, %v2622
  %2624 = vadd.xlane.f32.xlu0 %v2623
  %v2625 = vpop.xlane.xlu0 %2624
  %v2626 = vadd.f32 %v653, %v654
  %v2627 = vadd.f32 %v2626, %v655
  %v2628 = vadd.f32 %v2627, %v656
  %v2629 = vadd.f32 %v2628, %v657
  %v2630 = vadd.f32 %v2629, %v658
  %v2631 = vsel %vm1820, %v659, 0.0
  %v2632 = vadd.f32 %v2630, %v2631
  %2633 = vadd.xlane.f32.xlu0 %v2632
  %v2634 = vpop.xlane.xlu0 %2633
  %v2635 = vadd.f32 %v660, %v661
  %v2636 = vadd.f32 %v2635, %v662
  %v2637 = vadd.f32 %v2636, %v663
  %v2638 = vadd.f32 %v2637, %v664
  %v2639 = vadd.f32 %v2638, %v665
  %v2640 = vsel %vm1820, %v666, 0.0
  %v2641 = vadd.f32 %v2639, %v2640
  %2642 = vadd.xlane.f32.xlu0 %v2641
  %v2643 = vpop.xlane.xlu0 %2642
  %v2644 = vadd.f32 %v667, %v668
  %v2645 = vadd.f32 %v2644, %v669
  %v2646 = vadd.f32 %v2645, %v670
  %v2647 = vadd.f32 %v2646, %v671
  %v2648 = vadd.f32 %v2647, %v672
  %v2649 = vsel %vm1820, %v673, 0.0
  %v2650 = vadd.f32 %v2648, %v2649
  %2651 = vadd.xlane.f32.xlu0 %v2650
  %v2652 = vpop.xlane.xlu0 %2651
  %v2653 = vadd.f32 %v674, %v675
  %v2654 = vadd.f32 %v2653, %v676
  %v2655 = vadd.f32 %v2654, %v677
  %v2656 = vadd.f32 %v2655, %v678
  %v2657 = vadd.f32 %v2656, %v679
  %v2658 = vsel %vm1820, %v680, 0.0
  %v2659 = vadd.f32 %v2657, %v2658
  %2660 = vadd.xlane.f32.xlu0 %v2659
  %v2661 = vpop.xlane.xlu0 %2660
  %v2662 = vadd.f32 %v681, %v682
  %v2663 = vadd.f32 %v2662, %v683
  %v2664 = vadd.f32 %v2663, %v684
  %v2665 = vadd.f32 %v2664, %v685
  %v2666 = vadd.f32 %v2665, %v686
  %v2667 = vsel %vm1820, %v687, 0.0
  %v2668 = vadd.f32 %v2666, %v2667
  %2669 = vadd.xlane.f32.xlu0 %v2668
  %v2670 = vpop.xlane.xlu0 %2669
  %v2671 = vadd.f32 %v688, %v689
  %v2672 = vadd.f32 %v2671, %v690
  %v2673 = vadd.f32 %v2672, %v691
  %v2674 = vadd.f32 %v2673, %v692
  %v2675 = vadd.f32 %v2674, %v693
  %v2676 = vsel %vm1820, %v694, 0.0
  %v2677 = vadd.f32 %v2675, %v2676
  %2678 = vadd.xlane.f32.xlu0 %v2677
  %v2679 = vpop.xlane.xlu0 %2678
  %v2680 = vadd.f32 %v695, %v696
  %v2681 = vadd.f32 %v2680, %v697
  %v2682 = vadd.f32 %v2681, %v698
  %v2683 = vadd.f32 %v2682, %v699
  %v2684 = vadd.f32 %v2683, %v700
  %v2685 = vsel %vm1820, %v701, 0.0
  %v2686 = vadd.f32 %v2684, %v2685
  %2687 = vadd.xlane.f32.xlu0 %v2686
  %v2688 = vpop.xlane.xlu0 %2687
  %v2689 = vadd.f32 %v702, %v703
  %v2690 = vadd.f32 %v2689, %v704
  %v2691 = vadd.f32 %v2690, %v705
  %v2692 = vadd.f32 %v2691, %v706
  %v2693 = vadd.f32 %v2692, %v707
  %v2694 = vsel %vm1820, %v708, 0.0
  %v2695 = vadd.f32 %v2693, %v2694
  %2696 = vadd.xlane.f32.xlu0 %v2695
  %v2697 = vpop.xlane.xlu0 %2696
  %v2698 = vadd.f32 %v709, %v710
  %v2699 = vadd.f32 %v2698, %v711
  %v2700 = vadd.f32 %v2699, %v712
  %v2701 = vadd.f32 %v2700, %v713
  %v2702 = vadd.f32 %v2701, %v714
  %v2703 = vsel %vm1820, %v715, 0.0
  %v2704 = vadd.f32 %v2702, %v2703
  %2705 = vadd.xlane.f32.xlu0 %v2704
  %v2706 = vpop.xlane.xlu0 %2705
  %v2707 = vadd.f32 %v716, %v717
  %v2708 = vadd.f32 %v2707, %v718
  %v2709 = vadd.f32 %v2708, %v719
  %v2710 = vadd.f32 %v2709, %v720
  %v2711 = vadd.f32 %v2710, %v721
  %v2712 = vsel %vm1820, %v722, 0.0
  %v2713 = vadd.f32 %v2711, %v2712
  %2714 = vadd.xlane.f32.xlu0 %v2713
  %v2715 = vpop.xlane.xlu0 %2714
  %v2716 = vadd.f32 %v723, %v724
  %v2717 = vadd.f32 %v2716, %v725
  %v2718 = vadd.f32 %v2717, %v726
  %v2719 = vadd.f32 %v2718, %v727
  %v2720 = vadd.f32 %v2719, %v728
  %v2721 = vsel %vm1820, %v729, 0.0
  %v2722 = vadd.f32 %v2720, %v2721
  %2723 = vadd.xlane.f32.xlu0 %v2722
  %v2724 = vpop.xlane.xlu0 %2723
  %v2725 = vadd.f32 %v730, %v731
  %v2726 = vadd.f32 %v2725, %v732
  %v2727 = vadd.f32 %v2726, %v733
  %v2728 = vadd.f32 %v2727, %v734
  %v2729 = vadd.f32 %v2728, %v735
  %v2730 = vsel %vm1820, %v736, 0.0
  %v2731 = vadd.f32 %v2729, %v2730
  %2732 = vadd.xlane.f32.xlu0 %v2731
  %v2733 = vpop.xlane.xlu0 %2732
  %v2734 = vadd.f32 %v737, %v738
  %v2735 = vadd.f32 %v2734, %v739
  %v2736 = vadd.f32 %v2735, %v740
  %v2737 = vadd.f32 %v2736, %v741
  %v2738 = vadd.f32 %v2737, %v742
  %v2739 = vsel %vm1820, %v743, 0.0
  %v2740 = vadd.f32 %v2738, %v2739
  %2741 = vadd.xlane.f32.xlu0 %v2740
  %v2742 = vpop.xlane.xlu0 %2741
  %v2743 = vadd.f32 %v744, %v745
  %v2744 = vadd.f32 %v2743, %v746
  %v2745 = vadd.f32 %v2744, %v747
  %v2746 = vadd.f32 %v2745, %v748
  %v2747 = vadd.f32 %v2746, %v749
  %v2748 = vsel %vm1820, %v750, 0.0
  %v2749 = vadd.f32 %v2747, %v2748
  %2750 = vadd.xlane.f32.xlu0 %v2749
  %v2751 = vpop.xlane.xlu0 %2750
  %v2752 = vadd.f32 %v751, %v752
  %v2753 = vadd.f32 %v2752, %v753
  %v2754 = vadd.f32 %v2753, %v754
  %v2755 = vadd.f32 %v2754, %v755
  %v2756 = vadd.f32 %v2755, %v756
  %v2757 = vsel %vm1820, %v757, 0.0
  %v2758 = vadd.f32 %v2756, %v2757
  %2759 = vadd.xlane.f32.xlu0 %v2758
  %v2760 = vpop.xlane.xlu0 %2759
  %v2761 = vadd.f32 %v758, %v759
  %v2762 = vadd.f32 %v2761, %v760
  %v2763 = vadd.f32 %v2762, %v761
  %v2764 = vadd.f32 %v2763, %v762
  %v2765 = vadd.f32 %v2764, %v763
  %v2766 = vsel %vm1820, %v764, 0.0
  %v2767 = vadd.f32 %v2765, %v2766
  %2768 = vadd.xlane.f32.xlu0 %v2767
  %v2769 = vpop.xlane.xlu0 %2768
  %v2770 = vadd.f32 %v765, %v766
  %v2771 = vadd.f32 %v2770, %v767
  %v2772 = vadd.f32 %v2771, %v768
  %v2773 = vadd.f32 %v2772, %v769
  %v2774 = vadd.f32 %v2773, %v770
  %v2775 = vsel %vm1820, %v771, 0.0
  %v2776 = vadd.f32 %v2774, %v2775
  %2777 = vadd.xlane.f32.xlu0 %v2776
  %v2778 = vpop.xlane.xlu0 %2777
  %v2779 = vadd.f32 %v772, %v773
  %v2780 = vadd.f32 %v2779, %v774
  %v2781 = vadd.f32 %v2780, %v775
  %v2782 = vadd.f32 %v2781, %v776
  %v2783 = vadd.f32 %v2782, %v777
  %v2784 = vsel %vm1820, %v778, 0.0
  %v2785 = vadd.f32 %v2783, %v2784
  %2786 = vadd.xlane.f32.xlu0 %v2785
  %v2787 = vpop.xlane.xlu0 %2786
  %v2788 = vadd.f32 %v779, %v780
  %v2789 = vadd.f32 %v2788, %v781
  %v2790 = vadd.f32 %v2789, %v782
  %v2791 = vadd.f32 %v2790, %v783
  %v2792 = vadd.f32 %v2791, %v784
  %v2793 = vsel %vm1820, %v785, 0.0
  %v2794 = vadd.f32 %v2792, %v2793
  %2795 = vadd.xlane.f32.xlu0 %v2794
  %v2796 = vpop.xlane.xlu0 %2795
  %v2797 = vadd.f32 %v786, %v787
  %v2798 = vadd.f32 %v2797, %v788
  %v2799 = vadd.f32 %v2798, %v789
  %v2800 = vadd.f32 %v2799, %v790
  %v2801 = vadd.f32 %v2800, %v791
  %v2802 = vsel %vm1820, %v792, 0.0
  %v2803 = vadd.f32 %v2801, %v2802
  %2804 = vadd.xlane.f32.xlu0 %v2803
  %v2805 = vpop.xlane.xlu0 %2804
  %v2806 = vadd.f32 %v793, %v794
  %v2807 = vadd.f32 %v2806, %v795
  %v2808 = vadd.f32 %v2807, %v796
  %v2809 = vadd.f32 %v2808, %v797
  %v2810 = vadd.f32 %v2809, %v798
  %v2811 = vsel %vm1820, %v799, 0.0
  %v2812 = vadd.f32 %v2810, %v2811
  %2813 = vadd.xlane.f32.xlu0 %v2812
  %v2814 = vpop.xlane.xlu0 %2813
  %v2815 = vadd.f32 %v800, %v801
  %v2816 = vadd.f32 %v2815, %v802
  %v2817 = vadd.f32 %v2816, %v803
  %v2818 = vadd.f32 %v2817, %v804
  %v2819 = vadd.f32 %v2818, %v805
  %v2820 = vsel %vm1820, %v806, 0.0
  %v2821 = vadd.f32 %v2819, %v2820
  %2822 = vadd.xlane.f32.xlu0 %v2821
  %v2823 = vpop.xlane.xlu0 %2822
  %v2824 = vadd.f32 %v807, %v808
  %v2825 = vadd.f32 %v2824, %v809
  %v2826 = vadd.f32 %v2825, %v810
  %v2827 = vadd.f32 %v2826, %v811
  %v2828 = vadd.f32 %v2827, %v812
  %v2829 = vsel %vm1820, %v813, 0.0
  %v2830 = vadd.f32 %v2828, %v2829
  %2831 = vadd.xlane.f32.xlu0 %v2830
  %v2832 = vpop.xlane.xlu0 %2831
  %v2833 = vadd.f32 %v814, %v815
  %v2834 = vadd.f32 %v2833, %v816
  %v2835 = vadd.f32 %v2834, %v817
  %v2836 = vadd.f32 %v2835, %v818
  %v2837 = vadd.f32 %v2836, %v819
  %v2838 = vsel %vm1820, %v820, 0.0
  %v2839 = vadd.f32 %v2837, %v2838
  %2840 = vadd.xlane.f32.xlu0 %v2839
  %v2841 = vpop.xlane.xlu0 %2840
  %v2842 = vadd.f32 %v821, %v822
  %v2843 = vadd.f32 %v2842, %v823
  %v2844 = vadd.f32 %v2843, %v824
  %v2845 = vadd.f32 %v2844, %v825
  %v2846 = vadd.f32 %v2845, %v826
  %v2847 = vsel %vm1820, %v827, 0.0
  %v2848 = vadd.f32 %v2846, %v2847
  %2849 = vadd.xlane.f32.xlu0 %v2848
  %v2850 = vpop.xlane.xlu0 %2849
  %v2851 = vadd.f32 %v828, %v829
  %v2852 = vadd.f32 %v2851, %v830
  %v2853 = vadd.f32 %v2852, %v831
  %v2854 = vadd.f32 %v2853, %v832
  %v2855 = vadd.f32 %v2854, %v833
  %v2856 = vsel %vm1820, %v834, 0.0
  %v2857 = vadd.f32 %v2855, %v2856
  %2858 = vadd.xlane.f32.xlu0 %v2857
  %v2859 = vpop.xlane.xlu0 %2858
  %v2860 = vadd.f32 %v835, %v836
  %v2861 = vadd.f32 %v2860, %v837
  %v2862 = vadd.f32 %v2861, %v838
  %v2863 = vadd.f32 %v2862, %v839
  %v2864 = vadd.f32 %v2863, %v840
  %v2865 = vsel %vm1820, %v841, 0.0
  %v2866 = vadd.f32 %v2864, %v2865
  %2867 = vadd.xlane.f32.xlu0 %v2866
  %v2868 = vpop.xlane.xlu0 %2867
  %v2869 = vadd.f32 %v842, %v843
  %v2870 = vadd.f32 %v2869, %v844
  %v2871 = vadd.f32 %v2870, %v845
  %v2872 = vadd.f32 %v2871, %v846
  %v2873 = vadd.f32 %v2872, %v847
  %v2874 = vsel %vm1820, %v848, 0.0
  %v2875 = vadd.f32 %v2873, %v2874
  %2876 = vadd.xlane.f32.xlu0 %v2875
  %v2877 = vpop.xlane.xlu0 %2876
  %v2878 = vadd.f32 %v849, %v850
  %v2879 = vadd.f32 %v2878, %v851
  %v2880 = vadd.f32 %v2879, %v852
  %v2881 = vadd.f32 %v2880, %v853
  %v2882 = vadd.f32 %v2881, %v854
  %v2883 = vsel %vm1820, %v855, 0.0
  %v2884 = vadd.f32 %v2882, %v2883
  %2885 = vadd.xlane.f32.xlu0 %v2884
  %v2886 = vpop.xlane.xlu0 %2885
  %v2887 = vadd.f32 %v856, %v857
  %v2888 = vadd.f32 %v2887, %v858
  %v2889 = vadd.f32 %v2888, %v859
  %v2890 = vadd.f32 %v2889, %v860
  %v2891 = vadd.f32 %v2890, %v861
  %v2892 = vsel %vm1820, %v862, 0.0
  %v2893 = vadd.f32 %v2891, %v2892
  %2894 = vadd.xlane.f32.xlu0 %v2893
  %v2895 = vpop.xlane.xlu0 %2894
  %v2896 = vadd.f32 %v863, %v864
  %v2897 = vadd.f32 %v2896, %v865
  %v2898 = vadd.f32 %v2897, %v866
  %v2899 = vadd.f32 %v2898, %v867
  %v2900 = vadd.f32 %v2899, %v868
  %v2901 = vsel %vm1820, %v869, 0.0
  %v2902 = vadd.f32 %v2900, %v2901
  %2903 = vadd.xlane.f32.xlu0 %v2902
  %v2904 = vpop.xlane.xlu0 %2903
  %v2905 = vadd.f32 %v870, %v871
  %v2906 = vadd.f32 %v2905, %v872
  %v2907 = vadd.f32 %v2906, %v873
  %v2908 = vadd.f32 %v2907, %v874
  %v2909 = vadd.f32 %v2908, %v875
  %v2910 = vsel %vm1820, %v876, 0.0
  %v2911 = vadd.f32 %v2909, %v2910
  %2912 = vadd.xlane.f32.xlu0 %v2911
  %v2913 = vpop.xlane.xlu0 %2912
  %v2914 = vadd.f32 %v877, %v878
  %v2915 = vadd.f32 %v2914, %v879
  %v2916 = vadd.f32 %v2915, %v880
  %v2917 = vadd.f32 %v2916, %v881
  %v2918 = vadd.f32 %v2917, %v882
  %v2919 = vsel %vm1820, %v883, 0.0
  %v2920 = vadd.f32 %v2918, %v2919
  %2921 = vadd.xlane.f32.xlu0 %v2920
  %v2922 = vpop.xlane.xlu0 %2921
  %v2923 = vadd.f32 %v884, %v885
  %v2924 = vadd.f32 %v2923, %v886
  %v2925 = vadd.f32 %v2924, %v887
  %v2926 = vadd.f32 %v2925, %v888
  %v2927 = vadd.f32 %v2926, %v889
  %v2928 = vsel %vm1820, %v890, 0.0
  %v2929 = vadd.f32 %v2927, %v2928
  %2930 = vadd.xlane.f32.xlu0 %v2929
  %v2931 = vpop.xlane.xlu0 %2930
  %v2932 = vadd.f32 %v891, %v892
  %v2933 = vadd.f32 %v2932, %v893
  %v2934 = vadd.f32 %v2933, %v894
  %v2935 = vadd.f32 %v2934, %v895
  %v2936 = vadd.f32 %v2935, %v896
  %v2937 = vsel %vm1820, %v897, 0.0
  %v2938 = vadd.f32 %v2936, %v2937
  %2939 = vadd.xlane.f32.xlu0 %v2938
  %v2940 = vpop.xlane.xlu0 %2939
  %v2941 = vadd.f32 %v898, %v899
  %v2942 = vadd.f32 %v2941, %v900
  %v2943 = vadd.f32 %v2942, %v901
  %v2944 = vadd.f32 %v2943, %v902
  %v2945 = vadd.f32 %v2944, %v903
  %v2946 = vsel %vm1820, %v904, 0.0
  %v2947 = vadd.f32 %v2945, %v2946
  %2948 = vadd.xlane.f32.xlu0 %v2947
  %v2949 = vpop.xlane.xlu0 %2948
  %v2950 = vadd.f32 %v905, %v906
  %v2951 = vadd.f32 %v2950, %v907
  %v2952 = vadd.f32 %v2951, %v908
  %v2953 = vadd.f32 %v2952, %v909
  %v2954 = vadd.f32 %v2953, %v910
  %v2955 = vsel %vm1820, %v911, 0.0
  %v2956 = vadd.f32 %v2954, %v2955
  %2957 = vadd.xlane.f32.xlu0 %v2956
  %v2958 = vpop.xlane.xlu0 %2957
  %v2959 = vadd.f32 %v912, %v913
  %v2960 = vadd.f32 %v2959, %v914
  %v2961 = vadd.f32 %v2960, %v915
  %v2962 = vadd.f32 %v2961, %v916
  %v2963 = vadd.f32 %v2962, %v917
  %v2964 = vsel %vm1820, %v918, 0.0
  %v2965 = vadd.f32 %v2963, %v2964
  %2966 = vadd.xlane.f32.xlu0 %v2965
  %v2967 = vpop.xlane.xlu0 %2966
  %v2968 = vadd.f32 %v919, %v920
  %v2969 = vadd.f32 %v2968, %v921
  %v2970 = vadd.f32 %v2969, %v922
  %v2971 = vadd.f32 %v2970, %v923
  %v2972 = vadd.f32 %v2971, %v924
  %v2973 = vsel %vm1820, %v925, 0.0
  %v2974 = vadd.f32 %v2972, %v2973
  %2975 = vadd.xlane.f32.xlu0 %v2974
  %v2976 = vpop.xlane.xlu0 %2975
  %v2977 = vadd.f32 %v926, %v927
  %v2978 = vadd.f32 %v2977, %v928
  %v2979 = vadd.f32 %v2978, %v929
  %v2980 = vadd.f32 %v2979, %v930
  %v2981 = vadd.f32 %v2980, %v931
  %v2982 = vsel %vm1820, %v932, 0.0
  %v2983 = vadd.f32 %v2981, %v2982
  %2984 = vadd.xlane.f32.xlu0 %v2983
  %v2985 = vpop.xlane.xlu0 %2984
  %v2986 = vadd.f32 %v933, %v934
  %v2987 = vadd.f32 %v2986, %v935
  %v2988 = vadd.f32 %v2987, %v936
  %v2989 = vadd.f32 %v2988, %v937
  %v2990 = vadd.f32 %v2989, %v938
  %v2991 = vsel %vm1820, %v939, 0.0
  %v2992 = vadd.f32 %v2990, %v2991
  %2993 = vadd.xlane.f32.xlu0 %v2992
  %v2994 = vpop.xlane.xlu0 %2993
  %v2995 = vadd.f32 %v940, %v941
  %v2996 = vadd.f32 %v2995, %v942
  %v2997 = vadd.f32 %v2996, %v943
  %v2998 = vadd.f32 %v2997, %v944
  %v2999 = vadd.f32 %v2998, %v945
  %v3000 = vsel %vm1820, %v946, 0.0
  %v3001 = vadd.f32 %v2999, %v3000
  %3002 = vadd.xlane.f32.xlu0 %v3001
  %v3003 = vpop.xlane.xlu0 %3002
  %v3004 = vadd.f32 %v947, %v948
  %v3005 = vadd.f32 %v3004, %v949
  %v3006 = vadd.f32 %v3005, %v950
  %v3007 = vadd.f32 %v3006, %v951
  %v3008 = vadd.f32 %v3007, %v952
  %v3009 = vsel %vm1820, %v953, 0.0
  %v3010 = vadd.f32 %v3008, %v3009
  %3011 = vadd.xlane.f32.xlu0 %v3010
  %v3012 = vpop.xlane.xlu0 %3011
  %v3013 = vadd.f32 %v954, %v955
  %v3014 = vadd.f32 %v3013, %v956
  %v3015 = vadd.f32 %v3014, %v957
  %v3016 = vadd.f32 %v3015, %v958
  %v3017 = vadd.f32 %v3016, %v959
  %v3018 = vsel %vm1820, %v960, 0.0
  %v3019 = vadd.f32 %v3017, %v3018
  %3020 = vadd.xlane.f32.xlu0 %v3019
  %v3021 = vpop.xlane.xlu0 %3020
  %v3022 = vadd.f32 %v961, %v962
  %v3023 = vadd.f32 %v3022, %v963
  %v3024 = vadd.f32 %v3023, %v964
  %v3025 = vadd.f32 %v3024, %v965
  %v3026 = vadd.f32 %v3025, %v966
  %v3027 = vsel %vm1820, %v967, 0.0
  %v3028 = vadd.f32 %v3026, %v3027
  %3029 = vadd.xlane.f32.xlu0 %v3028
  %v3030 = vpop.xlane.xlu0 %3029
  %v3031 = vadd.f32 %v968, %v969
  %v3032 = vadd.f32 %v3031, %v970
  %v3033 = vadd.f32 %v3032, %v971
  %v3034 = vadd.f32 %v3033, %v972
  %v3035 = vadd.f32 %v3034, %v973
  %v3036 = vsel %vm1820, %v974, 0.0
  %v3037 = vadd.f32 %v3035, %v3036
  %3038 = vadd.xlane.f32.xlu0 %v3037
  %v3039 = vpop.xlane.xlu0 %3038
  %v3040 = vadd.f32 %v975, %v976
  %v3041 = vadd.f32 %v3040, %v977
  %v3042 = vadd.f32 %v3041, %v978
  %v3043 = vadd.f32 %v3042, %v979
  %v3044 = vadd.f32 %v3043, %v980
  %v3045 = vsel %vm1820, %v981, 0.0
  %v3046 = vadd.f32 %v3044, %v3045
  %3047 = vadd.xlane.f32.xlu0 %v3046
  %v3048 = vpop.xlane.xlu0 %3047
  %v3049 = vadd.f32 %v982, %v983
  %v3050 = vadd.f32 %v3049, %v984
  %v3051 = vadd.f32 %v3050, %v985
  %v3052 = vadd.f32 %v3051, %v986
  %v3053 = vadd.f32 %v3052, %v987
  %v3054 = vsel %vm1820, %v988, 0.0
  %v3055 = vadd.f32 %v3053, %v3054
  %3056 = vadd.xlane.f32.xlu0 %v3055
  %v3057 = vpop.xlane.xlu0 %3056
  %v3058 = vadd.f32 %v989, %v990
  %v3059 = vadd.f32 %v3058, %v991
  %v3060 = vadd.f32 %v3059, %v992
  %v3061 = vadd.f32 %v3060, %v993
  %v3062 = vadd.f32 %v3061, %v994
  %v3063 = vsel %vm1820, %v995, 0.0
  %v3064 = vadd.f32 %v3062, %v3063
  %3065 = vadd.xlane.f32.xlu0 %v3064
  %v3066 = vpop.xlane.xlu0 %3065
  %v3067 = vadd.f32 %v996, %v997
  %v3068 = vadd.f32 %v3067, %v998
  %v3069 = vadd.f32 %v3068, %v999
  %v3070 = vadd.f32 %v3069, %v1000
  %v3071 = vadd.f32 %v3070, %v1001
  %v3072 = vsel %vm1820, %v1002, 0.0
  %v3073 = vadd.f32 %v3071, %v3072
  %3074 = vadd.xlane.f32.xlu0 %v3073
  %v3075 = vpop.xlane.xlu0 %3074
  %v3076 = vadd.f32 %v1003, %v1004
  %v3077 = vadd.f32 %v3076, %v1005
  %v3078 = vadd.f32 %v3077, %v1006
  %v3079 = vadd.f32 %v3078, %v1007
  %v3080 = vadd.f32 %v3079, %v1008
  %v3081 = vsel %vm1820, %v1009, 0.0
  %v3082 = vadd.f32 %v3080, %v3081
  %3083 = vadd.xlane.f32.xlu0 %v3082
  %v3084 = vpop.xlane.xlu0 %3083
  %v3085 = vadd.f32 %v1010, %v1011
  %v3086 = vadd.f32 %v3085, %v1012
  %v3087 = vadd.f32 %v3086, %v1013
  %v3088 = vadd.f32 %v3087, %v1014
  %v3089 = vadd.f32 %v3088, %v1015
  %v3090 = vsel %vm1820, %v1016, 0.0
  %v3091 = vadd.f32 %v3089, %v3090
  %3092 = vadd.xlane.f32.xlu0 %v3091
  %v3093 = vpop.xlane.xlu0 %3092
  %v3094 = vadd.f32 %v1017, %v1018
  %v3095 = vadd.f32 %v3094, %v1019
  %v3096 = vadd.f32 %v3095, %v1020
  %v3097 = vadd.f32 %v3096, %v1021
  %v3098 = vadd.f32 %v3097, %v1022
  %v3099 = vsel %vm1820, %v1023, 0.0
  %v3100 = vadd.f32 %v3098, %v3099
  %3101 = vadd.xlane.f32.xlu0 %v3100
  %v3102 = vpop.xlane.xlu0 %3101
  %v3103 = vadd.f32 %v1024, %v1025
  %v3104 = vadd.f32 %v3103, %v1026
  %v3105 = vadd.f32 %v3104, %v1027
  %v3106 = vadd.f32 %v3105, %v1028
  %v3107 = vadd.f32 %v3106, %v1029
  %v3108 = vsel %vm1820, %v1030, 0.0
  %v3109 = vadd.f32 %v3107, %v3108
  %3110 = vadd.xlane.f32.xlu0 %v3109
  %v3111 = vpop.xlane.xlu0 %3110
  %v3112 = vadd.f32 %v1031, %v1032
  %v3113 = vadd.f32 %v3112, %v1033
  %v3114 = vadd.f32 %v3113, %v1034
  %v3115 = vadd.f32 %v3114, %v1035
  %v3116 = vadd.f32 %v3115, %v1036
  %v3117 = vsel %vm1820, %v1037, 0.0
  %v3118 = vadd.f32 %v3116, %v3117
  %3119 = vadd.xlane.f32.xlu0 %v3118
  %v3120 = vpop.xlane.xlu0 %3119
  %v3121 = vadd.f32 %v1038, %v1039
  %v3122 = vadd.f32 %v3121, %v1040
  %v3123 = vadd.f32 %v3122, %v1041
  %v3124 = vadd.f32 %v3123, %v1042
  %v3125 = vadd.f32 %v3124, %v1043
  %v3126 = vsel %vm1820, %v1044, 0.0
  %v3127 = vadd.f32 %v3125, %v3126
  %3128 = vadd.xlane.f32.xlu0 %v3127
  %v3129 = vpop.xlane.xlu0 %3128
  %v3130 = vadd.f32 %v1045, %v1046
  %v3131 = vadd.f32 %v3130, %v1047
  %v3132 = vadd.f32 %v3131, %v1048
  %v3133 = vadd.f32 %v3132, %v1049
  %v3134 = vadd.f32 %v3133, %v1050
  %v3135 = vsel %vm1820, %v1051, 0.0
  %v3136 = vadd.f32 %v3134, %v3135
  %3137 = vadd.xlane.f32.xlu0 %v3136
  %v3138 = vpop.xlane.xlu0 %3137
  %v3139 = vadd.f32 %v1052, %v1053
  %v3140 = vadd.f32 %v3139, %v1054
  %v3141 = vadd.f32 %v3140, %v1055
  %v3142 = vadd.f32 %v3141, %v1056
  %v3143 = vadd.f32 %v3142, %v1057
  %v3144 = vsel %vm1820, %v1058, 0.0
  %v3145 = vadd.f32 %v3143, %v3144
  %3146 = vadd.xlane.f32.xlu0 %v3145
  %v3147 = vpop.xlane.xlu0 %3146
  %v3148 = vadd.f32 %v1059, %v1060
  %v3149 = vadd.f32 %v3148, %v1061
  %v3150 = vadd.f32 %v3149, %v1062
  %v3151 = vadd.f32 %v3150, %v1063
  %v3152 = vadd.f32 %v3151, %v1064
  %v3153 = vsel %vm1820, %v1065, 0.0
  %v3154 = vadd.f32 %v3152, %v3153
  %3155 = vadd.xlane.f32.xlu0 %v3154
  %v3156 = vpop.xlane.xlu0 %3155
  %v3157 = vadd.f32 %v1066, %v1067
  %v3158 = vadd.f32 %v3157, %v1068
  %v3159 = vadd.f32 %v3158, %v1069
  %v3160 = vadd.f32 %v3159, %v1070
  %v3161 = vadd.f32 %v3160, %v1071
  %v3162 = vsel %vm1820, %v1072, 0.0
  %v3163 = vadd.f32 %v3161, %v3162
  %3164 = vadd.xlane.f32.xlu0 %v3163
  %v3165 = vpop.xlane.xlu0 %3164
  %v3166 = vadd.f32 %v1073, %v1074
  %v3167 = vadd.f32 %v3166, %v1075
  %v3168 = vadd.f32 %v3167, %v1076
  %v3169 = vadd.f32 %v3168, %v1077
  %v3170 = vadd.f32 %v3169, %v1078
  %v3171 = vsel %vm1820, %v1079, 0.0
  %v3172 = vadd.f32 %v3170, %v3171
  %3173 = vadd.xlane.f32.xlu0 %v3172
  %v3174 = vpop.xlane.xlu0 %3173
  %v3175 = vadd.f32 %v1080, %v1081
  %v3176 = vadd.f32 %v3175, %v1082
  %v3177 = vadd.f32 %v3176, %v1083
  %v3178 = vadd.f32 %v3177, %v1084
  %v3179 = vadd.f32 %v3178, %v1085
  %v3180 = vsel %vm1820, %v1086, 0.0
  %v3181 = vadd.f32 %v3179, %v3180
  %3182 = vadd.xlane.f32.xlu0 %v3181
  %v3183 = vpop.xlane.xlu0 %3182
  %v3184 = vadd.f32 %v1087, %v1088
  %v3185 = vadd.f32 %v3184, %v1089
  %v3186 = vadd.f32 %v3185, %v1090
  %v3187 = vadd.f32 %v3186, %v1091
  %v3188 = vadd.f32 %v3187, %v1092
  %v3189 = vsel %vm1820, %v1093, 0.0
  %v3190 = vadd.f32 %v3188, %v3189
  %3191 = vadd.xlane.f32.xlu0 %v3190
  %v3192 = vpop.xlane.xlu0 %3191
  %v3193 = vadd.f32 %v1094, %v1095
  %v3194 = vadd.f32 %v3193, %v1096
  %v3195 = vadd.f32 %v3194, %v1097
  %v3196 = vadd.f32 %v3195, %v1098
  %v3197 = vadd.f32 %v3196, %v1099
  %v3198 = vsel %vm1820, %v1100, 0.0
  %v3199 = vadd.f32 %v3197, %v3198
  %3200 = vadd.xlane.f32.xlu0 %v3199
  %v3201 = vpop.xlane.xlu0 %3200
  %v3202 = vadd.f32 %v1101, %v1102
  %v3203 = vadd.f32 %v3202, %v1103
  %v3204 = vadd.f32 %v3203, %v1104
  %v3205 = vadd.f32 %v3204, %v1105
  %v3206 = vadd.f32 %v3205, %v1106
  %v3207 = vsel %vm1820, %v1107, 0.0
  %v3208 = vadd.f32 %v3206, %v3207
  %3209 = vadd.xlane.f32.xlu0 %v3208
  %v3210 = vpop.xlane.xlu0 %3209
  %v3211 = vadd.f32 %v1108, %v1109
  %v3212 = vadd.f32 %v3211, %v1110
  %v3213 = vadd.f32 %v3212, %v1111
  %v3214 = vadd.f32 %v3213, %v1112
  %v3215 = vadd.f32 %v3214, %v1113
  %v3216 = vsel %vm1820, %v1114, 0.0
  %v3217 = vadd.f32 %v3215, %v3216
  %3218 = vadd.xlane.f32.xlu0 %v3217
  %v3219 = vpop.xlane.xlu0 %3218
  %v3220 = vadd.f32 %v1115, %v1116
  %v3221 = vadd.f32 %v3220, %v1117
  %v3222 = vadd.f32 %v3221, %v1118
  %v3223 = vadd.f32 %v3222, %v1119
  %v3224 = vadd.f32 %v3223, %v1120
  %v3225 = vsel %vm1820, %v1121, 0.0
  %v3226 = vadd.f32 %v3224, %v3225
  %3227 = vadd.xlane.f32.xlu0 %v3226
  %v3228 = vpop.xlane.xlu0 %3227
  %v3229 = vadd.f32 %v1122, %v1123
  %v3230 = vadd.f32 %v3229, %v1124
  %v3231 = vadd.f32 %v3230, %v1125
  %v3232 = vadd.f32 %v3231, %v1126
  %v3233 = vadd.f32 %v3232, %v1127
  %v3234 = vsel %vm1820, %v1128, 0.0
  %v3235 = vadd.f32 %v3233, %v3234
  %3236 = vadd.xlane.f32.xlu0 %v3235
  %v3237 = vpop.xlane.xlu0 %3236
  %v3238 = vadd.f32 %v1129, %v1130
  %v3239 = vadd.f32 %v3238, %v1131
  %v3240 = vadd.f32 %v3239, %v1132
  %v3241 = vadd.f32 %v3240, %v1133
  %v3242 = vadd.f32 %v3241, %v1134
  %v3243 = vsel %vm1820, %v1135, 0.0
  %v3244 = vadd.f32 %v3242, %v3243
  %3245 = vadd.xlane.f32.xlu0 %v3244
  %v3246 = vpop.xlane.xlu0 %3245
  %v3247 = vadd.f32 %v1136, %v1137
  %v3248 = vadd.f32 %v3247, %v1138
  %v3249 = vadd.f32 %v3248, %v1139
  %v3250 = vadd.f32 %v3249, %v1140
  %v3251 = vadd.f32 %v3250, %v1141
  %v3252 = vsel %vm1820, %v1142, 0.0
  %v3253 = vadd.f32 %v3251, %v3252
  %3254 = vadd.xlane.f32.xlu0 %v3253
  %v3255 = vpop.xlane.xlu0 %3254
  %v3256 = vadd.f32 %v1143, %v1144
  %v3257 = vadd.f32 %v3256, %v1145
  %v3258 = vadd.f32 %v3257, %v1146
  %v3259 = vadd.f32 %v3258, %v1147
  %v3260 = vadd.f32 %v3259, %v1148
  %v3261 = vsel %vm1820, %v1149, 0.0
  %v3262 = vadd.f32 %v3260, %v3261
  %3263 = vadd.xlane.f32.xlu0 %v3262
  %v3264 = vpop.xlane.xlu0 %3263
  %v3265 = vadd.f32 %v1150, %v1151
  %v3266 = vadd.f32 %v3265, %v1152
  %v3267 = vadd.f32 %v3266, %v1153
  %v3268 = vadd.f32 %v3267, %v1154
  %v3269 = vadd.f32 %v3268, %v1155
  %v3270 = vsel %vm1820, %v1156, 0.0
  %v3271 = vadd.f32 %v3269, %v3270
  %3272 = vadd.xlane.f32.xlu0 %v3271
  %v3273 = vpop.xlane.xlu0 %3272
  %v3274 = vadd.f32 %v1157, %v1158
  %v3275 = vadd.f32 %v3274, %v1159
  %v3276 = vadd.f32 %v3275, %v1160
  %v3277 = vadd.f32 %v3276, %v1161
  %v3278 = vadd.f32 %v3277, %v1162
  %v3279 = vsel %vm1820, %v1163, 0.0
  %v3280 = vadd.f32 %v3278, %v3279
  %3281 = vadd.xlane.f32.xlu0 %v3280
  %v3282 = vpop.xlane.xlu0 %3281
  %v3283 = vadd.f32 %v1164, %v1165
  %v3284 = vadd.f32 %v3283, %v1166
  %v3285 = vadd.f32 %v3284, %v1167
  %v3286 = vadd.f32 %v3285, %v1168
  %v3287 = vadd.f32 %v3286, %v1169
  %v3288 = vsel %vm1820, %v1170, 0.0
  %v3289 = vadd.f32 %v3287, %v3288
  %3290 = vadd.xlane.f32.xlu0 %v3289
  %v3291 = vpop.xlane.xlu0 %3290
  %v3292 = vadd.f32 %v1171, %v1172
  %v3293 = vadd.f32 %v3292, %v1173
  %v3294 = vadd.f32 %v3293, %v1174
  %v3295 = vadd.f32 %v3294, %v1175
  %v3296 = vadd.f32 %v3295, %v1176
  %v3297 = vsel %vm1820, %v1177, 0.0
  %v3298 = vadd.f32 %v3296, %v3297
  %3299 = vadd.xlane.f32.xlu0 %v3298
  %v3300 = vpop.xlane.xlu0 %3299
  %v3301 = vadd.f32 %v1178, %v1179
  %v3302 = vadd.f32 %v3301, %v1180
  %v3303 = vadd.f32 %v3302, %v1181
  %v3304 = vadd.f32 %v3303, %v1182
  %v3305 = vadd.f32 %v3304, %v1183
  %v3306 = vsel %vm1820, %v1184, 0.0
  %v3307 = vadd.f32 %v3305, %v3306
  %3308 = vadd.xlane.f32.xlu0 %v3307
  %v3309 = vpop.xlane.xlu0 %3308
  %v3310 = vadd.f32 %v1185, %v1186
  %v3311 = vadd.f32 %v3310, %v1187
  %v3312 = vadd.f32 %v3311, %v1188
  %v3313 = vadd.f32 %v3312, %v1189
  %v3314 = vadd.f32 %v3313, %v1190
  %v3315 = vsel %vm1820, %v1191, 0.0
  %v3316 = vadd.f32 %v3314, %v3315
  %3317 = vadd.xlane.f32.xlu0 %v3316
  %v3318 = vpop.xlane.xlu0 %3317
  %v3319 = vadd.f32 %v1192, %v1193
  %v3320 = vadd.f32 %v3319, %v1194
  %v3321 = vadd.f32 %v3320, %v1195
  %v3322 = vadd.f32 %v3321, %v1196
  %v3323 = vadd.f32 %v3322, %v1197
  %v3324 = vsel %vm1820, %v1198, 0.0
  %v3325 = vadd.f32 %v3323, %v3324
  %3326 = vadd.xlane.f32.xlu0 %v3325
  %v3327 = vpop.xlane.xlu0 %3326
  %v3328 = vadd.f32 %v1199, %v1200
  %v3329 = vadd.f32 %v3328, %v1201
  %v3330 = vadd.f32 %v3329, %v1202
  %v3331 = vadd.f32 %v3330, %v1203
  %v3332 = vadd.f32 %v3331, %v1204
  %v3333 = vsel %vm1820, %v1205, 0.0
  %v3334 = vadd.f32 %v3332, %v3333
  %3335 = vadd.xlane.f32.xlu0 %v3334
  %v3336 = vpop.xlane.xlu0 %3335
  %v3337 = vadd.f32 %v1206, %v1207
  %v3338 = vadd.f32 %v3337, %v1208
  %v3339 = vadd.f32 %v3338, %v1209
  %v3340 = vadd.f32 %v3339, %v1210
  %v3341 = vadd.f32 %v3340, %v1211
  %v3342 = vsel %vm1820, %v1212, 0.0
  %v3343 = vadd.f32 %v3341, %v3342
  %3344 = vadd.xlane.f32.xlu0 %v3343
  %v3345 = vpop.xlane.xlu0 %3344
  %v3346 = vadd.f32 %v1213, %v1214
  %v3347 = vadd.f32 %v3346, %v1215
  %v3348 = vadd.f32 %v3347, %v1216
  %v3349 = vadd.f32 %v3348, %v1217
  %v3350 = vadd.f32 %v3349, %v1218
  %v3351 = vsel %vm1820, %v1219, 0.0
  %v3352 = vadd.f32 %v3350, %v3351
  %3353 = vadd.xlane.f32.xlu0 %v3352
  %v3354 = vpop.xlane.xlu0 %3353
  %v3355 = vadd.f32 %v1220, %v1221
  %v3356 = vadd.f32 %v3355, %v1222
  %v3357 = vadd.f32 %v3356, %v1223
  %v3358 = vadd.f32 %v3357, %v1224
  %v3359 = vadd.f32 %v3358, %v1225
  %v3360 = vsel %vm1820, %v1226, 0.0
  %v3361 = vadd.f32 %v3359, %v3360
  %3362 = vadd.xlane.f32.xlu0 %v3361
  %v3363 = vpop.xlane.xlu0 %3362
  %v3364 = vadd.f32 %v1227, %v1228
  %v3365 = vadd.f32 %v3364, %v1229
  %v3366 = vadd.f32 %v3365, %v1230
  %v3367 = vadd.f32 %v3366, %v1231
  %v3368 = vadd.f32 %v3367, %v1232
  %v3369 = vsel %vm1820, %v1233, 0.0
  %v3370 = vadd.f32 %v3368, %v3369
  %3371 = vadd.xlane.f32.xlu0 %v3370
  %v3372 = vpop.xlane.xlu0 %3371
  %v3373 = vadd.f32 %v1234, %v1235
  %v3374 = vadd.f32 %v3373, %v1236
  %v3375 = vadd.f32 %v3374, %v1237
  %v3376 = vadd.f32 %v3375, %v1238
  %v3377 = vadd.f32 %v3376, %v1239
  %v3378 = vsel %vm1820, %v1240, 0.0
  %v3379 = vadd.f32 %v3377, %v3378
  %3380 = vadd.xlane.f32.xlu0 %v3379
  %v3381 = vpop.xlane.xlu0 %3380
  %v3382 = vadd.f32 %v1241, %v1242
  %v3383 = vadd.f32 %v3382, %v1243
  %v3384 = vadd.f32 %v3383, %v1244
  %v3385 = vadd.f32 %v3384, %v1245
  %v3386 = vadd.f32 %v3385, %v1246
  %v3387 = vsel %vm1820, %v1247, 0.0
  %v3388 = vadd.f32 %v3386, %v3387
  %3389 = vadd.xlane.f32.xlu0 %v3388
  %v3390 = vpop.xlane.xlu0 %3389
  %v3391 = vadd.f32 %v1248, %v1249
  %v3392 = vadd.f32 %v3391, %v1250
  %v3393 = vadd.f32 %v3392, %v1251
  %v3394 = vadd.f32 %v3393, %v1252
  %v3395 = vadd.f32 %v3394, %v1253
  %v3396 = vsel %vm1820, %v1254, 0.0
  %v3397 = vadd.f32 %v3395, %v3396
  %3398 = vadd.xlane.f32.xlu0 %v3397
  %v3399 = vpop.xlane.xlu0 %3398
  %v3400 = vadd.f32 %v1255, %v1256
  %v3401 = vadd.f32 %v3400, %v1257
  %v3402 = vadd.f32 %v3401, %v1258
  %v3403 = vadd.f32 %v3402, %v1259
  %v3404 = vadd.f32 %v3403, %v1260
  %v3405 = vsel %vm1820, %v1261, 0.0
  %v3406 = vadd.f32 %v3404, %v3405
  %3407 = vadd.xlane.f32.xlu0 %v3406
  %v3408 = vpop.xlane.xlu0 %3407
  %v3409 = vadd.f32 %v1262, %v1263
  %v3410 = vadd.f32 %v3409, %v1264
  %v3411 = vadd.f32 %v3410, %v1265
  %v3412 = vadd.f32 %v3411, %v1266
  %v3413 = vadd.f32 %v3412, %v1267
  %v3414 = vsel %vm1820, %v1268, 0.0
  %v3415 = vadd.f32 %v3413, %v3414
  %3416 = vadd.xlane.f32.xlu0 %v3415
  %v3417 = vpop.xlane.xlu0 %3416
  %v3418 = vadd.f32 %v1269, %v1270
  %v3419 = vadd.f32 %v3418, %v1271
  %v3420 = vadd.f32 %v3419, %v1272
  %v3421 = vadd.f32 %v3420, %v1273
  %v3422 = vadd.f32 %v3421, %v1274
  %v3423 = vsel %vm1820, %v1275, 0.0
  %v3424 = vadd.f32 %v3422, %v3423
  %3425 = vadd.xlane.f32.xlu0 %v3424
  %v3426 = vpop.xlane.xlu0 %3425
  %v3427 = vadd.f32 %v1276, %v1277
  %v3428 = vadd.f32 %v3427, %v1278
  %v3429 = vadd.f32 %v3428, %v1279
  %v3430 = vadd.f32 %v3429, %v1280
  %v3431 = vadd.f32 %v3430, %v1281
  %v3432 = vsel %vm1820, %v1282, 0.0
  %v3433 = vadd.f32 %v3431, %v3432
  %3434 = vadd.xlane.f32.xlu0 %v3433
  %v3435 = vpop.xlane.xlu0 %3434
  %v3436 = vadd.f32 %v1283, %v1284
  %v3437 = vadd.f32 %v3436, %v1285
  %v3438 = vadd.f32 %v3437, %v1286
  %v3439 = vadd.f32 %v3438, %v1287
  %v3440 = vadd.f32 %v3439, %v1288
  %v3441 = vsel %vm1820, %v1289, 0.0
  %v3442 = vadd.f32 %v3440, %v3441
  %3443 = vadd.xlane.f32.xlu0 %v3442
  %v3444 = vpop.xlane.xlu0 %3443
  %v3445 = vadd.f32 %v1290, %v1291
  %v3446 = vadd.f32 %v3445, %v1292
  %v3447 = vadd.f32 %v3446, %v1293
  %v3448 = vadd.f32 %v3447, %v1294
  %v3449 = vadd.f32 %v3448, %v1295
  %v3450 = vsel %vm1820, %v1296, 0.0
  %v3451 = vadd.f32 %v3449, %v3450
  %3452 = vadd.xlane.f32.xlu0 %v3451
  %v3453 = vpop.xlane.xlu0 %3452
  %v3454 = vadd.f32 %v1297, %v1298
  %v3455 = vadd.f32 %v3454, %v1299
  %v3456 = vadd.f32 %v3455, %v1300
  %v3457 = vadd.f32 %v3456, %v1301
  %v3458 = vadd.f32 %v3457, %v1302
  %v3459 = vsel %vm1820, %v1303, 0.0
  %v3460 = vadd.f32 %v3458, %v3459
  %3461 = vadd.xlane.f32.xlu0 %v3460
  %v3462 = vpop.xlane.xlu0 %3461
  %v3463 = vadd.f32 %v1304, %v1305
  %v3464 = vadd.f32 %v3463, %v1306
  %v3465 = vadd.f32 %v3464, %v1307
  %v3466 = vadd.f32 %v3465, %v1308
  %v3467 = vadd.f32 %v3466, %v1309
  %v3468 = vsel %vm1820, %v1310, 0.0
  %v3469 = vadd.f32 %v3467, %v3468
  %3470 = vadd.xlane.f32.xlu0 %v3469
  %v3471 = vpop.xlane.xlu0 %3470
  %v3472 = vadd.f32 %v1311, %v1312
  %v3473 = vadd.f32 %v3472, %v1313
  %v3474 = vadd.f32 %v3473, %v1314
  %v3475 = vadd.f32 %v3474, %v1315
  %v3476 = vadd.f32 %v3475, %v1316
  %v3477 = vsel %vm1820, %v1317, 0.0
  %v3478 = vadd.f32 %v3476, %v3477
  %3479 = vadd.xlane.f32.xlu0 %v3478
  %v3480 = vpop.xlane.xlu0 %3479
  %v3481 = vadd.f32 %v1318, %v1319
  %v3482 = vadd.f32 %v3481, %v1320
  %v3483 = vadd.f32 %v3482, %v1321
  %v3484 = vadd.f32 %v3483, %v1322
  %v3485 = vadd.f32 %v3484, %v1323
  %v3486 = vsel %vm1820, %v1324, 0.0
  %v3487 = vadd.f32 %v3485, %v3486
  %3488 = vadd.xlane.f32.xlu0 %v3487
  %v3489 = vpop.xlane.xlu0 %3488
  %v3490 = vadd.f32 %v1325, %v1326
  %v3491 = vadd.f32 %v3490, %v1327
  %v3492 = vadd.f32 %v3491, %v1328
  %v3493 = vadd.f32 %v3492, %v1329
  %v3494 = vadd.f32 %v3493, %v1330
  %v3495 = vsel %vm1820, %v1331, 0.0
  %v3496 = vadd.f32 %v3494, %v3495
  %3497 = vadd.xlane.f32.xlu0 %v3496
  %v3498 = vpop.xlane.xlu0 %3497
  %v3499 = vadd.f32 %v1332, %v1333
  %v3500 = vadd.f32 %v3499, %v1334
  %v3501 = vadd.f32 %v3500, %v1335
  %v3502 = vadd.f32 %v3501, %v1336
  %v3503 = vadd.f32 %v3502, %v1337
  %v3504 = vsel %vm1820, %v1338, 0.0
  %v3505 = vadd.f32 %v3503, %v3504
  %3506 = vadd.xlane.f32.xlu0 %v3505
  %v3507 = vpop.xlane.xlu0 %3506
  %v3508 = vadd.f32 %v1339, %v1340
  %v3509 = vadd.f32 %v3508, %v1341
  %v3510 = vadd.f32 %v3509, %v1342
  %v3511 = vadd.f32 %v3510, %v1343
  %v3512 = vadd.f32 %v3511, %v1344
  %v3513 = vsel %vm1820, %v1345, 0.0
  %v3514 = vadd.f32 %v3512, %v3513
  %3515 = vadd.xlane.f32.xlu0 %v3514
  %v3516 = vpop.xlane.xlu0 %3515
  %v3517 = vadd.f32 %v1346, %v1347
  %v3518 = vadd.f32 %v3517, %v1348
  %v3519 = vadd.f32 %v3518, %v1349
  %v3520 = vadd.f32 %v3519, %v1350
  %v3521 = vadd.f32 %v3520, %v1351
  %v3522 = vsel %vm1820, %v1352, 0.0
  %v3523 = vadd.f32 %v3521, %v3522
  %3524 = vadd.xlane.f32.xlu0 %v3523
  %v3525 = vpop.xlane.xlu0 %3524
  %v3526 = vadd.f32 %v1353, %v1354
  %v3527 = vadd.f32 %v3526, %v1355
  %v3528 = vadd.f32 %v3527, %v1356
  %v3529 = vadd.f32 %v3528, %v1357
  %v3530 = vadd.f32 %v3529, %v1358
  %v3531 = vsel %vm1820, %v1359, 0.0
  %v3532 = vadd.f32 %v3530, %v3531
  %3533 = vadd.xlane.f32.xlu0 %v3532
  %v3534 = vpop.xlane.xlu0 %3533
  %v3535 = vadd.f32 %v1360, %v1361
  %v3536 = vadd.f32 %v3535, %v1362
  %v3537 = vadd.f32 %v3536, %v1363
  %v3538 = vadd.f32 %v3537, %v1364
  %v3539 = vadd.f32 %v3538, %v1365
  %v3540 = vsel %vm1820, %v1366, 0.0
  %v3541 = vadd.f32 %v3539, %v3540
  %3542 = vadd.xlane.f32.xlu0 %v3541
  %v3543 = vpop.xlane.xlu0 %3542
  %v3544 = vadd.f32 %v1367, %v1368
  %v3545 = vadd.f32 %v3544, %v1369
  %v3546 = vadd.f32 %v3545, %v1370
  %v3547 = vadd.f32 %v3546, %v1371
  %v3548 = vadd.f32 %v3547, %v1372
  %v3549 = vsel %vm1820, %v1373, 0.0
  %v3550 = vadd.f32 %v3548, %v3549
  %3551 = vadd.xlane.f32.xlu0 %v3550
  %v3552 = vpop.xlane.xlu0 %3551
  %v3553 = vadd.f32 %v1374, %v1375
  %v3554 = vadd.f32 %v3553, %v1376
  %v3555 = vadd.f32 %v3554, %v1377
  %v3556 = vadd.f32 %v3555, %v1378
  %v3557 = vadd.f32 %v3556, %v1379
  %v3558 = vsel %vm1820, %v1380, 0.0
  %v3559 = vadd.f32 %v3557, %v3558
  %3560 = vadd.xlane.f32.xlu0 %v3559
  %v3561 = vpop.xlane.xlu0 %3560
  %v3562 = vadd.f32 %v1381, %v1382
  %v3563 = vadd.f32 %v3562, %v1383
  %v3564 = vadd.f32 %v3563, %v1384
  %v3565 = vadd.f32 %v3564, %v1385
  %v3566 = vadd.f32 %v3565, %v1386
  %v3567 = vsel %vm1820, %v1387, 0.0
  %v3568 = vadd.f32 %v3566, %v3567
  %3569 = vadd.xlane.f32.xlu0 %v3568
  %v3570 = vpop.xlane.xlu0 %3569
  %v3571 = vadd.f32 %v1388, %v1389
  %v3572 = vadd.f32 %v3571, %v1390
  %v3573 = vadd.f32 %v3572, %v1391
  %v3574 = vadd.f32 %v3573, %v1392
  %v3575 = vadd.f32 %v3574, %v1393
  %v3576 = vsel %vm1820, %v1394, 0.0
  %v3577 = vadd.f32 %v3575, %v3576
  %3578 = vadd.xlane.f32.xlu0 %v3577
  %v3579 = vpop.xlane.xlu0 %3578
  %v3580 = vadd.f32 %v1395, %v1396
  %v3581 = vadd.f32 %v3580, %v1397
  %v3582 = vadd.f32 %v3581, %v1398
  %v3583 = vadd.f32 %v3582, %v1399
  %v3584 = vadd.f32 %v3583, %v1400
  %v3585 = vsel %vm1820, %v1401, 0.0
  %v3586 = vadd.f32 %v3584, %v3585
  %3587 = vadd.xlane.f32.xlu0 %v3586
  %v3588 = vpop.xlane.xlu0 %3587
  %v3589 = vadd.f32 %v1402, %v1403
  %v3590 = vadd.f32 %v3589, %v1404
  %v3591 = vadd.f32 %v3590, %v1405
  %v3592 = vadd.f32 %v3591, %v1406
  %v3593 = vadd.f32 %v3592, %v1407
  %v3594 = vsel %vm1820, %v1408, 0.0
  %v3595 = vadd.f32 %v3593, %v3594
  %3596 = vadd.xlane.f32.xlu0 %v3595
  %v3597 = vpop.xlane.xlu0 %3596
  %v3598 = vadd.f32 %v1409, %v1410
  %v3599 = vadd.f32 %v3598, %v1411
  %v3600 = vadd.f32 %v3599, %v1412
  %v3601 = vadd.f32 %v3600, %v1413
  %v3602 = vadd.f32 %v3601, %v1414
  %v3603 = vsel %vm1820, %v1415, 0.0
  %v3604 = vadd.f32 %v3602, %v3603
  %3605 = vadd.xlane.f32.xlu0 %v3604
  %v3606 = vpop.xlane.xlu0 %3605
  %v3607 = vadd.f32 %v1416, %v1417
  %v3608 = vadd.f32 %v3607, %v1418
  %v3609 = vadd.f32 %v3608, %v1419
  %v3610 = vadd.f32 %v3609, %v1420
  %v3611 = vadd.f32 %v3610, %v1421
  %v3612 = vsel %vm1820, %v1422, 0.0
  %v3613 = vadd.f32 %v3611, %v3612
  %3614 = vadd.xlane.f32.xlu0 %v3613
  %v3615 = vpop.xlane.xlu0 %3614
  %v3616 = vadd.f32 %v1423, %v1424
  %v3617 = vadd.f32 %v3616, %v1425
  %v3618 = vadd.f32 %v3617, %v1426
  %v3619 = vadd.f32 %v3618, %v1427
  %v3620 = vadd.f32 %v3619, %v1428
  %v3621 = vsel %vm1820, %v1429, 0.0
  %v3622 = vadd.f32 %v3620, %v3621
  %3623 = vadd.xlane.f32.xlu0 %v3622
  %v3624 = vpop.xlane.xlu0 %3623
  %v3625 = vadd.f32 %v1430, %v1431
  %v3626 = vadd.f32 %v3625, %v1432
  %v3627 = vadd.f32 %v3626, %v1433
  %v3628 = vadd.f32 %v3627, %v1434
  %v3629 = vadd.f32 %v3628, %v1435
  %v3630 = vsel %vm1820, %v1436, 0.0
  %v3631 = vadd.f32 %v3629, %v3630
  %3632 = vadd.xlane.f32.xlu0 %v3631
  %v3633 = vpop.xlane.xlu0 %3632
  %v3634 = vadd.f32 %v1437, %v1438
  %v3635 = vadd.f32 %v3634, %v1439
  %v3636 = vadd.f32 %v3635, %v1440
  %v3637 = vadd.f32 %v3636, %v1441
  %v3638 = vadd.f32 %v3637, %v1442
  %v3639 = vsel %vm1820, %v1443, 0.0
  %v3640 = vadd.f32 %v3638, %v3639
  %3641 = vadd.xlane.f32.xlu0 %v3640
  %v3642 = vpop.xlane.xlu0 %3641
  %v3643 = vadd.f32 %v1444, %v1445
  %v3644 = vadd.f32 %v3643, %v1446
  %v3645 = vadd.f32 %v3644, %v1447
  %v3646 = vadd.f32 %v3645, %v1448
  %v3647 = vadd.f32 %v3646, %v1449
  %v3648 = vsel %vm1820, %v1450, 0.0
  %v3649 = vadd.f32 %v3647, %v3648
  %3650 = vadd.xlane.f32.xlu0 %v3649
  %v3651 = vpop.xlane.xlu0 %3650
  %v3652 = vadd.f32 %v1451, %v1452
  %v3653 = vadd.f32 %v3652, %v1453
  %v3654 = vadd.f32 %v3653, %v1454
  %v3655 = vadd.f32 %v3654, %v1455
  %v3656 = vadd.f32 %v3655, %v1456
  %v3657 = vsel %vm1820, %v1457, 0.0
  %v3658 = vadd.f32 %v3656, %v3657
  %3659 = vadd.xlane.f32.xlu0 %v3658
  %v3660 = vpop.xlane.xlu0 %3659
  %v3661 = vadd.f32 %v1458, %v1459
  %v3662 = vadd.f32 %v3661, %v1460
  %v3663 = vadd.f32 %v3662, %v1461
  %v3664 = vadd.f32 %v3663, %v1462
  %v3665 = vadd.f32 %v3664, %v1463
  %v3666 = vsel %vm1820, %v1464, 0.0
  %v3667 = vadd.f32 %v3665, %v3666
  %3668 = vadd.xlane.f32.xlu0 %v3667
  %v3669 = vpop.xlane.xlu0 %3668
  %v3670 = vadd.f32 %v1465, %v1466
  %v3671 = vadd.f32 %v3670, %v1467
  %v3672 = vadd.f32 %v3671, %v1468
  %v3673 = vadd.f32 %v3672, %v1469
  %v3674 = vadd.f32 %v3673, %v1470
  %v3675 = vsel %vm1820, %v1471, 0.0
  %v3676 = vadd.f32 %v3674, %v3675
  %3677 = vadd.xlane.f32.xlu0 %v3676
  %v3678 = vpop.xlane.xlu0 %3677
  %v3679 = vadd.f32 %v1472, %v1473
  %v3680 = vadd.f32 %v3679, %v1474
  %v3681 = vadd.f32 %v3680, %v1475
  %v3682 = vadd.f32 %v3681, %v1476
  %v3683 = vadd.f32 %v3682, %v1477
  %v3684 = vsel %vm1820, %v1478, 0.0
  %v3685 = vadd.f32 %v3683, %v3684
  %3686 = vadd.xlane.f32.xlu0 %v3685
  %v3687 = vpop.xlane.xlu0 %3686
  %v3688 = vadd.f32 %v1479, %v1480
  %v3689 = vadd.f32 %v3688, %v1481
  %v3690 = vadd.f32 %v3689, %v1482
  %v3691 = vadd.f32 %v3690, %v1483
  %v3692 = vadd.f32 %v3691, %v1484
  %v3693 = vsel %vm1820, %v1485, 0.0
  %v3694 = vadd.f32 %v3692, %v3693
  %3695 = vadd.xlane.f32.xlu0 %v3694
  %v3696 = vpop.xlane.xlu0 %3695
  %v3697 = vadd.f32 %v1486, %v1487
  %v3698 = vadd.f32 %v3697, %v1488
  %v3699 = vadd.f32 %v3698, %v1489
  %v3700 = vadd.f32 %v3699, %v1490
  %v3701 = vadd.f32 %v3700, %v1491
  %v3702 = vsel %vm1820, %v1492, 0.0
  %v3703 = vadd.f32 %v3701, %v3702
  %3704 = vadd.xlane.f32.xlu0 %v3703
  %v3705 = vpop.xlane.xlu0 %3704
  %v3706 = vadd.f32 %v1493, %v1494
  %v3707 = vadd.f32 %v3706, %v1495
  %v3708 = vadd.f32 %v3707, %v1496
  %v3709 = vadd.f32 %v3708, %v1497
  %v3710 = vadd.f32 %v3709, %v1498
  %v3711 = vsel %vm1820, %v1499, 0.0
  %v3712 = vadd.f32 %v3710, %v3711
  %3713 = vadd.xlane.f32.xlu0 %v3712
  %v3714 = vpop.xlane.xlu0 %3713
  %v3715 = vadd.f32 %v1500, %v1501
  %v3716 = vadd.f32 %v3715, %v1502
  %v3717 = vadd.f32 %v3716, %v1503
  %v3718 = vadd.f32 %v3717, %v1504
  %v3719 = vadd.f32 %v3718, %v1505
  %v3720 = vsel %vm1820, %v1506, 0.0
  %v3721 = vadd.f32 %v3719, %v3720
  %3722 = vadd.xlane.f32.xlu0 %v3721
  %v3723 = vpop.xlane.xlu0 %3722
  %v3724 = vadd.f32 %v1507, %v1508
  %v3725 = vadd.f32 %v3724, %v1509
  %v3726 = vadd.f32 %v3725, %v1510
  %v3727 = vadd.f32 %v3726, %v1511
  %v3728 = vadd.f32 %v3727, %v1512
  %v3729 = vsel %vm1820, %v1513, 0.0
  %v3730 = vadd.f32 %v3728, %v3729
  %3731 = vadd.xlane.f32.xlu0 %v3730
  %v3732 = vpop.xlane.xlu0 %3731
  %v3733 = vadd.f32 %v1514, %v1515
  %v3734 = vadd.f32 %v3733, %v1516
  %v3735 = vadd.f32 %v3734, %v1517
  %v3736 = vadd.f32 %v3735, %v1518
  %v3737 = vadd.f32 %v3736, %v1519
  %v3738 = vsel %vm1820, %v1520, 0.0
  %v3739 = vadd.f32 %v3737, %v3738
  %3740 = vadd.xlane.f32.xlu0 %v3739
  %v3741 = vpop.xlane.xlu0 %3740
  %v3742 = vadd.f32 %v1521, %v1522
  %v3743 = vadd.f32 %v3742, %v1523
  %v3744 = vadd.f32 %v3743, %v1524
  %v3745 = vadd.f32 %v3744, %v1525
  %v3746 = vadd.f32 %v3745, %v1526
  %v3747 = vsel %vm1820, %v1527, 0.0
  %v3748 = vadd.f32 %v3746, %v3747
  %3749 = vadd.xlane.f32.xlu0 %v3748
  %v3750 = vpop.xlane.xlu0 %3749
  %v3751 = vadd.f32 %v1528, %v1529
  %v3752 = vadd.f32 %v3751, %v1530
  %v3753 = vadd.f32 %v3752, %v1531
  %v3754 = vadd.f32 %v3753, %v1532
  %v3755 = vadd.f32 %v3754, %v1533
  %v3756 = vsel %vm1820, %v1534, 0.0
  %v3757 = vadd.f32 %v3755, %v3756
  %3758 = vadd.xlane.f32.xlu0 %v3757
  %v3759 = vpop.xlane.xlu0 %3758
  %v3760 = vadd.f32 %v1535, %v1536
  %v3761 = vadd.f32 %v3760, %v1537
  %v3762 = vadd.f32 %v3761, %v1538
  %v3763 = vadd.f32 %v3762, %v1539
  %v3764 = vadd.f32 %v3763, %v1540
  %v3765 = vsel %vm1820, %v1541, 0.0
  %v3766 = vadd.f32 %v3764, %v3765
  %3767 = vadd.xlane.f32.xlu0 %v3766
  %v3768 = vpop.xlane.xlu0 %3767
  %v3769 = vadd.f32 %v1542, %v1543
  %v3770 = vadd.f32 %v3769, %v1544
  %v3771 = vadd.f32 %v3770, %v1545
  %v3772 = vadd.f32 %v3771, %v1546
  %v3773 = vadd.f32 %v3772, %v1547
  %v3774 = vsel %vm1820, %v1548, 0.0
  %v3775 = vadd.f32 %v3773, %v3774
  %3776 = vadd.xlane.f32.xlu0 %v3775
  %v3777 = vpop.xlane.xlu0 %3776
  %v3778 = vadd.f32 %v1549, %v1550
  %v3779 = vadd.f32 %v3778, %v1551
  %v3780 = vadd.f32 %v3779, %v1552
  %v3781 = vadd.f32 %v3780, %v1553
  %v3782 = vadd.f32 %v3781, %v1554
  %v3783 = vsel %vm1820, %v1555, 0.0
  %v3784 = vadd.f32 %v3782, %v3783
  %3785 = vadd.xlane.f32.xlu0 %v3784
  %v3786 = vpop.xlane.xlu0 %3785
  %v3787 = vadd.f32 %v1556, %v1557
  %v3788 = vadd.f32 %v3787, %v1558
  %v3789 = vadd.f32 %v3788, %v1559
  %v3790 = vadd.f32 %v3789, %v1560
  %v3791 = vadd.f32 %v3790, %v1561
  %v3792 = vsel %vm1820, %v1562, 0.0
  %v3793 = vadd.f32 %v3791, %v3792
  %3794 = vadd.xlane.f32.xlu0 %v3793
  %v3795 = vpop.xlane.xlu0 %3794
  %v3796 = vadd.f32 %v1563, %v1564
  %v3797 = vadd.f32 %v3796, %v1565
  %v3798 = vadd.f32 %v3797, %v1566
  %v3799 = vadd.f32 %v3798, %v1567
  %v3800 = vadd.f32 %v3799, %v1568
  %v3801 = vsel %vm1820, %v1569, 0.0
  %v3802 = vadd.f32 %v3800, %v3801
  %3803 = vadd.xlane.f32.xlu0 %v3802
  %v3804 = vpop.xlane.xlu0 %3803
  %v3805 = vadd.f32 %v1570, %v1571
  %v3806 = vadd.f32 %v3805, %v1572
  %v3807 = vadd.f32 %v3806, %v1573
  %v3808 = vadd.f32 %v3807, %v1574
  %v3809 = vadd.f32 %v3808, %v1575
  %v3810 = vsel %vm1820, %v1576, 0.0
  %v3811 = vadd.f32 %v3809, %v3810
  %3812 = vadd.xlane.f32.xlu0 %v3811
  %v3813 = vpop.xlane.xlu0 %3812
  %v3814 = vadd.f32 %v1577, %v1578
  %v3815 = vadd.f32 %v3814, %v1579
  %v3816 = vadd.f32 %v3815, %v1580
  %v3817 = vadd.f32 %v3816, %v1581
  %v3818 = vadd.f32 %v3817, %v1582
  %v3819 = vsel %vm1820, %v1583, 0.0
  %v3820 = vadd.f32 %v3818, %v3819
  %3821 = vadd.xlane.f32.xlu0 %v3820
  %v3822 = vpop.xlane.xlu0 %3821
  %v3823 = vadd.f32 %v1584, %v1585
  %v3824 = vadd.f32 %v3823, %v1586
  %v3825 = vadd.f32 %v3824, %v1587
  %v3826 = vadd.f32 %v3825, %v1588
  %v3827 = vadd.f32 %v3826, %v1589
  %v3828 = vsel %vm1820, %v1590, 0.0
  %v3829 = vadd.f32 %v3827, %v3828
  %3830 = vadd.xlane.f32.xlu0 %v3829
  %v3831 = vpop.xlane.xlu0 %3830
  %v3832 = vadd.f32 %v1591, %v1592
  %v3833 = vadd.f32 %v3832, %v1593
  %v3834 = vadd.f32 %v3833, %v1594
  %v3835 = vadd.f32 %v3834, %v1595
  %v3836 = vadd.f32 %v3835, %v1596
  %v3837 = vsel %vm1820, %v1597, 0.0
  %v3838 = vadd.f32 %v3836, %v3837
  %3839 = vadd.xlane.f32.xlu0 %v3838
  %v3840 = vpop.xlane.xlu0 %3839
  %v3841 = vadd.f32 %v1598, %v1599
  %v3842 = vadd.f32 %v3841, %v1600
  %v3843 = vadd.f32 %v3842, %v1601
  %v3844 = vadd.f32 %v3843, %v1602
  %v3845 = vadd.f32 %v3844, %v1603
  %v3846 = vsel %vm1820, %v1604, 0.0
  %v3847 = vadd.f32 %v3845, %v3846
  %3848 = vadd.xlane.f32.xlu0 %v3847
  %v3849 = vpop.xlane.xlu0 %3848
  %v3850 = vadd.f32 %v1605, %v1606
  %v3851 = vadd.f32 %v3850, %v1607
  %v3852 = vadd.f32 %v3851, %v1608
  %v3853 = vadd.f32 %v3852, %v1609
  %v3854 = vadd.f32 %v3853, %v1610
  %v3855 = vsel %vm1820, %v1611, 0.0
  %v3856 = vadd.f32 %v3854, %v3855
  %3857 = vadd.xlane.f32.xlu0 %v3856
  %v3858 = vpop.xlane.xlu0 %3857
  %v3859 = vadd.f32 %v1612, %v1613
  %v3860 = vadd.f32 %v3859, %v1614
  %v3861 = vadd.f32 %v3860, %v1615
  %v3862 = vadd.f32 %v3861, %v1616
  %v3863 = vadd.f32 %v3862, %v1617
  %v3864 = vsel %vm1820, %v1618, 0.0
  %v3865 = vadd.f32 %v3863, %v3864
  %3866 = vadd.xlane.f32.xlu0 %v3865
  %v3867 = vpop.xlane.xlu0 %3866
  %v3868 = vadd.f32 %v1619, %v1620
  %v3869 = vadd.f32 %v3868, %v1621
  %v3870 = vadd.f32 %v3869, %v1622
  %v3871 = vadd.f32 %v3870, %v1623
  %v3872 = vadd.f32 %v3871, %v1624
  %v3873 = vsel %vm1820, %v1625, 0.0
  %v3874 = vadd.f32 %v3872, %v3873
  %3875 = vadd.xlane.f32.xlu0 %v3874
  %v3876 = vpop.xlane.xlu0 %3875
  %v3877 = vadd.f32 %v1626, %v1627
  %v3878 = vadd.f32 %v3877, %v1628
  %v3879 = vadd.f32 %v3878, %v1629
  %v3880 = vadd.f32 %v3879, %v1630
  %v3881 = vadd.f32 %v3880, %v1631
  %v3882 = vsel %vm1820, %v1632, 0.0
  %v3883 = vadd.f32 %v3881, %v3882
  %3884 = vadd.xlane.f32.xlu0 %v3883
  %v3885 = vpop.xlane.xlu0 %3884
  %v3886 = vadd.f32 %v1633, %v1634
  %v3887 = vadd.f32 %v3886, %v1635
  %v3888 = vadd.f32 %v3887, %v1636
  %v3889 = vadd.f32 %v3888, %v1637
  %v3890 = vadd.f32 %v3889, %v1638
  %v3891 = vsel %vm1820, %v1639, 0.0
  %v3892 = vadd.f32 %v3890, %v3891
  %3893 = vadd.xlane.f32.xlu0 %v3892
  %v3894 = vpop.xlane.xlu0 %3893
  %v3895 = vadd.f32 %v1640, %v1641
  %v3896 = vadd.f32 %v3895, %v1642
  %v3897 = vadd.f32 %v3896, %v1643
  %v3898 = vadd.f32 %v3897, %v1644
  %v3899 = vadd.f32 %v3898, %v1645
  %v3900 = vsel %vm1820, %v1646, 0.0
  %v3901 = vadd.f32 %v3899, %v3900
  %3902 = vadd.xlane.f32.xlu0 %v3901
  %v3903 = vpop.xlane.xlu0 %3902
  %v3904 = vadd.f32 %v1647, %v1648
  %v3905 = vadd.f32 %v3904, %v1649
  %v3906 = vadd.f32 %v3905, %v1650
  %v3907 = vadd.f32 %v3906, %v1651
  %v3908 = vadd.f32 %v3907, %v1652
  %v3909 = vsel %vm1820, %v1653, 0.0
  %v3910 = vadd.f32 %v3908, %v3909
  %3911 = vadd.xlane.f32.xlu0 %v3910
  %v3912 = vpop.xlane.xlu0 %3911
  %v3913 = vadd.f32 %v1654, %v1655
  %v3914 = vadd.f32 %v3913, %v1656
  %v3915 = vadd.f32 %v3914, %v1657
  %v3916 = vadd.f32 %v3915, %v1658
  %v3917 = vadd.f32 %v3916, %v1659
  %v3918 = vsel %vm1820, %v1660, 0.0
  %v3919 = vadd.f32 %v3917, %v3918
  %3920 = vadd.xlane.f32.xlu0 %v3919
  %v3921 = vpop.xlane.xlu0 %3920
  %v3922 = vadd.f32 %v1661, %v1662
  %v3923 = vadd.f32 %v3922, %v1663
  %v3924 = vadd.f32 %v3923, %v1664
  %v3925 = vadd.f32 %v3924, %v1665
  %v3926 = vadd.f32 %v3925, %v1666
  %v3927 = vsel %vm1820, %v1667, 0.0
  %v3928 = vadd.f32 %v3926, %v3927
  %3929 = vadd.xlane.f32.xlu0 %v3928
  %v3930 = vpop.xlane.xlu0 %3929
  %v3931 = vadd.f32 %v1668, %v1669
  %v3932 = vadd.f32 %v3931, %v1670
  %v3933 = vadd.f32 %v3932, %v1671
  %v3934 = vadd.f32 %v3933, %v1672
  %v3935 = vadd.f32 %v3934, %v1673
  %v3936 = vsel %vm1820, %v1674, 0.0
  %v3937 = vadd.f32 %v3935, %v3936
  %3938 = vadd.xlane.f32.xlu0 %v3937
  %v3939 = vpop.xlane.xlu0 %3938
  %v3940 = vadd.f32 %v1675, %v1676
  %v3941 = vadd.f32 %v3940, %v1677
  %v3942 = vadd.f32 %v3941, %v1678
  %v3943 = vadd.f32 %v3942, %v1679
  %v3944 = vadd.f32 %v3943, %v1680
  %v3945 = vsel %vm1820, %v1681, 0.0
  %v3946 = vadd.f32 %v3944, %v3945
  %3947 = vadd.xlane.f32.xlu0 %v3946
  %v3948 = vpop.xlane.xlu0 %3947
  %v3949 = vadd.f32 %v1682, %v1683
  %v3950 = vadd.f32 %v3949, %v1684
  %v3951 = vadd.f32 %v3950, %v1685
  %v3952 = vadd.f32 %v3951, %v1686
  %v3953 = vadd.f32 %v3952, %v1687
  %v3954 = vsel %vm1820, %v1688, 0.0
  %v3955 = vadd.f32 %v3953, %v3954
  %3956 = vadd.xlane.f32.xlu0 %v3955
  %v3957 = vpop.xlane.xlu0 %3956
  %v3958 = vadd.f32 %v1689, %v1690
  %v3959 = vadd.f32 %v3958, %v1691
  %v3960 = vadd.f32 %v3959, %v1692
  %v3961 = vadd.f32 %v3960, %v1693
  %v3962 = vadd.f32 %v3961, %v1694
  %v3963 = vsel %vm1820, %v1695, 0.0
  %v3964 = vadd.f32 %v3962, %v3963
  %3965 = vadd.xlane.f32.xlu0 %v3964
  %v3966 = vpop.xlane.xlu0 %3965
  %v3967 = vadd.f32 %v1696, %v1697
  %v3968 = vadd.f32 %v3967, %v1698
  %v3969 = vadd.f32 %v3968, %v1699
  %v3970 = vadd.f32 %v3969, %v1700
  %v3971 = vadd.f32 %v3970, %v1701
  %v3972 = vsel %vm1820, %v1702, 0.0
  %v3973 = vadd.f32 %v3971, %v3972
  %3974 = vadd.xlane.f32.xlu0 %v3973
  %v3975 = vpop.xlane.xlu0 %3974
  %v3976 = vadd.f32 %v1703, %v1704
  %v3977 = vadd.f32 %v3976, %v1705
  %v3978 = vadd.f32 %v3977, %v1706
  %v3979 = vadd.f32 %v3978, %v1707
  %v3980 = vadd.f32 %v3979, %v1708
  %v3981 = vsel %vm1820, %v1709, 0.0
  %v3982 = vadd.f32 %v3980, %v3981
  %3983 = vadd.xlane.f32.xlu0 %v3982
  %v3984 = vpop.xlane.xlu0 %3983
  %v3985 = vadd.f32 %v1710, %v1711
  %v3986 = vadd.f32 %v3985, %v1712
  %v3987 = vadd.f32 %v3986, %v1713
  %v3988 = vadd.f32 %v3987, %v1714
  %v3989 = vadd.f32 %v3988, %v1715
  %v3990 = vsel %vm1820, %v1716, 0.0
  %v3991 = vadd.f32 %v3989, %v3990
  %3992 = vadd.xlane.f32.xlu0 %v3991
  %v3993 = vpop.xlane.xlu0 %3992
  %v3994 = vadd.f32 %v1717, %v1718
  %v3995 = vadd.f32 %v3994, %v1719
  %v3996 = vadd.f32 %v3995, %v1720
  %v3997 = vadd.f32 %v3996, %v1721
  %v3998 = vadd.f32 %v3997, %v1722
  %v3999 = vsel %vm1820, %v1723, 0.0
  %v4000 = vadd.f32 %v3998, %v3999
  %4001 = vadd.xlane.f32.xlu0 %v4000
  %v4002 = vpop.xlane.xlu0 %4001
  %v4003 = vadd.f32 %v1724, %v1725
  %v4004 = vadd.f32 %v4003, %v1726
  %v4005 = vadd.f32 %v4004, %v1727
  %v4006 = vadd.f32 %v4005, %v1728
  %v4007 = vadd.f32 %v4006, %v1729
  %v4008 = vsel %vm1820, %v1730, 0.0
  %v4009 = vadd.f32 %v4007, %v4008
  %4010 = vadd.xlane.f32.xlu0 %v4009
  %v4011 = vpop.xlane.xlu0 %4010
  %v4012 = vadd.f32 %v1731, %v1732
  %v4013 = vadd.f32 %v4012, %v1733
  %v4014 = vadd.f32 %v4013, %v1734
  %v4015 = vadd.f32 %v4014, %v1735
  %v4016 = vadd.f32 %v4015, %v1736
  %v4017 = vsel %vm1820, %v1737, 0.0
  %v4018 = vadd.f32 %v4016, %v4017
  %4019 = vadd.xlane.f32.xlu0 %v4018
  %v4020 = vpop.xlane.xlu0 %4019
  %v4021 = vadd.f32 %v1738, %v1739
  %v4022 = vadd.f32 %v4021, %v1740
  %v4023 = vadd.f32 %v4022, %v1741
  %v4024 = vadd.f32 %v4023, %v1742
  %v4025 = vadd.f32 %v4024, %v1743
  %v4026 = vsel %vm1820, %v1744, 0.0
  %v4027 = vadd.f32 %v4025, %v4026
  %4028 = vadd.xlane.f32.xlu0 %v4027
  %v4029 = vpop.xlane.xlu0 %4028
  %v4030 = vadd.f32 %v1745, %v1746
  %v4031 = vadd.f32 %v4030, %v1747
  %v4032 = vadd.f32 %v4031, %v1748
  %v4033 = vadd.f32 %v4032, %v1749
  %v4034 = vadd.f32 %v4033, %v1750
  %v4035 = vsel %vm1820, %v1751, 0.0
  %v4036 = vadd.f32 %v4034, %v4035
  %4037 = vadd.xlane.f32.xlu0 %v4036
  %v4038 = vpop.xlane.xlu0 %4037
  %v4039 = vadd.f32 %v1752, %v1753
  %v4040 = vadd.f32 %v4039, %v1754
  %v4041 = vadd.f32 %v4040, %v1755
  %v4042 = vadd.f32 %v4041, %v1756
  %v4043 = vadd.f32 %v4042, %v1757
  %v4044 = vsel %vm1820, %v1758, 0.0
  %v4045 = vadd.f32 %v4043, %v4044
  %4046 = vadd.xlane.f32.xlu0 %v4045
  %v4047 = vpop.xlane.xlu0 %4046
  %v4048 = vadd.f32 %v1759, %v1760
  %v4049 = vadd.f32 %v4048, %v1761
  %v4050 = vadd.f32 %v4049, %v1762
  %v4051 = vadd.f32 %v4050, %v1763
  %v4052 = vadd.f32 %v4051, %v1764
  %v4053 = vsel %vm1820, %v1765, 0.0
  %v4054 = vadd.f32 %v4052, %v4053
  %4055 = vadd.xlane.f32.xlu0 %v4054
  %v4056 = vpop.xlane.xlu0 %4055
  %v4057 = vadd.f32 %v1766, %v1767
  %v4058 = vadd.f32 %v4057, %v1768
  %v4059 = vadd.f32 %v4058, %v1769
  %v4060 = vadd.f32 %v4059, %v1770
  %v4061 = vadd.f32 %v4060, %v1771
  %v4062 = vsel %vm1820, %v1772, 0.0
  %v4063 = vadd.f32 %v4061, %v4062
  %4064 = vadd.xlane.f32.xlu0 %v4063
  %v4065 = vpop.xlane.xlu0 %4064
  %v4066 = vadd.f32 %v1773, %v1774
  %v4067 = vadd.f32 %v4066, %v1775
  %v4068 = vadd.f32 %v4067, %v1776
  %v4069 = vadd.f32 %v4068, %v1777
  %v4070 = vadd.f32 %v4069, %v1778
  %v4071 = vsel %vm1820, %v1779, 0.0
  %v4072 = vadd.f32 %v4070, %v4071
  %4073 = vadd.xlane.f32.xlu0 %v4072
  %v4074 = vpop.xlane.xlu0 %4073
  %v4075 = vadd.f32 %v1780, %v1781
  %v4076 = vadd.f32 %v4075, %v1782
  %v4077 = vadd.f32 %v4076, %v1783
  %v4078 = vadd.f32 %v4077, %v1784
  %v4079 = vadd.f32 %v4078, %v1785
  %v4080 = vsel %vm1820, %v1786, 0.0
  %v4081 = vadd.f32 %v4079, %v4080
  %4082 = vadd.xlane.f32.xlu0 %v4081
  %v4083 = vpop.xlane.xlu0 %4082
  %v4084 = vadd.f32 %v1787, %v1788
  %v4085 = vadd.f32 %v4084, %v1789
  %v4086 = vadd.f32 %v4085, %v1790
  %v4087 = vadd.f32 %v4086, %v1791
  %v4088 = vadd.f32 %v4087, %v1792
  %v4089 = vsel %vm1820, %v1793, 0.0
  %v4090 = vadd.f32 %v4088, %v4089
  %4091 = vadd.xlane.f32.xlu0 %v4090
  %v4092 = vpop.xlane.xlu0 %4091
  %v4093 = vadd.f32 %v1794, %v1795
  %v4094 = vadd.f32 %v4093, %v1796
  %v4095 = vadd.f32 %v4094, %v1797
  %v4096 = vadd.f32 %v4095, %v1798
  %v4097 = vadd.f32 %v4096, %v1799
  %v4098 = vsel %vm1820, %v1800, 0.0
  %v4099 = vadd.f32 %v4097, %v4098
  %4100 = vadd.xlane.f32.xlu0 %v4099
  %v4101 = vpop.xlane.xlu0 %4100
  %v4102 = vadd.f32 %v1801, %v1802
  %v4103 = vadd.f32 %v4102, %v1803
  %v4104 = vadd.f32 %v4103, %v1804
  %v4105 = vadd.f32 %v4104, %v1805
  %v4106 = vadd.f32 %v4105, %v1806
  %v4107 = vsel %vm1820, %v1807, 0.0
  %v4108 = vadd.f32 %v4106, %v4107
  %4109 = vadd.xlane.f32.xlu0 %v4108
  %v4110 = vpop.xlane.xlu0 %4109
  %v4111 = vadd.f32 %v1808, %v1809
  %v4112 = vadd.f32 %v4111, %v1810
  %v4113 = vadd.f32 %v4112, %v1811
  %v4114 = vadd.f32 %v4113, %v1812
  %v4115 = vadd.f32 %v4114, %v1813
  %v4116 = vsel %vm1820, %v1814, 0.0
  %v4117 = vadd.f32 %v4115, %v4116
  %4118 = vadd.xlane.f32.xlu0 %v4117
  %v4119 = vpop.xlane.xlu0 %4118
  %v4120 = vrcp.pop 784.0
  %v4121 = vmul.f32 %v1824, %v4120
  %v4122 = vmul.f32 %v1833, %v4120
  %v4123 = vmul.f32 %v1842, %v4120
  %v4124 = vmul.f32 %v1851, %v4120
  %v4125 = vmul.f32 %v1860, %v4120
  %v4126 = vmul.f32 %v1869, %v4120
  %v4127 = vmul.f32 %v1878, %v4120
  %v4128 = vmul.f32 %v1887, %v4120
  %v4129 = vmul.f32 %v1896, %v4120
  %v4130 = vmul.f32 %v1905, %v4120
  %v4131 = vmul.f32 %v1914, %v4120
  %v4132 = vmul.f32 %v1923, %v4120
  %v4133 = vmul.f32 %v1932, %v4120
  %v4134 = vmul.f32 %v1941, %v4120
  %v4135 = vmul.f32 %v1950, %v4120
  %v4136 = vmul.f32 %v1959, %v4120
  %v4137 = vmul.f32 %v1968, %v4120
  %v4138 = vmul.f32 %v1977, %v4120
  %v4139 = vmul.f32 %v1986, %v4120
  %v4140 = vmul.f32 %v1995, %v4120
  %v4141 = vmul.f32 %v2004, %v4120
  %v4142 = vmul.f32 %v2013, %v4120
  %v4143 = vmul.f32 %v2022, %v4120
  %v4144 = vmul.f32 %v2031, %v4120
  %v4145 = vmul.f32 %v2040, %v4120
  %v4146 = vmul.f32 %v2049, %v4120
  %v4147 = vmul.f32 %v2058, %v4120
  %v4148 = vmul.f32 %v2067, %v4120
  %v4149 = vmul.f32 %v2076, %v4120
  %v4150 = vmul.f32 %v2085, %v4120
  %v4151 = vmul.f32 %v2094, %v4120
  %v4152 = vmul.f32 %v2103, %v4120
  %v4153 = vmul.f32 %v2112, %v4120
  %v4154 = vmul.f32 %v2121, %v4120
  %v4155 = vmul.f32 %v2130, %v4120
  %v4156 = vmul.f32 %v2139, %v4120
  %v4157 = vmul.f32 %v2148, %v4120
  %v4158 = vmul.f32 %v2157, %v4120
  %v4159 = vmul.f32 %v2166, %v4120
  %v4160 = vmul.f32 %v2175, %v4120
  %v4161 = vmul.f32 %v2184, %v4120
  %v4162 = vmul.f32 %v2193, %v4120
  %v4163 = vmul.f32 %v2202, %v4120
  %v4164 = vmul.f32 %v2211, %v4120
  %v4165 = vmul.f32 %v2220, %v4120
  %v4166 = vmul.f32 %v2229, %v4120
  %v4167 = vmul.f32 %v2238, %v4120
  %v4168 = vmul.f32 %v2247, %v4120
  %v4169 = vmul.f32 %v2256, %v4120
  %v4170 = vmul.f32 %v2265, %v4120
  %v4171 = vmul.f32 %v2274, %v4120
  %v4172 = vmul.f32 %v2283, %v4120
  %v4173 = vmul.f32 %v2292, %v4120
  %v4174 = vmul.f32 %v2301, %v4120
  %v4175 = vmul.f32 %v2310, %v4120
  %v4176 = vmul.f32 %v2319, %v4120
  %v4177 = vmul.f32 %v2328, %v4120
  %v4178 = vmul.f32 %v2337, %v4120
  %v4179 = vmul.f32 %v2346, %v4120
  %v4180 = vmul.f32 %v2355, %v4120
  %v4181 = vmul.f32 %v2364, %v4120
  %v4182 = vmul.f32 %v2373, %v4120
  %v4183 = vmul.f32 %v2382, %v4120
  %v4184 = vmul.f32 %v2391, %v4120
  %v4185 = vmul.f32 %v2400, %v4120
  %v4186 = vmul.f32 %v2409, %v4120
  %v4187 = vmul.f32 %v2418, %v4120
  %v4188 = vmul.f32 %v2427, %v4120
  %v4189 = vmul.f32 %v2436, %v4120
  %v4190 = vmul.f32 %v2445, %v4120
  %v4191 = vmul.f32 %v2454, %v4120
  %v4192 = vmul.f32 %v2463, %v4120
  %v4193 = vmul.f32 %v2472, %v4120
  %v4194 = vmul.f32 %v2481, %v4120
  %v4195 = vmul.f32 %v2490, %v4120
  %v4196 = vmul.f32 %v2499, %v4120
  %v4197 = vmul.f32 %v2508, %v4120
  %v4198 = vmul.f32 %v2517, %v4120
  %v4199 = vmul.f32 %v2526, %v4120
  %v4200 = vmul.f32 %v2535, %v4120
  %v4201 = vmul.f32 %v2544, %v4120
  %v4202 = vmul.f32 %v2553, %v4120
  %v4203 = vmul.f32 %v2562, %v4120
  %v4204 = vmul.f32 %v2571, %v4120
  %v4205 = vmul.f32 %v2580, %v4120
  %v4206 = vmul.f32 %v2589, %v4120
  %v4207 = vmul.f32 %v2598, %v4120
  %v4208 = vmul.f32 %v2607, %v4120
  %v4209 = vmul.f32 %v2616, %v4120
  %v4210 = vmul.f32 %v2625, %v4120
  %v4211 = vmul.f32 %v2634, %v4120
  %v4212 = vmul.f32 %v2643, %v4120
  %v4213 = vmul.f32 %v2652, %v4120
  %v4214 = vmul.f32 %v2661, %v4120
  %v4215 = vmul.f32 %v2670, %v4120
  %v4216 = vmul.f32 %v2679, %v4120
  %v4217 = vmul.f32 %v2688, %v4120
  %v4218 = vmul.f32 %v2697, %v4120
  %v4219 = vmul.f32 %v2706, %v4120
  %v4220 = vmul.f32 %v2715, %v4120
  %v4221 = vmul.f32 %v2724, %v4120
  %v4222 = vmul.f32 %v2733, %v4120
  %v4223 = vmul.f32 %v2742, %v4120
  %v4224 = vmul.f32 %v2751, %v4120
  %v4225 = vmul.f32 %v2760, %v4120
  %v4226 = vmul.f32 %v2769, %v4120
  %v4227 = vmul.f32 %v2778, %v4120
  %v4228 = vmul.f32 %v2787, %v4120
  %v4229 = vmul.f32 %v2796, %v4120
  %v4230 = vmul.f32 %v2805, %v4120
  %v4231 = vmul.f32 %v2814, %v4120
  %v4232 = vmul.f32 %v2823, %v4120
  %v4233 = vmul.f32 %v2832, %v4120
  %v4234 = vmul.f32 %v2841, %v4120
  %v4235 = vmul.f32 %v2850, %v4120
  %v4236 = vmul.f32 %v2859, %v4120
  %v4237 = vmul.f32 %v2868, %v4120
  %v4238 = vmul.f32 %v2877, %v4120
  %v4239 = vmul.f32 %v2886, %v4120
  %v4240 = vmul.f32 %v2895, %v4120
  %v4241 = vmul.f32 %v2904, %v4120
  %v4242 = vmul.f32 %v2913, %v4120
  %v4243 = vmul.f32 %v2922, %v4120
  %v4244 = vmul.f32 %v2931, %v4120
  %v4245 = vmul.f32 %v2940, %v4120
  %v4246 = vmul.f32 %v2949, %v4120
  %v4247 = vmul.f32 %v2958, %v4120
  %v4248 = vmul.f32 %v2967, %v4120
  %v4249 = vmul.f32 %v2976, %v4120
  %v4250 = vmul.f32 %v2985, %v4120
  %v4251 = vmul.f32 %v2994, %v4120
  %v4252 = vmul.f32 %v3003, %v4120
  %v4253 = vmul.f32 %v3012, %v4120
  %v4254 = vmul.f32 %v3021, %v4120
  %v4255 = vmul.f32 %v3030, %v4120
  %v4256 = vmul.f32 %v3039, %v4120
  %v4257 = vmul.f32 %v3048, %v4120
  %v4258 = vmul.f32 %v3057, %v4120
  %v4259 = vmul.f32 %v3066, %v4120
  %v4260 = vmul.f32 %v3075, %v4120
  %v4261 = vmul.f32 %v3084, %v4120
  %v4262 = vmul.f32 %v3093, %v4120
  %v4263 = vmul.f32 %v3102, %v4120
  %v4264 = vmul.f32 %v3111, %v4120
  %v4265 = vmul.f32 %v3120, %v4120
  %v4266 = vmul.f32 %v3129, %v4120
  %v4267 = vmul.f32 %v3138, %v4120
  %v4268 = vmul.f32 %v3147, %v4120
  %v4269 = vmul.f32 %v3156, %v4120
  %v4270 = vmul.f32 %v3165, %v4120
  %v4271 = vmul.f32 %v3174, %v4120
  %v4272 = vmul.f32 %v3183, %v4120
  %v4273 = vmul.f32 %v3192, %v4120
  %v4274 = vmul.f32 %v3201, %v4120
  %v4275 = vmul.f32 %v3210, %v4120
  %v4276 = vmul.f32 %v3219, %v4120
  %v4277 = vmul.f32 %v3228, %v4120
  %v4278 = vmul.f32 %v3237, %v4120
  %v4279 = vmul.f32 %v3246, %v4120
  %v4280 = vmul.f32 %v3255, %v4120
  %v4281 = vmul.f32 %v3264, %v4120
  %v4282 = vmul.f32 %v3273, %v4120
  %v4283 = vmul.f32 %v3282, %v4120
  %v4284 = vmul.f32 %v3291, %v4120
  %v4285 = vmul.f32 %v3300, %v4120
  %v4286 = vmul.f32 %v3309, %v4120
  %v4287 = vmul.f32 %v3318, %v4120
  %v4288 = vmul.f32 %v3327, %v4120
  %v4289 = vmul.f32 %v3336, %v4120
  %v4290 = vmul.f32 %v3345, %v4120
  %v4291 = vmul.f32 %v3354, %v4120
  %v4292 = vmul.f32 %v3363, %v4120
  %v4293 = vmul.f32 %v3372, %v4120
  %v4294 = vmul.f32 %v3381, %v4120
  %v4295 = vmul.f32 %v3390, %v4120
  %v4296 = vmul.f32 %v3399, %v4120
  %v4297 = vmul.f32 %v3408, %v4120
  %v4298 = vmul.f32 %v3417, %v4120
  %v4299 = vmul.f32 %v3426, %v4120
  %v4300 = vmul.f32 %v3435, %v4120
  %v4301 = vmul.f32 %v3444, %v4120
  %v4302 = vmul.f32 %v3453, %v4120
  %v4303 = vmul.f32 %v3462, %v4120
  %v4304 = vmul.f32 %v3471, %v4120
  %v4305 = vmul.f32 %v3480, %v4120
  %v4306 = vmul.f32 %v3489, %v4120
  %v4307 = vmul.f32 %v3498, %v4120
  %v4308 = vmul.f32 %v3507, %v4120
  %v4309 = vmul.f32 %v3516, %v4120
  %v4310 = vmul.f32 %v3525, %v4120
  %v4311 = vmul.f32 %v3534, %v4120
  %v4312 = vmul.f32 %v3543, %v4120
  %v4313 = vmul.f32 %v3552, %v4120
  %v4314 = vmul.f32 %v3561, %v4120
  %v4315 = vmul.f32 %v3570, %v4120
  %v4316 = vmul.f32 %v3579, %v4120
  %v4317 = vmul.f32 %v3588, %v4120
  %v4318 = vmul.f32 %v3597, %v4120
  %v4319 = vmul.f32 %v3606, %v4120
  %v4320 = vmul.f32 %v3615, %v4120
  %v4321 = vmul.f32 %v3624, %v4120
  %v4322 = vmul.f32 %v3633, %v4120
  %v4323 = vmul.f32 %v3642, %v4120
  %v4324 = vmul.f32 %v3651, %v4120
  %v4325 = vmul.f32 %v3660, %v4120
  %v4326 = vmul.f32 %v3669, %v4120
  %v4327 = vmul.f32 %v3678, %v4120
  %v4328 = vmul.f32 %v3687, %v4120
  %v4329 = vmul.f32 %v3696, %v4120
  %v4330 = vmul.f32 %v3705, %v4120
  %v4331 = vmul.f32 %v3714, %v4120
  %v4332 = vmul.f32 %v3723, %v4120
  %v4333 = vmul.f32 %v3732, %v4120
  %v4334 = vmul.f32 %v3741, %v4120
  %v4335 = vmul.f32 %v3750, %v4120
  %v4336 = vmul.f32 %v3759, %v4120
  %v4337 = vmul.f32 %v3768, %v4120
  %v4338 = vmul.f32 %v3777, %v4120
  %v4339 = vmul.f32 %v3786, %v4120
  %v4340 = vmul.f32 %v3795, %v4120
  %v4341 = vmul.f32 %v3804, %v4120
  %v4342 = vmul.f32 %v3813, %v4120
  %v4343 = vmul.f32 %v3822, %v4120
  %v4344 = vmul.f32 %v3831, %v4120
  %v4345 = vmul.f32 %v3840, %v4120
  %v4346 = vmul.f32 %v3849, %v4120
  %v4347 = vmul.f32 %v3858, %v4120
  %v4348 = vmul.f32 %v3867, %v4120
  %v4349 = vmul.f32 %v3876, %v4120
  %v4350 = vmul.f32 %v3885, %v4120
  %v4351 = vmul.f32 %v3894, %v4120
  %v4352 = vmul.f32 %v3903, %v4120
  %v4353 = vmul.f32 %v3912, %v4120
  %v4354 = vmul.f32 %v3921, %v4120
  %v4355 = vmul.f32 %v3930, %v4120
  %v4356 = vmul.f32 %v3939, %v4120
  %v4357 = vmul.f32 %v3948, %v4120
  %v4358 = vmul.f32 %v3957, %v4120
  %v4359 = vmul.f32 %v3966, %v4120
  %v4360 = vmul.f32 %v3975, %v4120
  %v4361 = vmul.f32 %v3984, %v4120
  %v4362 = vmul.f32 %v3993, %v4120
  %v4363 = vmul.f32 %v4002, %v4120
  %v4364 = vmul.f32 %v4011, %v4120
  %v4365 = vmul.f32 %v4020, %v4120
  %v4366 = vmul.f32 %v4029, %v4120
  %v4367 = vmul.f32 %v4038, %v4120
  %v4368 = vmul.f32 %v4047, %v4120
  %v4369 = vmul.f32 %v4056, %v4120
  %v4370 = vmul.f32 %v4065, %v4120
  %v4371 = vmul.f32 %v4074, %v4120
  %v4372 = vmul.f32 %v4083, %v4120
  %v4373 = vmul.f32 %v4092, %v4120
  %v4374 = vmul.f32 %v4101, %v4120
  %v4375 = vmul.f32 %v4110, %v4120
  %v4376 = vmul.f32 %v4119, %v4120
  %v4377 = vld [vmem:[%s1] sm:$0xff]
  %v4378 = vld [vmem:[%s1 + $0x8] sm:$0xff]
  %v4379 = vld [vmem:[%s1 + $0x10] sm:$0xff]
  %v4380 = vld [vmem:[%s1 + $0x18] sm:$0xff]
  %v4381 = vld [vmem:[%s1 + $0x20] sm:$0xff]
  %v4382 = vld [vmem:[%s1 + $0x28] sm:$0xff]
  %v4383 = vld [vmem:[%s1 + $0x30] sm:$0xff]
  %v4384 = vld [vmem:[%s1 + $0x38] sm:$0xff]
  %v4385 = vld [vmem:[%s1 + $0x40] sm:$0xff]
  %v4386 = vld [vmem:[%s1 + $0x48] sm:$0xff]
  %v4387 = vld [vmem:[%s1 + $0x50] sm:$0xff]
  %v4388 = vld [vmem:[%s1 + $0x58] sm:$0xff]
  %v4389 = vld [vmem:[%s1 + $0x60] sm:$0xff]
  %v4390 = vld [vmem:[%s1 + $0x68] sm:$0xff]
  %v4391 = vld [vmem:[%s1 + $0x70] sm:$0xff]
  %v4392 = vld [vmem:[%s1 + $0x78] sm:$0xff]
  %v4393 = vld [vmem:[%s1 + $0x80] sm:$0xff]
  %v4394 = vld [vmem:[%s1 + $0x88] sm:$0xff]
  %v4395 = vld [vmem:[%s1 + $0x90] sm:$0xff]
  %v4396 = vld [vmem:[%s1 + $0x98] sm:$0xff]
  %v4397 = vld [vmem:[%s1 + $0xa0] sm:$0xff]
  %v4398 = vld [vmem:[%s1 + $0xa8] sm:$0xff]
  %v4399 = vld [vmem:[%s1 + $0xb0] sm:$0xff]
  %v4400 = vld [vmem:[%s1 + $0xb8] sm:$0xff]
  %v4401 = vld [vmem:[%s1 + $0xc0] sm:$0xff]
  %v4402 = vld [vmem:[%s1 + $0xc8] sm:$0xff]
  %v4403 = vld [vmem:[%s1 + $0xd0] sm:$0xff]
  %v4404 = vld [vmem:[%s1 + $0xd8] sm:$0xff]
  %v4405 = vld [vmem:[%s1 + $0xe0] sm:$0xff]
  %v4406 = vld [vmem:[%s1 + $0xe8] sm:$0xff]
  %v4407 = vld [vmem:[%s1 + $0xf0] sm:$0xff]
  %v4408 = vld [vmem:[%s1 + $0xf8] sm:$0xff]
  %v4409 = vld [vmem:[%s1 + $0x100] sm:$0xff]
  %v4410 = vld [vmem:[%s1 + $0x108] sm:$0xff]
  %v4411 = vld [vmem:[%s1 + $0x110] sm:$0xff]
  %v4412 = vld [vmem:[%s1 + $0x118] sm:$0xff]
  %v4413 = vld [vmem:[%s1 + $0x120] sm:$0xff]
  %v4414 = vld [vmem:[%s1 + $0x128] sm:$0xff]
  %v4415 = vld [vmem:[%s1 + $0x130] sm:$0xff]
  %v4416 = vld [vmem:[%s1 + $0x138] sm:$0xff]
  %v4417 = vld [vmem:[%s1 + $0x140] sm:$0xff]
  %v4418 = vld [vmem:[%s1 + $0x148] sm:$0xff]
  %v4419 = vld [vmem:[%s1 + $0x150] sm:$0xff]
  %v4420 = vld [vmem:[%s1 + $0x158] sm:$0xff]
  %v4421 = vld [vmem:[%s1 + $0x160] sm:$0xff]
  %v4422 = vld [vmem:[%s1 + $0x168] sm:$0xff]
  %v4423 = vld [vmem:[%s1 + $0x170] sm:$0xff]
  %v4424 = vld [vmem:[%s1 + $0x178] sm:$0xff]
  %v4425 = vld [vmem:[%s1 + $0x180] sm:$0xff]
  %v4426 = vld [vmem:[%s1 + $0x188] sm:$0xff]
  %v4427 = vld [vmem:[%s1 + $0x190] sm:$0xff]
  %v4428 = vld [vmem:[%s1 + $0x198] sm:$0xff]
  %v4429 = vld [vmem:[%s1 + $0x1a0] sm:$0xff]
  %v4430 = vld [vmem:[%s1 + $0x1a8] sm:$0xff]
  %v4431 = vld [vmem:[%s1 + $0x1b0] sm:$0xff]
  %v4432 = vld [vmem:[%s1 + $0x1b8] sm:$0xff]
  %v4433 = vld [vmem:[%s1 + $0x1c0] sm:$0xff]
  %v4434 = vld [vmem:[%s1 + $0x1c8] sm:$0xff]
  %v4435 = vld [vmem:[%s1 + $0x1d0] sm:$0xff]
  %v4436 = vld [vmem:[%s1 + $0x1d8] sm:$0xff]
  %v4437 = vld [vmem:[%s1 + $0x1e0] sm:$0xff]
  %v4438 = vld [vmem:[%s1 + $0x1e8] sm:$0xff]
  %v4439 = vld [vmem:[%s1 + $0x1f0] sm:$0xff]
  %v4440 = vld [vmem:[%s1 + $0x1f8] sm:$0xff]
  %v4441 = vld [vmem:[%s1 + $0x200] sm:$0xff]
  %v4442 = vld [vmem:[%s1 + $0x208] sm:$0xff]
  %v4443 = vld [vmem:[%s1 + $0x210] sm:$0xff]
  %v4444 = vld [vmem:[%s1 + $0x218] sm:$0xff]
  %v4445 = vld [vmem:[%s1 + $0x220] sm:$0xff]
  %v4446 = vld [vmem:[%s1 + $0x228] sm:$0xff]
  %v4447 = vld [vmem:[%s1 + $0x230] sm:$0xff]
  %v4448 = vld [vmem:[%s1 + $0x238] sm:$0xff]
  %v4449 = vld [vmem:[%s1 + $0x240] sm:$0xff]
  %v4450 = vld [vmem:[%s1 + $0x248] sm:$0xff]
  %v4451 = vld [vmem:[%s1 + $0x250] sm:$0xff]
  %v4452 = vld [vmem:[%s1 + $0x258] sm:$0xff]
  %v4453 = vld [vmem:[%s1 + $0x260] sm:$0xff]
  %v4454 = vld [vmem:[%s1 + $0x268] sm:$0xff]
  %v4455 = vld [vmem:[%s1 + $0x270] sm:$0xff]
  %v4456 = vld [vmem:[%s1 + $0x278] sm:$0xff]
  %v4457 = vld [vmem:[%s1 + $0x280] sm:$0xff]
  %v4458 = vld [vmem:[%s1 + $0x288] sm:$0xff]
  %v4459 = vld [vmem:[%s1 + $0x290] sm:$0xff]
  %v4460 = vld [vmem:[%s1 + $0x298] sm:$0xff]
  %v4461 = vld [vmem:[%s1 + $0x2a0] sm:$0xff]
  %v4462 = vld [vmem:[%s1 + $0x2a8] sm:$0xff]
  %v4463 = vld [vmem:[%s1 + $0x2b0] sm:$0xff]
  %v4464 = vld [vmem:[%s1 + $0x2b8] sm:$0xff]
  %v4465 = vld [vmem:[%s1 + $0x2c0] sm:$0xff]
  %v4466 = vld [vmem:[%s1 + $0x2c8] sm:$0xff]
  %v4467 = vld [vmem:[%s1 + $0x2d0] sm:$0xff]
  %v4468 = vld [vmem:[%s1 + $0x2d8] sm:$0xff]
  %v4469 = vld [vmem:[%s1 + $0x2e0] sm:$0xff]
  %v4470 = vld [vmem:[%s1 + $0x2e8] sm:$0xff]
  %v4471 = vld [vmem:[%s1 + $0x2f0] sm:$0xff]
  %v4472 = vld [vmem:[%s1 + $0x2f8] sm:$0xff]
  %v4473 = vld [vmem:[%s1 + $0x300] sm:$0xff]
  %v4474 = vld [vmem:[%s1 + $0x308] sm:$0xff]
  %v4475 = vld [vmem:[%s1 + $0x310] sm:$0xff]
  %v4476 = vld [vmem:[%s1 + $0x318] sm:$0xff]
  %v4477 = vld [vmem:[%s1 + $0x320] sm:$0xff]
  %v4478 = vld [vmem:[%s1 + $0x328] sm:$0xff]
  %v4479 = vld [vmem:[%s1 + $0x330] sm:$0xff]
  %v4480 = vld [vmem:[%s1 + $0x338] sm:$0xff]
  %v4481 = vld [vmem:[%s1 + $0x340] sm:$0xff]
  %v4482 = vld [vmem:[%s1 + $0x348] sm:$0xff]
  %v4483 = vld [vmem:[%s1 + $0x350] sm:$0xff]
  %v4484 = vld [vmem:[%s1 + $0x358] sm:$0xff]
  %v4485 = vld [vmem:[%s1 + $0x360] sm:$0xff]
  %v4486 = vld [vmem:[%s1 + $0x368] sm:$0xff]
  %v4487 = vld [vmem:[%s1 + $0x370] sm:$0xff]
  %v4488 = vld [vmem:[%s1 + $0x378] sm:$0xff]
  %v4489 = vld [vmem:[%s1 + $0x380] sm:$0xff]
  %v4490 = vld [vmem:[%s1 + $0x388] sm:$0xff]
  %v4491 = vld [vmem:[%s1 + $0x390] sm:$0xff]
  %v4492 = vld [vmem:[%s1 + $0x398] sm:$0xff]
  %v4493 = vld [vmem:[%s1 + $0x3a0] sm:$0xff]
  %v4494 = vld [vmem:[%s1 + $0x3a8] sm:$0xff]
  %v4495 = vld [vmem:[%s1 + $0x3b0] sm:$0xff]
  %v4496 = vld [vmem:[%s1 + $0x3b8] sm:$0xff]
  %v4497 = vld [vmem:[%s1 + $0x3c0] sm:$0xff]
  %v4498 = vld [vmem:[%s1 + $0x3c8] sm:$0xff]
  %v4499 = vld [vmem:[%s1 + $0x3d0] sm:$0xff]
  %v4500 = vld [vmem:[%s1 + $0x3d8] sm:$0xff]
  %v4501 = vld [vmem:[%s1 + $0x3e0] sm:$0xff]
  %v4502 = vld [vmem:[%s1 + $0x3e8] sm:$0xff]
  %v4503 = vld [vmem:[%s1 + $0x3f0] sm:$0xff]
  %v4504 = vld [vmem:[%s1 + $0x3f8] sm:$0xff]
  %v4505 = vld [vmem:[%s2] sm:$0xf]
  %v4507 = vlaneseq
  %v4508 = vshrl.u32 %v4507, 7
  %v4509 = vsub.s32 0, %v4508
  %v4510 = vrot.slane %v4505, %v4509
  %v4511 = vlaneseq
  %v4512 = vshrl.u32 %v4511, 7
  %v4513 = vsub.s32 1, %v4512
  %v4514 = vrot.slane %v4505, %v4513
  %v4515 = vlaneseq
  %v4516 = vshrl.u32 %v4515, 7
  %v4517 = vsub.s32 2, %v4516
  %v4518 = vrot.slane %v4505, %v4517
  %v4519 = vlaneseq
  %v4520 = vshrl.u32 %v4519, 7
  %v4521 = vsub.s32 3, %v4520
  %v4522 = vrot.slane %v4505, %v4521
  %v4783 = vlaneseq
  %v4784 = vand.u32 %v4783, 127
  %v4785 = vlaneseq
  %v4786 = vshrl.u32 %v4785, 7
  %v4787 = vsub.s32 %v4784, %v4786
  %v4788 = vrot.slane %v4121, %v4787
  %v4789 = vadd.s32 %v4784, 4294967288
  %v4790 = vlaneseq
  %v4791 = vshrl.u32 %v4790, 7
  %v4792 = vsub.s32 %v4789, %v4791
  %v4793 = vrot.slane %v4122, %v4792
  %vm4794 = vcmask 130112
  %v4795 = vsel %vm4794, %v4793, %v4788
  %v4796 = vadd.s32 %v4784, 4294967280
  %v4797 = vlaneseq
  %v4798 = vshrl.u32 %v4797, 7
  %v4799 = vsub.s32 %v4796, %v4798
  %v4800 = vrot.slane %v4123, %v4799
  %vm4801 = vcmask 195712
  %v4802 = vsel %vm4801, %v4800, %v4795
  %v4803 = vadd.s32 %v4784, 4294967272
  %v4804 = vlaneseq
  %v4805 = vshrl.u32 %v4804, 7
  %v4806 = vsub.s32 %v4803, %v4805
  %v4807 = vrot.slane %v4124, %v4806
  %vm4808 = vcmask 261312
  %v4809 = vsel %vm4808, %v4807, %v4802
  %v4810 = vadd.s32 %v4784, 4294967264
  %v4811 = vlaneseq
  %v4812 = vshrl.u32 %v4811, 7
  %v4813 = vsub.s32 %v4810, %v4812
  %v4814 = vrot.slane %v4125, %v4813
  %vm4815 = vcmask 326912
  %v4816 = vsel %vm4815, %v4814, %v4809
  %v4817 = vadd.s32 %v4784, 4294967256
  %v4818 = vlaneseq
  %v4819 = vshrl.u32 %v4818, 7
  %v4820 = vsub.s32 %v4817, %v4819
  %v4821 = vrot.slane %v4126, %v4820
  %vm4822 = vcmask 392512
  %v4823 = vsel %vm4822, %v4821, %v4816
  %v4824 = vadd.s32 %v4784, 4294967248
  %v4825 = vlaneseq
  %v4826 = vshrl.u32 %v4825, 7
  %v4827 = vsub.s32 %v4824, %v4826
  %v4828 = vrot.slane %v4127, %v4827
  %vm4829 = vcmask 458112
  %v4830 = vsel %vm4829, %v4828, %v4823
  %v4831 = vadd.s32 %v4784, 4294967240
  %v4832 = vlaneseq
  %v4833 = vshrl.u32 %v4832, 7
  %v4834 = vsub.s32 %v4831, %v4833
  %v4835 = vrot.slane %v4128, %v4834
  %vm4836 = vcmask 523712
  %v4837 = vsel %vm4836, %v4835, %v4830
  %v4838 = vadd.s32 %v4784, 4294967232
  %v4839 = vlaneseq
  %v4840 = vshrl.u32 %v4839, 7
  %v4841 = vsub.s32 %v4838, %v4840
  %v4842 = vrot.slane %v4129, %v4841
  %vm4843 = vcmask 589312
  %v4844 = vsel %vm4843, %v4842, %v4837
  %v4845 = vadd.s32 %v4784, 4294967224
  %v4846 = vlaneseq
  %v4847 = vshrl.u32 %v4846, 7
  %v4848 = vsub.s32 %v4845, %v4847
  %v4849 = vrot.slane %v4130, %v4848
  %vm4850 = vcmask 654912
  %v4851 = vsel %vm4850, %v4849, %v4844
  %v4852 = vadd.s32 %v4784, 4294967216
  %v4853 = vlaneseq
  %v4854 = vshrl.u32 %v4853, 7
  %v4855 = vsub.s32 %v4852, %v4854
  %v4856 = vrot.slane %v4131, %v4855
  %vm4857 = vcmask 720512
  %v4858 = vsel %vm4857, %v4856, %v4851
  %v4859 = vadd.s32 %v4784, 4294967208
  %v4860 = vlaneseq
  %v4861 = vshrl.u32 %v4860, 7
  %v4862 = vsub.s32 %v4859, %v4861
  %v4863 = vrot.slane %v4132, %v4862
  %vm4864 = vcmask 786112
  %v4865 = vsel %vm4864, %v4863, %v4858
  %v4866 = vadd.s32 %v4784, 4294967200
  %v4867 = vlaneseq
  %v4868 = vshrl.u32 %v4867, 7
  %v4869 = vsub.s32 %v4866, %v4868
  %v4870 = vrot.slane %v4133, %v4869
  %vm4871 = vcmask 851712
  %v4872 = vsel %vm4871, %v4870, %v4865
  %v4873 = vadd.s32 %v4784, 4294967192
  %v4874 = vlaneseq
  %v4875 = vshrl.u32 %v4874, 7
  %v4876 = vsub.s32 %v4873, %v4875
  %v4877 = vrot.slane %v4134, %v4876
  %vm4878 = vcmask 917312
  %v4879 = vsel %vm4878, %v4877, %v4872
  %v4880 = vadd.s32 %v4784, 4294967184
  %v4881 = vlaneseq
  %v4882 = vshrl.u32 %v4881, 7
  %v4883 = vsub.s32 %v4880, %v4882
  %v4884 = vrot.slane %v4135, %v4883
  %vm4885 = vcmask 982912
  %v4886 = vsel %vm4885, %v4884, %v4879
  %v4887 = vadd.s32 %v4784, 4294967176
  %v4888 = vlaneseq
  %v4889 = vshrl.u32 %v4888, 7
  %v4890 = vsub.s32 %v4887, %v4889
  %v4891 = vrot.slane %v4136, %v4890
  %vm4892 = vcmask 1048512
  %v4893 = vsel %vm4892, %v4891, %v4886
  %v4894 = vlaneseq
  %v4895 = vshrl.u32 %v4894, 7
  %v4896 = vsub.s32 %v4784, %v4895
  %v4897 = vrot.slane %v4137, %v4896
  %v4898 = vlaneseq
  %v4899 = vshrl.u32 %v4898, 7
  %v4900 = vsub.s32 %v4789, %v4899
  %v4901 = vrot.slane %v4138, %v4900
  %v4902 = vsel %vm4794, %v4901, %v4897
  %v4903 = vlaneseq
  %v4904 = vshrl.u32 %v4903, 7
  %v4905 = vsub.s32 %v4796, %v4904
  %v4906 = vrot.slane %v4139, %v4905
  %v4907 = vsel %vm4801, %v4906, %v4902
  %v4908 = vlaneseq
  %v4909 = vshrl.u32 %v4908, 7
  %v4910 = vsub.s32 %v4803, %v4909
  %v4911 = vrot.slane %v4140, %v4910
  %v4912 = vsel %vm4808, %v4911, %v4907
  %v4913 = vlaneseq
  %v4914 = vshrl.u32 %v4913, 7
  %v4915 = vsub.s32 %v4810, %v4914
  %v4916 = vrot.slane %v4141, %v4915
  %v4917 = vsel %vm4815, %v4916, %v4912
  %v4918 = vlaneseq
  %v4919 = vshrl.u32 %v4918, 7
  %v4920 = vsub.s32 %v4817, %v4919
  %v4921 = vrot.slane %v4142, %v4920
  %v4922 = vsel %vm4822, %v4921, %v4917
  %v4923 = vlaneseq
  %v4924 = vshrl.u32 %v4923, 7
  %v4925 = vsub.s32 %v4824, %v4924
  %v4926 = vrot.slane %v4143, %v4925
  %v4927 = vsel %vm4829, %v4926, %v4922
  %v4928 = vlaneseq
  %v4929 = vshrl.u32 %v4928, 7
  %v4930 = vsub.s32 %v4831, %v4929
  %v4931 = vrot.slane %v4144, %v4930
  %v4932 = vsel %vm4836, %v4931, %v4927
  %v4933 = vlaneseq
  %v4934 = vshrl.u32 %v4933, 7
  %v4935 = vsub.s32 %v4838, %v4934
  %v4936 = vrot.slane %v4145, %v4935
  %v4937 = vsel %vm4843, %v4936, %v4932
  %v4938 = vlaneseq
  %v4939 = vshrl.u32 %v4938, 7
  %v4940 = vsub.s32 %v4845, %v4939
  %v4941 = vrot.slane %v4146, %v4940
  %v4942 = vsel %vm4850, %v4941, %v4937
  %v4943 = vlaneseq
  %v4944 = vshrl.u32 %v4943, 7
  %v4945 = vsub.s32 %v4852, %v4944
  %v4946 = vrot.slane %v4147, %v4945
  %v4947 = vsel %vm4857, %v4946, %v4942
  %v4948 = vlaneseq
  %v4949 = vshrl.u32 %v4948, 7
  %v4950 = vsub.s32 %v4859, %v4949
  %v4951 = vrot.slane %v4148, %v4950
  %v4952 = vsel %vm4864, %v4951, %v4947
  %v4953 = vlaneseq
  %v4954 = vshrl.u32 %v4953, 7
  %v4955 = vsub.s32 %v4866, %v4954
  %v4956 = vrot.slane %v4149, %v4955
  %v4957 = vsel %vm4871, %v4956, %v4952
  %v4958 = vlaneseq
  %v4959 = vshrl.u32 %v4958, 7
  %v4960 = vsub.s32 %v4873, %v4959
  %v4961 = vrot.slane %v4150, %v4960
  %v4962 = vsel %vm4878, %v4961, %v4957
  %v4963 = vlaneseq
  %v4964 = vshrl.u32 %v4963, 7
  %v4965 = vsub.s32 %v4880, %v4964
  %v4966 = vrot.slane %v4151, %v4965
  %v4967 = vsel %vm4885, %v4966, %v4962
  %v4968 = vlaneseq
  %v4969 = vshrl.u32 %v4968, 7
  %v4970 = vsub.s32 %v4887, %v4969
  %v4971 = vrot.slane %v4152, %v4970
  %v4972 = vsel %vm4892, %v4971, %v4967
  %v4973 = vlaneseq
  %v4974 = vshrl.u32 %v4973, 7
  %v4975 = vsub.s32 %v4784, %v4974
  %v4976 = vrot.slane %v4153, %v4975
  %v4977 = vlaneseq
  %v4978 = vshrl.u32 %v4977, 7
  %v4979 = vsub.s32 %v4789, %v4978
  %v4980 = vrot.slane %v4154, %v4979
  %v4981 = vsel %vm4794, %v4980, %v4976
  %v4982 = vlaneseq
  %v4983 = vshrl.u32 %v4982, 7
  %v4984 = vsub.s32 %v4796, %v4983
  %v4985 = vrot.slane %v4155, %v4984
  %v4986 = vsel %vm4801, %v4985, %v4981
  %v4987 = vlaneseq
  %v4988 = vshrl.u32 %v4987, 7
  %v4989 = vsub.s32 %v4803, %v4988
  %v4990 = vrot.slane %v4156, %v4989
  %v4991 = vsel %vm4808, %v4990, %v4986
  %v4992 = vlaneseq
  %v4993 = vshrl.u32 %v4992, 7
  %v4994 = vsub.s32 %v4810, %v4993
  %v4995 = vrot.slane %v4157, %v4994
  %v4996 = vsel %vm4815, %v4995, %v4991
  %v4997 = vlaneseq
  %v4998 = vshrl.u32 %v4997, 7
  %v4999 = vsub.s32 %v4817, %v4998
  %v5000 = vrot.slane %v4158, %v4999
  %v5001 = vsel %vm4822, %v5000, %v4996
  %v5002 = vlaneseq
  %v5003 = vshrl.u32 %v5002, 7
  %v5004 = vsub.s32 %v4824, %v5003
  %v5005 = vrot.slane %v4159, %v5004
  %v5006 = vsel %vm4829, %v5005, %v5001
  %v5007 = vlaneseq
  %v5008 = vshrl.u32 %v5007, 7
  %v5009 = vsub.s32 %v4831, %v5008
  %v5010 = vrot.slane %v4160, %v5009
  %v5011 = vsel %vm4836, %v5010, %v5006
  %v5012 = vlaneseq
  %v5013 = vshrl.u32 %v5012, 7
  %v5014 = vsub.s32 %v4838, %v5013
  %v5015 = vrot.slane %v4161, %v5014
  %v5016 = vsel %vm4843, %v5015, %v5011
  %v5017 = vlaneseq
  %v5018 = vshrl.u32 %v5017, 7
  %v5019 = vsub.s32 %v4845, %v5018
  %v5020 = vrot.slane %v4162, %v5019
  %v5021 = vsel %vm4850, %v5020, %v5016
  %v5022 = vlaneseq
  %v5023 = vshrl.u32 %v5022, 7
  %v5024 = vsub.s32 %v4852, %v5023
  %v5025 = vrot.slane %v4163, %v5024
  %v5026 = vsel %vm4857, %v5025, %v5021
  %v5027 = vlaneseq
  %v5028 = vshrl.u32 %v5027, 7
  %v5029 = vsub.s32 %v4859, %v5028
  %v5030 = vrot.slane %v4164, %v5029
  %v5031 = vsel %vm4864, %v5030, %v5026
  %v5032 = vlaneseq
  %v5033 = vshrl.u32 %v5032, 7
  %v5034 = vsub.s32 %v4866, %v5033
  %v5035 = vrot.slane %v4165, %v5034
  %v5036 = vsel %vm4871, %v5035, %v5031
  %v5037 = vlaneseq
  %v5038 = vshrl.u32 %v5037, 7
  %v5039 = vsub.s32 %v4873, %v5038
  %v5040 = vrot.slane %v4166, %v5039
  %v5041 = vsel %vm4878, %v5040, %v5036
  %v5042 = vlaneseq
  %v5043 = vshrl.u32 %v5042, 7
  %v5044 = vsub.s32 %v4880, %v5043
  %v5045 = vrot.slane %v4167, %v5044
  %v5046 = vsel %vm4885, %v5045, %v5041
  %v5047 = vlaneseq
  %v5048 = vshrl.u32 %v5047, 7
  %v5049 = vsub.s32 %v4887, %v5048
  %v5050 = vrot.slane %v4168, %v5049
  %v5051 = vsel %vm4892, %v5050, %v5046
  %v5052 = vlaneseq
  %v5053 = vshrl.u32 %v5052, 7
  %v5054 = vsub.s32 %v4784, %v5053
  %v5055 = vrot.slane %v4169, %v5054
  %v5056 = vlaneseq
  %v5057 = vshrl.u32 %v5056, 7
  %v5058 = vsub.s32 %v4789, %v5057
  %v5059 = vrot.slane %v4170, %v5058
  %v5060 = vsel %vm4794, %v5059, %v5055
  %v5061 = vlaneseq
  %v5062 = vshrl.u32 %v5061, 7
  %v5063 = vsub.s32 %v4796, %v5062
  %v5064 = vrot.slane %v4171, %v5063
  %v5065 = vsel %vm4801, %v5064, %v5060
  %v5066 = vlaneseq
  %v5067 = vshrl.u32 %v5066, 7
  %v5068 = vsub.s32 %v4803, %v5067
  %v5069 = vrot.slane %v4172, %v5068
  %v5070 = vsel %vm4808, %v5069, %v5065
  %v5071 = vlaneseq
  %v5072 = vshrl.u32 %v5071, 7
  %v5073 = vsub.s32 %v4810, %v5072
  %v5074 = vrot.slane %v4173, %v5073
  %v5075 = vsel %vm4815, %v5074, %v5070
  %v5076 = vlaneseq
  %v5077 = vshrl.u32 %v5076, 7
  %v5078 = vsub.s32 %v4817, %v5077
  %v5079 = vrot.slane %v4174, %v5078
  %v5080 = vsel %vm4822, %v5079, %v5075
  %v5081 = vlaneseq
  %v5082 = vshrl.u32 %v5081, 7
  %v5083 = vsub.s32 %v4824, %v5082
  %v5084 = vrot.slane %v4175, %v5083
  %v5085 = vsel %vm4829, %v5084, %v5080
  %v5086 = vlaneseq
  %v5087 = vshrl.u32 %v5086, 7
  %v5088 = vsub.s32 %v4831, %v5087
  %v5089 = vrot.slane %v4176, %v5088
  %v5090 = vsel %vm4836, %v5089, %v5085
  %v5091 = vlaneseq
  %v5092 = vshrl.u32 %v5091, 7
  %v5093 = vsub.s32 %v4838, %v5092
  %v5094 = vrot.slane %v4177, %v5093
  %v5095 = vsel %vm4843, %v5094, %v5090
  %v5096 = vlaneseq
  %v5097 = vshrl.u32 %v5096, 7
  %v5098 = vsub.s32 %v4845, %v5097
  %v5099 = vrot.slane %v4178, %v5098
  %v5100 = vsel %vm4850, %v5099, %v5095
  %v5101 = vlaneseq
  %v5102 = vshrl.u32 %v5101, 7
  %v5103 = vsub.s32 %v4852, %v5102
  %v5104 = vrot.slane %v4179, %v5103
  %v5105 = vsel %vm4857, %v5104, %v5100
  %v5106 = vlaneseq
  %v5107 = vshrl.u32 %v5106, 7
  %v5108 = vsub.s32 %v4859, %v5107
  %v5109 = vrot.slane %v4180, %v5108
  %v5110 = vsel %vm4864, %v5109, %v5105
  %v5111 = vlaneseq
  %v5112 = vshrl.u32 %v5111, 7
  %v5113 = vsub.s32 %v4866, %v5112
  %v5114 = vrot.slane %v4181, %v5113
  %v5115 = vsel %vm4871, %v5114, %v5110
  %v5116 = vlaneseq
  %v5117 = vshrl.u32 %v5116, 7
  %v5118 = vsub.s32 %v4873, %v5117
  %v5119 = vrot.slane %v4182, %v5118
  %v5120 = vsel %vm4878, %v5119, %v5115
  %v5121 = vlaneseq
  %v5122 = vshrl.u32 %v5121, 7
  %v5123 = vsub.s32 %v4880, %v5122
  %v5124 = vrot.slane %v4183, %v5123
  %v5125 = vsel %vm4885, %v5124, %v5120
  %v5126 = vlaneseq
  %v5127 = vshrl.u32 %v5126, 7
  %v5128 = vsub.s32 %v4887, %v5127
  %v5129 = vrot.slane %v4184, %v5128
  %v5130 = vsel %vm4892, %v5129, %v5125
  %v5131 = vlaneseq
  %v5132 = vshrl.u32 %v5131, 7
  %v5133 = vsub.s32 %v4784, %v5132
  %v5134 = vrot.slane %v4185, %v5133
  %v5135 = vlaneseq
  %v5136 = vshrl.u32 %v5135, 7
  %v5137 = vsub.s32 %v4789, %v5136
  %v5138 = vrot.slane %v4186, %v5137
  %v5139 = vsel %vm4794, %v5138, %v5134
  %v5140 = vlaneseq
  %v5141 = vshrl.u32 %v5140, 7
  %v5142 = vsub.s32 %v4796, %v5141
  %v5143 = vrot.slane %v4187, %v5142
  %v5144 = vsel %vm4801, %v5143, %v5139
  %v5145 = vlaneseq
  %v5146 = vshrl.u32 %v5145, 7
  %v5147 = vsub.s32 %v4803, %v5146
  %v5148 = vrot.slane %v4188, %v5147
  %v5149 = vsel %vm4808, %v5148, %v5144
  %v5150 = vlaneseq
  %v5151 = vshrl.u32 %v5150, 7
  %v5152 = vsub.s32 %v4810, %v5151
  %v5153 = vrot.slane %v4189, %v5152
  %v5154 = vsel %vm4815, %v5153, %v5149
  %v5155 = vlaneseq
  %v5156 = vshrl.u32 %v5155, 7
  %v5157 = vsub.s32 %v4817, %v5156
  %v5158 = vrot.slane %v4190, %v5157
  %v5159 = vsel %vm4822, %v5158, %v5154
  %v5160 = vlaneseq
  %v5161 = vshrl.u32 %v5160, 7
  %v5162 = vsub.s32 %v4824, %v5161
  %v5163 = vrot.slane %v4191, %v5162
  %v5164 = vsel %vm4829, %v5163, %v5159
  %v5165 = vlaneseq
  %v5166 = vshrl.u32 %v5165, 7
  %v5167 = vsub.s32 %v4831, %v5166
  %v5168 = vrot.slane %v4192, %v5167
  %v5169 = vsel %vm4836, %v5168, %v5164
  %v5170 = vlaneseq
  %v5171 = vshrl.u32 %v5170, 7
  %v5172 = vsub.s32 %v4838, %v5171
  %v5173 = vrot.slane %v4193, %v5172
  %v5174 = vsel %vm4843, %v5173, %v5169
  %v5175 = vlaneseq
  %v5176 = vshrl.u32 %v5175, 7
  %v5177 = vsub.s32 %v4845, %v5176
  %v5178 = vrot.slane %v4194, %v5177
  %v5179 = vsel %vm4850, %v5178, %v5174
  %v5180 = vlaneseq
  %v5181 = vshrl.u32 %v5180, 7
  %v5182 = vsub.s32 %v4852, %v5181
  %v5183 = vrot.slane %v4195, %v5182
  %v5184 = vsel %vm4857, %v5183, %v5179
  %v5185 = vlaneseq
  %v5186 = vshrl.u32 %v5185, 7
  %v5187 = vsub.s32 %v4859, %v5186
  %v5188 = vrot.slane %v4196, %v5187
  %v5189 = vsel %vm4864, %v5188, %v5184
  %v5190 = vlaneseq
  %v5191 = vshrl.u32 %v5190, 7
  %v5192 = vsub.s32 %v4866, %v5191
  %v5193 = vrot.slane %v4197, %v5192
  %v5194 = vsel %vm4871, %v5193, %v5189
  %v5195 = vlaneseq
  %v5196 = vshrl.u32 %v5195, 7
  %v5197 = vsub.s32 %v4873, %v5196
  %v5198 = vrot.slane %v4198, %v5197
  %v5199 = vsel %vm4878, %v5198, %v5194
  %v5200 = vlaneseq
  %v5201 = vshrl.u32 %v5200, 7
  %v5202 = vsub.s32 %v4880, %v5201
  %v5203 = vrot.slane %v4199, %v5202
  %v5204 = vsel %vm4885, %v5203, %v5199
  %v5205 = vlaneseq
  %v5206 = vshrl.u32 %v5205, 7
  %v5207 = vsub.s32 %v4887, %v5206
  %v5208 = vrot.slane %v4200, %v5207
  %v5209 = vsel %vm4892, %v5208, %v5204
  %v5210 = vlaneseq
  %v5211 = vshrl.u32 %v5210, 7
  %v5212 = vsub.s32 %v4784, %v5211
  %v5213 = vrot.slane %v4201, %v5212
  %v5214 = vlaneseq
  %v5215 = vshrl.u32 %v5214, 7
  %v5216 = vsub.s32 %v4789, %v5215
  %v5217 = vrot.slane %v4202, %v5216
  %v5218 = vsel %vm4794, %v5217, %v5213
  %v5219 = vlaneseq
  %v5220 = vshrl.u32 %v5219, 7
  %v5221 = vsub.s32 %v4796, %v5220
  %v5222 = vrot.slane %v4203, %v5221
  %v5223 = vsel %vm4801, %v5222, %v5218
  %v5224 = vlaneseq
  %v5225 = vshrl.u32 %v5224, 7
  %v5226 = vsub.s32 %v4803, %v5225
  %v5227 = vrot.slane %v4204, %v5226
  %v5228 = vsel %vm4808, %v5227, %v5223
  %v5229 = vlaneseq
  %v5230 = vshrl.u32 %v5229, 7
  %v5231 = vsub.s32 %v4810, %v5230
  %v5232 = vrot.slane %v4205, %v5231
  %v5233 = vsel %vm4815, %v5232, %v5228
  %v5234 = vlaneseq
  %v5235 = vshrl.u32 %v5234, 7
  %v5236 = vsub.s32 %v4817, %v5235
  %v5237 = vrot.slane %v4206, %v5236
  %v5238 = vsel %vm4822, %v5237, %v5233
  %v5239 = vlaneseq
  %v5240 = vshrl.u32 %v5239, 7
  %v5241 = vsub.s32 %v4824, %v5240
  %v5242 = vrot.slane %v4207, %v5241
  %v5243 = vsel %vm4829, %v5242, %v5238
  %v5244 = vlaneseq
  %v5245 = vshrl.u32 %v5244, 7
  %v5246 = vsub.s32 %v4831, %v5245
  %v5247 = vrot.slane %v4208, %v5246
  %v5248 = vsel %vm4836, %v5247, %v5243
  %v5249 = vlaneseq
  %v5250 = vshrl.u32 %v5249, 7
  %v5251 = vsub.s32 %v4838, %v5250
  %v5252 = vrot.slane %v4209, %v5251
  %v5253 = vsel %vm4843, %v5252, %v5248
  %v5254 = vlaneseq
  %v5255 = vshrl.u32 %v5254, 7
  %v5256 = vsub.s32 %v4845, %v5255
  %v5257 = vrot.slane %v4210, %v5256
  %v5258 = vsel %vm4850, %v5257, %v5253
  %v5259 = vlaneseq
  %v5260 = vshrl.u32 %v5259, 7
  %v5261 = vsub.s32 %v4852, %v5260
  %v5262 = vrot.slane %v4211, %v5261
  %v5263 = vsel %vm4857, %v5262, %v5258
  %v5264 = vlaneseq
  %v5265 = vshrl.u32 %v5264, 7
  %v5266 = vsub.s32 %v4859, %v5265
  %v5267 = vrot.slane %v4212, %v5266
  %v5268 = vsel %vm4864, %v5267, %v5263
  %v5269 = vlaneseq
  %v5270 = vshrl.u32 %v5269, 7
  %v5271 = vsub.s32 %v4866, %v5270
  %v5272 = vrot.slane %v4213, %v5271
  %v5273 = vsel %vm4871, %v5272, %v5268
  %v5274 = vlaneseq
  %v5275 = vshrl.u32 %v5274, 7
  %v5276 = vsub.s32 %v4873, %v5275
  %v5277 = vrot.slane %v4214, %v5276
  %v5278 = vsel %vm4878, %v5277, %v5273
  %v5279 = vlaneseq
  %v5280 = vshrl.u32 %v5279, 7
  %v5281 = vsub.s32 %v4880, %v5280
  %v5282 = vrot.slane %v4215, %v5281
  %v5283 = vsel %vm4885, %v5282, %v5278
  %v5284 = vlaneseq
  %v5285 = vshrl.u32 %v5284, 7
  %v5286 = vsub.s32 %v4887, %v5285
  %v5287 = vrot.slane %v4216, %v5286
  %v5288 = vsel %vm4892, %v5287, %v5283
  %v5289 = vlaneseq
  %v5290 = vshrl.u32 %v5289, 7
  %v5291 = vsub.s32 %v4784, %v5290
  %v5292 = vrot.slane %v4217, %v5291
  %v5293 = vlaneseq
  %v5294 = vshrl.u32 %v5293, 7
  %v5295 = vsub.s32 %v4789, %v5294
  %v5296 = vrot.slane %v4218, %v5295
  %v5297 = vsel %vm4794, %v5296, %v5292
  %v5298 = vlaneseq
  %v5299 = vshrl.u32 %v5298, 7
  %v5300 = vsub.s32 %v4796, %v5299
  %v5301 = vrot.slane %v4219, %v5300
  %v5302 = vsel %vm4801, %v5301, %v5297
  %v5303 = vlaneseq
  %v5304 = vshrl.u32 %v5303, 7
  %v5305 = vsub.s32 %v4803, %v5304
  %v5306 = vrot.slane %v4220, %v5305
  %v5307 = vsel %vm4808, %v5306, %v5302
  %v5308 = vlaneseq
  %v5309 = vshrl.u32 %v5308, 7
  %v5310 = vsub.s32 %v4810, %v5309
  %v5311 = vrot.slane %v4221, %v5310
  %v5312 = vsel %vm4815, %v5311, %v5307
  %v5313 = vlaneseq
  %v5314 = vshrl.u32 %v5313, 7
  %v5315 = vsub.s32 %v4817, %v5314
  %v5316 = vrot.slane %v4222, %v5315
  %v5317 = vsel %vm4822, %v5316, %v5312
  %v5318 = vlaneseq
  %v5319 = vshrl.u32 %v5318, 7
  %v5320 = vsub.s32 %v4824, %v5319
  %v5321 = vrot.slane %v4223, %v5320
  %v5322 = vsel %vm4829, %v5321, %v5317
  %v5323 = vlaneseq
  %v5324 = vshrl.u32 %v5323, 7
  %v5325 = vsub.s32 %v4831, %v5324
  %v5326 = vrot.slane %v4224, %v5325
  %v5327 = vsel %vm4836, %v5326, %v5322
  %v5328 = vlaneseq
  %v5329 = vshrl.u32 %v5328, 7
  %v5330 = vsub.s32 %v4838, %v5329
  %v5331 = vrot.slane %v4225, %v5330
  %v5332 = vsel %vm4843, %v5331, %v5327
  %v5333 = vlaneseq
  %v5334 = vshrl.u32 %v5333, 7
  %v5335 = vsub.s32 %v4845, %v5334
  %v5336 = vrot.slane %v4226, %v5335
  %v5337 = vsel %vm4850, %v5336, %v5332
  %v5338 = vlaneseq
  %v5339 = vshrl.u32 %v5338, 7
  %v5340 = vsub.s32 %v4852, %v5339
  %v5341 = vrot.slane %v4227, %v5340
  %v5342 = vsel %vm4857, %v5341, %v5337
  %v5343 = vlaneseq
  %v5344 = vshrl.u32 %v5343, 7
  %v5345 = vsub.s32 %v4859, %v5344
  %v5346 = vrot.slane %v4228, %v5345
  %v5347 = vsel %vm4864, %v5346, %v5342
  %v5348 = vlaneseq
  %v5349 = vshrl.u32 %v5348, 7
  %v5350 = vsub.s32 %v4866, %v5349
  %v5351 = vrot.slane %v4229, %v5350
  %v5352 = vsel %vm4871, %v5351, %v5347
  %v5353 = vlaneseq
  %v5354 = vshrl.u32 %v5353, 7
  %v5355 = vsub.s32 %v4873, %v5354
  %v5356 = vrot.slane %v4230, %v5355
  %v5357 = vsel %vm4878, %v5356, %v5352
  %v5358 = vlaneseq
  %v5359 = vshrl.u32 %v5358, 7
  %v5360 = vsub.s32 %v4880, %v5359
  %v5361 = vrot.slane %v4231, %v5360
  %v5362 = vsel %vm4885, %v5361, %v5357
  %v5363 = vlaneseq
  %v5364 = vshrl.u32 %v5363, 7
  %v5365 = vsub.s32 %v4887, %v5364
  %v5366 = vrot.slane %v4232, %v5365
  %v5367 = vsel %vm4892, %v5366, %v5362
  %v5368 = vlaneseq
  %v5369 = vshrl.u32 %v5368, 7
  %v5370 = vsub.s32 %v4784, %v5369
  %v5371 = vrot.slane %v4233, %v5370
  %v5372 = vlaneseq
  %v5373 = vshrl.u32 %v5372, 7
  %v5374 = vsub.s32 %v4789, %v5373
  %v5375 = vrot.slane %v4234, %v5374
  %v5376 = vsel %vm4794, %v5375, %v5371
  %v5377 = vlaneseq
  %v5378 = vshrl.u32 %v5377, 7
  %v5379 = vsub.s32 %v4796, %v5378
  %v5380 = vrot.slane %v4235, %v5379
  %v5381 = vsel %vm4801, %v5380, %v5376
  %v5382 = vlaneseq
  %v5383 = vshrl.u32 %v5382, 7
  %v5384 = vsub.s32 %v4803, %v5383
  %v5385 = vrot.slane %v4236, %v5384
  %v5386 = vsel %vm4808, %v5385, %v5381
  %v5387 = vlaneseq
  %v5388 = vshrl.u32 %v5387, 7
  %v5389 = vsub.s32 %v4810, %v5388
  %v5390 = vrot.slane %v4237, %v5389
  %v5391 = vsel %vm4815, %v5390, %v5386
  %v5392 = vlaneseq
  %v5393 = vshrl.u32 %v5392, 7
  %v5394 = vsub.s32 %v4817, %v5393
  %v5395 = vrot.slane %v4238, %v5394
  %v5396 = vsel %vm4822, %v5395, %v5391
  %v5397 = vlaneseq
  %v5398 = vshrl.u32 %v5397, 7
  %v5399 = vsub.s32 %v4824, %v5398
  %v5400 = vrot.slane %v4239, %v5399
  %v5401 = vsel %vm4829, %v5400, %v5396
  %v5402 = vlaneseq
  %v5403 = vshrl.u32 %v5402, 7
  %v5404 = vsub.s32 %v4831, %v5403
  %v5405 = vrot.slane %v4240, %v5404
  %v5406 = vsel %vm4836, %v5405, %v5401
  %v5407 = vlaneseq
  %v5408 = vshrl.u32 %v5407, 7
  %v5409 = vsub.s32 %v4838, %v5408
  %v5410 = vrot.slane %v4241, %v5409
  %v5411 = vsel %vm4843, %v5410, %v5406
  %v5412 = vlaneseq
  %v5413 = vshrl.u32 %v5412, 7
  %v5414 = vsub.s32 %v4845, %v5413
  %v5415 = vrot.slane %v4242, %v5414
  %v5416 = vsel %vm4850, %v5415, %v5411
  %v5417 = vlaneseq
  %v5418 = vshrl.u32 %v5417, 7
  %v5419 = vsub.s32 %v4852, %v5418
  %v5420 = vrot.slane %v4243, %v5419
  %v5421 = vsel %vm4857, %v5420, %v5416
  %v5422 = vlaneseq
  %v5423 = vshrl.u32 %v5422, 7
  %v5424 = vsub.s32 %v4859, %v5423
  %v5425 = vrot.slane %v4244, %v5424
  %v5426 = vsel %vm4864, %v5425, %v5421
  %v5427 = vlaneseq
  %v5428 = vshrl.u32 %v5427, 7
  %v5429 = vsub.s32 %v4866, %v5428
  %v5430 = vrot.slane %v4245, %v5429
  %v5431 = vsel %vm4871, %v5430, %v5426
  %v5432 = vlaneseq
  %v5433 = vshrl.u32 %v5432, 7
  %v5434 = vsub.s32 %v4873, %v5433
  %v5435 = vrot.slane %v4246, %v5434
  %v5436 = vsel %vm4878, %v5435, %v5431
  %v5437 = vlaneseq
  %v5438 = vshrl.u32 %v5437, 7
  %v5439 = vsub.s32 %v4880, %v5438
  %v5440 = vrot.slane %v4247, %v5439
  %v5441 = vsel %vm4885, %v5440, %v5436
  %v5442 = vlaneseq
  %v5443 = vshrl.u32 %v5442, 7
  %v5444 = vsub.s32 %v4887, %v5443
  %v5445 = vrot.slane %v4248, %v5444
  %v5446 = vsel %vm4892, %v5445, %v5441
  %v5447 = vlaneseq
  %v5448 = vshrl.u32 %v5447, 7
  %v5449 = vsub.s32 %v4784, %v5448
  %v5450 = vrot.slane %v4249, %v5449
  %v5451 = vlaneseq
  %v5452 = vshrl.u32 %v5451, 7
  %v5453 = vsub.s32 %v4789, %v5452
  %v5454 = vrot.slane %v4250, %v5453
  %v5455 = vsel %vm4794, %v5454, %v5450
  %v5456 = vlaneseq
  %v5457 = vshrl.u32 %v5456, 7
  %v5458 = vsub.s32 %v4796, %v5457
  %v5459 = vrot.slane %v4251, %v5458
  %v5460 = vsel %vm4801, %v5459, %v5455
  %v5461 = vlaneseq
  %v5462 = vshrl.u32 %v5461, 7
  %v5463 = vsub.s32 %v4803, %v5462
  %v5464 = vrot.slane %v4252, %v5463
  %v5465 = vsel %vm4808, %v5464, %v5460
  %v5466 = vlaneseq
  %v5467 = vshrl.u32 %v5466, 7
  %v5468 = vsub.s32 %v4810, %v5467
  %v5469 = vrot.slane %v4253, %v5468
  %v5470 = vsel %vm4815, %v5469, %v5465
  %v5471 = vlaneseq
  %v5472 = vshrl.u32 %v5471, 7
  %v5473 = vsub.s32 %v4817, %v5472
  %v5474 = vrot.slane %v4254, %v5473
  %v5475 = vsel %vm4822, %v5474, %v5470
  %v5476 = vlaneseq
  %v5477 = vshrl.u32 %v5476, 7
  %v5478 = vsub.s32 %v4824, %v5477
  %v5479 = vrot.slane %v4255, %v5478
  %v5480 = vsel %vm4829, %v5479, %v5475
  %v5481 = vlaneseq
  %v5482 = vshrl.u32 %v5481, 7
  %v5483 = vsub.s32 %v4831, %v5482
  %v5484 = vrot.slane %v4256, %v5483
  %v5485 = vsel %vm4836, %v5484, %v5480
  %v5486 = vlaneseq
  %v5487 = vshrl.u32 %v5486, 7
  %v5488 = vsub.s32 %v4838, %v5487
  %v5489 = vrot.slane %v4257, %v5488
  %v5490 = vsel %vm4843, %v5489, %v5485
  %v5491 = vlaneseq
  %v5492 = vshrl.u32 %v5491, 7
  %v5493 = vsub.s32 %v4845, %v5492
  %v5494 = vrot.slane %v4258, %v5493
  %v5495 = vsel %vm4850, %v5494, %v5490
  %v5496 = vlaneseq
  %v5497 = vshrl.u32 %v5496, 7
  %v5498 = vsub.s32 %v4852, %v5497
  %v5499 = vrot.slane %v4259, %v5498
  %v5500 = vsel %vm4857, %v5499, %v5495
  %v5501 = vlaneseq
  %v5502 = vshrl.u32 %v5501, 7
  %v5503 = vsub.s32 %v4859, %v5502
  %v5504 = vrot.slane %v4260, %v5503
  %v5505 = vsel %vm4864, %v5504, %v5500
  %v5506 = vlaneseq
  %v5507 = vshrl.u32 %v5506, 7
  %v5508 = vsub.s32 %v4866, %v5507
  %v5509 = vrot.slane %v4261, %v5508
  %v5510 = vsel %vm4871, %v5509, %v5505
  %v5511 = vlaneseq
  %v5512 = vshrl.u32 %v5511, 7
  %v5513 = vsub.s32 %v4873, %v5512
  %v5514 = vrot.slane %v4262, %v5513
  %v5515 = vsel %vm4878, %v5514, %v5510
  %v5516 = vlaneseq
  %v5517 = vshrl.u32 %v5516, 7
  %v5518 = vsub.s32 %v4880, %v5517
  %v5519 = vrot.slane %v4263, %v5518
  %v5520 = vsel %vm4885, %v5519, %v5515
  %v5521 = vlaneseq
  %v5522 = vshrl.u32 %v5521, 7
  %v5523 = vsub.s32 %v4887, %v5522
  %v5524 = vrot.slane %v4264, %v5523
  %v5525 = vsel %vm4892, %v5524, %v5520
  %v5526 = vlaneseq
  %v5527 = vshrl.u32 %v5526, 7
  %v5528 = vsub.s32 %v4784, %v5527
  %v5529 = vrot.slane %v4265, %v5528
  %v5530 = vlaneseq
  %v5531 = vshrl.u32 %v5530, 7
  %v5532 = vsub.s32 %v4789, %v5531
  %v5533 = vrot.slane %v4266, %v5532
  %v5534 = vsel %vm4794, %v5533, %v5529
  %v5535 = vlaneseq
  %v5536 = vshrl.u32 %v5535, 7
  %v5537 = vsub.s32 %v4796, %v5536
  %v5538 = vrot.slane %v4267, %v5537
  %v5539 = vsel %vm4801, %v5538, %v5534
  %v5540 = vlaneseq
  %v5541 = vshrl.u32 %v5540, 7
  %v5542 = vsub.s32 %v4803, %v5541
  %v5543 = vrot.slane %v4268, %v5542
  %v5544 = vsel %vm4808, %v5543, %v5539
  %v5545 = vlaneseq
  %v5546 = vshrl.u32 %v5545, 7
  %v5547 = vsub.s32 %v4810, %v5546
  %v5548 = vrot.slane %v4269, %v5547
  %v5549 = vsel %vm4815, %v5548, %v5544
  %v5550 = vlaneseq
  %v5551 = vshrl.u32 %v5550, 7
  %v5552 = vsub.s32 %v4817, %v5551
  %v5553 = vrot.slane %v4270, %v5552
  %v5554 = vsel %vm4822, %v5553, %v5549
  %v5555 = vlaneseq
  %v5556 = vshrl.u32 %v5555, 7
  %v5557 = vsub.s32 %v4824, %v5556
  %v5558 = vrot.slane %v4271, %v5557
  %v5559 = vsel %vm4829, %v5558, %v5554
  %v5560 = vlaneseq
  %v5561 = vshrl.u32 %v5560, 7
  %v5562 = vsub.s32 %v4831, %v5561
  %v5563 = vrot.slane %v4272, %v5562
  %v5564 = vsel %vm4836, %v5563, %v5559
  %v5565 = vlaneseq
  %v5566 = vshrl.u32 %v5565, 7
  %v5567 = vsub.s32 %v4838, %v5566
  %v5568 = vrot.slane %v4273, %v5567
  %v5569 = vsel %vm4843, %v5568, %v5564
  %v5570 = vlaneseq
  %v5571 = vshrl.u32 %v5570, 7
  %v5572 = vsub.s32 %v4845, %v5571
  %v5573 = vrot.slane %v4274, %v5572
  %v5574 = vsel %vm4850, %v5573, %v5569
  %v5575 = vlaneseq
  %v5576 = vshrl.u32 %v5575, 7
  %v5577 = vsub.s32 %v4852, %v5576
  %v5578 = vrot.slane %v4275, %v5577
  %v5579 = vsel %vm4857, %v5578, %v5574
  %v5580 = vlaneseq
  %v5581 = vshrl.u32 %v5580, 7
  %v5582 = vsub.s32 %v4859, %v5581
  %v5583 = vrot.slane %v4276, %v5582
  %v5584 = vsel %vm4864, %v5583, %v5579
  %v5585 = vlaneseq
  %v5586 = vshrl.u32 %v5585, 7
  %v5587 = vsub.s32 %v4866, %v5586
  %v5588 = vrot.slane %v4277, %v5587
  %v5589 = vsel %vm4871, %v5588, %v5584
  %v5590 = vlaneseq
  %v5591 = vshrl.u32 %v5590, 7
  %v5592 = vsub.s32 %v4873, %v5591
  %v5593 = vrot.slane %v4278, %v5592
  %v5594 = vsel %vm4878, %v5593, %v5589
  %v5595 = vlaneseq
  %v5596 = vshrl.u32 %v5595, 7
  %v5597 = vsub.s32 %v4880, %v5596
  %v5598 = vrot.slane %v4279, %v5597
  %v5599 = vsel %vm4885, %v5598, %v5594
  %v5600 = vlaneseq
  %v5601 = vshrl.u32 %v5600, 7
  %v5602 = vsub.s32 %v4887, %v5601
  %v5603 = vrot.slane %v4280, %v5602
  %v5604 = vsel %vm4892, %v5603, %v5599
  %v5605 = vlaneseq
  %v5606 = vshrl.u32 %v5605, 7
  %v5607 = vsub.s32 %v4784, %v5606
  %v5608 = vrot.slane %v4281, %v5607
  %v5609 = vlaneseq
  %v5610 = vshrl.u32 %v5609, 7
  %v5611 = vsub.s32 %v4789, %v5610
  %v5612 = vrot.slane %v4282, %v5611
  %v5613 = vsel %vm4794, %v5612, %v5608
  %v5614 = vlaneseq
  %v5615 = vshrl.u32 %v5614, 7
  %v5616 = vsub.s32 %v4796, %v5615
  %v5617 = vrot.slane %v4283, %v5616
  %v5618 = vsel %vm4801, %v5617, %v5613
  %v5619 = vlaneseq
  %v5620 = vshrl.u32 %v5619, 7
  %v5621 = vsub.s32 %v4803, %v5620
  %v5622 = vrot.slane %v4284, %v5621
  %v5623 = vsel %vm4808, %v5622, %v5618
  %v5624 = vlaneseq
  %v5625 = vshrl.u32 %v5624, 7
  %v5626 = vsub.s32 %v4810, %v5625
  %v5627 = vrot.slane %v4285, %v5626
  %v5628 = vsel %vm4815, %v5627, %v5623
  %v5629 = vlaneseq
  %v5630 = vshrl.u32 %v5629, 7
  %v5631 = vsub.s32 %v4817, %v5630
  %v5632 = vrot.slane %v4286, %v5631
  %v5633 = vsel %vm4822, %v5632, %v5628
  %v5634 = vlaneseq
  %v5635 = vshrl.u32 %v5634, 7
  %v5636 = vsub.s32 %v4824, %v5635
  %v5637 = vrot.slane %v4287, %v5636
  %v5638 = vsel %vm4829, %v5637, %v5633
  %v5639 = vlaneseq
  %v5640 = vshrl.u32 %v5639, 7
  %v5641 = vsub.s32 %v4831, %v5640
  %v5642 = vrot.slane %v4288, %v5641
  %v5643 = vsel %vm4836, %v5642, %v5638
  %v5644 = vlaneseq
  %v5645 = vshrl.u32 %v5644, 7
  %v5646 = vsub.s32 %v4838, %v5645
  %v5647 = vrot.slane %v4289, %v5646
  %v5648 = vsel %vm4843, %v5647, %v5643
  %v5649 = vlaneseq
  %v5650 = vshrl.u32 %v5649, 7
  %v5651 = vsub.s32 %v4845, %v5650
  %v5652 = vrot.slane %v4290, %v5651
  %v5653 = vsel %vm4850, %v5652, %v5648
  %v5654 = vlaneseq
  %v5655 = vshrl.u32 %v5654, 7
  %v5656 = vsub.s32 %v4852, %v5655
  %v5657 = vrot.slane %v4291, %v5656
  %v5658 = vsel %vm4857, %v5657, %v5653
  %v5659 = vlaneseq
  %v5660 = vshrl.u32 %v5659, 7
  %v5661 = vsub.s32 %v4859, %v5660
  %v5662 = vrot.slane %v4292, %v5661
  %v5663 = vsel %vm4864, %v5662, %v5658
  %v5664 = vlaneseq
  %v5665 = vshrl.u32 %v5664, 7
  %v5666 = vsub.s32 %v4866, %v5665
  %v5667 = vrot.slane %v4293, %v5666
  %v5668 = vsel %vm4871, %v5667, %v5663
  %v5669 = vlaneseq
  %v5670 = vshrl.u32 %v5669, 7
  %v5671 = vsub.s32 %v4873, %v5670
  %v5672 = vrot.slane %v4294, %v5671
  %v5673 = vsel %vm4878, %v5672, %v5668
  %v5674 = vlaneseq
  %v5675 = vshrl.u32 %v5674, 7
  %v5676 = vsub.s32 %v4880, %v5675
  %v5677 = vrot.slane %v4295, %v5676
  %v5678 = vsel %vm4885, %v5677, %v5673
  %v5679 = vlaneseq
  %v5680 = vshrl.u32 %v5679, 7
  %v5681 = vsub.s32 %v4887, %v5680
  %v5682 = vrot.slane %v4296, %v5681
  %v5683 = vsel %vm4892, %v5682, %v5678
  %v5684 = vlaneseq
  %v5685 = vshrl.u32 %v5684, 7
  %v5686 = vsub.s32 %v4784, %v5685
  %v5687 = vrot.slane %v4297, %v5686
  %v5688 = vlaneseq
  %v5689 = vshrl.u32 %v5688, 7
  %v5690 = vsub.s32 %v4789, %v5689
  %v5691 = vrot.slane %v4298, %v5690
  %v5692 = vsel %vm4794, %v5691, %v5687
  %v5693 = vlaneseq
  %v5694 = vshrl.u32 %v5693, 7
  %v5695 = vsub.s32 %v4796, %v5694
  %v5696 = vrot.slane %v4299, %v5695
  %v5697 = vsel %vm4801, %v5696, %v5692
  %v5698 = vlaneseq
  %v5699 = vshrl.u32 %v5698, 7
  %v5700 = vsub.s32 %v4803, %v5699
  %v5701 = vrot.slane %v4300, %v5700
  %v5702 = vsel %vm4808, %v5701, %v5697
  %v5703 = vlaneseq
  %v5704 = vshrl.u32 %v5703, 7
  %v5705 = vsub.s32 %v4810, %v5704
  %v5706 = vrot.slane %v4301, %v5705
  %v5707 = vsel %vm4815, %v5706, %v5702
  %v5708 = vlaneseq
  %v5709 = vshrl.u32 %v5708, 7
  %v5710 = vsub.s32 %v4817, %v5709
  %v5711 = vrot.slane %v4302, %v5710
  %v5712 = vsel %vm4822, %v5711, %v5707
  %v5713 = vlaneseq
  %v5714 = vshrl.u32 %v5713, 7
  %v5715 = vsub.s32 %v4824, %v5714
  %v5716 = vrot.slane %v4303, %v5715
  %v5717 = vsel %vm4829, %v5716, %v5712
  %v5718 = vlaneseq
  %v5719 = vshrl.u32 %v5718, 7
  %v5720 = vsub.s32 %v4831, %v5719
  %v5721 = vrot.slane %v4304, %v5720
  %v5722 = vsel %vm4836, %v5721, %v5717
  %v5723 = vlaneseq
  %v5724 = vshrl.u32 %v5723, 7
  %v5725 = vsub.s32 %v4838, %v5724
  %v5726 = vrot.slane %v4305, %v5725
  %v5727 = vsel %vm4843, %v5726, %v5722
  %v5728 = vlaneseq
  %v5729 = vshrl.u32 %v5728, 7
  %v5730 = vsub.s32 %v4845, %v5729
  %v5731 = vrot.slane %v4306, %v5730
  %v5732 = vsel %vm4850, %v5731, %v5727
  %v5733 = vlaneseq
  %v5734 = vshrl.u32 %v5733, 7
  %v5735 = vsub.s32 %v4852, %v5734
  %v5736 = vrot.slane %v4307, %v5735
  %v5737 = vsel %vm4857, %v5736, %v5732
  %v5738 = vlaneseq
  %v5739 = vshrl.u32 %v5738, 7
  %v5740 = vsub.s32 %v4859, %v5739
  %v5741 = vrot.slane %v4308, %v5740
  %v5742 = vsel %vm4864, %v5741, %v5737
  %v5743 = vlaneseq
  %v5744 = vshrl.u32 %v5743, 7
  %v5745 = vsub.s32 %v4866, %v5744
  %v5746 = vrot.slane %v4309, %v5745
  %v5747 = vsel %vm4871, %v5746, %v5742
  %v5748 = vlaneseq
  %v5749 = vshrl.u32 %v5748, 7
  %v5750 = vsub.s32 %v4873, %v5749
  %v5751 = vrot.slane %v4310, %v5750
  %v5752 = vsel %vm4878, %v5751, %v5747
  %v5753 = vlaneseq
  %v5754 = vshrl.u32 %v5753, 7
  %v5755 = vsub.s32 %v4880, %v5754
  %v5756 = vrot.slane %v4311, %v5755
  %v5757 = vsel %vm4885, %v5756, %v5752
  %v5758 = vlaneseq
  %v5759 = vshrl.u32 %v5758, 7
  %v5760 = vsub.s32 %v4887, %v5759
  %v5761 = vrot.slane %v4312, %v5760
  %v5762 = vsel %vm4892, %v5761, %v5757
  %v5763 = vlaneseq
  %v5764 = vshrl.u32 %v5763, 7
  %v5765 = vsub.s32 %v4784, %v5764
  %v5766 = vrot.slane %v4313, %v5765
  %v5767 = vlaneseq
  %v5768 = vshrl.u32 %v5767, 7
  %v5769 = vsub.s32 %v4789, %v5768
  %v5770 = vrot.slane %v4314, %v5769
  %v5771 = vsel %vm4794, %v5770, %v5766
  %v5772 = vlaneseq
  %v5773 = vshrl.u32 %v5772, 7
  %v5774 = vsub.s32 %v4796, %v5773
  %v5775 = vrot.slane %v4315, %v5774
  %v5776 = vsel %vm4801, %v5775, %v5771
  %v5777 = vlaneseq
  %v5778 = vshrl.u32 %v5777, 7
  %v5779 = vsub.s32 %v4803, %v5778
  %v5780 = vrot.slane %v4316, %v5779
  %v5781 = vsel %vm4808, %v5780, %v5776
  %v5782 = vlaneseq
  %v5783 = vshrl.u32 %v5782, 7
  %v5784 = vsub.s32 %v4810, %v5783
  %v5785 = vrot.slane %v4317, %v5784
  %v5786 = vsel %vm4815, %v5785, %v5781
  %v5787 = vlaneseq
  %v5788 = vshrl.u32 %v5787, 7
  %v5789 = vsub.s32 %v4817, %v5788
  %v5790 = vrot.slane %v4318, %v5789
  %v5791 = vsel %vm4822, %v5790, %v5786
  %v5792 = vlaneseq
  %v5793 = vshrl.u32 %v5792, 7
  %v5794 = vsub.s32 %v4824, %v5793
  %v5795 = vrot.slane %v4319, %v5794
  %v5796 = vsel %vm4829, %v5795, %v5791
  %v5797 = vlaneseq
  %v5798 = vshrl.u32 %v5797, 7
  %v5799 = vsub.s32 %v4831, %v5798
  %v5800 = vrot.slane %v4320, %v5799
  %v5801 = vsel %vm4836, %v5800, %v5796
  %v5802 = vlaneseq
  %v5803 = vshrl.u32 %v5802, 7
  %v5804 = vsub.s32 %v4838, %v5803
  %v5805 = vrot.slane %v4321, %v5804
  %v5806 = vsel %vm4843, %v5805, %v5801
  %v5807 = vlaneseq
  %v5808 = vshrl.u32 %v5807, 7
  %v5809 = vsub.s32 %v4845, %v5808
  %v5810 = vrot.slane %v4322, %v5809
  %v5811 = vsel %vm4850, %v5810, %v5806
  %v5812 = vlaneseq
  %v5813 = vshrl.u32 %v5812, 7
  %v5814 = vsub.s32 %v4852, %v5813
  %v5815 = vrot.slane %v4323, %v5814
  %v5816 = vsel %vm4857, %v5815, %v5811
  %v5817 = vlaneseq
  %v5818 = vshrl.u32 %v5817, 7
  %v5819 = vsub.s32 %v4859, %v5818
  %v5820 = vrot.slane %v4324, %v5819
  %v5821 = vsel %vm4864, %v5820, %v5816
  %v5822 = vlaneseq
  %v5823 = vshrl.u32 %v5822, 7
  %v5824 = vsub.s32 %v4866, %v5823
  %v5825 = vrot.slane %v4325, %v5824
  %v5826 = vsel %vm4871, %v5825, %v5821
  %v5827 = vlaneseq
  %v5828 = vshrl.u32 %v5827, 7
  %v5829 = vsub.s32 %v4873, %v5828
  %v5830 = vrot.slane %v4326, %v5829
  %v5831 = vsel %vm4878, %v5830, %v5826
  %v5832 = vlaneseq
  %v5833 = vshrl.u32 %v5832, 7
  %v5834 = vsub.s32 %v4880, %v5833
  %v5835 = vrot.slane %v4327, %v5834
  %v5836 = vsel %vm4885, %v5835, %v5831
  %v5837 = vlaneseq
  %v5838 = vshrl.u32 %v5837, 7
  %v5839 = vsub.s32 %v4887, %v5838
  %v5840 = vrot.slane %v4328, %v5839
  %v5841 = vsel %vm4892, %v5840, %v5836
  %v5842 = vlaneseq
  %v5843 = vshrl.u32 %v5842, 7
  %v5844 = vsub.s32 %v4784, %v5843
  %v5845 = vrot.slane %v4329, %v5844
  %v5846 = vlaneseq
  %v5847 = vshrl.u32 %v5846, 7
  %v5848 = vsub.s32 %v4789, %v5847
  %v5849 = vrot.slane %v4330, %v5848
  %v5850 = vsel %vm4794, %v5849, %v5845
  %v5851 = vlaneseq
  %v5852 = vshrl.u32 %v5851, 7
  %v5853 = vsub.s32 %v4796, %v5852
  %v5854 = vrot.slane %v4331, %v5853
  %v5855 = vsel %vm4801, %v5854, %v5850
  %v5856 = vlaneseq
  %v5857 = vshrl.u32 %v5856, 7
  %v5858 = vsub.s32 %v4803, %v5857
  %v5859 = vrot.slane %v4332, %v5858
  %v5860 = vsel %vm4808, %v5859, %v5855
  %v5861 = vlaneseq
  %v5862 = vshrl.u32 %v5861, 7
  %v5863 = vsub.s32 %v4810, %v5862
  %v5864 = vrot.slane %v4333, %v5863
  %v5865 = vsel %vm4815, %v5864, %v5860
  %v5866 = vlaneseq
  %v5867 = vshrl.u32 %v5866, 7
  %v5868 = vsub.s32 %v4817, %v5867
  %v5869 = vrot.slane %v4334, %v5868
  %v5870 = vsel %vm4822, %v5869, %v5865
  %v5871 = vlaneseq
  %v5872 = vshrl.u32 %v5871, 7
  %v5873 = vsub.s32 %v4824, %v5872
  %v5874 = vrot.slane %v4335, %v5873
  %v5875 = vsel %vm4829, %v5874, %v5870
  %v5876 = vlaneseq
  %v5877 = vshrl.u32 %v5876, 7
  %v5878 = vsub.s32 %v4831, %v5877
  %v5879 = vrot.slane %v4336, %v5878
  %v5880 = vsel %vm4836, %v5879, %v5875
  %v5881 = vlaneseq
  %v5882 = vshrl.u32 %v5881, 7
  %v5883 = vsub.s32 %v4838, %v5882
  %v5884 = vrot.slane %v4337, %v5883
  %v5885 = vsel %vm4843, %v5884, %v5880
  %v5886 = vlaneseq
  %v5887 = vshrl.u32 %v5886, 7
  %v5888 = vsub.s32 %v4845, %v5887
  %v5889 = vrot.slane %v4338, %v5888
  %v5890 = vsel %vm4850, %v5889, %v5885
  %v5891 = vlaneseq
  %v5892 = vshrl.u32 %v5891, 7
  %v5893 = vsub.s32 %v4852, %v5892
  %v5894 = vrot.slane %v4339, %v5893
  %v5895 = vsel %vm4857, %v5894, %v5890
  %v5896 = vlaneseq
  %v5897 = vshrl.u32 %v5896, 7
  %v5898 = vsub.s32 %v4859, %v5897
  %v5899 = vrot.slane %v4340, %v5898
  %v5900 = vsel %vm4864, %v5899, %v5895
  %v5901 = vlaneseq
  %v5902 = vshrl.u32 %v5901, 7
  %v5903 = vsub.s32 %v4866, %v5902
  %v5904 = vrot.slane %v4341, %v5903
  %v5905 = vsel %vm4871, %v5904, %v5900
  %v5906 = vlaneseq
  %v5907 = vshrl.u32 %v5906, 7
  %v5908 = vsub.s32 %v4873, %v5907
  %v5909 = vrot.slane %v4342, %v5908
  %v5910 = vsel %vm4878, %v5909, %v5905
  %v5911 = vlaneseq
  %v5912 = vshrl.u32 %v5911, 7
  %v5913 = vsub.s32 %v4880, %v5912
  %v5914 = vrot.slane %v4343, %v5913
  %v5915 = vsel %vm4885, %v5914, %v5910
  %v5916 = vlaneseq
  %v5917 = vshrl.u32 %v5916, 7
  %v5918 = vsub.s32 %v4887, %v5917
  %v5919 = vrot.slane %v4344, %v5918
  %v5920 = vsel %vm4892, %v5919, %v5915
  %v5921 = vlaneseq
  %v5922 = vshrl.u32 %v5921, 7
  %v5923 = vsub.s32 %v4784, %v5922
  %v5924 = vrot.slane %v4345, %v5923
  %v5925 = vlaneseq
  %v5926 = vshrl.u32 %v5925, 7
  %v5927 = vsub.s32 %v4789, %v5926
  %v5928 = vrot.slane %v4346, %v5927
  %v5929 = vsel %vm4794, %v5928, %v5924
  %v5930 = vlaneseq
  %v5931 = vshrl.u32 %v5930, 7
  %v5932 = vsub.s32 %v4796, %v5931
  %v5933 = vrot.slane %v4347, %v5932
  %v5934 = vsel %vm4801, %v5933, %v5929
  %v5935 = vlaneseq
  %v5936 = vshrl.u32 %v5935, 7
  %v5937 = vsub.s32 %v4803, %v5936
  %v5938 = vrot.slane %v4348, %v5937
  %v5939 = vsel %vm4808, %v5938, %v5934
  %v5940 = vlaneseq
  %v5941 = vshrl.u32 %v5940, 7
  %v5942 = vsub.s32 %v4810, %v5941
  %v5943 = vrot.slane %v4349, %v5942
  %v5944 = vsel %vm4815, %v5943, %v5939
  %v5945 = vlaneseq
  %v5946 = vshrl.u32 %v5945, 7
  %v5947 = vsub.s32 %v4817, %v5946
  %v5948 = vrot.slane %v4350, %v5947
  %v5949 = vsel %vm4822, %v5948, %v5944
  %v5950 = vlaneseq
  %v5951 = vshrl.u32 %v5950, 7
  %v5952 = vsub.s32 %v4824, %v5951
  %v5953 = vrot.slane %v4351, %v5952
  %v5954 = vsel %vm4829, %v5953, %v5949
  %v5955 = vlaneseq
  %v5956 = vshrl.u32 %v5955, 7
  %v5957 = vsub.s32 %v4831, %v5956
  %v5958 = vrot.slane %v4352, %v5957
  %v5959 = vsel %vm4836, %v5958, %v5954
  %v5960 = vlaneseq
  %v5961 = vshrl.u32 %v5960, 7
  %v5962 = vsub.s32 %v4838, %v5961
  %v5963 = vrot.slane %v4353, %v5962
  %v5964 = vsel %vm4843, %v5963, %v5959
  %v5965 = vlaneseq
  %v5966 = vshrl.u32 %v5965, 7
  %v5967 = vsub.s32 %v4845, %v5966
  %v5968 = vrot.slane %v4354, %v5967
  %v5969 = vsel %vm4850, %v5968, %v5964
  %v5970 = vlaneseq
  %v5971 = vshrl.u32 %v5970, 7
  %v5972 = vsub.s32 %v4852, %v5971
  %v5973 = vrot.slane %v4355, %v5972
  %v5974 = vsel %vm4857, %v5973, %v5969
  %v5975 = vlaneseq
  %v5976 = vshrl.u32 %v5975, 7
  %v5977 = vsub.s32 %v4859, %v5976
  %v5978 = vrot.slane %v4356, %v5977
  %v5979 = vsel %vm4864, %v5978, %v5974
  %v5980 = vlaneseq
  %v5981 = vshrl.u32 %v5980, 7
  %v5982 = vsub.s32 %v4866, %v5981
  %v5983 = vrot.slane %v4357, %v5982
  %v5984 = vsel %vm4871, %v5983, %v5979
  %v5985 = vlaneseq
  %v5986 = vshrl.u32 %v5985, 7
  %v5987 = vsub.s32 %v4873, %v5986
  %v5988 = vrot.slane %v4358, %v5987
  %v5989 = vsel %vm4878, %v5988, %v5984
  %v5990 = vlaneseq
  %v5991 = vshrl.u32 %v5990, 7
  %v5992 = vsub.s32 %v4880, %v5991
  %v5993 = vrot.slane %v4359, %v5992
  %v5994 = vsel %vm4885, %v5993, %v5989
  %v5995 = vlaneseq
  %v5996 = vshrl.u32 %v5995, 7
  %v5997 = vsub.s32 %v4887, %v5996
  %v5998 = vrot.slane %v4360, %v5997
  %v5999 = vsel %vm4892, %v5998, %v5994
  %v6000 = vlaneseq
  %v6001 = vshrl.u32 %v6000, 7
  %v6002 = vsub.s32 %v4784, %v6001
  %v6003 = vrot.slane %v4361, %v6002
  %v6004 = vlaneseq
  %v6005 = vshrl.u32 %v6004, 7
  %v6006 = vsub.s32 %v4789, %v6005
  %v6007 = vrot.slane %v4362, %v6006
  %v6008 = vsel %vm4794, %v6007, %v6003
  %v6009 = vlaneseq
  %v6010 = vshrl.u32 %v6009, 7
  %v6011 = vsub.s32 %v4796, %v6010
  %v6012 = vrot.slane %v4363, %v6011
  %v6013 = vsel %vm4801, %v6012, %v6008
  %v6014 = vlaneseq
  %v6015 = vshrl.u32 %v6014, 7
  %v6016 = vsub.s32 %v4803, %v6015
  %v6017 = vrot.slane %v4364, %v6016
  %v6018 = vsel %vm4808, %v6017, %v6013
  %v6019 = vlaneseq
  %v6020 = vshrl.u32 %v6019, 7
  %v6021 = vsub.s32 %v4810, %v6020
  %v6022 = vrot.slane %v4365, %v6021
  %v6023 = vsel %vm4815, %v6022, %v6018
  %v6024 = vlaneseq
  %v6025 = vshrl.u32 %v6024, 7
  %v6026 = vsub.s32 %v4817, %v6025
  %v6027 = vrot.slane %v4366, %v6026
  %v6028 = vsel %vm4822, %v6027, %v6023
  %v6029 = vlaneseq
  %v6030 = vshrl.u32 %v6029, 7
  %v6031 = vsub.s32 %v4824, %v6030
  %v6032 = vrot.slane %v4367, %v6031
  %v6033 = vsel %vm4829, %v6032, %v6028
  %v6034 = vlaneseq
  %v6035 = vshrl.u32 %v6034, 7
  %v6036 = vsub.s32 %v4831, %v6035
  %v6037 = vrot.slane %v4368, %v6036
  %v6038 = vsel %vm4836, %v6037, %v6033
  %v6039 = vlaneseq
  %v6040 = vshrl.u32 %v6039, 7
  %v6041 = vsub.s32 %v4838, %v6040
  %v6042 = vrot.slane %v4369, %v6041
  %v6043 = vsel %vm4843, %v6042, %v6038
  %v6044 = vlaneseq
  %v6045 = vshrl.u32 %v6044, 7
  %v6046 = vsub.s32 %v4845, %v6045
  %v6047 = vrot.slane %v4370, %v6046
  %v6048 = vsel %vm4850, %v6047, %v6043
  %v6049 = vlaneseq
  %v6050 = vshrl.u32 %v6049, 7
  %v6051 = vsub.s32 %v4852, %v6050
  %v6052 = vrot.slane %v4371, %v6051
  %v6053 = vsel %vm4857, %v6052, %v6048
  %v6054 = vlaneseq
  %v6055 = vshrl.u32 %v6054, 7
  %v6056 = vsub.s32 %v4859, %v6055
  %v6057 = vrot.slane %v4372, %v6056
  %v6058 = vsel %vm4864, %v6057, %v6053
  %v6059 = vlaneseq
  %v6060 = vshrl.u32 %v6059, 7
  %v6061 = vsub.s32 %v4866, %v6060
  %v6062 = vrot.slane %v4373, %v6061
  %v6063 = vsel %vm4871, %v6062, %v6058
  %v6064 = vlaneseq
  %v6065 = vshrl.u32 %v6064, 7
  %v6066 = vsub.s32 %v4873, %v6065
  %v6067 = vrot.slane %v4374, %v6066
  %v6068 = vsel %vm4878, %v6067, %v6063
  %v6069 = vlaneseq
  %v6070 = vshrl.u32 %v6069, 7
  %v6071 = vsub.s32 %v4880, %v6070
  %v6072 = vrot.slane %v4375, %v6071
  %v6073 = vsel %vm4885, %v6072, %v6068
  %v6074 = vlaneseq
  %v6075 = vshrl.u32 %v6074, 7
  %v6076 = vsub.s32 %v4887, %v6075
  %v6077 = vrot.slane %v4376, %v6076
  %v6078 = vsel %vm4892, %v6077, %v6073
  %vm6079 = vcmask 1041409
  %v6080 = vsel %vm6079, %v5051, %v4893
  %vm6081 = vcmask 1042434
  %v6082 = vsel %vm6081, %v5209, %v6080
  %vm6083 = vcmask 1043459
  %v6084 = vsel %vm6083, %v5367, %v6082
  %vm6085 = vcmask 1044484
  %v6086 = vsel %vm6085, %v5525, %v6084
  %vm6087 = vcmask 1045509
  %v6088 = vsel %vm6087, %v5683, %v6086
  %vm6089 = vcmask 1046534
  %v6090 = vsel %vm6089, %v5841, %v6088
  %vm6091 = vcmask 1047559
  %v6092 = vsel %vm6091, %v5999, %v6090
  %v6093 = vsel %vm6079, %v5130, %v4972
  %v6094 = vsel %vm6081, %v5288, %v6093
  %v6095 = vsel %vm6083, %v5446, %v6094
  %v6096 = vsel %vm6085, %v5604, %v6095
  %v6097 = vsel %vm6087, %v5762, %v6096
  %v6098 = vsel %vm6089, %v5920, %v6097
  %v6099 = vsel %vm6091, %v6078, %v6098
  %6102 = vmatprep.subr.mxu0 %v4438
  %6103 = vmatpush1.msra.mxu0 %v4437
  %6104 = vmatprep.subr.mxu0 %v4434
  %6105 = vmatpush1.msra.mxu0 %v4433
  %6106 = vmatprep.subr.mxu0 %v4430
  %6107 = vmatpush1.msra.mxu0 %v4429
  %6108 = vmatprep.subr.mxu0 %v4426
  %6109 = vmatpush1.msra.mxu0 %v4425
  %6110 = vmatprep.subr.mxu0 %v4422
  %6111 = vmatpush1.msra.mxu0 %v4421
  %6112 = vmatprep.subr.mxu0 %v4418
  %6113 = vmatpush1.msra.mxu0 %v4417
  %6114 = vmatprep.subr.mxu0 %v4414
  %6115 = vmatpush1.msra.mxu0 %v4413
  %6116 = vmatprep.subr.mxu0 %v4410
  %6117 = vmatpush1.msra.mxu0 %v4409
  %6118 = vmatprep.subr.mxu0 %v4406
  %6119 = vmatpush1.msra.mxu0 %v4405
  %6120 = vmatprep.subr.mxu0 %v4402
  %6121 = vmatpush1.msra.mxu0 %v4401
  %6122 = vmatprep.subr.mxu0 %v4398
  %6123 = vmatpush1.msra.mxu0 %v4397
  %6124 = vmatprep.subr.mxu0 %v4394
  %6125 = vmatpush1.msra.mxu0 %v4393
  %6126 = vmatprep.subr.mxu0 %v4390
  %6127 = vmatpush1.msra.mxu0 %v4389
  %6128 = vmatprep.subr.mxu0 %v4386
  %6129 = vmatpush1.msra.mxu0 %v4385
  %6130 = vmatprep.subr.mxu0 %v4382
  %6131 = vmatpush1.msra.mxu0 %v4381
  %6132 = vmatprep.subr.mxu0 %v4378
  %6133 = vmatpush1.msra.mxu0 %v4377
  %6134 = vmatprep.subr.mxu0 %v4502
  %6135 = vmatpush2.msra.mxu0 %v4501
  %6136 = vmatprep.subr.mxu0 %v4498
  %6137 = vmatpush2.msra.mxu0 %v4497
  %6138 = vmatprep.subr.mxu0 %v4494
  %6139 = vmatpush2.msra.mxu0 %v4493
  %6140 = vmatprep.subr.mxu0 %v4490
  %6141 = vmatpush2.msra.mxu0 %v4489
  %6142 = vmatprep.subr.mxu0 %v4486
  %6143 = vmatpush2.msra.mxu0 %v4485
  %6144 = vmatprep.subr.mxu0 %v4482
  %6145 = vmatpush2.msra.mxu0 %v4481
  %6146 = vmatprep.subr.mxu0 %v4478
  %6147 = vmatpush2.msra.mxu0 %v4477
  %6148 = vmatprep.subr.mxu0 %v4474
  %6149 = vmatpush2.msra.mxu0 %v4473
  %6150 = vmatprep.subr.mxu0 %v4470
  %6151 = vmatpush2.msra.mxu0 %v4469
  %6152 = vmatprep.subr.mxu0 %v4466
  %6153 = vmatpush2.msra.mxu0 %v4465
  %6154 = vmatprep.subr.mxu0 %v4462
  %6155 = vmatpush2.msra.mxu0 %v4461
  %6156 = vmatprep.subr.mxu0 %v4458
  %6157 = vmatpush2.msra.mxu0 %v4457
  %6158 = vmatprep.subr.mxu0 %v4454
  %6159 = vmatpush2.msra.mxu0 %v4453
  %6160 = vmatprep.subr.mxu0 %v4450
  %6161 = vmatpush2.msra.mxu0 %v4449
  %6162 = vmatprep.subr.mxu0 %v4446
  %6163 = vmatpush2.msra.mxu0 %v4445
  %6164 = vmatprep.subr.mxu0 %v4442
  %6165 = vmatpush2.msra.mxu0 %v4441
  %6166 = vmatprep.mubr.f32.mxu0 %v6099
  %6167 = vmatmul.mubr.f32.gmra.mxu0 %v6092
  %v6168 = vpop.f32.mrf.mxu0
  %v6169 = vadd.f32 %v4510, %v6168
  %v6170 = vpop.f32.mrf.mxu0
  %v6171 = vadd.f32 %v4514, %v6170
  %6172 = vdwg.mxu0
  %6173 = vmatprep.subr.mxu0 %v4440
  %6174 = vmatpush1.msra.mxu0 %v4439
  %6175 = vmatprep.subr.mxu0 %v4436
  %6176 = vmatpush1.msra.mxu0 %v4435
  %6177 = vmatprep.subr.mxu0 %v4432
  %6178 = vmatpush1.msra.mxu0 %v4431
  %6179 = vmatprep.subr.mxu0 %v4428
  %6180 = vmatpush1.msra.mxu0 %v4427
  %6181 = vmatprep.subr.mxu0 %v4424
  %6182 = vmatpush1.msra.mxu0 %v4423
  %6183 = vmatprep.subr.mxu0 %v4420
  %6184 = vmatpush1.msra.mxu0 %v4419
  %6185 = vmatprep.subr.mxu0 %v4416
  %6186 = vmatpush1.msra.mxu0 %v4415
  %6187 = vmatprep.subr.mxu0 %v4412
  %6188 = vmatpush1.msra.mxu0 %v4411
  %6189 = vmatprep.subr.mxu0 %v4408
  %6190 = vmatpush1.msra.mxu0 %v4407
  %6191 = vmatprep.subr.mxu0 %v4404
  %6192 = vmatpush1.msra.mxu0 %v4403
  %6193 = vmatprep.subr.mxu0 %v4400
  %6194 = vmatpush1.msra.mxu0 %v4399
  %6195 = vmatprep.subr.mxu0 %v4396
  %6196 = vmatpush1.msra.mxu0 %v4395
  %6197 = vmatprep.subr.mxu0 %v4392
  %6198 = vmatpush1.msra.mxu0 %v4391
  %6199 = vmatprep.subr.mxu0 %v4388
  %6200 = vmatpush1.msra.mxu0 %v4387
  %6201 = vmatprep.subr.mxu0 %v4384
  %6202 = vmatpush1.msra.mxu0 %v4383
  %6203 = vmatprep.subr.mxu0 %v4380
  %6204 = vmatpush1.msra.mxu0 %v4379
  %6205 = vmatprep.subr.mxu0 %v4504
  %6206 = vmatpush2.msra.mxu0 %v4503
  %6207 = vmatprep.subr.mxu0 %v4500
  %6208 = vmatpush2.msra.mxu0 %v4499
  %6209 = vmatprep.subr.mxu0 %v4496
  %6210 = vmatpush2.msra.mxu0 %v4495
  %6211 = vmatprep.subr.mxu0 %v4492
  %6212 = vmatpush2.msra.mxu0 %v4491
  %6213 = vmatprep.subr.mxu0 %v4488
  %6214 = vmatpush2.msra.mxu0 %v4487
  %6215 = vmatprep.subr.mxu0 %v4484
  %6216 = vmatpush2.msra.mxu0 %v4483
  %6217 = vmatprep.subr.mxu0 %v4480
  %6218 = vmatpush2.msra.mxu0 %v4479
  %6219 = vmatprep.subr.mxu0 %v4476
  %6220 = vmatpush2.msra.mxu0 %v4475
  %6221 = vmatprep.subr.mxu0 %v4472
  %6222 = vmatpush2.msra.mxu0 %v4471
  %6223 = vmatprep.subr.mxu0 %v4468
  %6224 = vmatpush2.msra.mxu0 %v4467
  %6225 = vmatprep.subr.mxu0 %v4464
  %6226 = vmatpush2.msra.mxu0 %v4463
  %6227 = vmatprep.subr.mxu0 %v4460
  %6228 = vmatpush2.msra.mxu0 %v4459
  %6229 = vmatprep.subr.mxu0 %v4456
  %6230 = vmatpush2.msra.mxu0 %v4455
  %6231 = vmatprep.subr.mxu0 %v4452
  %6232 = vmatpush2.msra.mxu0 %v4451
  %6233 = vmatprep.subr.mxu0 %v4448
  %6234 = vmatpush2.msra.mxu0 %v4447
  %6235 = vmatprep.subr.mxu0 %v4444
  %6236 = vmatpush2.msra.mxu0 %v4443
  %6237 = vmatprep.mubr.f32.mxu0 %v6099
  %6238 = vmatmul.mubr.f32.gmra.mxu0 %v6092
  %v6239 = vpop.f32.mrf.mxu0
  %v6240 = vadd.f32 %v4518, %v6239
  %v6241 = vpop.f32.mrf.mxu0
  %v6242 = vadd.f32 %v4522, %v6241
  %6243 = vdwg.mxu0
  %v6244 = vtanh.pop %v6169
  %v6245 = vtanh.pop %v6171
  %v6246 = vtanh.pop %v6240
  %v6247 = vtanh.pop %v6242
  %v6248 = vld [vmem:[%s3] sm:$0xff]
  %v6249 = vld [vmem:[%s3 + $0x8] sm:$0xff]
  %v6250 = vld [vmem:[%s3 + $0x10] sm:$0xff]
  %v6251 = vld [vmem:[%s3 + $0x18] sm:$0xff]
  %v6252 = vld [vmem:[%s3 + $0x20] sm:$0xff]
  %v6253 = vld [vmem:[%s3 + $0x28] sm:$0xff]
  %v6254 = vld [vmem:[%s3 + $0x30] sm:$0xff]
  %v6255 = vld [vmem:[%s3 + $0x38] sm:$0xff]
  %v6256 = vld [vmem:[%s3 + $0x40] sm:$0xff]
  %v6257 = vld [vmem:[%s3 + $0x48] sm:$0xff]
  %v6258 = vld [vmem:[%s3 + $0x50] sm:$0xff]
  %v6259 = vld [vmem:[%s3 + $0x58] sm:$0xff]
  %v6260 = vld [vmem:[%s3 + $0x60] sm:$0xff]
  %v6261 = vld [vmem:[%s3 + $0x68] sm:$0xff]
  %v6262 = vld [vmem:[%s3 + $0x70] sm:$0xff]
  %v6263 = vld [vmem:[%s3 + $0x78] sm:$0xff]
  %v6264 = vld [vmem:[%s3 + $0x80] sm:$0xff]
  %v6265 = vld [vmem:[%s3 + $0x88] sm:$0xff]
  %v6266 = vld [vmem:[%s3 + $0x90] sm:$0xff]
  %v6267 = vld [vmem:[%s3 + $0x98] sm:$0xff]
  %v6268 = vld [vmem:[%s3 + $0xa0] sm:$0xff]
  %v6269 = vld [vmem:[%s3 + $0xa8] sm:$0xff]
  %v6270 = vld [vmem:[%s3 + $0xb0] sm:$0xff]
  %v6271 = vld [vmem:[%s3 + $0xb8] sm:$0xff]
  %v6272 = vld [vmem:[%s3 + $0xc0] sm:$0xff]
  %v6273 = vld [vmem:[%s3 + $0xc8] sm:$0xff]
  %v6274 = vld [vmem:[%s3 + $0xd0] sm:$0xff]
  %v6275 = vld [vmem:[%s3 + $0xd8] sm:$0xff]
  %v6276 = vld [vmem:[%s3 + $0xe0] sm:$0xff]
  %v6277 = vld [vmem:[%s3 + $0xe8] sm:$0xff]
  %v6278 = vld [vmem:[%s3 + $0xf0] sm:$0xff]
  %v6279 = vld [vmem:[%s3 + $0xf8] sm:$0xff]
  %v6280 = vld [vmem:[%s3 + $0x100] sm:$0xff]
  %v6281 = vld [vmem:[%s3 + $0x108] sm:$0xff]
  %v6282 = vld [vmem:[%s3 + $0x110] sm:$0xff]
  %v6283 = vld [vmem:[%s3 + $0x118] sm:$0xff]
  %v6284 = vld [vmem:[%s3 + $0x120] sm:$0xff]
  %v6285 = vld [vmem:[%s3 + $0x128] sm:$0xff]
  %v6286 = vld [vmem:[%s3 + $0x130] sm:$0xff]
  %v6287 = vld [vmem:[%s3 + $0x138] sm:$0xff]
  %v6288 = vld [vmem:[%s3 + $0x140] sm:$0xff]
  %v6289 = vld [vmem:[%s3 + $0x148] sm:$0xff]
  %v6290 = vld [vmem:[%s3 + $0x150] sm:$0xff]
  %v6291 = vld [vmem:[%s3 + $0x158] sm:$0xff]
  %v6292 = vld [vmem:[%s3 + $0x160] sm:$0xff]
  %v6293 = vld [vmem:[%s3 + $0x168] sm:$0xff]
  %v6294 = vld [vmem:[%s3 + $0x170] sm:$0xff]
  %v6295 = vld [vmem:[%s3 + $0x178] sm:$0xff]
  %v6296 = vld [vmem:[%s3 + $0x180] sm:$0xff]
  %v6297 = vld [vmem:[%s3 + $0x188] sm:$0xff]
  %v6298 = vld [vmem:[%s3 + $0x190] sm:$0xff]
  %v6299 = vld [vmem:[%s3 + $0x198] sm:$0xff]
  %v6300 = vld [vmem:[%s3 + $0x1a0] sm:$0xff]
  %v6301 = vld [vmem:[%s3 + $0x1a8] sm:$0xff]
  %v6302 = vld [vmem:[%s3 + $0x1b0] sm:$0xff]
  %v6303 = vld [vmem:[%s3 + $0x1b8] sm:$0xff]
  %v6304 = vld [vmem:[%s3 + $0x1c0] sm:$0xff]
  %v6305 = vld [vmem:[%s3 + $0x1c8] sm:$0xff]
  %v6306 = vld [vmem:[%s3 + $0x1d0] sm:$0xff]
  %v6307 = vld [vmem:[%s3 + $0x1d8] sm:$0xff]
  %v6308 = vld [vmem:[%s3 + $0x1e0] sm:$0xff]
  %v6309 = vld [vmem:[%s3 + $0x1e8] sm:$0xff]
  %v6310 = vld [vmem:[%s3 + $0x1f0] sm:$0xff]
  %v6311 = vld [vmem:[%s3 + $0x1f8] sm:$0xff]
  %v6312 = vld [vmem:[%s3 + $0x200] sm:$0xff]
  %v6313 = vld [vmem:[%s3 + $0x208] sm:$0xff]
  %v6314 = vld [vmem:[%s3 + $0x210] sm:$0xff]
  %v6315 = vld [vmem:[%s3 + $0x218] sm:$0xff]
  %v6316 = vld [vmem:[%s3 + $0x220] sm:$0xff]
  %v6317 = vld [vmem:[%s3 + $0x228] sm:$0xff]
  %v6318 = vld [vmem:[%s3 + $0x230] sm:$0xff]
  %v6319 = vld [vmem:[%s3 + $0x238] sm:$0xff]
  %v6320 = vld [vmem:[%s3 + $0x240] sm:$0xff]
  %v6321 = vld [vmem:[%s3 + $0x248] sm:$0xff]
  %v6322 = vld [vmem:[%s3 + $0x250] sm:$0xff]
  %v6323 = vld [vmem:[%s3 + $0x258] sm:$0xff]
  %v6324 = vld [vmem:[%s3 + $0x260] sm:$0xff]
  %v6325 = vld [vmem:[%s3 + $0x268] sm:$0xff]
  %v6326 = vld [vmem:[%s3 + $0x270] sm:$0xff]
  %v6327 = vld [vmem:[%s3 + $0x278] sm:$0xff]
  %v6328 = vld [vmem:[%s3 + $0x280] sm:$0xff]
  %v6329 = vld [vmem:[%s3 + $0x288] sm:$0xff]
  %v6330 = vld [vmem:[%s3 + $0x290] sm:$0xff]
  %v6331 = vld [vmem:[%s3 + $0x298] sm:$0xff]
  %v6332 = vld [vmem:[%s3 + $0x2a0] sm:$0xff]
  %v6333 = vld [vmem:[%s3 + $0x2a8] sm:$0xff]
  %v6334 = vld [vmem:[%s3 + $0x2b0] sm:$0xff]
  %v6335 = vld [vmem:[%s3 + $0x2b8] sm:$0xff]
  %v6336 = vld [vmem:[%s3 + $0x2c0] sm:$0xff]
  %v6337 = vld [vmem:[%s3 + $0x2c8] sm:$0xff]
  %v6338 = vld [vmem:[%s3 + $0x2d0] sm:$0xff]
  %v6339 = vld [vmem:[%s3 + $0x2d8] sm:$0xff]
  %v6340 = vld [vmem:[%s3 + $0x2e0] sm:$0xff]
  %v6341 = vld [vmem:[%s3 + $0x2e8] sm:$0xff]
  %v6342 = vld [vmem:[%s3 + $0x2f0] sm:$0xff]
  %v6343 = vld [vmem:[%s3 + $0x2f8] sm:$0xff]
  %v6344 = vld [vmem:[%s3 + $0x300] sm:$0xff]
  %v6345 = vld [vmem:[%s3 + $0x308] sm:$0xff]
  %v6346 = vld [vmem:[%s3 + $0x310] sm:$0xff]
  %v6347 = vld [vmem:[%s3 + $0x318] sm:$0xff]
  %v6348 = vld [vmem:[%s3 + $0x320] sm:$0xff]
  %v6349 = vld [vmem:[%s3 + $0x328] sm:$0xff]
  %v6350 = vld [vmem:[%s3 + $0x330] sm:$0xff]
  %v6351 = vld [vmem:[%s3 + $0x338] sm:$0xff]
  %v6352 = vld [vmem:[%s3 + $0x340] sm:$0xff]
  %v6353 = vld [vmem:[%s3 + $0x348] sm:$0xff]
  %v6354 = vld [vmem:[%s3 + $0x350] sm:$0xff]
  %v6355 = vld [vmem:[%s3 + $0x358] sm:$0xff]
  %v6356 = vld [vmem:[%s3 + $0x360] sm:$0xff]
  %v6357 = vld [vmem:[%s3 + $0x368] sm:$0xff]
  %v6358 = vld [vmem:[%s3 + $0x370] sm:$0xff]
  %v6359 = vld [vmem:[%s3 + $0x378] sm:$0xff]
  %v6360 = vld [vmem:[%s3 + $0x380] sm:$0xff]
  %v6361 = vld [vmem:[%s3 + $0x388] sm:$0xff]
  %v6362 = vld [vmem:[%s3 + $0x390] sm:$0xff]
  %v6363 = vld [vmem:[%s3 + $0x398] sm:$0xff]
  %v6364 = vld [vmem:[%s3 + $0x3a0] sm:$0xff]
  %v6365 = vld [vmem:[%s3 + $0x3a8] sm:$0xff]
  %v6366 = vld [vmem:[%s3 + $0x3b0] sm:$0xff]
  %v6367 = vld [vmem:[%s3 + $0x3b8] sm:$0xff]
  %v6368 = vld [vmem:[%s3 + $0x3c0] sm:$0xff]
  %v6369 = vld [vmem:[%s3 + $0x3c8] sm:$0xff]
  %v6370 = vld [vmem:[%s3 + $0x3d0] sm:$0xff]
  %v6371 = vld [vmem:[%s3 + $0x3d8] sm:$0xff]
  %v6372 = vld [vmem:[%s3 + $0x3e0] sm:$0xff]
  %v6373 = vld [vmem:[%s3 + $0x3e8] sm:$0xff]
  %v6374 = vld [vmem:[%s3 + $0x3f0] sm:$0xff]
  %v6375 = vld [vmem:[%s3 + $0x3f8] sm:$0xff]
  %v6376 = vld [vmem:[%s4] sm:$0x3]
  %v6378 = vlaneseq
  %v6379 = vshrl.u32 %v6378, 7
  %v6380 = vsub.s32 0, %v6379
  %v6381 = vrot.slane %v6376, %v6380
  %v6382 = vlaneseq
  %v6383 = vshrl.u32 %v6382, 7
  %v6384 = vsub.s32 1, %v6383
  %v6385 = vrot.slane %v6376, %v6384
  %6388 = vmatprep.subr.mxu0 %v6279
  %6389 = vmatpush1.msra.mxu0 %v6278
  %6390 = vmatprep.subr.mxu0 %v6277
  %6391 = vmatpush1.msra.mxu0 %v6276
  %6392 = vmatprep.subr.mxu0 %v6275
  %6393 = vmatpush1.msra.mxu0 %v6274
  %6394 = vmatprep.subr.mxu0 %v6273
  %6395 = vmatpush1.msra.mxu0 %v6272
  %6396 = vmatprep.subr.mxu0 %v6271
  %6397 = vmatpush1.msra.mxu0 %v6270
  %6398 = vmatprep.subr.mxu0 %v6269
  %6399 = vmatpush1.msra.mxu0 %v6268
  %6400 = vmatprep.subr.mxu0 %v6267
  %6401 = vmatpush1.msra.mxu0 %v6266
  %6402 = vmatprep.subr.mxu0 %v6265
  %6403 = vmatpush1.msra.mxu0 %v6264
  %6404 = vmatprep.subr.mxu0 %v6263
  %6405 = vmatpush1.msra.mxu0 %v6262
  %6406 = vmatprep.subr.mxu0 %v6261
  %6407 = vmatpush1.msra.mxu0 %v6260
  %6408 = vmatprep.subr.mxu0 %v6259
  %6409 = vmatpush1.msra.mxu0 %v6258
  %6410 = vmatprep.subr.mxu0 %v6257
  %6411 = vmatpush1.msra.mxu0 %v6256
  %6412 = vmatprep.subr.mxu0 %v6255
  %6413 = vmatpush1.msra.mxu0 %v6254
  %6414 = vmatprep.subr.mxu0 %v6253
  %6415 = vmatpush1.msra.mxu0 %v6252
  %6416 = vmatprep.subr.mxu0 %v6251
  %6417 = vmatpush1.msra.mxu0 %v6250
  %6418 = vmatprep.subr.mxu0 %v6249
  %6419 = vmatpush1.msra.mxu0 %v6248
  %6420 = vmatprep.subr.mxu0 %v6311
  %6421 = vmatpush2.msra.mxu0 %v6310
  %6422 = vmatprep.subr.mxu0 %v6309
  %6423 = vmatpush2.msra.mxu0 %v6308
  %6424 = vmatprep.subr.mxu0 %v6307
  %6425 = vmatpush2.msra.mxu0 %v6306
  %6426 = vmatprep.subr.mxu0 %v6305
  %6427 = vmatpush2.msra.mxu0 %v6304
  %6428 = vmatprep.subr.mxu0 %v6303
  %6429 = vmatpush2.msra.mxu0 %v6302
  %6430 = vmatprep.subr.mxu0 %v6301
  %6431 = vmatpush2.msra.mxu0 %v6300
  %6432 = vmatprep.subr.mxu0 %v6299
  %6433 = vmatpush2.msra.mxu0 %v6298
  %6434 = vmatprep.subr.mxu0 %v6297
  %6435 = vmatpush2.msra.mxu0 %v6296
  %6436 = vmatprep.subr.mxu0 %v6295
  %6437 = vmatpush2.msra.mxu0 %v6294
  %6438 = vmatprep.subr.mxu0 %v6293
  %6439 = vmatpush2.msra.mxu0 %v6292
  %6440 = vmatprep.subr.mxu0 %v6291
  %6441 = vmatpush2.msra.mxu0 %v6290
  %6442 = vmatprep.subr.mxu0 %v6289
  %6443 = vmatpush2.msra.mxu0 %v6288
  %6444 = vmatprep.subr.mxu0 %v6287
  %6445 = vmatpush2.msra.mxu0 %v6286
  %6446 = vmatprep.subr.mxu0 %v6285
  %6447 = vmatpush2.msra.mxu0 %v6284
  %6448 = vmatprep.subr.mxu0 %v6283
  %6449 = vmatpush2.msra.mxu0 %v6282
  %6450 = vmatprep.subr.mxu0 %v6281
  %6451 = vmatpush2.msra.mxu0 %v6280
  %6452 = vmatprep.mubr.f32.mxu0 %v6245
  %6453 = vmatmul.mubr.f32.gmra.mxu0 %v6244
  %v6454 = vpop.f32.mrf.mxu0
  %v6455 = vadd.f32 %v6381, %v6454
  %v6456 = vpop.f32.mrf.mxu0
  %v6457 = vadd.f32 %v6385, %v6456
  %6458 = vdwg.mxu0
  %6459 = vmatprep.subr.mxu0 %v6343
  %6460 = vmatpush1.msra.mxu0 %v6342
  %6461 = vmatprep.subr.mxu0 %v6341
  %6462 = vmatpush1.msra.mxu0 %v6340
  %6463 = vmatprep.subr.mxu0 %v6339
  %6464 = vmatpush1.msra.mxu0 %v6338
  %6465 = vmatprep.subr.mxu0 %v6337
  %6466 = vmatpush1.msra.mxu0 %v6336
  %6467 = vmatprep.subr.mxu0 %v6335
  %6468 = vmatpush1.msra.mxu0 %v6334
  %6469 = vmatprep.subr.mxu0 %v6333
  %6470 = vmatpush1.msra.mxu0 %v6332
  %6471 = vmatprep.subr.mxu0 %v6331
  %6472 = vmatpush1.msra.mxu0 %v6330
  %6473 = vmatprep.subr.mxu0 %v6329
  %6474 = vmatpush1.msra.mxu0 %v6328
  %6475 = vmatprep.subr.mxu0 %v6327
  %6476 = vmatpush1.msra.mxu0 %v6326
  %6477 = vmatprep.subr.mxu0 %v6325
  %6478 = vmatpush1.msra.mxu0 %v6324
  %6479 = vmatprep.subr.mxu0 %v6323
  %6480 = vmatpush1.msra.mxu0 %v6322
  %6481 = vmatprep.subr.mxu0 %v6321
  %6482 = vmatpush1.msra.mxu0 %v6320
  %6483 = vmatprep.subr.mxu0 %v6319
  %6484 = vmatpush1.msra.mxu0 %v6318
  %6485 = vmatprep.subr.mxu0 %v6317
  %6486 = vmatpush1.msra.mxu0 %v6316
  %6487 = vmatprep.subr.mxu0 %v6315
  %6488 = vmatpush1.msra.mxu0 %v6314
  %6489 = vmatprep.subr.mxu0 %v6313
  %6490 = vmatpush1.msra.mxu0 %v6312
  %6491 = vmatprep.subr.mxu0 %v6375
  %6492 = vmatpush2.msra.mxu0 %v6374
  %6493 = vmatprep.subr.mxu0 %v6373
  %6494 = vmatpush2.msra.mxu0 %v6372
  %6495 = vmatprep.subr.mxu0 %v6371
  %6496 = vmatpush2.msra.mxu0 %v6370
  %6497 = vmatprep.subr.mxu0 %v6369
  %6498 = vmatpush2.msra.mxu0 %v6368
  %6499 = vmatprep.subr.mxu0 %v6367
  %6500 = vmatpush2.msra.mxu0 %v6366
  %6501 = vmatprep.subr.mxu0 %v6365
  %6502 = vmatpush2.msra.mxu0 %v6364
  %6503 = vmatprep.subr.mxu0 %v6363
  %6504 = vmatpush2.msra.mxu0 %v6362
  %6505 = vmatprep.subr.mxu0 %v6361
  %6506 = vmatpush2.msra.mxu0 %v6360
  %6507 = vmatprep.subr.mxu0 %v6359
  %6508 = vmatpush2.msra.mxu0 %v6358
  %6509 = vmatprep.subr.mxu0 %v6357
  %6510 = vmatpush2.msra.mxu0 %v6356
  %6511 = vmatprep.subr.mxu0 %v6355
  %6512 = vmatpush2.msra.mxu0 %v6354
  %6513 = vmatprep.subr.mxu0 %v6353
  %6514 = vmatpush2.msra.mxu0 %v6352
  %6515 = vmatprep.subr.mxu0 %v6351
  %6516 = vmatpush2.msra.mxu0 %v6350
  %6517 = vmatprep.subr.mxu0 %v6349
  %6518 = vmatpush2.msra.mxu0 %v6348
  %6519 = vmatprep.subr.mxu0 %v6347
  %6520 = vmatpush2.msra.mxu0 %v6346
  %6521 = vmatprep.subr.mxu0 %v6345
  %6522 = vmatpush2.msra.mxu0 %v6344
  %6523 = vmatprep.mubr.f32.mxu0 %v6247
  %6524 = vmatmul.mubr.f32.gmra.mxu0 %v6246
  %v6525 = vpop.f32.mrf.mxu0
  %v6526 = vadd.f32 %v6455, %v6525
  %v6527 = vpop.f32.mrf.mxu0
  %v6528 = vadd.f32 %v6457, %v6527
  %6529 = vdwg.mxu0
  %v6530 = vxor.u32 %v6526, 2147483648
  %v6531 = vxor.u32 %v6528, 2147483648
  %v6532 = vmul.f32 %v6530, 1.442695
  %v6533 = vpow.pop %v6532
  %v6534 = vmul.f32 %v6531, 1.442695
  %v6535 = vpow.pop %v6534
  %v6536 = vadd.f32 %v6533, 1.0
  %v6537 = vadd.f32 %v6535, 1.0
  %v6538 = vrcp.pop %v6536
  %v6539 = vmul.f32 1.0, %v6538
  %v6540 = vrcp.pop %v6537
  %v6541 = vmul.f32 1.0, %v6540
  %v6542 = vld [vmem:[%s5] sm:$0xff]
  %v6543 = vld [vmem:[%s5 + $0x8] sm:$0xff]
  %v6544 = vld [vmem:[%s5 + $0x10] sm:$0xff]
  %v6545 = vld [vmem:[%s5 + $0x18] sm:$0xff]
  %v6546 = vld [vmem:[%s5 + $0x20] sm:$0xff]
  %v6547 = vld [vmem:[%s5 + $0x28] sm:$0xff]
  %v6548 = vld [vmem:[%s5 + $0x30] sm:$0xff]
  %v6549 = vld [vmem:[%s5 + $0x38] sm:$0xff]
  %v6550 = vld [vmem:[%s5 + $0x40] sm:$0xff]
  %v6551 = vld [vmem:[%s5 + $0x48] sm:$0xff]
  %v6552 = vld [vmem:[%s5 + $0x50] sm:$0xff]
  %v6553 = vld [vmem:[%s5 + $0x58] sm:$0xff]
  %v6554 = vld [vmem:[%s5 + $0x60] sm:$0xff]
  %v6555 = vld [vmem:[%s5 + $0x68] sm:$0xff]
  %v6556 = vld [vmem:[%s5 + $0x70] sm:$0xff]
  %v6557 = vld [vmem:[%s5 + $0x78] sm:$0xff]
  %v6558 = vld [vmem:[%s5 + $0x80] sm:$0xff]
  %v6559 = vld [vmem:[%s5 + $0x88] sm:$0xff]
  %v6560 = vld [vmem:[%s5 + $0x90] sm:$0xff]
  %v6561 = vld [vmem:[%s5 + $0x98] sm:$0xff]
  %v6562 = vld [vmem:[%s5 + $0xa0] sm:$0xff]
  %v6563 = vld [vmem:[%s5 + $0xa8] sm:$0xff]
  %v6564 = vld [vmem:[%s5 + $0xb0] sm:$0xff]
  %v6565 = vld [vmem:[%s5 + $0xb8] sm:$0xff]
  %v6566 = vld [vmem:[%s5 + $0xc0] sm:$0xff]
  %v6567 = vld [vmem:[%s5 + $0xc8] sm:$0xff]
  %v6568 = vld [vmem:[%s5 + $0xd0] sm:$0xff]
  %v6569 = vld [vmem:[%s5 + $0xd8] sm:$0xff]
  %v6570 = vld [vmem:[%s5 + $0xe0] sm:$0xff]
  %v6571 = vld [vmem:[%s5 + $0xe8] sm:$0xff]
  %v6572 = vld [vmem:[%s5 + $0xf0] sm:$0xff]
  %v6573 = vld [vmem:[%s5 + $0xf8] sm:$0xff]
  %v6574 = vld [vmem:[%s5 + $0x100] sm:$0xff]
  %v6575 = vld [vmem:[%s5 + $0x108] sm:$0xff]
  %v6576 = vld [vmem:[%s5 + $0x110] sm:$0xff]
  %v6577 = vld [vmem:[%s5 + $0x118] sm:$0xff]
  %v6578 = vld [vmem:[%s5 + $0x120] sm:$0xff]
  %v6579 = vld [vmem:[%s5 + $0x128] sm:$0xff]
  %v6580 = vld [vmem:[%s5 + $0x130] sm:$0xff]
  %v6581 = vld [vmem:[%s5 + $0x138] sm:$0xff]
  %v6582 = vld [vmem:[%s5 + $0x140] sm:$0xff]
  %v6583 = vld [vmem:[%s5 + $0x148] sm:$0xff]
  %v6584 = vld [vmem:[%s5 + $0x150] sm:$0xff]
  %v6585 = vld [vmem:[%s5 + $0x158] sm:$0xff]
  %v6586 = vld [vmem:[%s5 + $0x160] sm:$0xff]
  %v6587 = vld [vmem:[%s5 + $0x168] sm:$0xff]
  %v6588 = vld [vmem:[%s5 + $0x170] sm:$0xff]
  %v6589 = vld [vmem:[%s5 + $0x178] sm:$0xff]
  %v6590 = vld [vmem:[%s5 + $0x180] sm:$0xff]
  %v6591 = vld [vmem:[%s5 + $0x188] sm:$0xff]
  %v6592 = vld [vmem:[%s5 + $0x190] sm:$0xff]
  %v6593 = vld [vmem:[%s5 + $0x198] sm:$0xff]
  %v6594 = vld [vmem:[%s5 + $0x1a0] sm:$0xff]
  %v6595 = vld [vmem:[%s5 + $0x1a8] sm:$0xff]
  %v6596 = vld [vmem:[%s5 + $0x1b0] sm:$0xff]
  %v6597 = vld [vmem:[%s5 + $0x1b8] sm:$0xff]
  %v6598 = vld [vmem:[%s5 + $0x1c0] sm:$0xff]
  %v6599 = vld [vmem:[%s5 + $0x1c8] sm:$0xff]
  %v6600 = vld [vmem:[%s5 + $0x1d0] sm:$0xff]
  %v6601 = vld [vmem:[%s5 + $0x1d8] sm:$0xff]
  %v6602 = vld [vmem:[%s5 + $0x1e0] sm:$0xff]
  %v6603 = vld [vmem:[%s5 + $0x1e8] sm:$0xff]
  %v6604 = vld [vmem:[%s5 + $0x1f0] sm:$0xff]
  %v6605 = vld [vmem:[%s5 + $0x1f8] sm:$0xff]
  %v6606 = vld [vmem:[%s5 + $0x200] sm:$0xff]
  %v6607 = vld [vmem:[%s5 + $0x208] sm:$0xff]
  %v6608 = vld [vmem:[%s5 + $0x210] sm:$0xff]
  %v6609 = vld [vmem:[%s5 + $0x218] sm:$0xff]
  %v6610 = vld [vmem:[%s5 + $0x220] sm:$0xff]
  %v6611 = vld [vmem:[%s5 + $0x228] sm:$0xff]
  %v6612 = vld [vmem:[%s5 + $0x230] sm:$0xff]
  %v6613 = vld [vmem:[%s5 + $0x238] sm:$0xff]
  %v6614 = vld [vmem:[%s5 + $0x240] sm:$0xff]
  %v6615 = vld [vmem:[%s5 + $0x248] sm:$0xff]
  %v6616 = vld [vmem:[%s5 + $0x250] sm:$0xff]
  %v6617 = vld [vmem:[%s5 + $0x258] sm:$0xff]
  %v6618 = vld [vmem:[%s5 + $0x260] sm:$0xff]
  %v6619 = vld [vmem:[%s5 + $0x268] sm:$0xff]
  %v6620 = vld [vmem:[%s5 + $0x270] sm:$0xff]
  %v6621 = vld [vmem:[%s5 + $0x278] sm:$0xff]
  %v6622 = vld [vmem:[%s5 + $0x280] sm:$0xff]
  %v6623 = vld [vmem:[%s5 + $0x288] sm:$0xff]
  %v6624 = vld [vmem:[%s5 + $0x290] sm:$0xff]
  %v6625 = vld [vmem:[%s5 + $0x298] sm:$0xff]
  %v6626 = vld [vmem:[%s5 + $0x2a0] sm:$0xff]
  %v6627 = vld [vmem:[%s5 + $0x2a8] sm:$0xff]
  %v6628 = vld [vmem:[%s5 + $0x2b0] sm:$0xff]
  %v6629 = vld [vmem:[%s5 + $0x2b8] sm:$0xff]
  %v6630 = vld [vmem:[%s5 + $0x2c0] sm:$0xff]
  %v6631 = vld [vmem:[%s5 + $0x2c8] sm:$0xff]
  %v6632 = vld [vmem:[%s5 + $0x2d0] sm:$0xff]
  %v6633 = vld [vmem:[%s5 + $0x2d8] sm:$0xff]
  %v6634 = vld [vmem:[%s5 + $0x2e0] sm:$0xff]
  %v6635 = vld [vmem:[%s5 + $0x2e8] sm:$0xff]
  %v6636 = vld [vmem:[%s5 + $0x2f0] sm:$0xff]
  %v6637 = vld [vmem:[%s5 + $0x2f8] sm:$0xff]
  %v6638 = vld [vmem:[%s5 + $0x300] sm:$0xff]
  %v6639 = vld [vmem:[%s5 + $0x308] sm:$0xff]
  %v6640 = vld [vmem:[%s5 + $0x310] sm:$0xff]
  %v6641 = vld [vmem:[%s5 + $0x318] sm:$0xff]
  %v6642 = vld [vmem:[%s5 + $0x320] sm:$0xff]
  %v6643 = vld [vmem:[%s5 + $0x328] sm:$0xff]
  %v6644 = vld [vmem:[%s5 + $0x330] sm:$0xff]
  %v6645 = vld [vmem:[%s5 + $0x338] sm:$0xff]
  %v6646 = vld [vmem:[%s5 + $0x340] sm:$0xff]
  %v6647 = vld [vmem:[%s5 + $0x348] sm:$0xff]
  %v6648 = vld [vmem:[%s5 + $0x350] sm:$0xff]
  %v6649 = vld [vmem:[%s5 + $0x358] sm:$0xff]
  %v6650 = vld [vmem:[%s5 + $0x360] sm:$0xff]
  %v6651 = vld [vmem:[%s5 + $0x368] sm:$0xff]
  %v6652 = vld [vmem:[%s5 + $0x370] sm:$0xff]
  %v6653 = vld [vmem:[%s5 + $0x378] sm:$0xff]
  %v6654 = vld [vmem:[%s5 + $0x380] sm:$0xff]
  %v6655 = vld [vmem:[%s5 + $0x388] sm:$0xff]
  %v6656 = vld [vmem:[%s5 + $0x390] sm:$0xff]
  %v6657 = vld [vmem:[%s5 + $0x398] sm:$0xff]
  %v6658 = vld [vmem:[%s5 + $0x3a0] sm:$0xff]
  %v6659 = vld [vmem:[%s5 + $0x3a8] sm:$0xff]
  %v6660 = vld [vmem:[%s5 + $0x3b0] sm:$0xff]
  %v6661 = vld [vmem:[%s5 + $0x3b8] sm:$0xff]
  %v6662 = vld [vmem:[%s5 + $0x3c0] sm:$0xff]
  %v6663 = vld [vmem:[%s5 + $0x3c8] sm:$0xff]
  %v6664 = vld [vmem:[%s5 + $0x3d0] sm:$0xff]
  %v6665 = vld [vmem:[%s5 + $0x3d8] sm:$0xff]
  %v6666 = vld [vmem:[%s5 + $0x3e0] sm:$0xff]
  %v6667 = vld [vmem:[%s5 + $0x3e8] sm:$0xff]
  %v6668 = vld [vmem:[%s5 + $0x3f0] sm:$0xff]
  %v6669 = vld [vmem:[%s5 + $0x3f8] sm:$0xff]
  %v6670 = vld [vmem:[%s5 + $0x400] sm:$0xff]
  %v6671 = vld [vmem:[%s5 + $0x408] sm:$0xff]
  %v6672 = vld [vmem:[%s5 + $0x410] sm:$0xff]
  %v6673 = vld [vmem:[%s5 + $0x418] sm:$0xff]
  %v6674 = vld [vmem:[%s5 + $0x420] sm:$0xff]
  %v6675 = vld [vmem:[%s5 + $0x428] sm:$0xff]
  %v6676 = vld [vmem:[%s5 + $0x430] sm:$0xff]
  %v6677 = vld [vmem:[%s5 + $0x438] sm:$0xff]
  %v6678 = vld [vmem:[%s5 + $0x440] sm:$0xff]
  %v6679 = vld [vmem:[%s5 + $0x448] sm:$0xff]
  %v6680 = vld [vmem:[%s5 + $0x450] sm:$0xff]
  %v6681 = vld [vmem:[%s5 + $0x458] sm:$0xff]
  %v6682 = vld [vmem:[%s5 + $0x460] sm:$0xff]
  %v6683 = vld [vmem:[%s5 + $0x468] sm:$0xff]
  %v6684 = vld [vmem:[%s5 + $0x470] sm:$0xff]
  %v6685 = vld [vmem:[%s5 + $0x478] sm:$0xff]
  %v6686 = vld [vmem:[%s5 + $0x480] sm:$0xff]
  %v6687 = vld [vmem:[%s5 + $0x488] sm:$0xff]
  %v6688 = vld [vmem:[%s5 + $0x490] sm:$0xff]
  %v6689 = vld [vmem:[%s5 + $0x498] sm:$0xff]
  %v6690 = vld [vmem:[%s5 + $0x4a0] sm:$0xff]
  %v6691 = vld [vmem:[%s5 + $0x4a8] sm:$0xff]
  %v6692 = vld [vmem:[%s5 + $0x4b0] sm:$0xff]
  %v6693 = vld [vmem:[%s5 + $0x4b8] sm:$0xff]
  %v6694 = vld [vmem:[%s5 + $0x4c0] sm:$0xff]
  %v6695 = vld [vmem:[%s5 + $0x4c8] sm:$0xff]
  %v6696 = vld [vmem:[%s5 + $0x4d0] sm:$0xff]
  %v6697 = vld [vmem:[%s5 + $0x4d8] sm:$0xff]
  %v6698 = vld [vmem:[%s5 + $0x4e0] sm:$0xff]
  %v6699 = vld [vmem:[%s5 + $0x4e8] sm:$0xff]
  %v6700 = vld [vmem:[%s5 + $0x4f0] sm:$0xff]
  %v6701 = vld [vmem:[%s5 + $0x4f8] sm:$0xff]
  %v6702 = vld [vmem:[%s5 + $0x500] sm:$0xff]
  %v6703 = vld [vmem:[%s5 + $0x508] sm:$0xff]
  %v6704 = vld [vmem:[%s5 + $0x510] sm:$0xff]
  %v6705 = vld [vmem:[%s5 + $0x518] sm:$0xff]
  %v6706 = vld [vmem:[%s5 + $0x520] sm:$0xff]
  %v6707 = vld [vmem:[%s5 + $0x528] sm:$0xff]
  %v6708 = vld [vmem:[%s5 + $0x530] sm:$0xff]
  %v6709 = vld [vmem:[%s5 + $0x538] sm:$0xff]
  %v6710 = vld [vmem:[%s5 + $0x540] sm:$0xff]
  %v6711 = vld [vmem:[%s5 + $0x548] sm:$0xff]
  %v6712 = vld [vmem:[%s5 + $0x550] sm:$0xff]
  %v6713 = vld [vmem:[%s5 + $0x558] sm:$0xff]
  %v6714 = vld [vmem:[%s5 + $0x560] sm:$0xff]
  %v6715 = vld [vmem:[%s5 + $0x568] sm:$0xff]
  %v6716 = vld [vmem:[%s5 + $0x570] sm:$0xff]
  %v6717 = vld [vmem:[%s5 + $0x578] sm:$0xff]
  %v6718 = vld [vmem:[%s5 + $0x580] sm:$0xff]
  %v6719 = vld [vmem:[%s5 + $0x588] sm:$0xff]
  %v6720 = vld [vmem:[%s5 + $0x590] sm:$0xff]
  %v6721 = vld [vmem:[%s5 + $0x598] sm:$0xff]
  %v6722 = vld [vmem:[%s5 + $0x5a0] sm:$0xff]
  %v6723 = vld [vmem:[%s5 + $0x5a8] sm:$0xff]
  %v6724 = vld [vmem:[%s5 + $0x5b0] sm:$0xff]
  %v6725 = vld [vmem:[%s5 + $0x5b8] sm:$0xff]
  %v6726 = vld [vmem:[%s5 + $0x5c0] sm:$0xff]
  %v6727 = vld [vmem:[%s5 + $0x5c8] sm:$0xff]
  %v6728 = vld [vmem:[%s5 + $0x5d0] sm:$0xff]
  %v6729 = vld [vmem:[%s5 + $0x5d8] sm:$0xff]
  %v6730 = vld [vmem:[%s5 + $0x5e0] sm:$0xff]
  %v6731 = vld [vmem:[%s5 + $0x5e8] sm:$0xff]
  %v6732 = vld [vmem:[%s5 + $0x5f0] sm:$0xff]
  %v6733 = vld [vmem:[%s5 + $0x5f8] sm:$0xff]
  %v6734 = vld [vmem:[%s5 + $0x600] sm:$0xff]
  %v6735 = vld [vmem:[%s5 + $0x608] sm:$0xff]
  %v6736 = vld [vmem:[%s5 + $0x610] sm:$0xff]
  %v6737 = vld [vmem:[%s5 + $0x618] sm:$0xff]
  %v6738 = vld [vmem:[%s5 + $0x620] sm:$0xff]
  %v6739 = vld [vmem:[%s5 + $0x628] sm:$0xff]
  %v6740 = vld [vmem:[%s5 + $0x630] sm:$0xff]
  %v6741 = vld [vmem:[%s5 + $0x638] sm:$0xff]
  %v6742 = vld [vmem:[%s5 + $0x640] sm:$0xff]
  %v6743 = vld [vmem:[%s5 + $0x648] sm:$0xff]
  %v6744 = vld [vmem:[%s5 + $0x650] sm:$0xff]
  %v6745 = vld [vmem:[%s5 + $0x658] sm:$0xff]
  %v6746 = vld [vmem:[%s5 + $0x660] sm:$0xff]
  %v6747 = vld [vmem:[%s5 + $0x668] sm:$0xff]
  %v6748 = vld [vmem:[%s5 + $0x670] sm:$0xff]
  %v6749 = vld [vmem:[%s5 + $0x678] sm:$0xff]
  %v6750 = vld [vmem:[%s5 + $0x680] sm:$0xff]
  %v6751 = vld [vmem:[%s5 + $0x688] sm:$0xff]
  %v6752 = vld [vmem:[%s5 + $0x690] sm:$0xff]
  %v6753 = vld [vmem:[%s5 + $0x698] sm:$0xff]
  %v6754 = vld [vmem:[%s5 + $0x6a0] sm:$0xff]
  %v6755 = vld [vmem:[%s5 + $0x6a8] sm:$0xff]
  %v6756 = vld [vmem:[%s5 + $0x6b0] sm:$0xff]
  %v6757 = vld [vmem:[%s5 + $0x6b8] sm:$0xff]
  %v6758 = vld [vmem:[%s5 + $0x6c0] sm:$0xff]
  %v6759 = vld [vmem:[%s5 + $0x6c8] sm:$0xff]
  %v6760 = vld [vmem:[%s5 + $0x6d0] sm:$0xff]
  %v6761 = vld [vmem:[%s5 + $0x6d8] sm:$0xff]
  %v6762 = vld [vmem:[%s5 + $0x6e0] sm:$0xff]
  %v6763 = vld [vmem:[%s5 + $0x6e8] sm:$0xff]
  %v6764 = vld [vmem:[%s5 + $0x6f0] sm:$0xff]
  %v6765 = vld [vmem:[%s5 + $0x6f8] sm:$0xff]
  %6766 = vmatprep.subr.mxu0 %v6648
  %6767 = vmatpush1.msra.mxu0 %v6647
  %6768 = vmatprep.subr.mxu0 %v6641
  %6769 = vmatpush1.msra.mxu0 %v6640
  %6770 = vmatprep.subr.mxu0 %v6634
  %6771 = vmatpush1.msra.mxu0 %v6633
  %6772 = vmatprep.subr.mxu0 %v6627
  %6773 = vmatpush1.msra.mxu0 %v6626
  %6774 = vmatprep.subr.mxu0 %v6620
  %6775 = vmatpush1.msra.mxu0 %v6619
  %6776 = vmatprep.subr.mxu0 %v6613
  %6777 = vmatpush1.msra.mxu0 %v6612
  %6778 = vmatprep.subr.mxu0 %v6606
  %6779 = vmatpush1.msra.mxu0 %v6605
  %6780 = vmatprep.subr.mxu0 %v6599
  %6781 = vmatpush1.msra.mxu0 %v6598
  %6782 = vmatprep.subr.mxu0 %v6592
  %6783 = vmatpush1.msra.mxu0 %v6591
  %6784 = vmatprep.subr.mxu0 %v6585
  %6785 = vmatpush1.msra.mxu0 %v6584
  %6786 = vmatprep.subr.mxu0 %v6578
  %6787 = vmatpush1.msra.mxu0 %v6577
  %6788 = vmatprep.subr.mxu0 %v6571
  %6789 = vmatpush1.msra.mxu0 %v6570
  %6790 = vmatprep.subr.mxu0 %v6564
  %6791 = vmatpush1.msra.mxu0 %v6563
  %6792 = vmatprep.subr.mxu0 %v6557
  %6793 = vmatpush1.msra.mxu0 %v6556
  %6794 = vmatprep.subr.mxu0 %v6550
  %6795 = vmatpush1.msra.mxu0 %v6549
  %6796 = vmatprep.subr.mxu0 %v6543
  %6797 = vmatpush1.msra.mxu0 %v6542
  %6798 = vmatprep.subr.mxu0 %v6760
  %6799 = vmatpush2.msra.mxu0 %v6759
  %6800 = vmatprep.subr.mxu0 %v6753
  %6801 = vmatpush2.msra.mxu0 %v6752
  %6802 = vmatprep.subr.mxu0 %v6746
  %6803 = vmatpush2.msra.mxu0 %v6745
  %6804 = vmatprep.subr.mxu0 %v6739
  %6805 = vmatpush2.msra.mxu0 %v6738
  %6806 = vmatprep.subr.mxu0 %v6732
  %6807 = vmatpush2.msra.mxu0 %v6731
  %6808 = vmatprep.subr.mxu0 %v6725
  %6809 = vmatpush2.msra.mxu0 %v6724
  %6810 = vmatprep.subr.mxu0 %v6718
  %6811 = vmatpush2.msra.mxu0 %v6717
  %6812 = vmatprep.subr.mxu0 %v6711
  %6813 = vmatpush2.msra.mxu0 %v6710
  %6814 = vmatprep.subr.mxu0 %v6704
  %6815 = vmatpush2.msra.mxu0 %v6703
  %6816 = vmatprep.subr.mxu0 %v6697
  %6817 = vmatpush2.msra.mxu0 %v6696
  %6818 = vmatprep.subr.mxu0 %v6690
  %6819 = vmatpush2.msra.mxu0 %v6689
  %6820 = vmatprep.subr.mxu0 %v6683
  %6821 = vmatpush2.msra.mxu0 %v6682
  %6822 = vmatprep.subr.mxu0 %v6676
  %6823 = vmatpush2.msra.mxu0 %v6675
  %6824 = vmatprep.subr.mxu0 %v6669
  %6825 = vmatpush2.msra.mxu0 %v6668
  %6826 = vmatprep.subr.mxu0 %v6662
  %6827 = vmatpush2.msra.mxu0 %v6661
  %6828 = vmatprep.subr.mxu0 %v6655
  %6829 = vmatpush2.msra.mxu0 %v6654
  %6830 = vmatprep.mubr.f32.mxu0 %v6541
  %6831 = vmatmul.mubr.f32.gmra.mxu0 %v6539
  %v6832 = vpop.f32.mrf.mxu0
  %v6833 = vadd.f32 0.0, %v6832
  %v6834 = vpop.f32.mrf.mxu0
  %v6835 = vadd.f32 0.0, %v6834
  %6836 = vdwg.mxu0
  %6837 = vmatprep.subr.mxu0 %v6650
  %6838 = vmatpush1.msra.mxu0 %v6649
  %6839 = vmatprep.subr.mxu0 %v6643
  %6840 = vmatpush1.msra.mxu0 %v6642
  %6841 = vmatprep.subr.mxu0 %v6636
  %6842 = vmatpush1.msra.mxu0 %v6635
  %6843 = vmatprep.subr.mxu0 %v6629
  %6844 = vmatpush1.msra.mxu0 %v6628
  %6845 = vmatprep.subr.mxu0 %v6622
  %6846 = vmatpush1.msra.mxu0 %v6621
  %6847 = vmatprep.subr.mxu0 %v6615
  %6848 = vmatpush1.msra.mxu0 %v6614
  %6849 = vmatprep.subr.mxu0 %v6608
  %6850 = vmatpush1.msra.mxu0 %v6607
  %6851 = vmatprep.subr.mxu0 %v6601
  %6852 = vmatpush1.msra.mxu0 %v6600
  %6853 = vmatprep.subr.mxu0 %v6594
  %6854 = vmatpush1.msra.mxu0 %v6593
  %6855 = vmatprep.subr.mxu0 %v6587
  %6856 = vmatpush1.msra.mxu0 %v6586
  %6857 = vmatprep.subr.mxu0 %v6580
  %6858 = vmatpush1.msra.mxu0 %v6579
  %6859 = vmatprep.subr.mxu0 %v6573
  %6860 = vmatpush1.msra.mxu0 %v6572
  %6861 = vmatprep.subr.mxu0 %v6566
  %6862 = vmatpush1.msra.mxu0 %v6565
  %6863 = vmatprep.subr.mxu0 %v6559
  %6864 = vmatpush1.msra.mxu0 %v6558
  %6865 = vmatprep.subr.mxu0 %v6552
  %6866 = vmatpush1.msra.mxu0 %v6551
  %6867 = vmatprep.subr.mxu0 %v6545
  %6868 = vmatpush1.msra.mxu0 %v6544
  %6869 = vmatprep.subr.mxu0 %v6762
  %6870 = vmatpush2.msra.mxu0 %v6761
  %6871 = vmatprep.subr.mxu0 %v6755
  %6872 = vmatpush2.msra.mxu0 %v6754
  %6873 = vmatprep.subr.mxu0 %v6748
  %6874 = vmatpush2.msra.mxu0 %v6747
  %6875 = vmatprep.subr.mxu0 %v6741
  %6876 = vmatpush2.msra.mxu0 %v6740
  %6877 = vmatprep.subr.mxu0 %v6734
  %6878 = vmatpush2.msra.mxu0 %v6733
  %6879 = vmatprep.subr.mxu0 %v6727
  %6880 = vmatpush2.msra.mxu0 %v6726
  %6881 = vmatprep.subr.mxu0 %v6720
  %6882 = vmatpush2.msra.mxu0 %v6719
  %6883 = vmatprep.subr.mxu0 %v6713
  %6884 = vmatpush2.msra.mxu0 %v6712
  %6885 = vmatprep.subr.mxu0 %v6706
  %6886 = vmatpush2.msra.mxu0 %v6705
  %6887 = vmatprep.subr.mxu0 %v6699
  %6888 = vmatpush2.msra.mxu0 %v6698
  %6889 = vmatprep.subr.mxu0 %v6692
  %6890 = vmatpush2.msra.mxu0 %v6691
  %6891 = vmatprep.subr.mxu0 %v6685
  %6892 = vmatpush2.msra.mxu0 %v6684
  %6893 = vmatprep.subr.mxu0 %v6678
  %6894 = vmatpush2.msra.mxu0 %v6677
  %6895 = vmatprep.subr.mxu0 %v6671
  %6896 = vmatpush2.msra.mxu0 %v6670
  %6897 = vmatprep.subr.mxu0 %v6664
  %6898 = vmatpush2.msra.mxu0 %v6663
  %6899 = vmatprep.subr.mxu0 %v6657
  %6900 = vmatpush2.msra.mxu0 %v6656
  %6901 = vmatprep.mubr.f32.mxu0 %v6541
  %6902 = vmatmul.mubr.f32.gmra.mxu0 %v6539
  %v6903 = vpop.f32.mrf.mxu0
  %v6904 = vadd.f32 0.0, %v6903
  %v6905 = vpop.f32.mrf.mxu0
  %v6906 = vadd.f32 0.0, %v6905
  %6907 = vdwg.mxu0
  %6908 = vmatprep.subr.mxu0 %v6652
  %6909 = vmatpush1.msra.mxu0 %v6651
  %6910 = vmatprep.subr.mxu0 %v6645
  %6911 = vmatpush1.msra.mxu0 %v6644
  %6912 = vmatprep.subr.mxu0 %v6638
  %6913 = vmatpush1.msra.mxu0 %v6637
  %6914 = vmatprep.subr.mxu0 %v6631
  %6915 = vmatpush1.msra.mxu0 %v6630
  %6916 = vmatprep.subr.mxu0 %v6624
  %6917 = vmatpush1.msra.mxu0 %v6623
  %6918 = vmatprep.subr.mxu0 %v6617
  %6919 = vmatpush1.msra.mxu0 %v6616
  %6920 = vmatprep.subr.mxu0 %v6610
  %6921 = vmatpush1.msra.mxu0 %v6609
  %6922 = vmatprep.subr.mxu0 %v6603
  %6923 = vmatpush1.msra.mxu0 %v6602
  %6924 = vmatprep.subr.mxu0 %v6596
  %6925 = vmatpush1.msra.mxu0 %v6595
  %6926 = vmatprep.subr.mxu0 %v6589
  %6927 = vmatpush1.msra.mxu0 %v6588
  %6928 = vmatprep.subr.mxu0 %v6582
  %6929 = vmatpush1.msra.mxu0 %v6581
  %6930 = vmatprep.subr.mxu0 %v6575
  %6931 = vmatpush1.msra.mxu0 %v6574
  %6932 = vmatprep.subr.mxu0 %v6568
  %6933 = vmatpush1.msra.mxu0 %v6567
  %6934 = vmatprep.subr.mxu0 %v6561
  %6935 = vmatpush1.msra.mxu0 %v6560
  %6936 = vmatprep.subr.mxu0 %v6554
  %6937 = vmatpush1.msra.mxu0 %v6553
  %6938 = vmatprep.subr.mxu0 %v6547
  %6939 = vmatpush1.msra.mxu0 %v6546
  %6940 = vmatprep.subr.mxu0 %v6764
  %6941 = vmatpush2.msra.mxu0 %v6763
  %6942 = vmatprep.subr.mxu0 %v6757
  %6943 = vmatpush2.msra.mxu0 %v6756
  %6944 = vmatprep.subr.mxu0 %v6750
  %6945 = vmatpush2.msra.mxu0 %v6749
  %6946 = vmatprep.subr.mxu0 %v6743
  %6947 = vmatpush2.msra.mxu0 %v6742
  %6948 = vmatprep.subr.mxu0 %v6736
  %6949 = vmatpush2.msra.mxu0 %v6735
  %6950 = vmatprep.subr.mxu0 %v6729
  %6951 = vmatpush2.msra.mxu0 %v6728
  %6952 = vmatprep.subr.mxu0 %v6722
  %6953 = vmatpush2.msra.mxu0 %v6721
  %6954 = vmatprep.subr.mxu0 %v6715
  %6955 = vmatpush2.msra.mxu0 %v6714
  %6956 = vmatprep.subr.mxu0 %v6708
  %6957 = vmatpush2.msra.mxu0 %v6707
  %6958 = vmatprep.subr.mxu0 %v6701
  %6959 = vmatpush2.msra.mxu0 %v6700
  %6960 = vmatprep.subr.mxu0 %v6694
  %6961 = vmatpush2.msra.mxu0 %v6693
  %6962 = vmatprep.subr.mxu0 %v6687
  %6963 = vmatpush2.msra.mxu0 %v6686
  %6964 = vmatprep.subr.mxu0 %v6680
  %6965 = vmatpush2.msra.mxu0 %v6679
  %6966 = vmatprep.subr.mxu0 %v6673
  %6967 = vmatpush2.msra.mxu0 %v6672
  %6968 = vmatprep.subr.mxu0 %v6666
  %6969 = vmatpush2.msra.mxu0 %v6665
  %6970 = vmatprep.subr.mxu0 %v6659
  %6971 = vmatpush2.msra.mxu0 %v6658
  %6972 = vmatprep.mubr.f32.mxu0 %v6541
  %6973 = vmatmul.mubr.f32.gmra.mxu0 %v6539
  %v6974 = vpop.f32.mrf.mxu0
  %v6975 = vadd.f32 0.0, %v6974
  %v6976 = vpop.f32.mrf.mxu0
  %v6977 = vadd.f32 0.0, %v6976
  %6978 = vdwg.mxu0
  %6979 = vmatprep.subr.mxu0 0.0
  %6980 = vmatpush1.msra.mxu0 %v6653
  %6981 = vmatprep.subr.mxu0 0.0
  %6982 = vmatpush1.msra.mxu0 %v6646
  %6983 = vmatprep.subr.mxu0 0.0
  %6984 = vmatpush1.msra.mxu0 %v6639
  %6985 = vmatprep.subr.mxu0 0.0
  %6986 = vmatpush1.msra.mxu0 %v6632
  %6987 = vmatprep.subr.mxu0 0.0
  %6988 = vmatpush1.msra.mxu0 %v6625
  %6989 = vmatprep.subr.mxu0 0.0
  %6990 = vmatpush1.msra.mxu0 %v6618
  %6991 = vmatprep.subr.mxu0 0.0
  %6992 = vmatpush1.msra.mxu0 %v6611
  %6993 = vmatprep.subr.mxu0 0.0
  %6994 = vmatpush1.msra.mxu0 %v6604
  %6995 = vmatprep.subr.mxu0 0.0
  %6996 = vmatpush1.msra.mxu0 %v6597
  %6997 = vmatprep.subr.mxu0 0.0
  %6998 = vmatpush1.msra.mxu0 %v6590
  %6999 = vmatprep.subr.mxu0 0.0
  %7000 = vmatpush1.msra.mxu0 %v6583
  %7001 = vmatprep.subr.mxu0 0.0
  %7002 = vmatpush1.msra.mxu0 %v6576
  %7003 = vmatprep.subr.mxu0 0.0
  %7004 = vmatpush1.msra.mxu0 %v6569
  %7005 = vmatprep.subr.mxu0 0.0
  %7006 = vmatpush1.msra.mxu0 %v6562
  %7007 = vmatprep.subr.mxu0 0.0
  %7008 = vmatpush1.msra.mxu0 %v6555
  %7009 = vmatprep.subr.mxu0 0.0
  %7010 = vmatpush1.msra.mxu0 %v6548
  %7011 = vmatprep.subr.mxu0 0.0
  %7012 = vmatpush2.msra.mxu0 %v6765
  %7013 = vmatprep.subr.mxu0 0.0
  %7014 = vmatpush2.msra.mxu0 %v6758
  %7015 = vmatprep.subr.mxu0 0.0
  %7016 = vmatpush2.msra.mxu0 %v6751
  %7017 = vmatprep.subr.mxu0 0.0
  %7018 = vmatpush2.msra.mxu0 %v6744
  %7019 = vmatprep.subr.mxu0 0.0
  %7020 = vmatpush2.msra.mxu0 %v6737
  %7021 = vmatprep.subr.mxu0 0.0
  %7022 = vmatpush2.msra.mxu0 %v6730
  %7023 = vmatprep.subr.mxu0 0.0
  %7024 = vmatpush2.msra.mxu0 %v6723
  %7025 = vmatprep.subr.mxu0 0.0
  %7026 = vmatpush2.msra.mxu0 %v6716
  %7027 = vmatprep.subr.mxu0 0.0
  %7028 = vmatpush2.msra.mxu0 %v6709
  %7029 = vmatprep.subr.mxu0 0.0
  %7030 = vmatpush2.msra.mxu0 %v6702
  %7031 = vmatprep.subr.mxu0 0.0
  %7032 = vmatpush2.msra.mxu0 %v6695
  %7033 = vmatprep.subr.mxu0 0.0
  %7034 = vmatpush2.msra.mxu0 %v6688
  %7035 = vmatprep.subr.mxu0 0.0
  %7036 = vmatpush2.msra.mxu0 %v6681
  %7037 = vmatprep.subr.mxu0 0.0
  %7038 = vmatpush2.msra.mxu0 %v6674
  %7039 = vmatprep.subr.mxu0 0.0
  %7040 = vmatpush2.msra.mxu0 %v6667
  %7041 = vmatprep.subr.mxu0 0.0
  %7042 = vmatpush2.msra.mxu0 %v6660
  %7043 = vmatprep.mubr.f32.mxu0 %v6541
  %7044 = vmatmul.mubr.f32.gmra.mxu0 %v6539
  %v7045 = vpop.f32.mrf.mxu0
  %v7046 = vadd.f32 0.0, %v7045
  %v7047 = vpop.f32.mrf.mxu0
  %7048 = vdwg.mxu0
  %v7049 = vadd.f32 %v23, %v30
  %v7050 = vadd.f32 %v7049, %v37
  %v7051 = vadd.f32 %v7050, %v44
  %v7052 = vadd.f32 %v7051, %v51
  %v7053 = vadd.f32 %v7052, %v58
  %v7054 = vadd.f32 %v7053, %v65
  %v7055 = vadd.f32 %v7054, %v72
  %v7056 = vadd.f32 %v7055, %v79
  %v7057 = vadd.f32 %v7056, %v86
  %v7058 = vadd.f32 %v7057, %v93
  %v7059 = vadd.f32 %v7058, %v100
  %v7060 = vadd.f32 %v7059, %v107
  %v7061 = vadd.f32 %v7060, %v114
  %v7062 = vadd.f32 %v7061, %v121
  %v7063 = vadd.f32 %v7062, %v128
  %v7064 = vadd.f32 %v7063, %v135
  %v7065 = vadd.f32 %v7064, %v142
  %v7066 = vadd.f32 %v7065, %v149
  %v7067 = vadd.f32 %v7066, %v156
  %v7068 = vadd.f32 %v7067, %v163
  %v7069 = vadd.f32 %v7068, %v170
  %v7070 = vadd.f32 %v7069, %v177
  %v7071 = vadd.f32 %v7070, %v184
  %v7072 = vadd.f32 %v7071, %v191
  %v7073 = vadd.f32 %v7072, %v198
  %v7074 = vadd.f32 %v7073, %v205
  %v7075 = vadd.f32 %v7074, %v212
  %v7076 = vadd.f32 %v7075, %v219
  %v7077 = vadd.f32 %v7076, %v226
  %v7078 = vadd.f32 %v7077, %v233
  %v7079 = vadd.f32 %v7078, %v240
  %v7080 = vrot.slane %v7079, 4
  %v7081 = vadd.f32 %v7079, %v7080
  %v7082 = vrot.slane %v7081, 2
  %v7083 = vadd.f32 %v7081, %v7082
  %v7084 = vrot.slane %v7083, 1
  %v7085 = vadd.f32 %v7083, %v7084
  %v7086 = vadd.f32 %v24, %v31
  %v7087 = vadd.f32 %v7086, %v38
  %v7088 = vadd.f32 %v7087, %v45
  %v7089 = vadd.f32 %v7088, %v52
  %v7090 = vadd.f32 %v7089, %v59
  %v7091 = vadd.f32 %v7090, %v66
  %v7092 = vadd.f32 %v7091, %v73
  %v7093 = vadd.f32 %v7092, %v80
  %v7094 = vadd.f32 %v7093, %v87
  %v7095 = vadd.f32 %v7094, %v94
  %v7096 = vadd.f32 %v7095, %v101
  %v7097 = vadd.f32 %v7096, %v108
  %v7098 = vadd.f32 %v7097, %v115
  %v7099 = vadd.f32 %v7098, %v122
  %v7100 = vadd.f32 %v7099, %v129
  %v7101 = vadd.f32 %v7100, %v136
  %v7102 = vadd.f32 %v7101, %v143
  %v7103 = vadd.f32 %v7102, %v150
  %v7104 = vadd.f32 %v7103, %v157
  %v7105 = vadd.f32 %v7104, %v164
  %v7106 = vadd.f32 %v7105, %v171
  %v7107 = vadd.f32 %v7106, %v178
  %v7108 = vadd.f32 %v7107, %v185
  %v7109 = vadd.f32 %v7108, %v192
  %v7110 = vadd.f32 %v7109, %v199
  %v7111 = vadd.f32 %v7110, %v206
  %v7112 = vadd.f32 %v7111, %v213
  %v7113 = vadd.f32 %v7112, %v220
  %v7114 = vadd.f32 %v7113, %v227
  %v7115 = vadd.f32 %v7114, %v234
  %v7116 = vadd.f32 %v7115, %v241
  %v7117 = vrot.slane %v7116, 4
  %v7118 = vadd.f32 %v7116, %v7117
  %v7119 = vrot.slane %v7118, 2
  %v7120 = vadd.f32 %v7118, %v7119
  %v7121 = vrot.slane %v7120, 1
  %v7122 = vadd.f32 %v7120, %v7121
  %v7123 = vadd.f32 %v25, %v32
  %v7124 = vadd.f32 %v7123, %v39
  %v7125 = vadd.f32 %v7124, %v46
  %v7126 = vadd.f32 %v7125, %v53
  %v7127 = vadd.f32 %v7126, %v60
  %v7128 = vadd.f32 %v7127, %v67
  %v7129 = vadd.f32 %v7128, %v74
  %v7130 = vadd.f32 %v7129, %v81
  %v7131 = vadd.f32 %v7130, %v88
  %v7132 = vadd.f32 %v7131, %v95
  %v7133 = vadd.f32 %v7132, %v102
  %v7134 = vadd.f32 %v7133, %v109
  %v7135 = vadd.f32 %v7134, %v116
  %v7136 = vadd.f32 %v7135, %v123
  %v7137 = vadd.f32 %v7136, %v130
  %v7138 = vadd.f32 %v7137, %v137
  %v7139 = vadd.f32 %v7138, %v144
  %v7140 = vadd.f32 %v7139, %v151
  %v7141 = vadd.f32 %v7140, %v158
  %v7142 = vadd.f32 %v7141, %v165
  %v7143 = vadd.f32 %v7142, %v172
  %v7144 = vadd.f32 %v7143, %v179
  %v7145 = vadd.f32 %v7144, %v186
  %v7146 = vadd.f32 %v7145, %v193
  %v7147 = vadd.f32 %v7146, %v200
  %v7148 = vadd.f32 %v7147, %v207
  %v7149 = vadd.f32 %v7148, %v214
  %v7150 = vadd.f32 %v7149, %v221
  %v7151 = vadd.f32 %v7150, %v228
  %v7152 = vadd.f32 %v7151, %v235
  %v7153 = vadd.f32 %v7152, %v242
  %v7154 = vrot.slane %v7153, 4
  %v7155 = vadd.f32 %v7153, %v7154
  %v7156 = vrot.slane %v7155, 2
  %v7157 = vadd.f32 %v7155, %v7156
  %v7158 = vrot.slane %v7157, 1
  %v7159 = vadd.f32 %v7157, %v7158
  %v7160 = vadd.f32 %v26, %v33
  %v7161 = vadd.f32 %v7160, %v40
  %v7162 = vadd.f32 %v7161, %v47
  %v7163 = vadd.f32 %v7162, %v54
  %v7164 = vadd.f32 %v7163, %v61
  %v7165 = vadd.f32 %v7164, %v68
  %v7166 = vadd.f32 %v7165, %v75
  %v7167 = vadd.f32 %v7166, %v82
  %v7168 = vadd.f32 %v7167, %v89
  %v7169 = vadd.f32 %v7168, %v96
  %v7170 = vadd.f32 %v7169, %v103
  %v7171 = vadd.f32 %v7170, %v110
  %v7172 = vadd.f32 %v7171, %v117
  %v7173 = vadd.f32 %v7172, %v124
  %v7174 = vadd.f32 %v7173, %v131
  %v7175 = vadd.f32 %v7174, %v138
  %v7176 = vadd.f32 %v7175, %v145
  %v7177 = vadd.f32 %v7176, %v152
  %v7178 = vadd.f32 %v7177, %v159
  %v7179 = vadd.f32 %v7178, %v166
  %v7180 = vadd.f32 %v7179, %v173
  %v7181 = vadd.f32 %v7180, %v180
  %v7182 = vadd.f32 %v7181, %v187
  %v7183 = vadd.f32 %v7182, %v194
  %v7184 = vadd.f32 %v7183, %v201
  %v7185 = vadd.f32 %v7184, %v208
  %v7186 = vadd.f32 %v7185, %v215
  %v7187 = vadd.f32 %v7186, %v222
  %v7188 = vadd.f32 %v7187, %v229
  %v7189 = vadd.f32 %v7188, %v236
  %v7190 = vadd.f32 %v7189, %v243
  %v7191 = vrot.slane %v7190, 4
  %v7192 = vadd.f32 %v7190, %v7191
  %v7193 = vrot.slane %v7192, 2
  %v7194 = vadd.f32 %v7192, %v7193
  %v7195 = vrot.slane %v7194, 1
  %v7196 = vadd.f32 %v7194, %v7195
  %v7197 = vadd.f32 %v27, %v34
  %v7198 = vadd.f32 %v7197, %v41
  %v7199 = vadd.f32 %v7198, %v48
  %v7200 = vadd.f32 %v7199, %v55
  %v7201 = vadd.f32 %v7200, %v62
  %v7202 = vadd.f32 %v7201, %v69
  %v7203 = vadd.f32 %v7202, %v76
  %v7204 = vadd.f32 %v7203, %v83
  %v7205 = vadd.f32 %v7204, %v90
  %v7206 = vadd.f32 %v7205, %v97
  %v7207 = vadd.f32 %v7206, %v104
  %v7208 = vadd.f32 %v7207, %v111
  %v7209 = vadd.f32 %v7208, %v118
  %v7210 = vadd.f32 %v7209, %v125
  %v7211 = vadd.f32 %v7210, %v132
  %v7212 = vadd.f32 %v7211, %v139
  %v7213 = vadd.f32 %v7212, %v146
  %v7214 = vadd.f32 %v7213, %v153
  %v7215 = vadd.f32 %v7214, %v160
  %v7216 = vadd.f32 %v7215, %v167
  %v7217 = vadd.f32 %v7216, %v174
  %v7218 = vadd.f32 %v7217, %v181
  %v7219 = vadd.f32 %v7218, %v188
  %v7220 = vadd.f32 %v7219, %v195
  %v7221 = vadd.f32 %v7220, %v202
  %v7222 = vadd.f32 %v7221, %v209
  %v7223 = vadd.f32 %v7222, %v216
  %v7224 = vadd.f32 %v7223, %v223
  %v7225 = vadd.f32 %v7224, %v230
  %v7226 = vadd.f32 %v7225, %v237
  %v7227 = vadd.f32 %v7226, %v244
  %v7228 = vrot.slane %v7227, 4
  %v7229 = vadd.f32 %v7227, %v7228
  %v7230 = vrot.slane %v7229, 2
  %v7231 = vadd.f32 %v7229, %v7230
  %v7232 = vrot.slane %v7231, 1
  %v7233 = vadd.f32 %v7231, %v7232
  %v7234 = vadd.f32 %v28, %v35
  %v7235 = vadd.f32 %v7234, %v42
  %v7236 = vadd.f32 %v7235, %v49
  %v7237 = vadd.f32 %v7236, %v56
  %v7238 = vadd.f32 %v7237, %v63
  %v7239 = vadd.f32 %v7238, %v70
  %v7240 = vadd.f32 %v7239, %v77
  %v7241 = vadd.f32 %v7240, %v84
  %v7242 = vadd.f32 %v7241, %v91
  %v7243 = vadd.f32 %v7242, %v98
  %v7244 = vadd.f32 %v7243, %v105
  %v7245 = vadd.f32 %v7244, %v112
  %v7246 = vadd.f32 %v7245, %v119
  %v7247 = vadd.f32 %v7246, %v126
  %v7248 = vadd.f32 %v7247, %v133
  %v7249 = vadd.f32 %v7248, %v140
  %v7250 = vadd.f32 %v7249, %v147
  %v7251 = vadd.f32 %v7250, %v154
  %v7252 = vadd.f32 %v7251, %v161
  %v7253 = vadd.f32 %v7252, %v168
  %v7254 = vadd.f32 %v7253, %v175
  %v7255 = vadd.f32 %v7254, %v182
  %v7256 = vadd.f32 %v7255, %v189
  %v7257 = vadd.f32 %v7256, %v196
  %v7258 = vadd.f32 %v7257, %v203
  %v7259 = vadd.f32 %v7258, %v210
  %v7260 = vadd.f32 %v7259, %v217
  %v7261 = vadd.f32 %v7260, %v224
  %v7262 = vadd.f32 %v7261, %v231
  %v7263 = vadd.f32 %v7262, %v238
  %v7264 = vadd.f32 %v7263, %v245
  %v7265 = vrot.slane %v7264, 4
  %v7266 = vadd.f32 %v7264, %v7265
  %v7267 = vrot.slane %v7266, 2
  %v7268 = vadd.f32 %v7266, %v7267
  %v7269 = vrot.slane %v7268, 1
  %v7270 = vadd.f32 %v7268, %v7269
  %v7271 = vadd.f32 %v1821, %v1830
  %v7272 = vadd.f32 %v7271, %v1839
  %v7273 = vadd.f32 %v7272, %v1848
  %v7274 = vadd.f32 %v7273, %v1857
  %v7275 = vadd.f32 %v7274, %v1866
  %v7276 = vadd.f32 %v7275, %v1875
  %v7277 = vadd.f32 %v7276, %v1884
  %v7278 = vadd.f32 %v7277, %v1893
  %v7279 = vadd.f32 %v7278, %v1902
  %v7280 = vadd.f32 %v7279, %v1911
  %v7281 = vadd.f32 %v7280, %v1920
  %v7282 = vadd.f32 %v7281, %v1929
  %v7283 = vadd.f32 %v7282, %v1938
  %v7284 = vadd.f32 %v7283, %v1947
  %v7285 = vadd.f32 %v7284, %v1956
  %v7286 = vadd.f32 %v7285, %v1965
  %v7287 = vadd.f32 %v7286, %v1974
  %v7288 = vadd.f32 %v7287, %v1983
  %v7289 = vadd.f32 %v7288, %v1992
  %v7290 = vadd.f32 %v7289, %v2001
  %v7291 = vadd.f32 %v7290, %v2010
  %v7292 = vadd.f32 %v7291, %v2019
  %v7293 = vadd.f32 %v7292, %v2028
  %v7294 = vadd.f32 %v7293, %v2037
  %v7295 = vadd.f32 %v7294, %v2046
  %v7296 = vadd.f32 %v7295, %v2055
  %v7297 = vadd.f32 %v7296, %v2064
  %v7298 = vadd.f32 %v7297, %v2073
  %v7299 = vadd.f32 %v7298, %v2082
  %v7300 = vadd.f32 %v7299, %v2091
  %v7301 = vadd.f32 %v7300, %v2100
  %v7302 = vrot.slane %v7301, 4
  %v7303 = vadd.f32 %v7301, %v7302
  %v7304 = vrot.slane %v7303, 2
  %v7305 = vadd.f32 %v7303, %v7304
  %v7306 = vrot.slane %v7305, 1
  %v7307 = vadd.f32 %v7305, %v7306
  %v7308 = vadd.f32 %v247, %v254
  %v7309 = vadd.f32 %v7308, %v261
  %v7310 = vadd.f32 %v7309, %v268
  %v7311 = vadd.f32 %v7310, %v275
  %v7312 = vadd.f32 %v7311, %v282
  %v7313 = vadd.f32 %v7312, %v289
  %v7314 = vadd.f32 %v7313, %v296
  %v7315 = vadd.f32 %v7314, %v303
  %v7316 = vadd.f32 %v7315, %v310
  %v7317 = vadd.f32 %v7316, %v317
  %v7318 = vadd.f32 %v7317, %v324
  %v7319 = vadd.f32 %v7318, %v331
  %v7320 = vadd.f32 %v7319, %v338
  %v7321 = vadd.f32 %v7320, %v345
  %v7322 = vadd.f32 %v7321, %v352
  %v7323 = vadd.f32 %v7322, %v359
  %v7324 = vadd.f32 %v7323, %v366
  %v7325 = vadd.f32 %v7324, %v373
  %v7326 = vadd.f32 %v7325, %v380
  %v7327 = vadd.f32 %v7326, %v387
  %v7328 = vadd.f32 %v7327, %v394
  %v7329 = vadd.f32 %v7328, %v401
  %v7330 = vadd.f32 %v7329, %v408
  %v7331 = vadd.f32 %v7330, %v415
  %v7332 = vadd.f32 %v7331, %v422
  %v7333 = vadd.f32 %v7332, %v429
  %v7334 = vadd.f32 %v7333, %v436
  %v7335 = vadd.f32 %v7334, %v443
  %v7336 = vadd.f32 %v7335, %v450
  %v7337 = vadd.f32 %v7336, %v457
  %v7338 = vadd.f32 %v7337, %v464
  %v7339 = vrot.slane %v7338, 4
  %v7340 = vadd.f32 %v7338, %v7339
  %v7341 = vrot.slane %v7340, 2
  %v7342 = vadd.f32 %v7340, %v7341
  %v7343 = vrot.slane %v7342, 1
  %v7344 = vadd.f32 %v7342, %v7343
  %v7345 = vadd.f32 %v248, %v255
  %v7346 = vadd.f32 %v7345, %v262
  %v7347 = vadd.f32 %v7346, %v269
  %v7348 = vadd.f32 %v7347, %v276
  %v7349 = vadd.f32 %v7348, %v283
  %v7350 = vadd.f32 %v7349, %v290
  %v7351 = vadd.f32 %v7350, %v297
  %v7352 = vadd.f32 %v7351, %v304
  %v7353 = vadd.f32 %v7352, %v311
  %v7354 = vadd.f32 %v7353, %v318
  %v7355 = vadd.f32 %v7354, %v325
  %v7356 = vadd.f32 %v7355, %v332
  %v7357 = vadd.f32 %v7356, %v339
  %v7358 = vadd.f32 %v7357, %v346
  %v7359 = vadd.f32 %v7358, %v353
  %v7360 = vadd.f32 %v7359, %v360
  %v7361 = vadd.f32 %v7360, %v367
  %v7362 = vadd.f32 %v7361, %v374
  %v7363 = vadd.f32 %v7362, %v381
  %v7364 = vadd.f32 %v7363, %v388
  %v7365 = vadd.f32 %v7364, %v395
  %v7366 = vadd.f32 %v7365, %v402
  %v7367 = vadd.f32 %v7366, %v409
  %v7368 = vadd.f32 %v7367, %v416
  %v7369 = vadd.f32 %v7368, %v423
  %v7370 = vadd.f32 %v7369, %v430
  %v7371 = vadd.f32 %v7370, %v437
  %v7372 = vadd.f32 %v7371, %v444
  %v7373 = vadd.f32 %v7372, %v451
  %v7374 = vadd.f32 %v7373, %v458
  %v7375 = vadd.f32 %v7374, %v465
  %v7376 = vrot.slane %v7375, 4
  %v7377 = vadd.f32 %v7375, %v7376
  %v7378 = vrot.slane %v7377, 2
  %v7379 = vadd.f32 %v7377, %v7378
  %v7380 = vrot.slane %v7379, 1
  %v7381 = vadd.f32 %v7379, %v7380
  %v7382 = vadd.f32 %v249, %v256
  %v7383 = vadd.f32 %v7382, %v263
  %v7384 = vadd.f32 %v7383, %v270
  %v7385 = vadd.f32 %v7384, %v277
  %v7386 = vadd.f32 %v7385, %v284
  %v7387 = vadd.f32 %v7386, %v291
  %v7388 = vadd.f32 %v7387, %v298
  %v7389 = vadd.f32 %v7388, %v305
  %v7390 = vadd.f32 %v7389, %v312
  %v7391 = vadd.f32 %v7390, %v319
  %v7392 = vadd.f32 %v7391, %v326
  %v7393 = vadd.f32 %v7392, %v333
  %v7394 = vadd.f32 %v7393, %v340
  %v7395 = vadd.f32 %v7394, %v347
  %v7396 = vadd.f32 %v7395, %v354
  %v7397 = vadd.f32 %v7396, %v361
  %v7398 = vadd.f32 %v7397, %v368
  %v7399 = vadd.f32 %v7398, %v375
  %v7400 = vadd.f32 %v7399, %v382
  %v7401 = vadd.f32 %v7400, %v389
  %v7402 = vadd.f32 %v7401, %v396
  %v7403 = vadd.f32 %v7402, %v403
  %v7404 = vadd.f32 %v7403, %v410
  %v7405 = vadd.f32 %v7404, %v417
  %v7406 = vadd.f32 %v7405, %v424
  %v7407 = vadd.f32 %v7406, %v431
  %v7408 = vadd.f32 %v7407, %v438
  %v7409 = vadd.f32 %v7408, %v445
  %v7410 = vadd.f32 %v7409, %v452
  %v7411 = vadd.f32 %v7410, %v459
  %v7412 = vadd.f32 %v7411, %v466
  %v7413 = vrot.slane %v7412, 4
  %v7414 = vadd.f32 %v7412, %v7413
  %v7415 = vrot.slane %v7414, 2
  %v7416 = vadd.f32 %v7414, %v7415
  %v7417 = vrot.slane %v7416, 1
  %v7418 = vadd.f32 %v7416, %v7417
  %v7419 = vadd.f32 %v250, %v257
  %v7420 = vadd.f32 %v7419, %v264
  %v7421 = vadd.f32 %v7420, %v271
  %v7422 = vadd.f32 %v7421, %v278
  %v7423 = vadd.f32 %v7422, %v285
  %v7424 = vadd.f32 %v7423, %v292
  %v7425 = vadd.f32 %v7424, %v299
  %v7426 = vadd.f32 %v7425, %v306
  %v7427 = vadd.f32 %v7426, %v313
  %v7428 = vadd.f32 %v7427, %v320
  %v7429 = vadd.f32 %v7428, %v327
  %v7430 = vadd.f32 %v7429, %v334
  %v7431 = vadd.f32 %v7430, %v341
  %v7432 = vadd.f32 %v7431, %v348
  %v7433 = vadd.f32 %v7432, %v355
  %v7434 = vadd.f32 %v7433, %v362
  %v7435 = vadd.f32 %v7434, %v369
  %v7436 = vadd.f32 %v7435, %v376
  %v7437 = vadd.f32 %v7436, %v383
  %v7438 = vadd.f32 %v7437, %v390
  %v7439 = vadd.f32 %v7438, %v397
  %v7440 = vadd.f32 %v7439, %v404
  %v7441 = vadd.f32 %v7440, %v411
  %v7442 = vadd.f32 %v7441, %v418
  %v7443 = vadd.f32 %v7442, %v425
  %v7444 = vadd.f32 %v7443, %v432
  %v7445 = vadd.f32 %v7444, %v439
  %v7446 = vadd.f32 %v7445, %v446
  %v7447 = vadd.f32 %v7446, %v453
  %v7448 = vadd.f32 %v7447, %v460
  %v7449 = vadd.f32 %v7448, %v467
  %v7450 = vrot.slane %v7449, 4
  %v7451 = vadd.f32 %v7449, %v7450
  %v7452 = vrot.slane %v7451, 2
  %v7453 = vadd.f32 %v7451, %v7452
  %v7454 = vrot.slane %v7453, 1
  %v7455 = vadd.f32 %v7453, %v7454
  %v7456 = vadd.f32 %v251, %v258
  %v7457 = vadd.f32 %v7456, %v265
  %v7458 = vadd.f32 %v7457, %v272
  %v7459 = vadd.f32 %v7458, %v279
  %v7460 = vadd.f32 %v7459, %v286
  %v7461 = vadd.f32 %v7460, %v293
  %v7462 = vadd.f32 %v7461, %v300
  %v7463 = vadd.f32 %v7462, %v307
  %v7464 = vadd.f32 %v7463, %v314
  %v7465 = vadd.f32 %v7464, %v321
  %v7466 = vadd.f32 %v7465, %v328
  %v7467 = vadd.f32 %v7466, %v335
  %v7468 = vadd.f32 %v7467, %v342
  %v7469 = vadd.f32 %v7468, %v349
  %v7470 = vadd.f32 %v7469, %v356
  %v7471 = vadd.f32 %v7470, %v363
  %v7472 = vadd.f32 %v7471, %v370
  %v7473 = vadd.f32 %v7472, %v377
  %v7474 = vadd.f32 %v7473, %v384
  %v7475 = vadd.f32 %v7474, %v391
  %v7476 = vadd.f32 %v7475, %v398
  %v7477 = vadd.f32 %v7476, %v405
  %v7478 = vadd.f32 %v7477, %v412
  %v7479 = vadd.f32 %v7478, %v419
  %v7480 = vadd.f32 %v7479, %v426
  %v7481 = vadd.f32 %v7480, %v433
  %v7482 = vadd.f32 %v7481, %v440
  %v7483 = vadd.f32 %v7482, %v447
  %v7484 = vadd.f32 %v7483, %v454
  %v7485 = vadd.f32 %v7484, %v461
  %v7486 = vadd.f32 %v7485, %v468
  %v7487 = vrot.slane %v7486, 4
  %v7488 = vadd.f32 %v7486, %v7487
  %v7489 = vrot.slane %v7488, 2
  %v7490 = vadd.f32 %v7488, %v7489
  %v7491 = vrot.slane %v7490, 1
  %v7492 = vadd.f32 %v7490, %v7491
  %v7493 = vadd.f32 %v252, %v259
  %v7494 = vadd.f32 %v7493, %v266
  %v7495 = vadd.f32 %v7494, %v273
  %v7496 = vadd.f32 %v7495, %v280
  %v7497 = vadd.f32 %v7496, %v287
  %v7498 = vadd.f32 %v7497, %v294
  %v7499 = vadd.f32 %v7498, %v301
  %v7500 = vadd.f32 %v7499, %v308
  %v7501 = vadd.f32 %v7500, %v315
  %v7502 = vadd.f32 %v7501, %v322
  %v7503 = vadd.f32 %v7502, %v329
  %v7504 = vadd.f32 %v7503, %v336
  %v7505 = vadd.f32 %v7504, %v343
  %v7506 = vadd.f32 %v7505, %v350
  %v7507 = vadd.f32 %v7506, %v357
  %v7508 = vadd.f32 %v7507, %v364
  %v7509 = vadd.f32 %v7508, %v371
  %v7510 = vadd.f32 %v7509, %v378
  %v7511 = vadd.f32 %v7510, %v385
  %v7512 = vadd.f32 %v7511, %v392
  %v7513 = vadd.f32 %v7512, %v399
  %v7514 = vadd.f32 %v7513, %v406
  %v7515 = vadd.f32 %v7514, %v413
  %v7516 = vadd.f32 %v7515, %v420
  %v7517 = vadd.f32 %v7516, %v427
  %v7518 = vadd.f32 %v7517, %v434
  %v7519 = vadd.f32 %v7518, %v441
  %v7520 = vadd.f32 %v7519, %v448
  %v7521 = vadd.f32 %v7520, %v455
  %v7522 = vadd.f32 %v7521, %v462
  %v7523 = vadd.f32 %v7522, %v469
  %v7524 = vrot.slane %v7523, 4
  %v7525 = vadd.f32 %v7523, %v7524
  %v7526 = vrot.slane %v7525, 2
  %v7527 = vadd.f32 %v7525, %v7526
  %v7528 = vrot.slane %v7527, 1
  %v7529 = vadd.f32 %v7527, %v7528
  %v7530 = vadd.f32 %v2109, %v2118
  %v7531 = vadd.f32 %v7530, %v2127
  %v7532 = vadd.f32 %v7531, %v2136
  %v7533 = vadd.f32 %v7532, %v2145
  %v7534 = vadd.f32 %v7533, %v2154
  %v7535 = vadd.f32 %v7534, %v2163
  %v7536 = vadd.f32 %v7535, %v2172
  %v7537 = vadd.f32 %v7536, %v2181
  %v7538 = vadd.f32 %v7537, %v2190
  %v7539 = vadd.f32 %v7538, %v2199
  %v7540 = vadd.f32 %v7539, %v2208
  %v7541 = vadd.f32 %v7540, %v2217
  %v7542 = vadd.f32 %v7541, %v2226
  %v7543 = vadd.f32 %v7542, %v2235
  %v7544 = vadd.f32 %v7543, %v2244
  %v7545 = vadd.f32 %v7544, %v2253
  %v7546 = vadd.f32 %v7545, %v2262
  %v7547 = vadd.f32 %v7546, %v2271
  %v7548 = vadd.f32 %v7547, %v2280
  %v7549 = vadd.f32 %v7548, %v2289
  %v7550 = vadd.f32 %v7549, %v2298
  %v7551 = vadd.f32 %v7550, %v2307
  %v7552 = vadd.f32 %v7551, %v2316
  %v7553 = vadd.f32 %v7552, %v2325
  %v7554 = vadd.f32 %v7553, %v2334
  %v7555 = vadd.f32 %v7554, %v2343
  %v7556 = vadd.f32 %v7555, %v2352
  %v7557 = vadd.f32 %v7556, %v2361
  %v7558 = vadd.f32 %v7557, %v2370
  %v7559 = vadd.f32 %v7558, %v2379
  %v7560 = vadd.f32 %v7559, %v2388
  %v7561 = vrot.slane %v7560, 4
  %v7562 = vadd.f32 %v7560, %v7561
  %v7563 = vrot.slane %v7562, 2
  %v7564 = vadd.f32 %v7562, %v7563
  %v7565 = vrot.slane %v7564, 1
  %v7566 = vadd.f32 %v7564, %v7565
  %v7567 = vadd.f32 %v471, %v478
  %v7568 = vadd.f32 %v7567, %v485
  %v7569 = vadd.f32 %v7568, %v492
  %v7570 = vadd.f32 %v7569, %v499
  %v7571 = vadd.f32 %v7570, %v506
  %v7572 = vadd.f32 %v7571, %v513
  %v7573 = vadd.f32 %v7572, %v520
  %v7574 = vadd.f32 %v7573, %v527
  %v7575 = vadd.f32 %v7574, %v534
  %v7576 = vadd.f32 %v7575, %v541
  %v7577 = vadd.f32 %v7576, %v548
  %v7578 = vadd.f32 %v7577, %v555
  %v7579 = vadd.f32 %v7578, %v562
  %v7580 = vadd.f32 %v7579, %v569
  %v7581 = vadd.f32 %v7580, %v576
  %v7582 = vadd.f32 %v7581, %v583
  %v7583 = vadd.f32 %v7582, %v590
  %v7584 = vadd.f32 %v7583, %v597
  %v7585 = vadd.f32 %v7584, %v604
  %v7586 = vadd.f32 %v7585, %v611
  %v7587 = vadd.f32 %v7586, %v618
  %v7588 = vadd.f32 %v7587, %v625
  %v7589 = vadd.f32 %v7588, %v632
  %v7590 = vadd.f32 %v7589, %v639
  %v7591 = vadd.f32 %v7590, %v646
  %v7592 = vadd.f32 %v7591, %v653
  %v7593 = vadd.f32 %v7592, %v660
  %v7594 = vadd.f32 %v7593, %v667
  %v7595 = vadd.f32 %v7594, %v674
  %v7596 = vadd.f32 %v7595, %v681
  %v7597 = vadd.f32 %v7596, %v688
  %v7598 = vrot.slane %v7597, 4
  %v7599 = vadd.f32 %v7597, %v7598
  %v7600 = vrot.slane %v7599, 2
  %v7601 = vadd.f32 %v7599, %v7600
  %v7602 = vrot.slane %v7601, 1
  %v7603 = vadd.f32 %v7601, %v7602
  %v7604 = vadd.f32 %v472, %v479
  %v7605 = vadd.f32 %v7604, %v486
  %v7606 = vadd.f32 %v7605, %v493
  %v7607 = vadd.f32 %v7606, %v500
  %v7608 = vadd.f32 %v7607, %v507
  %v7609 = vadd.f32 %v7608, %v514
  %v7610 = vadd.f32 %v7609, %v521
  %v7611 = vadd.f32 %v7610, %v528
  %v7612 = vadd.f32 %v7611, %v535
  %v7613 = vadd.f32 %v7612, %v542
  %v7614 = vadd.f32 %v7613, %v549
  %v7615 = vadd.f32 %v7614, %v556
  %v7616 = vadd.f32 %v7615, %v563
  %v7617 = vadd.f32 %v7616, %v570
  %v7618 = vadd.f32 %v7617, %v577
  %v7619 = vadd.f32 %v7618, %v584
  %v7620 = vadd.f32 %v7619, %v591
  %v7621 = vadd.f32 %v7620, %v598
  %v7622 = vadd.f32 %v7621, %v605
  %v7623 = vadd.f32 %v7622, %v612
  %v7624 = vadd.f32 %v7623, %v619
  %v7625 = vadd.f32 %v7624, %v626
  %v7626 = vadd.f32 %v7625, %v633
  %v7627 = vadd.f32 %v7626, %v640
  %v7628 = vadd.f32 %v7627, %v647
  %v7629 = vadd.f32 %v7628, %v654
  %v7630 = vadd.f32 %v7629, %v661
  %v7631 = vadd.f32 %v7630, %v668
  %v7632 = vadd.f32 %v7631, %v675
  %v7633 = vadd.f32 %v7632, %v682
  %v7634 = vadd.f32 %v7633, %v689
  %v7635 = vrot.slane %v7634, 4
  %v7636 = vadd.f32 %v7634, %v7635
  %v7637 = vrot.slane %v7636, 2
  %v7638 = vadd.f32 %v7636, %v7637
  %v7639 = vrot.slane %v7638, 1
  %v7640 = vadd.f32 %v7638, %v7639
  %v7641 = vadd.f32 %v473, %v480
  %v7642 = vadd.f32 %v7641, %v487
  %v7643 = vadd.f32 %v7642, %v494
  %v7644 = vadd.f32 %v7643, %v501
  %v7645 = vadd.f32 %v7644, %v508
  %v7646 = vadd.f32 %v7645, %v515
  %v7647 = vadd.f32 %v7646, %v522
  %v7648 = vadd.f32 %v7647, %v529
  %v7649 = vadd.f32 %v7648, %v536
  %v7650 = vadd.f32 %v7649, %v543
  %v7651 = vadd.f32 %v7650, %v550
  %v7652 = vadd.f32 %v7651, %v557
  %v7653 = vadd.f32 %v7652, %v564
  %v7654 = vadd.f32 %v7653, %v571
  %v7655 = vadd.f32 %v7654, %v578
  %v7656 = vadd.f32 %v7655, %v585
  %v7657 = vadd.f32 %v7656, %v592
  %v7658 = vadd.f32 %v7657, %v599
  %v7659 = vadd.f32 %v7658, %v606
  %v7660 = vadd.f32 %v7659, %v613
  %v7661 = vadd.f32 %v7660, %v620
  %v7662 = vadd.f32 %v7661, %v627
  %v7663 = vadd.f32 %v7662, %v634
  %v7664 = vadd.f32 %v7663, %v641
  %v7665 = vadd.f32 %v7664, %v648
  %v7666 = vadd.f32 %v7665, %v655
  %v7667 = vadd.f32 %v7666, %v662
  %v7668 = vadd.f32 %v7667, %v669
  %v7669 = vadd.f32 %v7668, %v676
  %v7670 = vadd.f32 %v7669, %v683
  %v7671 = vadd.f32 %v7670, %v690
  %v7672 = vrot.slane %v7671, 4
  %v7673 = vadd.f32 %v7671, %v7672
  %v7674 = vrot.slane %v7673, 2
  %v7675 = vadd.f32 %v7673, %v7674
  %v7676 = vrot.slane %v7675, 1
  %v7677 = vadd.f32 %v7675, %v7676
  %v7678 = vadd.f32 %v474, %v481
  %v7679 = vadd.f32 %v7678, %v488
  %v7680 = vadd.f32 %v7679, %v495
  %v7681 = vadd.f32 %v7680, %v502
  %v7682 = vadd.f32 %v7681, %v509
  %v7683 = vadd.f32 %v7682, %v516
  %v7684 = vadd.f32 %v7683, %v523
  %v7685 = vadd.f32 %v7684, %v530
  %v7686 = vadd.f32 %v7685, %v537
  %v7687 = vadd.f32 %v7686, %v544
  %v7688 = vadd.f32 %v7687, %v551
  %v7689 = vadd.f32 %v7688, %v558
  %v7690 = vadd.f32 %v7689, %v565
  %v7691 = vadd.f32 %v7690, %v572
  %v7692 = vadd.f32 %v7691, %v579
  %v7693 = vadd.f32 %v7692, %v586
  %v7694 = vadd.f32 %v7693, %v593
  %v7695 = vadd.f32 %v7694, %v600
  %v7696 = vadd.f32 %v7695, %v607
  %v7697 = vadd.f32 %v7696, %v614
  %v7698 = vadd.f32 %v7697, %v621
  %v7699 = vadd.f32 %v7698, %v628
  %v7700 = vadd.f32 %v7699, %v635
  %v7701 = vadd.f32 %v7700, %v642
  %v7702 = vadd.f32 %v7701, %v649
  %v7703 = vadd.f32 %v7702, %v656
  %v7704 = vadd.f32 %v7703, %v663
  %v7705 = vadd.f32 %v7704, %v670
  %v7706 = vadd.f32 %v7705, %v677
  %v7707 = vadd.f32 %v7706, %v684
  %v7708 = vadd.f32 %v7707, %v691
  %v7709 = vrot.slane %v7708, 4
  %v7710 = vadd.f32 %v7708, %v7709
  %v7711 = vrot.slane %v7710, 2
  %v7712 = vadd.f32 %v7710, %v7711
  %v7713 = vrot.slane %v7712, 1
  %v7714 = vadd.f32 %v7712, %v7713
  %v7715 = vadd.f32 %v475, %v482
  %v7716 = vadd.f32 %v7715, %v489
  %v7717 = vadd.f32 %v7716, %v496
  %v7718 = vadd.f32 %v7717, %v503
  %v7719 = vadd.f32 %v7718, %v510
  %v7720 = vadd.f32 %v7719, %v517
  %v7721 = vadd.f32 %v7720, %v524
  %v7722 = vadd.f32 %v7721, %v531
  %v7723 = vadd.f32 %v7722, %v538
  %v7724 = vadd.f32 %v7723, %v545
  %v7725 = vadd.f32 %v7724, %v552
  %v7726 = vadd.f32 %v7725, %v559
  %v7727 = vadd.f32 %v7726, %v566
  %v7728 = vadd.f32 %v7727, %v573
  %v7729 = vadd.f32 %v7728, %v580
  %v7730 = vadd.f32 %v7729, %v587
  %v7731 = vadd.f32 %v7730, %v594
  %v7732 = vadd.f32 %v7731, %v601
  %v7733 = vadd.f32 %v7732, %v608
  %v7734 = vadd.f32 %v7733, %v615
  %v7735 = vadd.f32 %v7734, %v622
  %v7736 = vadd.f32 %v7735, %v629
  %v7737 = vadd.f32 %v7736, %v636
  %v7738 = vadd.f32 %v7737, %v643
  %v7739 = vadd.f32 %v7738, %v650
  %v7740 = vadd.f32 %v7739, %v657
  %v7741 = vadd.f32 %v7740, %v664
  %v7742 = vadd.f32 %v7741, %v671
  %v7743 = vadd.f32 %v7742, %v678
  %v7744 = vadd.f32 %v7743, %v685
  %v7745 = vadd.f32 %v7744, %v692
  %v7746 = vrot.slane %v7745, 4
  %v7747 = vadd.f32 %v7745, %v7746
  %v7748 = vrot.slane %v7747, 2
  %v7749 = vadd.f32 %v7747, %v7748
  %v7750 = vrot.slane %v7749, 1
  %v7751 = vadd.f32 %v7749, %v7750
  %v7752 = vadd.f32 %v476, %v483
  %v7753 = vadd.f32 %v7752, %v490
  %v7754 = vadd.f32 %v7753, %v497
  %v7755 = vadd.f32 %v7754, %v504
  %v7756 = vadd.f32 %v7755, %v511
  %v7757 = vadd.f32 %v7756, %v518
  %v7758 = vadd.f32 %v7757, %v525
  %v7759 = vadd.f32 %v7758, %v532
  %v7760 = vadd.f32 %v7759, %v539
  %v7761 = vadd.f32 %v7760, %v546
  %v7762 = vadd.f32 %v7761, %v553
  %v7763 = vadd.f32 %v7762, %v560
  %v7764 = vadd.f32 %v7763, %v567
  %v7765 = vadd.f32 %v7764, %v574
  %v7766 = vadd.f32 %v7765, %v581
  %v7767 = vadd.f32 %v7766, %v588
  %v7768 = vadd.f32 %v7767, %v595
  %v7769 = vadd.f32 %v7768, %v602
  %v7770 = vadd.f32 %v7769, %v609
  %v7771 = vadd.f32 %v7770, %v616
  %v7772 = vadd.f32 %v7771, %v623
  %v7773 = vadd.f32 %v7772, %v630
  %v7774 = vadd.f32 %v7773, %v637
  %v7775 = vadd.f32 %v7774, %v644
  %v7776 = vadd.f32 %v7775, %v651
  %v7777 = vadd.f32 %v7776, %v658
  %v7778 = vadd.f32 %v7777, %v665
  %v7779 = vadd.f32 %v7778, %v672
  %v7780 = vadd.f32 %v7779, %v679
  %v7781 = vadd.f32 %v7780, %v686
  %v7782 = vadd.f32 %v7781, %v693
  %v7783 = vrot.slane %v7782, 4
  %v7784 = vadd.f32 %v7782, %v7783
  %v7785 = vrot.slane %v7784, 2
  %v7786 = vadd.f32 %v7784, %v7785
  %v7787 = vrot.slane %v7786, 1
  %v7788 = vadd.f32 %v7786, %v7787
  %v7789 = vadd.f32 %v2397, %v2406
  %v7790 = vadd.f32 %v7789, %v2415
  %v7791 = vadd.f32 %v7790, %v2424
  %v7792 = vadd.f32 %v7791, %v2433
  %v7793 = vadd.f32 %v7792, %v2442
  %v7794 = vadd.f32 %v7793, %v2451
  %v7795 = vadd.f32 %v7794, %v2460
  %v7796 = vadd.f32 %v7795, %v2469
  %v7797 = vadd.f32 %v7796, %v2478
  %v7798 = vadd.f32 %v7797, %v2487
  %v7799 = vadd.f32 %v7798, %v2496
  %v7800 = vadd.f32 %v7799, %v2505
  %v7801 = vadd.f32 %v7800, %v2514
  %v7802 = vadd.f32 %v7801, %v2523
  %v7803 = vadd.f32 %v7802, %v2532
  %v7804 = vadd.f32 %v7803, %v2541
  %v7805 = vadd.f32 %v7804, %v2550
  %v7806 = vadd.f32 %v7805, %v2559
  %v7807 = vadd.f32 %v7806, %v2568
  %v7808 = vadd.f32 %v7807, %v2577
  %v7809 = vadd.f32 %v7808, %v2586
  %v7810 = vadd.f32 %v7809, %v2595
  %v7811 = vadd.f32 %v7810, %v2604
  %v7812 = vadd.f32 %v7811, %v2613
  %v7813 = vadd.f32 %v7812, %v2622
  %v7814 = vadd.f32 %v7813, %v2631
  %v7815 = vadd.f32 %v7814, %v2640
  %v7816 = vadd.f32 %v7815, %v2649
  %v7817 = vadd.f32 %v7816, %v2658
  %v7818 = vadd.f32 %v7817, %v2667
  %v7819 = vadd.f32 %v7818, %v2676
  %v7820 = vrot.slane %v7819, 4
  %v7821 = vadd.f32 %v7819, %v7820
  %v7822 = vrot.slane %v7821, 2
  %v7823 = vadd.f32 %v7821, %v7822
  %v7824 = vrot.slane %v7823, 1
  %v7825 = vadd.f32 %v7823, %v7824
  %v7826 = vadd.f32 %v695, %v702
  %v7827 = vadd.f32 %v7826, %v709
  %v7828 = vadd.f32 %v7827, %v716
  %v7829 = vadd.f32 %v7828, %v723
  %v7830 = vadd.f32 %v7829, %v730
  %v7831 = vadd.f32 %v7830, %v737
  %v7832 = vadd.f32 %v7831, %v744
  %v7833 = vadd.f32 %v7832, %v751
  %v7834 = vadd.f32 %v7833, %v758
  %v7835 = vadd.f32 %v7834, %v765
  %v7836 = vadd.f32 %v7835, %v772
  %v7837 = vadd.f32 %v7836, %v779
  %v7838 = vadd.f32 %v7837, %v786
  %v7839 = vadd.f32 %v7838, %v793
  %v7840 = vadd.f32 %v7839, %v800
  %v7841 = vadd.f32 %v7840, %v807
  %v7842 = vadd.f32 %v7841, %v814
  %v7843 = vadd.f32 %v7842, %v821
  %v7844 = vadd.f32 %v7843, %v828
  %v7845 = vadd.f32 %v7844, %v835
  %v7846 = vadd.f32 %v7845, %v842
  %v7847 = vadd.f32 %v7846, %v849
  %v7848 = vadd.f32 %v7847, %v856
  %v7849 = vadd.f32 %v7848, %v863
  %v7850 = vadd.f32 %v7849, %v870
  %v7851 = vadd.f32 %v7850, %v877
  %v7852 = vadd.f32 %v7851, %v884
  %v7853 = vadd.f32 %v7852, %v891
  %v7854 = vadd.f32 %v7853, %v898
  %v7855 = vadd.f32 %v7854, %v905
  %v7856 = vadd.f32 %v7855, %v912
  %v7857 = vrot.slane %v7856, 4
  %v7858 = vadd.f32 %v7856, %v7857
  %v7859 = vrot.slane %v7858, 2
  %v7860 = vadd.f32 %v7858, %v7859
  %v7861 = vrot.slane %v7860, 1
  %v7862 = vadd.f32 %v7860, %v7861
  %v7863 = vadd.f32 %v696, %v703
  %v7864 = vadd.f32 %v7863, %v710
  %v7865 = vadd.f32 %v7864, %v717
  %v7866 = vadd.f32 %v7865, %v724
  %v7867 = vadd.f32 %v7866, %v731
  %v7868 = vadd.f32 %v7867, %v738
  %v7869 = vadd.f32 %v7868, %v745
  %v7870 = vadd.f32 %v7869, %v752
  %v7871 = vadd.f32 %v7870, %v759
  %v7872 = vadd.f32 %v7871, %v766
  %v7873 = vadd.f32 %v7872, %v773
  %v7874 = vadd.f32 %v7873, %v780
  %v7875 = vadd.f32 %v7874, %v787
  %v7876 = vadd.f32 %v7875, %v794
  %v7877 = vadd.f32 %v7876, %v801
  %v7878 = vadd.f32 %v7877, %v808
  %v7879 = vadd.f32 %v7878, %v815
  %v7880 = vadd.f32 %v7879, %v822
  %v7881 = vadd.f32 %v7880, %v829
  %v7882 = vadd.f32 %v7881, %v836
  %v7883 = vadd.f32 %v7882, %v843
  %v7884 = vadd.f32 %v7883, %v850
  %v7885 = vadd.f32 %v7884, %v857
  %v7886 = vadd.f32 %v7885, %v864
  %v7887 = vadd.f32 %v7886, %v871
  %v7888 = vadd.f32 %v7887, %v878
  %v7889 = vadd.f32 %v7888, %v885
  %v7890 = vadd.f32 %v7889, %v892
  %v7891 = vadd.f32 %v7890, %v899
  %v7892 = vadd.f32 %v7891, %v906
  %v7893 = vadd.f32 %v7892, %v913
  %v7894 = vrot.slane %v7893, 4
  %v7895 = vadd.f32 %v7893, %v7894
  %v7896 = vrot.slane %v7895, 2
  %v7897 = vadd.f32 %v7895, %v7896
  %v7898 = vrot.slane %v7897, 1
  %v7899 = vadd.f32 %v7897, %v7898
  %v7900 = vadd.f32 %v697, %v704
  %v7901 = vadd.f32 %v7900, %v711
  %v7902 = vadd.f32 %v7901, %v718
  %v7903 = vadd.f32 %v7902, %v725
  %v7904 = vadd.f32 %v7903, %v732
  %v7905 = vadd.f32 %v7904, %v739
  %v7906 = vadd.f32 %v7905, %v746
  %v7907 = vadd.f32 %v7906, %v753
  %v7908 = vadd.f32 %v7907, %v760
  %v7909 = vadd.f32 %v7908, %v767
  %v7910 = vadd.f32 %v7909, %v774
  %v7911 = vadd.f32 %v7910, %v781
  %v7912 = vadd.f32 %v7911, %v788
  %v7913 = vadd.f32 %v7912, %v795
  %v7914 = vadd.f32 %v7913, %v802
  %v7915 = vadd.f32 %v7914, %v809
  %v7916 = vadd.f32 %v7915, %v816
  %v7917 = vadd.f32 %v7916, %v823
  %v7918 = vadd.f32 %v7917, %v830
  %v7919 = vadd.f32 %v7918, %v837
  %v7920 = vadd.f32 %v7919, %v844
  %v7921 = vadd.f32 %v7920, %v851
  %v7922 = vadd.f32 %v7921, %v858
  %v7923 = vadd.f32 %v7922, %v865
  %v7924 = vadd.f32 %v7923, %v872
  %v7925 = vadd.f32 %v7924, %v879
  %v7926 = vadd.f32 %v7925, %v886
  %v7927 = vadd.f32 %v7926, %v893
  %v7928 = vadd.f32 %v7927, %v900
  %v7929 = vadd.f32 %v7928, %v907
  %v7930 = vadd.f32 %v7929, %v914
  %v7931 = vrot.slane %v7930, 4
  %v7932 = vadd.f32 %v7930, %v7931
  %v7933 = vrot.slane %v7932, 2
  %v7934 = vadd.f32 %v7932, %v7933
  %v7935 = vrot.slane %v7934, 1
  %v7936 = vadd.f32 %v7934, %v7935
  %v7937 = vadd.f32 %v698, %v705
  %v7938 = vadd.f32 %v7937, %v712
  %v7939 = vadd.f32 %v7938, %v719
  %v7940 = vadd.f32 %v7939, %v726
  %v7941 = vadd.f32 %v7940, %v733
  %v7942 = vadd.f32 %v7941, %v740
  %v7943 = vadd.f32 %v7942, %v747
  %v7944 = vadd.f32 %v7943, %v754
  %v7945 = vadd.f32 %v7944, %v761
  %v7946 = vadd.f32 %v7945, %v768
  %v7947 = vadd.f32 %v7946, %v775
  %v7948 = vadd.f32 %v7947, %v782
  %v7949 = vadd.f32 %v7948, %v789
  %v7950 = vadd.f32 %v7949, %v796
  %v7951 = vadd.f32 %v7950, %v803
  %v7952 = vadd.f32 %v7951, %v810
  %v7953 = vadd.f32 %v7952, %v817
  %v7954 = vadd.f32 %v7953, %v824
  %v7955 = vadd.f32 %v7954, %v831
  %v7956 = vadd.f32 %v7955, %v838
  %v7957 = vadd.f32 %v7956, %v845
  %v7958 = vadd.f32 %v7957, %v852
  %v7959 = vadd.f32 %v7958, %v859
  %v7960 = vadd.f32 %v7959, %v866
  %v7961 = vadd.f32 %v7960, %v873
  %v7962 = vadd.f32 %v7961, %v880
  %v7963 = vadd.f32 %v7962, %v887
  %v7964 = vadd.f32 %v7963, %v894
  %v7965 = vadd.f32 %v7964, %v901
  %v7966 = vadd.f32 %v7965, %v908
  %v7967 = vadd.f32 %v7966, %v915
  %v7968 = vrot.slane %v7967, 4
  %v7969 = vadd.f32 %v7967, %v7968
  %v7970 = vrot.slane %v7969, 2
  %v7971 = vadd.f32 %v7969, %v7970
  %v7972 = vrot.slane %v7971, 1
  %v7973 = vadd.f32 %v7971, %v7972
  %v7974 = vadd.f32 %v699, %v706
  %v7975 = vadd.f32 %v7974, %v713
  %v7976 = vadd.f32 %v7975, %v720
  %v7977 = vadd.f32 %v7976, %v727
  %v7978 = vadd.f32 %v7977, %v734
  %v7979 = vadd.f32 %v7978, %v741
  %v7980 = vadd.f32 %v7979, %v748
  %v7981 = vadd.f32 %v7980, %v755
  %v7982 = vadd.f32 %v7981, %v762
  %v7983 = vadd.f32 %v7982, %v769
  %v7984 = vadd.f32 %v7983, %v776
  %v7985 = vadd.f32 %v7984, %v783
  %v7986 = vadd.f32 %v7985, %v790
  %v7987 = vadd.f32 %v7986, %v797
  %v7988 = vadd.f32 %v7987, %v804
  %v7989 = vadd.f32 %v7988, %v811
  %v7990 = vadd.f32 %v7989, %v818
  %v7991 = vadd.f32 %v7990, %v825
  %v7992 = vadd.f32 %v7991, %v832
  %v7993 = vadd.f32 %v7992, %v839
  %v7994 = vadd.f32 %v7993, %v846
  %v7995 = vadd.f32 %v7994, %v853
  %v7996 = vadd.f32 %v7995, %v860
  %v7997 = vadd.f32 %v7996, %v867
  %v7998 = vadd.f32 %v7997, %v874
  %v7999 = vadd.f32 %v7998, %v881
  %v8000 = vadd.f32 %v7999, %v888
  %v8001 = vadd.f32 %v8000, %v895
  %v8002 = vadd.f32 %v8001, %v902
  %v8003 = vadd.f32 %v8002, %v909
  %v8004 = vadd.f32 %v8003, %v916
  %v8005 = vrot.slane %v8004, 4
  %v8006 = vadd.f32 %v8004, %v8005
  %v8007 = vrot.slane %v8006, 2
  %v8008 = vadd.f32 %v8006, %v8007
  %v8009 = vrot.slane %v8008, 1
  %v8010 = vadd.f32 %v8008, %v8009
  %v8011 = vadd.f32 %v700, %v707
  %v8012 = vadd.f32 %v8011, %v714
  %v8013 = vadd.f32 %v8012, %v721
  %v8014 = vadd.f32 %v8013, %v728
  %v8015 = vadd.f32 %v8014, %v735
  %v8016 = vadd.f32 %v8015, %v742
  %v8017 = vadd.f32 %v8016, %v749
  %v8018 = vadd.f32 %v8017, %v756
  %v8019 = vadd.f32 %v8018, %v763
  %v8020 = vadd.f32 %v8019, %v770
  %v8021 = vadd.f32 %v8020, %v777
  %v8022 = vadd.f32 %v8021, %v784
  %v8023 = vadd.f32 %v8022, %v791
  %v8024 = vadd.f32 %v8023, %v798
  %v8025 = vadd.f32 %v8024, %v805
  %v8026 = vadd.f32 %v8025, %v812
  %v8027 = vadd.f32 %v8026, %v819
  %v8028 = vadd.f32 %v8027, %v826
  %v8029 = vadd.f32 %v8028, %v833
  %v8030 = vadd.f32 %v8029, %v840
  %v8031 = vadd.f32 %v8030, %v847
  %v8032 = vadd.f32 %v8031, %v854
  %v8033 = vadd.f32 %v8032, %v861
  %v8034 = vadd.f32 %v8033, %v868
  %v8035 = vadd.f32 %v8034, %v875
  %v8036 = vadd.f32 %v8035, %v882
  %v8037 = vadd.f32 %v8036, %v889
  %v8038 = vadd.f32 %v8037, %v896
  %v8039 = vadd.f32 %v8038, %v903
  %v8040 = vadd.f32 %v8039, %v910
  %v8041 = vadd.f32 %v8040, %v917
  %v8042 = vrot.slane %v8041, 4
  %v8043 = vadd.f32 %v8041, %v8042
  %v8044 = vrot.slane %v8043, 2
  %v8045 = vadd.f32 %v8043, %v8044
  %v8046 = vrot.slane %v8045, 1
  %v8047 = vadd.f32 %v8045, %v8046
  %v8048 = vadd.f32 %v2685, %v2694
  %v8049 = vadd.f32 %v8048, %v2703
  %v8050 = vadd.f32 %v8049, %v2712
  %v8051 = vadd.f32 %v8050, %v2721
  %v8052 = vadd.f32 %v8051, %v2730
  %v8053 = vadd.f32 %v8052, %v2739
  %v8054 = vadd.f32 %v8053, %v2748
  %v8055 = vadd.f32 %v8054, %v2757
  %v8056 = vadd.f32 %v8055, %v2766
  %v8057 = vadd.f32 %v8056, %v2775
  %v8058 = vadd.f32 %v8057, %v2784
  %v8059 = vadd.f32 %v8058, %v2793
  %v8060 = vadd.f32 %v8059, %v2802
  %v8061 = vadd.f32 %v8060, %v2811
  %v8062 = vadd.f32 %v8061, %v2820
  %v8063 = vadd.f32 %v8062, %v2829
  %v8064 = vadd.f32 %v8063, %v2838
  %v8065 = vadd.f32 %v8064, %v2847
  %v8066 = vadd.f32 %v8065, %v2856
  %v8067 = vadd.f32 %v8066, %v2865
  %v8068 = vadd.f32 %v8067, %v2874
  %v8069 = vadd.f32 %v8068, %v2883
  %v8070 = vadd.f32 %v8069, %v2892
  %v8071 = vadd.f32 %v8070, %v2901
  %v8072 = vadd.f32 %v8071, %v2910
  %v8073 = vadd.f32 %v8072, %v2919
  %v8074 = vadd.f32 %v8073, %v2928
  %v8075 = vadd.f32 %v8074, %v2937
  %v8076 = vadd.f32 %v8075, %v2946
  %v8077 = vadd.f32 %v8076, %v2955
  %v8078 = vadd.f32 %v8077, %v2964
  %v8079 = vrot.slane %v8078, 4
  %v8080 = vadd.f32 %v8078, %v8079
  %v8081 = vrot.slane %v8080, 2
  %v8082 = vadd.f32 %v8080, %v8081
  %v8083 = vrot.slane %v8082, 1
  %v8084 = vadd.f32 %v8082, %v8083
  %v8085 = vadd.f32 %v919, %v926
  %v8086 = vadd.f32 %v8085, %v933
  %v8087 = vadd.f32 %v8086, %v940
  %v8088 = vadd.f32 %v8087, %v947
  %v8089 = vadd.f32 %v8088, %v954
  %v8090 = vadd.f32 %v8089, %v961
  %v8091 = vadd.f32 %v8090, %v968
  %v8092 = vadd.f32 %v8091, %v975
  %v8093 = vadd.f32 %v8092, %v982
  %v8094 = vadd.f32 %v8093, %v989
  %v8095 = vadd.f32 %v8094, %v996
  %v8096 = vadd.f32 %v8095, %v1003
  %v8097 = vadd.f32 %v8096, %v1010
  %v8098 = vadd.f32 %v8097, %v1017
  %v8099 = vadd.f32 %v8098, %v1024
  %v8100 = vadd.f32 %v8099, %v1031
  %v8101 = vadd.f32 %v8100, %v1038
  %v8102 = vadd.f32 %v8101, %v1045
  %v8103 = vadd.f32 %v8102, %v1052
  %v8104 = vadd.f32 %v8103, %v1059
  %v8105 = vadd.f32 %v8104, %v1066
  %v8106 = vadd.f32 %v8105, %v1073
  %v8107 = vadd.f32 %v8106, %v1080
  %v8108 = vadd.f32 %v8107, %v1087
  %v8109 = vadd.f32 %v8108, %v1094
  %v8110 = vadd.f32 %v8109, %v1101
  %v8111 = vadd.f32 %v8110, %v1108
  %v8112 = vadd.f32 %v8111, %v1115
  %v8113 = vadd.f32 %v8112, %v1122
  %v8114 = vadd.f32 %v8113, %v1129
  %v8115 = vadd.f32 %v8114, %v1136
  %v8116 = vrot.slane %v8115, 4
  %v8117 = vadd.f32 %v8115, %v8116
  %v8118 = vrot.slane %v8117, 2
  %v8119 = vadd.f32 %v8117, %v8118
  %v8120 = vrot.slane %v8119, 1
  %v8121 = vadd.f32 %v8119, %v8120
  %v8122 = vadd.f32 %v920, %v927
  %v8123 = vadd.f32 %v8122, %v934
  %v8124 = vadd.f32 %v8123, %v941
  %v8125 = vadd.f32 %v8124, %v948
  %v8126 = vadd.f32 %v8125, %v955
  %v8127 = vadd.f32 %v8126, %v962
  %v8128 = vadd.f32 %v8127, %v969
  %v8129 = vadd.f32 %v8128, %v976
  %v8130 = vadd.f32 %v8129, %v983
  %v8131 = vadd.f32 %v8130, %v990
  %v8132 = vadd.f32 %v8131, %v997
  %v8133 = vadd.f32 %v8132, %v1004
  %v8134 = vadd.f32 %v8133, %v1011
  %v8135 = vadd.f32 %v8134, %v1018
  %v8136 = vadd.f32 %v8135, %v1025
  %v8137 = vadd.f32 %v8136, %v1032
  %v8138 = vadd.f32 %v8137, %v1039
  %v8139 = vadd.f32 %v8138, %v1046
  %v8140 = vadd.f32 %v8139, %v1053
  %v8141 = vadd.f32 %v8140, %v1060
  %v8142 = vadd.f32 %v8141, %v1067
  %v8143 = vadd.f32 %v8142, %v1074
  %v8144 = vadd.f32 %v8143, %v1081
  %v8145 = vadd.f32 %v8144, %v1088
  %v8146 = vadd.f32 %v8145, %v1095
  %v8147 = vadd.f32 %v8146, %v1102
  %v8148 = vadd.f32 %v8147, %v1109
  %v8149 = vadd.f32 %v8148, %v1116
  %v8150 = vadd.f32 %v8149, %v1123
  %v8151 = vadd.f32 %v8150, %v1130
  %v8152 = vadd.f32 %v8151, %v1137
  %v8153 = vrot.slane %v8152, 4
  %v8154 = vadd.f32 %v8152, %v8153
  %v8155 = vrot.slane %v8154, 2
  %v8156 = vadd.f32 %v8154, %v8155
  %v8157 = vrot.slane %v8156, 1
  %v8158 = vadd.f32 %v8156, %v8157
  %v8159 = vadd.f32 %v921, %v928
  %v8160 = vadd.f32 %v8159, %v935
  %v8161 = vadd.f32 %v8160, %v942
  %v8162 = vadd.f32 %v8161, %v949
  %v8163 = vadd.f32 %v8162, %v956
  %v8164 = vadd.f32 %v8163, %v963
  %v8165 = vadd.f32 %v8164, %v970
  %v8166 = vadd.f32 %v8165, %v977
  %v8167 = vadd.f32 %v8166, %v984
  %v8168 = vadd.f32 %v8167, %v991
  %v8169 = vadd.f32 %v8168, %v998
  %v8170 = vadd.f32 %v8169, %v1005
  %v8171 = vadd.f32 %v8170, %v1012
  %v8172 = vadd.f32 %v8171, %v1019
  %v8173 = vadd.f32 %v8172, %v1026
  %v8174 = vadd.f32 %v8173, %v1033
  %v8175 = vadd.f32 %v8174, %v1040
  %v8176 = vadd.f32 %v8175, %v1047
  %v8177 = vadd.f32 %v8176, %v1054
  %v8178 = vadd.f32 %v8177, %v1061
  %v8179 = vadd.f32 %v8178, %v1068
  %v8180 = vadd.f32 %v8179, %v1075
  %v8181 = vadd.f32 %v8180, %v1082
  %v8182 = vadd.f32 %v8181, %v1089
  %v8183 = vadd.f32 %v8182, %v1096
  %v8184 = vadd.f32 %v8183, %v1103
  %v8185 = vadd.f32 %v8184, %v1110
  %v8186 = vadd.f32 %v8185, %v1117
  %v8187 = vadd.f32 %v8186, %v1124
  %v8188 = vadd.f32 %v8187, %v1131
  %v8189 = vadd.f32 %v8188, %v1138
  %v8190 = vrot.slane %v8189, 4
  %v8191 = vadd.f32 %v8189, %v8190
  %v8192 = vrot.slane %v8191, 2
  %v8193 = vadd.f32 %v8191, %v8192
  %v8194 = vrot.slane %v8193, 1
  %v8195 = vadd.f32 %v8193, %v8194
  %v8196 = vadd.f32 %v922, %v929
  %v8197 = vadd.f32 %v8196, %v936
  %v8198 = vadd.f32 %v8197, %v943
  %v8199 = vadd.f32 %v8198, %v950
  %v8200 = vadd.f32 %v8199, %v957
  %v8201 = vadd.f32 %v8200, %v964
  %v8202 = vadd.f32 %v8201, %v971
  %v8203 = vadd.f32 %v8202, %v978
  %v8204 = vadd.f32 %v8203, %v985
  %v8205 = vadd.f32 %v8204, %v992
  %v8206 = vadd.f32 %v8205, %v999
  %v8207 = vadd.f32 %v8206, %v1006
  %v8208 = vadd.f32 %v8207, %v1013
  %v8209 = vadd.f32 %v8208, %v1020
  %v8210 = vadd.f32 %v8209, %v1027
  %v8211 = vadd.f32 %v8210, %v1034
  %v8212 = vadd.f32 %v8211, %v1041
  %v8213 = vadd.f32 %v8212, %v1048
  %v8214 = vadd.f32 %v8213, %v1055
  %v8215 = vadd.f32 %v8214, %v1062
  %v8216 = vadd.f32 %v8215, %v1069
  %v8217 = vadd.f32 %v8216, %v1076
  %v8218 = vadd.f32 %v8217, %v1083
  %v8219 = vadd.f32 %v8218, %v1090
  %v8220 = vadd.f32 %v8219, %v1097
  %v8221 = vadd.f32 %v8220, %v1104
  %v8222 = vadd.f32 %v8221, %v1111
  %v8223 = vadd.f32 %v8222, %v1118
  %v8224 = vadd.f32 %v8223, %v1125
  %v8225 = vadd.f32 %v8224, %v1132
  %v8226 = vadd.f32 %v8225, %v1139
  %v8227 = vrot.slane %v8226, 4
  %v8228 = vadd.f32 %v8226, %v8227
  %v8229 = vrot.slane %v8228, 2
  %v8230 = vadd.f32 %v8228, %v8229
  %v8231 = vrot.slane %v8230, 1
  %v8232 = vadd.f32 %v8230, %v8231
  %v8233 = vadd.f32 %v923, %v930
  %v8234 = vadd.f32 %v8233, %v937
  %v8235 = vadd.f32 %v8234, %v944
  %v8236 = vadd.f32 %v8235, %v951
  %v8237 = vadd.f32 %v8236, %v958
  %v8238 = vadd.f32 %v8237, %v965
  %v8239 = vadd.f32 %v8238, %v972
  %v8240 = vadd.f32 %v8239, %v979
  %v8241 = vadd.f32 %v8240, %v986
  %v8242 = vadd.f32 %v8241, %v993
  %v8243 = vadd.f32 %v8242, %v1000
  %v8244 = vadd.f32 %v8243, %v1007
  %v8245 = vadd.f32 %v8244, %v1014
  %v8246 = vadd.f32 %v8245, %v1021
  %v8247 = vadd.f32 %v8246, %v1028
  %v8248 = vadd.f32 %v8247, %v1035
  %v8249 = vadd.f32 %v8248, %v1042
  %v8250 = vadd.f32 %v8249, %v1049
  %v8251 = vadd.f32 %v8250, %v1056
  %v8252 = vadd.f32 %v8251, %v1063
  %v8253 = vadd.f32 %v8252, %v1070
  %v8254 = vadd.f32 %v8253, %v1077
  %v8255 = vadd.f32 %v8254, %v1084
  %v8256 = vadd.f32 %v8255, %v1091
  %v8257 = vadd.f32 %v8256, %v1098
  %v8258 = vadd.f32 %v8257, %v1105
  %v8259 = vadd.f32 %v8258, %v1112
  %v8260 = vadd.f32 %v8259, %v1119
  %v8261 = vadd.f32 %v8260, %v1126
  %v8262 = vadd.f32 %v8261, %v1133
  %v8263 = vadd.f32 %v8262, %v1140
  %v8264 = vrot.slane %v8263, 4
  %v8265 = vadd.f32 %v8263, %v8264
  %v8266 = vrot.slane %v8265, 2
  %v8267 = vadd.f32 %v8265, %v8266
  %v8268 = vrot.slane %v8267, 1
  %v8269 = vadd.f32 %v8267, %v8268
  %v8270 = vadd.f32 %v924, %v931
  %v8271 = vadd.f32 %v8270, %v938
  %v8272 = vadd.f32 %v8271, %v945
  %v8273 = vadd.f32 %v8272, %v952
  %v8274 = vadd.f32 %v8273, %v959
  %v8275 = vadd.f32 %v8274, %v966
  %v8276 = vadd.f32 %v8275, %v973
  %v8277 = vadd.f32 %v8276, %v980
  %v8278 = vadd.f32 %v8277, %v987
  %v8279 = vadd.f32 %v8278, %v994
  %v8280 = vadd.f32 %v8279, %v1001
  %v8281 = vadd.f32 %v8280, %v1008
  %v8282 = vadd.f32 %v8281, %v1015
  %v8283 = vadd.f32 %v8282, %v1022
  %v8284 = vadd.f32 %v8283, %v1029
  %v8285 = vadd.f32 %v8284, %v1036
  %v8286 = vadd.f32 %v8285, %v1043
  %v8287 = vadd.f32 %v8286, %v1050
  %v8288 = vadd.f32 %v8287, %v1057
  %v8289 = vadd.f32 %v8288, %v1064
  %v8290 = vadd.f32 %v8289, %v1071
  %v8291 = vadd.f32 %v8290, %v1078
  %v8292 = vadd.f32 %v8291, %v1085
  %v8293 = vadd.f32 %v8292, %v1092
  %v8294 = vadd.f32 %v8293, %v1099
  %v8295 = vadd.f32 %v8294, %v1106
  %v8296 = vadd.f32 %v8295, %v1113
  %v8297 = vadd.f32 %v8296, %v1120
  %v8298 = vadd.f32 %v8297, %v1127
  %v8299 = vadd.f32 %v8298, %v1134
  %v8300 = vadd.f32 %v8299, %v1141
  %v8301 = vrot.slane %v8300, 4
  %v8302 = vadd.f32 %v8300, %v8301
  %v8303 = vrot.slane %v8302, 2
  %v8304 = vadd.f32 %v8302, %v8303
  %v8305 = vrot.slane %v8304, 1
  %v8306 = vadd.f32 %v8304, %v8305
  %v8307 = vadd.f32 %v2973, %v2982
  %v8308 = vadd.f32 %v8307, %v2991
  %v8309 = vadd.f32 %v8308, %v3000
  %v8310 = vadd.f32 %v8309, %v3009
  %v8311 = vadd.f32 %v8310, %v3018
  %v8312 = vadd.f32 %v8311, %v3027
  %v8313 = vadd.f32 %v8312, %v3036
  %v8314 = vadd.f32 %v8313, %v3045
  %v8315 = vadd.f32 %v8314, %v3054
  %v8316 = vadd.f32 %v8315, %v3063
  %v8317 = vadd.f32 %v8316, %v3072
  %v8318 = vadd.f32 %v8317, %v3081
  %v8319 = vadd.f32 %v8318, %v3090
  %v8320 = vadd.f32 %v8319, %v3099
  %v8321 = vadd.f32 %v8320, %v3108
  %v8322 = vadd.f32 %v8321, %v3117
  %v8323 = vadd.f32 %v8322, %v3126
  %v8324 = vadd.f32 %v8323, %v3135
  %v8325 = vadd.f32 %v8324, %v3144
  %v8326 = vadd.f32 %v8325, %v3153
  %v8327 = vadd.f32 %v8326, %v3162
  %v8328 = vadd.f32 %v8327, %v3171
  %v8329 = vadd.f32 %v8328, %v3180
  %v8330 = vadd.f32 %v8329, %v3189
  %v8331 = vadd.f32 %v8330, %v3198
  %v8332 = vadd.f32 %v8331, %v3207
  %v8333 = vadd.f32 %v8332, %v3216
  %v8334 = vadd.f32 %v8333, %v3225
  %v8335 = vadd.f32 %v8334, %v3234
  %v8336 = vadd.f32 %v8335, %v3243
  %v8337 = vadd.f32 %v8336, %v3252
  %v8338 = vrot.slane %v8337, 4
  %v8339 = vadd.f32 %v8337, %v8338
  %v8340 = vrot.slane %v8339, 2
  %v8341 = vadd.f32 %v8339, %v8340
  %v8342 = vrot.slane %v8341, 1
  %v8343 = vadd.f32 %v8341, %v8342
  %v8344 = vadd.f32 %v1143, %v1150
  %v8345 = vadd.f32 %v8344, %v1157
  %v8346 = vadd.f32 %v8345, %v1164
  %v8347 = vadd.f32 %v8346, %v1171
  %v8348 = vadd.f32 %v8347, %v1178
  %v8349 = vadd.f32 %v8348, %v1185
  %v8350 = vadd.f32 %v8349, %v1192
  %v8351 = vadd.f32 %v8350, %v1199
  %v8352 = vadd.f32 %v8351, %v1206
  %v8353 = vadd.f32 %v8352, %v1213
  %v8354 = vadd.f32 %v8353, %v1220
  %v8355 = vadd.f32 %v8354, %v1227
  %v8356 = vadd.f32 %v8355, %v1234
  %v8357 = vadd.f32 %v8356, %v1241
  %v8358 = vadd.f32 %v8357, %v1248
  %v8359 = vadd.f32 %v8358, %v1255
  %v8360 = vadd.f32 %v8359, %v1262
  %v8361 = vadd.f32 %v8360, %v1269
  %v8362 = vadd.f32 %v8361, %v1276
  %v8363 = vadd.f32 %v8362, %v1283
  %v8364 = vadd.f32 %v8363, %v1290
  %v8365 = vadd.f32 %v8364, %v1297
  %v8366 = vadd.f32 %v8365, %v1304
  %v8367 = vadd.f32 %v8366, %v1311
  %v8368 = vadd.f32 %v8367, %v1318
  %v8369 = vadd.f32 %v8368, %v1325
  %v8370 = vadd.f32 %v8369, %v1332
  %v8371 = vadd.f32 %v8370, %v1339
  %v8372 = vadd.f32 %v8371, %v1346
  %v8373 = vadd.f32 %v8372, %v1353
  %v8374 = vadd.f32 %v8373, %v1360
  %v8375 = vrot.slane %v8374, 4
  %v8376 = vadd.f32 %v8374, %v8375
  %v8377 = vrot.slane %v8376, 2
  %v8378 = vadd.f32 %v8376, %v8377
  %v8379 = vrot.slane %v8378, 1
  %v8380 = vadd.f32 %v8378, %v8379
  %v8381 = vadd.f32 %v1144, %v1151
  %v8382 = vadd.f32 %v8381, %v1158
  %v8383 = vadd.f32 %v8382, %v1165
  %v8384 = vadd.f32 %v8383, %v1172
  %v8385 = vadd.f32 %v8384, %v1179
  %v8386 = vadd.f32 %v8385, %v1186
  %v8387 = vadd.f32 %v8386, %v1193
  %v8388 = vadd.f32 %v8387, %v1200
  %v8389 = vadd.f32 %v8388, %v1207
  %v8390 = vadd.f32 %v8389, %v1214
  %v8391 = vadd.f32 %v8390, %v1221
  %v8392 = vadd.f32 %v8391, %v1228
  %v8393 = vadd.f32 %v8392, %v1235
  %v8394 = vadd.f32 %v8393, %v1242
  %v8395 = vadd.f32 %v8394, %v1249
  %v8396 = vadd.f32 %v8395, %v1256
  %v8397 = vadd.f32 %v8396, %v1263
  %v8398 = vadd.f32 %v8397, %v1270
  %v8399 = vadd.f32 %v8398, %v1277
  %v8400 = vadd.f32 %v8399, %v1284
  %v8401 = vadd.f32 %v8400, %v1291
  %v8402 = vadd.f32 %v8401, %v1298
  %v8403 = vadd.f32 %v8402, %v1305
  %v8404 = vadd.f32 %v8403, %v1312
  %v8405 = vadd.f32 %v8404, %v1319
  %v8406 = vadd.f32 %v8405, %v1326
  %v8407 = vadd.f32 %v8406, %v1333
  %v8408 = vadd.f32 %v8407, %v1340
  %v8409 = vadd.f32 %v8408, %v1347
  %v8410 = vadd.f32 %v8409, %v1354
  %v8411 = vadd.f32 %v8410, %v1361
  %v8412 = vrot.slane %v8411, 4
  %v8413 = vadd.f32 %v8411, %v8412
  %v8414 = vrot.slane %v8413, 2
  %v8415 = vadd.f32 %v8413, %v8414
  %v8416 = vrot.slane %v8415, 1
  %v8417 = vadd.f32 %v8415, %v8416
  %v8418 = vadd.f32 %v1145, %v1152
  %v8419 = vadd.f32 %v8418, %v1159
  %v8420 = vadd.f32 %v8419, %v1166
  %v8421 = vadd.f32 %v8420, %v1173
  %v8422 = vadd.f32 %v8421, %v1180
  %v8423 = vadd.f32 %v8422, %v1187
  %v8424 = vadd.f32 %v8423, %v1194
  %v8425 = vadd.f32 %v8424, %v1201
  %v8426 = vadd.f32 %v8425, %v1208
  %v8427 = vadd.f32 %v8426, %v1215
  %v8428 = vadd.f32 %v8427, %v1222
  %v8429 = vadd.f32 %v8428, %v1229
  %v8430 = vadd.f32 %v8429, %v1236
  %v8431 = vadd.f32 %v8430, %v1243
  %v8432 = vadd.f32 %v8431, %v1250
  %v8433 = vadd.f32 %v8432, %v1257
  %v8434 = vadd.f32 %v8433, %v1264
  %v8435 = vadd.f32 %v8434, %v1271
  %v8436 = vadd.f32 %v8435, %v1278
  %v8437 = vadd.f32 %v8436, %v1285
  %v8438 = vadd.f32 %v8437, %v1292
  %v8439 = vadd.f32 %v8438, %v1299
  %v8440 = vadd.f32 %v8439, %v1306
  %v8441 = vadd.f32 %v8440, %v1313
  %v8442 = vadd.f32 %v8441, %v1320
  %v8443 = vadd.f32 %v8442, %v1327
  %v8444 = vadd.f32 %v8443, %v1334
  %v8445 = vadd.f32 %v8444, %v1341
  %v8446 = vadd.f32 %v8445, %v1348
  %v8447 = vadd.f32 %v8446, %v1355
  %v8448 = vadd.f32 %v8447, %v1362
  %v8449 = vrot.slane %v8448, 4
  %v8450 = vadd.f32 %v8448, %v8449
  %v8451 = vrot.slane %v8450, 2
  %v8452 = vadd.f32 %v8450, %v8451
  %v8453 = vrot.slane %v8452, 1
  %v8454 = vadd.f32 %v8452, %v8453
  %v8455 = vadd.f32 %v1146, %v1153
  %v8456 = vadd.f32 %v8455, %v1160
  %v8457 = vadd.f32 %v8456, %v1167
  %v8458 = vadd.f32 %v8457, %v1174
  %v8459 = vadd.f32 %v8458, %v1181
  %v8460 = vadd.f32 %v8459, %v1188
  %v8461 = vadd.f32 %v8460, %v1195
  %v8462 = vadd.f32 %v8461, %v1202
  %v8463 = vadd.f32 %v8462, %v1209
  %v8464 = vadd.f32 %v8463, %v1216
  %v8465 = vadd.f32 %v8464, %v1223
  %v8466 = vadd.f32 %v8465, %v1230
  %v8467 = vadd.f32 %v8466, %v1237
  %v8468 = vadd.f32 %v8467, %v1244
  %v8469 = vadd.f32 %v8468, %v1251
  %v8470 = vadd.f32 %v8469, %v1258
  %v8471 = vadd.f32 %v8470, %v1265
  %v8472 = vadd.f32 %v8471, %v1272
  %v8473 = vadd.f32 %v8472, %v1279
  %v8474 = vadd.f32 %v8473, %v1286
  %v8475 = vadd.f32 %v8474, %v1293
  %v8476 = vadd.f32 %v8475, %v1300
  %v8477 = vadd.f32 %v8476, %v1307
  %v8478 = vadd.f32 %v8477, %v1314
  %v8479 = vadd.f32 %v8478, %v1321
  %v8480 = vadd.f32 %v8479, %v1328
  %v8481 = vadd.f32 %v8480, %v1335
  %v8482 = vadd.f32 %v8481, %v1342
  %v8483 = vadd.f32 %v8482, %v1349
  %v8484 = vadd.f32 %v8483, %v1356
  %v8485 = vadd.f32 %v8484, %v1363
  %v8486 = vrot.slane %v8485, 4
  %v8487 = vadd.f32 %v8485, %v8486
  %v8488 = vrot.slane %v8487, 2
  %v8489 = vadd.f32 %v8487, %v8488
  %v8490 = vrot.slane %v8489, 1
  %v8491 = vadd.f32 %v8489, %v8490
  %v8492 = vadd.f32 %v1147, %v1154
  %v8493 = vadd.f32 %v8492, %v1161
  %v8494 = vadd.f32 %v8493, %v1168
  %v8495 = vadd.f32 %v8494, %v1175
  %v8496 = vadd.f32 %v8495, %v1182
  %v8497 = vadd.f32 %v8496, %v1189
  %v8498 = vadd.f32 %v8497, %v1196
  %v8499 = vadd.f32 %v8498, %v1203
  %v8500 = vadd.f32 %v8499, %v1210
  %v8501 = vadd.f32 %v8500, %v1217
  %v8502 = vadd.f32 %v8501, %v1224
  %v8503 = vadd.f32 %v8502, %v1231
  %v8504 = vadd.f32 %v8503, %v1238
  %v8505 = vadd.f32 %v8504, %v1245
  %v8506 = vadd.f32 %v8505, %v1252
  %v8507 = vadd.f32 %v8506, %v1259
  %v8508 = vadd.f32 %v8507, %v1266
  %v8509 = vadd.f32 %v8508, %v1273
  %v8510 = vadd.f32 %v8509, %v1280
  %v8511 = vadd.f32 %v8510, %v1287
  %v8512 = vadd.f32 %v8511, %v1294
  %v8513 = vadd.f32 %v8512, %v1301
  %v8514 = vadd.f32 %v8513, %v1308
  %v8515 = vadd.f32 %v8514, %v1315
  %v8516 = vadd.f32 %v8515, %v1322
  %v8517 = vadd.f32 %v8516, %v1329
  %v8518 = vadd.f32 %v8517, %v1336
  %v8519 = vadd.f32 %v8518, %v1343
  %v8520 = vadd.f32 %v8519, %v1350
  %v8521 = vadd.f32 %v8520, %v1357
  %v8522 = vadd.f32 %v8521, %v1364
  %v8523 = vrot.slane %v8522, 4
  %v8524 = vadd.f32 %v8522, %v8523
  %v8525 = vrot.slane %v8524, 2
  %v8526 = vadd.f32 %v8524, %v8525
  %v8527 = vrot.slane %v8526, 1
  %v8528 = vadd.f32 %v8526, %v8527
  %v8529 = vadd.f32 %v1148, %v1155
  %v8530 = vadd.f32 %v8529, %v1162
  %v8531 = vadd.f32 %v8530, %v1169
  %v8532 = vadd.f32 %v8531, %v1176
  %v8533 = vadd.f32 %v8532, %v1183
  %v8534 = vadd.f32 %v8533, %v1190
  %v8535 = vadd.f32 %v8534, %v1197
  %v8536 = vadd.f32 %v8535, %v1204
  %v8537 = vadd.f32 %v8536, %v1211
  %v8538 = vadd.f32 %v8537, %v1218
  %v8539 = vadd.f32 %v8538, %v1225
  %v8540 = vadd.f32 %v8539, %v1232
  %v8541 = vadd.f32 %v8540, %v1239
  %v8542 = vadd.f32 %v8541, %v1246
  %v8543 = vadd.f32 %v8542, %v1253
  %v8544 = vadd.f32 %v8543, %v1260
  %v8545 = vadd.f32 %v8544, %v1267
  %v8546 = vadd.f32 %v8545, %v1274
  %v8547 = vadd.f32 %v8546, %v1281
  %v8548 = vadd.f32 %v8547, %v1288
  %v8549 = vadd.f32 %v8548, %v1295
  %v8550 = vadd.f32 %v8549, %v1302
  %v8551 = vadd.f32 %v8550, %v1309
  %v8552 = vadd.f32 %v8551, %v1316
  %v8553 = vadd.f32 %v8552, %v1323
  %v8554 = vadd.f32 %v8553, %v1330
  %v8555 = vadd.f32 %v8554, %v1337
  %v8556 = vadd.f32 %v8555, %v1344
  %v8557 = vadd.f32 %v8556, %v1351
  %v8558 = vadd.f32 %v8557, %v1358
  %v8559 = vadd.f32 %v8558, %v1365
  %v8560 = vrot.slane %v8559, 4
  %v8561 = vadd.f32 %v8559, %v8560
  %v8562 = vrot.slane %v8561, 2
  %v8563 = vadd.f32 %v8561, %v8562
  %v8564 = vrot.slane %v8563, 1
  %v8565 = vadd.f32 %v8563, %v8564
  %v8566 = vadd.f32 %v3261, %v3270
  %v8567 = vadd.f32 %v8566, %v3279
  %v8568 = vadd.f32 %v8567, %v3288
  %v8569 = vadd.f32 %v8568, %v3297
  %v8570 = vadd.f32 %v8569, %v3306
  %v8571 = vadd.f32 %v8570, %v3315
  %v8572 = vadd.f32 %v8571, %v3324
  %v8573 = vadd.f32 %v8572, %v3333
  %v8574 = vadd.f32 %v8573, %v3342
  %v8575 = vadd.f32 %v8574, %v3351
  %v8576 = vadd.f32 %v8575, %v3360
  %v8577 = vadd.f32 %v8576, %v3369
  %v8578 = vadd.f32 %v8577, %v3378
  %v8579 = vadd.f32 %v8578, %v3387
  %v8580 = vadd.f32 %v8579, %v3396
  %v8581 = vadd.f32 %v8580, %v3405
  %v8582 = vadd.f32 %v8581, %v3414
  %v8583 = vadd.f32 %v8582, %v3423
  %v8584 = vadd.f32 %v8583, %v3432
  %v8585 = vadd.f32 %v8584, %v3441
  %v8586 = vadd.f32 %v8585, %v3450
  %v8587 = vadd.f32 %v8586, %v3459
  %v8588 = vadd.f32 %v8587, %v3468
  %v8589 = vadd.f32 %v8588, %v3477
  %v8590 = vadd.f32 %v8589, %v3486
  %v8591 = vadd.f32 %v8590, %v3495
  %v8592 = vadd.f32 %v8591, %v3504
  %v8593 = vadd.f32 %v8592, %v3513
  %v8594 = vadd.f32 %v8593, %v3522
  %v8595 = vadd.f32 %v8594, %v3531
  %v8596 = vadd.f32 %v8595, %v3540
  %v8597 = vrot.slane %v8596, 4
  %v8598 = vadd.f32 %v8596, %v8597
  %v8599 = vrot.slane %v8598, 2
  %v8600 = vadd.f32 %v8598, %v8599
  %v8601 = vrot.slane %v8600, 1
  %v8602 = vadd.f32 %v8600, %v8601
  %v8603 = vadd.f32 %v1367, %v1374
  %v8604 = vadd.f32 %v8603, %v1381
  %v8605 = vadd.f32 %v8604, %v1388
  %v8606 = vadd.f32 %v8605, %v1395
  %v8607 = vadd.f32 %v8606, %v1402
  %v8608 = vadd.f32 %v8607, %v1409
  %v8609 = vadd.f32 %v8608, %v1416
  %v8610 = vadd.f32 %v8609, %v1423
  %v8611 = vadd.f32 %v8610, %v1430
  %v8612 = vadd.f32 %v8611, %v1437
  %v8613 = vadd.f32 %v8612, %v1444
  %v8614 = vadd.f32 %v8613, %v1451
  %v8615 = vadd.f32 %v8614, %v1458
  %v8616 = vadd.f32 %v8615, %v1465
  %v8617 = vadd.f32 %v8616, %v1472
  %v8618 = vadd.f32 %v8617, %v1479
  %v8619 = vadd.f32 %v8618, %v1486
  %v8620 = vadd.f32 %v8619, %v1493
  %v8621 = vadd.f32 %v8620, %v1500
  %v8622 = vadd.f32 %v8621, %v1507
  %v8623 = vadd.f32 %v8622, %v1514
  %v8624 = vadd.f32 %v8623, %v1521
  %v8625 = vadd.f32 %v8624, %v1528
  %v8626 = vadd.f32 %v8625, %v1535
  %v8627 = vadd.f32 %v8626, %v1542
  %v8628 = vadd.f32 %v8627, %v1549
  %v8629 = vadd.f32 %v8628, %v1556
  %v8630 = vadd.f32 %v8629, %v1563
  %v8631 = vadd.f32 %v8630, %v1570
  %v8632 = vadd.f32 %v8631, %v1577
  %v8633 = vadd.f32 %v8632, %v1584
  %v8634 = vrot.slane %v8633, 4
  %v8635 = vadd.f32 %v8633, %v8634
  %v8636 = vrot.slane %v8635, 2
  %v8637 = vadd.f32 %v8635, %v8636
  %v8638 = vrot.slane %v8637, 1
  %v8639 = vadd.f32 %v8637, %v8638
  %v8640 = vadd.f32 %v1368, %v1375
  %v8641 = vadd.f32 %v8640, %v1382
  %v8642 = vadd.f32 %v8641, %v1389
  %v8643 = vadd.f32 %v8642, %v1396
  %v8644 = vadd.f32 %v8643, %v1403
  %v8645 = vadd.f32 %v8644, %v1410
  %v8646 = vadd.f32 %v8645, %v1417
  %v8647 = vadd.f32 %v8646, %v1424
  %v8648 = vadd.f32 %v8647, %v1431
  %v8649 = vadd.f32 %v8648, %v1438
  %v8650 = vadd.f32 %v8649, %v1445
  %v8651 = vadd.f32 %v8650, %v1452
  %v8652 = vadd.f32 %v8651, %v1459
  %v8653 = vadd.f32 %v8652, %v1466
  %v8654 = vadd.f32 %v8653, %v1473
  %v8655 = vadd.f32 %v8654, %v1480
  %v8656 = vadd.f32 %v8655, %v1487
  %v8657 = vadd.f32 %v8656, %v1494
  %v8658 = vadd.f32 %v8657, %v1501
  %v8659 = vadd.f32 %v8658, %v1508
  %v8660 = vadd.f32 %v8659, %v1515
  %v8661 = vadd.f32 %v8660, %v1522
  %v8662 = vadd.f32 %v8661, %v1529
  %v8663 = vadd.f32 %v8662, %v1536
  %v8664 = vadd.f32 %v8663, %v1543
  %v8665 = vadd.f32 %v8664, %v1550
  %v8666 = vadd.f32 %v8665, %v1557
  %v8667 = vadd.f32 %v8666, %v1564
  %v8668 = vadd.f32 %v8667, %v1571
  %v8669 = vadd.f32 %v8668, %v1578
  %v8670 = vadd.f32 %v8669, %v1585
  %v8671 = vrot.slane %v8670, 4
  %v8672 = vadd.f32 %v8670, %v8671
  %v8673 = vrot.slane %v8672, 2
  %v8674 = vadd.f32 %v8672, %v8673
  %v8675 = vrot.slane %v8674, 1
  %v8676 = vadd.f32 %v8674, %v8675
  %v8677 = vadd.f32 %v1369, %v1376
  %v8678 = vadd.f32 %v8677, %v1383
  %v8679 = vadd.f32 %v8678, %v1390
  %v8680 = vadd.f32 %v8679, %v1397
  %v8681 = vadd.f32 %v8680, %v1404
  %v8682 = vadd.f32 %v8681, %v1411
  %v8683 = vadd.f32 %v8682, %v1418
  %v8684 = vadd.f32 %v8683, %v1425
  %v8685 = vadd.f32 %v8684, %v1432
  %v8686 = vadd.f32 %v8685, %v1439
  %v8687 = vadd.f32 %v8686, %v1446
  %v8688 = vadd.f32 %v8687, %v1453
  %v8689 = vadd.f32 %v8688, %v1460
  %v8690 = vadd.f32 %v8689, %v1467
  %v8691 = vadd.f32 %v8690, %v1474
  %v8692 = vadd.f32 %v8691, %v1481
  %v8693 = vadd.f32 %v8692, %v1488
  %v8694 = vadd.f32 %v8693, %v1495
  %v8695 = vadd.f32 %v8694, %v1502
  %v8696 = vadd.f32 %v8695, %v1509
  %v8697 = vadd.f32 %v8696, %v1516
  %v8698 = vadd.f32 %v8697, %v1523
  %v8699 = vadd.f32 %v8698, %v1530
  %v8700 = vadd.f32 %v8699, %v1537
  %v8701 = vadd.f32 %v8700, %v1544
  %v8702 = vadd.f32 %v8701, %v1551
  %v8703 = vadd.f32 %v8702, %v1558
  %v8704 = vadd.f32 %v8703, %v1565
  %v8705 = vadd.f32 %v8704, %v1572
  %v8706 = vadd.f32 %v8705, %v1579
  %v8707 = vadd.f32 %v8706, %v1586
  %v8708 = vrot.slane %v8707, 4
  %v8709 = vadd.f32 %v8707, %v8708
  %v8710 = vrot.slane %v8709, 2
  %v8711 = vadd.f32 %v8709, %v8710
  %v8712 = vrot.slane %v8711, 1
  %v8713 = vadd.f32 %v8711, %v8712
  %v8714 = vadd.f32 %v1370, %v1377
  %v8715 = vadd.f32 %v8714, %v1384
  %v8716 = vadd.f32 %v8715, %v1391
  %v8717 = vadd.f32 %v8716, %v1398
  %v8718 = vadd.f32 %v8717, %v1405
  %v8719 = vadd.f32 %v8718, %v1412
  %v8720 = vadd.f32 %v8719, %v1419
  %v8721 = vadd.f32 %v8720, %v1426
  %v8722 = vadd.f32 %v8721, %v1433
  %v8723 = vadd.f32 %v8722, %v1440
  %v8724 = vadd.f32 %v8723, %v1447
  %v8725 = vadd.f32 %v8724, %v1454
  %v8726 = vadd.f32 %v8725, %v1461
  %v8727 = vadd.f32 %v8726, %v1468
  %v8728 = vadd.f32 %v8727, %v1475
  %v8729 = vadd.f32 %v8728, %v1482
  %v8730 = vadd.f32 %v8729, %v1489
  %v8731 = vadd.f32 %v8730, %v1496
  %v8732 = vadd.f32 %v8731, %v1503
  %v8733 = vadd.f32 %v8732, %v1510
  %v8734 = vadd.f32 %v8733, %v1517
  %v8735 = vadd.f32 %v8734, %v1524
  %v8736 = vadd.f32 %v8735, %v1531
  %v8737 = vadd.f32 %v8736, %v1538
  %v8738 = vadd.f32 %v8737, %v1545
  %v8739 = vadd.f32 %v8738, %v1552
  %v8740 = vadd.f32 %v8739, %v1559
  %v8741 = vadd.f32 %v8740, %v1566
  %v8742 = vadd.f32 %v8741, %v1573
  %v8743 = vadd.f32 %v8742, %v1580
  %v8744 = vadd.f32 %v8743, %v1587
  %v8745 = vrot.slane %v8744, 4
  %v8746 = vadd.f32 %v8744, %v8745
  %v8747 = vrot.slane %v8746, 2
  %v8748 = vadd.f32 %v8746, %v8747
  %v8749 = vrot.slane %v8748, 1
  %v8750 = vadd.f32 %v8748, %v8749
  %v8751 = vadd.f32 %v1371, %v1378
  %v8752 = vadd.f32 %v8751, %v1385
  %v8753 = vadd.f32 %v8752, %v1392
  %v8754 = vadd.f32 %v8753, %v1399
  %v8755 = vadd.f32 %v8754, %v1406
  %v8756 = vadd.f32 %v8755, %v1413
  %v8757 = vadd.f32 %v8756, %v1420
  %v8758 = vadd.f32 %v8757, %v1427
  %v8759 = vadd.f32 %v8758, %v1434
  %v8760 = vadd.f32 %v8759, %v1441
  %v8761 = vadd.f32 %v8760, %v1448
  %v8762 = vadd.f32 %v8761, %v1455
  %v8763 = vadd.f32 %v8762, %v1462
  %v8764 = vadd.f32 %v8763, %v1469
  %v8765 = vadd.f32 %v8764, %v1476
  %v8766 = vadd.f32 %v8765, %v1483
  %v8767 = vadd.f32 %v8766, %v1490
  %v8768 = vadd.f32 %v8767, %v1497
  %v8769 = vadd.f32 %v8768, %v1504
  %v8770 = vadd.f32 %v8769, %v1511
  %v8771 = vadd.f32 %v8770, %v1518
  %v8772 = vadd.f32 %v8771, %v1525
  %v8773 = vadd.f32 %v8772, %v1532
  %v8774 = vadd.f32 %v8773, %v1539
  %v8775 = vadd.f32 %v8774, %v1546
  %v8776 = vadd.f32 %v8775, %v1553
  %v8777 = vadd.f32 %v8776, %v1560
  %v8778 = vadd.f32 %v8777, %v1567
  %v8779 = vadd.f32 %v8778, %v1574
  %v8780 = vadd.f32 %v8779, %v1581
  %v8781 = vadd.f32 %v8780, %v1588
  %v8782 = vrot.slane %v8781, 4
  %v8783 = vadd.f32 %v8781, %v8782
  %v8784 = vrot.slane %v8783, 2
  %v8785 = vadd.f32 %v8783, %v8784
  %v8786 = vrot.slane %v8785, 1
  %v8787 = vadd.f32 %v8785, %v8786
  %v8788 = vadd.f32 %v1372, %v1379
  %v8789 = vadd.f32 %v8788, %v1386
  %v8790 = vadd.f32 %v8789, %v1393
  %v8791 = vadd.f32 %v8790, %v1400
  %v8792 = vadd.f32 %v8791, %v1407
  %v8793 = vadd.f32 %v8792, %v1414
  %v8794 = vadd.f32 %v8793, %v1421
  %v8795 = vadd.f32 %v8794, %v1428
  %v8796 = vadd.f32 %v8795, %v1435
  %v8797 = vadd.f32 %v8796, %v1442
  %v8798 = vadd.f32 %v8797, %v1449
  %v8799 = vadd.f32 %v8798, %v1456
  %v8800 = vadd.f32 %v8799, %v1463
  %v8801 = vadd.f32 %v8800, %v1470
  %v8802 = vadd.f32 %v8801, %v1477
  %v8803 = vadd.f32 %v8802, %v1484
  %v8804 = vadd.f32 %v8803, %v1491
  %v8805 = vadd.f32 %v8804, %v1498
  %v8806 = vadd.f32 %v8805, %v1505
  %v8807 = vadd.f32 %v8806, %v1512
  %v8808 = vadd.f32 %v8807, %v1519
  %v8809 = vadd.f32 %v8808, %v1526
  %v8810 = vadd.f32 %v8809, %v1533
  %v8811 = vadd.f32 %v8810, %v1540
  %v8812 = vadd.f32 %v8811, %v1547
  %v8813 = vadd.f32 %v8812, %v1554
  %v8814 = vadd.f32 %v8813, %v1561
  %v8815 = vadd.f32 %v8814, %v1568
  %v8816 = vadd.f32 %v8815, %v1575
  %v8817 = vadd.f32 %v8816, %v1582
  %v8818 = vadd.f32 %v8817, %v1589
  %v8819 = vrot.slane %v8818, 4
  %v8820 = vadd.f32 %v8818, %v8819
  %v8821 = vrot.slane %v8820, 2
  %v8822 = vadd.f32 %v8820, %v8821
  %v8823 = vrot.slane %v8822, 1
  %v8824 = vadd.f32 %v8822, %v8823
  %v8825 = vadd.f32 %v3549, %v3558
  %v8826 = vadd.f32 %v8825, %v3567
  %v8827 = vadd.f32 %v8826, %v3576
  %v8828 = vadd.f32 %v8827, %v3585
  %v8829 = vadd.f32 %v8828, %v3594
  %v8830 = vadd.f32 %v8829, %v3603
  %v8831 = vadd.f32 %v8830, %v3612
  %v8832 = vadd.f32 %v8831, %v3621
  %v8833 = vadd.f32 %v8832, %v3630
  %v8834 = vadd.f32 %v8833, %v3639
  %v8835 = vadd.f32 %v8834, %v3648
  %v8836 = vadd.f32 %v8835, %v3657
  %v8837 = vadd.f32 %v8836, %v3666
  %v8838 = vadd.f32 %v8837, %v3675
  %v8839 = vadd.f32 %v8838, %v3684
  %v8840 = vadd.f32 %v8839, %v3693
  %v8841 = vadd.f32 %v8840, %v3702
  %v8842 = vadd.f32 %v8841, %v3711
  %v8843 = vadd.f32 %v8842, %v3720
  %v8844 = vadd.f32 %v8843, %v3729
  %v8845 = vadd.f32 %v8844, %v3738
  %v8846 = vadd.f32 %v8845, %v3747
  %v8847 = vadd.f32 %v8846, %v3756
  %v8848 = vadd.f32 %v8847, %v3765
  %v8849 = vadd.f32 %v8848, %v3774
  %v8850 = vadd.f32 %v8849, %v3783
  %v8851 = vadd.f32 %v8850, %v3792
  %v8852 = vadd.f32 %v8851, %v3801
  %v8853 = vadd.f32 %v8852, %v3810
  %v8854 = vadd.f32 %v8853, %v3819
  %v8855 = vadd.f32 %v8854, %v3828
  %v8856 = vrot.slane %v8855, 4
  %v8857 = vadd.f32 %v8855, %v8856
  %v8858 = vrot.slane %v8857, 2
  %v8859 = vadd.f32 %v8857, %v8858
  %v8860 = vrot.slane %v8859, 1
  %v8861 = vadd.f32 %v8859, %v8860
  %v8862 = vadd.f32 %v1591, %v1598
  %v8863 = vadd.f32 %v8862, %v1605
  %v8864 = vadd.f32 %v8863, %v1612
  %v8865 = vadd.f32 %v8864, %v1619
  %v8866 = vadd.f32 %v8865, %v1626
  %v8867 = vadd.f32 %v8866, %v1633
  %v8868 = vadd.f32 %v8867, %v1640
  %v8869 = vadd.f32 %v8868, %v1647
  %v8870 = vadd.f32 %v8869, %v1654
  %v8871 = vadd.f32 %v8870, %v1661
  %v8872 = vadd.f32 %v8871, %v1668
  %v8873 = vadd.f32 %v8872, %v1675
  %v8874 = vadd.f32 %v8873, %v1682
  %v8875 = vadd.f32 %v8874, %v1689
  %v8876 = vadd.f32 %v8875, %v1696
  %v8877 = vadd.f32 %v8876, %v1703
  %v8878 = vadd.f32 %v8877, %v1710
  %v8879 = vadd.f32 %v8878, %v1717
  %v8880 = vadd.f32 %v8879, %v1724
  %v8881 = vadd.f32 %v8880, %v1731
  %v8882 = vadd.f32 %v8881, %v1738
  %v8883 = vadd.f32 %v8882, %v1745
  %v8884 = vadd.f32 %v8883, %v1752
  %v8885 = vadd.f32 %v8884, %v1759
  %v8886 = vadd.f32 %v8885, %v1766
  %v8887 = vadd.f32 %v8886, %v1773
  %v8888 = vadd.f32 %v8887, %v1780
  %v8889 = vadd.f32 %v8888, %v1787
  %v8890 = vadd.f32 %v8889, %v1794
  %v8891 = vadd.f32 %v8890, %v1801
  %v8892 = vadd.f32 %v8891, %v1808
  %v8893 = vrot.slane %v8892, 4
  %v8894 = vadd.f32 %v8892, %v8893
  %v8895 = vrot.slane %v8894, 2
  %v8896 = vadd.f32 %v8894, %v8895
  %v8897 = vrot.slane %v8896, 1
  %v8898 = vadd.f32 %v8896, %v8897
  %v8899 = vadd.f32 %v1592, %v1599
  %v8900 = vadd.f32 %v8899, %v1606
  %v8901 = vadd.f32 %v8900, %v1613
  %v8902 = vadd.f32 %v8901, %v1620
  %v8903 = vadd.f32 %v8902, %v1627
  %v8904 = vadd.f32 %v8903, %v1634
  %v8905 = vadd.f32 %v8904, %v1641
  %v8906 = vadd.f32 %v8905, %v1648
  %v8907 = vadd.f32 %v8906, %v1655
  %v8908 = vadd.f32 %v8907, %v1662
  %v8909 = vadd.f32 %v8908, %v1669
  %v8910 = vadd.f32 %v8909, %v1676
  %v8911 = vadd.f32 %v8910, %v1683
  %v8912 = vadd.f32 %v8911, %v1690
  %v8913 = vadd.f32 %v8912, %v1697
  %v8914 = vadd.f32 %v8913, %v1704
  %v8915 = vadd.f32 %v8914, %v1711
  %v8916 = vadd.f32 %v8915, %v1718
  %v8917 = vadd.f32 %v8916, %v1725
  %v8918 = vadd.f32 %v8917, %v1732
  %v8919 = vadd.f32 %v8918, %v1739
  %v8920 = vadd.f32 %v8919, %v1746
  %v8921 = vadd.f32 %v8920, %v1753
  %v8922 = vadd.f32 %v8921, %v1760
  %v8923 = vadd.f32 %v8922, %v1767
  %v8924 = vadd.f32 %v8923, %v1774
  %v8925 = vadd.f32 %v8924, %v1781
  %v8926 = vadd.f32 %v8925, %v1788
  %v8927 = vadd.f32 %v8926, %v1795
  %v8928 = vadd.f32 %v8927, %v1802
  %v8929 = vadd.f32 %v8928, %v1809
  %v8930 = vrot.slane %v8929, 4
  %v8931 = vadd.f32 %v8929, %v8930
  %v8932 = vrot.slane %v8931, 2
  %v8933 = vadd.f32 %v8931, %v8932
  %v8934 = vrot.slane %v8933, 1
  %v8935 = vadd.f32 %v8933, %v8934
  %v8936 = vadd.f32 %v1593, %v1600
  %v8937 = vadd.f32 %v8936, %v1607
  %v8938 = vadd.f32 %v8937, %v1614
  %v8939 = vadd.f32 %v8938, %v1621
  %v8940 = vadd.f32 %v8939, %v1628
  %v8941 = vadd.f32 %v8940, %v1635
  %v8942 = vadd.f32 %v8941, %v1642
  %v8943 = vadd.f32 %v8942, %v1649
  %v8944 = vadd.f32 %v8943, %v1656
  %v8945 = vadd.f32 %v8944, %v1663
  %v8946 = vadd.f32 %v8945, %v1670
  %v8947 = vadd.f32 %v8946, %v1677
  %v8948 = vadd.f32 %v8947, %v1684
  %v8949 = vadd.f32 %v8948, %v1691
  %v8950 = vadd.f32 %v8949, %v1698
  %v8951 = vadd.f32 %v8950, %v1705
  %v8952 = vadd.f32 %v8951, %v1712
  %v8953 = vadd.f32 %v8952, %v1719
  %v8954 = vadd.f32 %v8953, %v1726
  %v8955 = vadd.f32 %v8954, %v1733
  %v8956 = vadd.f32 %v8955, %v1740
  %v8957 = vadd.f32 %v8956, %v1747
  %v8958 = vadd.f32 %v8957, %v1754
  %v8959 = vadd.f32 %v8958, %v1761
  %v8960 = vadd.f32 %v8959, %v1768
  %v8961 = vadd.f32 %v8960, %v1775
  %v8962 = vadd.f32 %v8961, %v1782
  %v8963 = vadd.f32 %v8962, %v1789
  %v8964 = vadd.f32 %v8963, %v1796
  %v8965 = vadd.f32 %v8964, %v1803
  %v8966 = vadd.f32 %v8965, %v1810
  %v8967 = vrot.slane %v8966, 4
  %v8968 = vadd.f32 %v8966, %v8967
  %v8969 = vrot.slane %v8968, 2
  %v8970 = vadd.f32 %v8968, %v8969
  %v8971 = vrot.slane %v8970, 1
  %v8972 = vadd.f32 %v8970, %v8971
  %v8973 = vadd.f32 %v1594, %v1601
  %v8974 = vadd.f32 %v8973, %v1608
  %v8975 = vadd.f32 %v8974, %v1615
  %v8976 = vadd.f32 %v8975, %v1622
  %v8977 = vadd.f32 %v8976, %v1629
  %v8978 = vadd.f32 %v8977, %v1636
  %v8979 = vadd.f32 %v8978, %v1643
  %v8980 = vadd.f32 %v8979, %v1650
  %v8981 = vadd.f32 %v8980, %v1657
  %v8982 = vadd.f32 %v8981, %v1664
  %v8983 = vadd.f32 %v8982, %v1671
  %v8984 = vadd.f32 %v8983, %v1678
  %v8985 = vadd.f32 %v8984, %v1685
  %v8986 = vadd.f32 %v8985, %v1692
  %v8987 = vadd.f32 %v8986, %v1699
  %v8988 = vadd.f32 %v8987, %v1706
  %v8989 = vadd.f32 %v8988, %v1713
  %v8990 = vadd.f32 %v8989, %v1720
  %v8991 = vadd.f32 %v8990, %v1727
  %v8992 = vadd.f32 %v8991, %v1734
  %v8993 = vadd.f32 %v8992, %v1741
  %v8994 = vadd.f32 %v8993, %v1748
  %v8995 = vadd.f32 %v8994, %v1755
  %v8996 = vadd.f32 %v8995, %v1762
  %v8997 = vadd.f32 %v8996, %v1769
  %v8998 = vadd.f32 %v8997, %v1776
  %v8999 = vadd.f32 %v8998, %v1783
  %v9000 = vadd.f32 %v8999, %v1790
  %v9001 = vadd.f32 %v9000, %v1797
  %v9002 = vadd.f32 %v9001, %v1804
  %v9003 = vadd.f32 %v9002, %v1811
  %v9004 = vrot.slane %v9003, 4
  %v9005 = vadd.f32 %v9003, %v9004
  %v9006 = vrot.slane %v9005, 2
  %v9007 = vadd.f32 %v9005, %v9006
  %v9008 = vrot.slane %v9007, 1
  %v9009 = vadd.f32 %v9007, %v9008
  %v9010 = vadd.f32 %v1595, %v1602
  %v9011 = vadd.f32 %v9010, %v1609
  %v9012 = vadd.f32 %v9011, %v1616
  %v9013 = vadd.f32 %v9012, %v1623
  %v9014 = vadd.f32 %v9013, %v1630
  %v9015 = vadd.f32 %v9014, %v1637
  %v9016 = vadd.f32 %v9015, %v1644
  %v9017 = vadd.f32 %v9016, %v1651
  %v9018 = vadd.f32 %v9017, %v1658
  %v9019 = vadd.f32 %v9018, %v1665
  %v9020 = vadd.f32 %v9019, %v1672
  %v9021 = vadd.f32 %v9020, %v1679
  %v9022 = vadd.f32 %v9021, %v1686
  %v9023 = vadd.f32 %v9022, %v1693
  %v9024 = vadd.f32 %v9023, %v1700
  %v9025 = vadd.f32 %v9024, %v1707
  %v9026 = vadd.f32 %v9025, %v1714
  %v9027 = vadd.f32 %v9026, %v1721
  %v9028 = vadd.f32 %v9027, %v1728
  %v9029 = vadd.f32 %v9028, %v1735
  %v9030 = vadd.f32 %v9029, %v1742
  %v9031 = vadd.f32 %v9030, %v1749
  %v9032 = vadd.f32 %v9031, %v1756
  %v9033 = vadd.f32 %v9032, %v1763
  %v9034 = vadd.f32 %v9033, %v1770
  %v9035 = vadd.f32 %v9034, %v1777
  %v9036 = vadd.f32 %v9035, %v1784
  %v9037 = vadd.f32 %v9036, %v1791
  %v9038 = vadd.f32 %v9037, %v1798
  %v9039 = vadd.f32 %v9038, %v1805
  %v9040 = vadd.f32 %v9039, %v1812
  %v9041 = vrot.slane %v9040, 4
  %v9042 = vadd.f32 %v9040, %v9041
  %v9043 = vrot.slane %v9042, 2
  %v9044 = vadd.f32 %v9042, %v9043
  %v9045 = vrot.slane %v9044, 1
  %v9046 = vadd.f32 %v9044, %v9045
  %v9047 = vadd.f32 %v1596, %v1603
  %v9048 = vadd.f32 %v9047, %v1610
  %v9049 = vadd.f32 %v9048, %v1617
  %v9050 = vadd.f32 %v9049, %v1624
  %v9051 = vadd.f32 %v9050, %v1631
  %v9052 = vadd.f32 %v9051, %v1638
  %v9053 = vadd.f32 %v9052, %v1645
  %v9054 = vadd.f32 %v9053, %v1652
  %v9055 = vadd.f32 %v9054, %v1659
  %v9056 = vadd.f32 %v9055, %v1666
  %v9057 = vadd.f32 %v9056, %v1673
  %v9058 = vadd.f32 %v9057, %v1680
  %v9059 = vadd.f32 %v9058, %v1687
  %v9060 = vadd.f32 %v9059, %v1694
  %v9061 = vadd.f32 %v9060, %v1701
  %v9062 = vadd.f32 %v9061, %v1708
  %v9063 = vadd.f32 %v9062, %v1715
  %v9064 = vadd.f32 %v9063, %v1722
  %v9065 = vadd.f32 %v9064, %v1729
  %v9066 = vadd.f32 %v9065, %v1736
  %v9067 = vadd.f32 %v9066, %v1743
  %v9068 = vadd.f32 %v9067, %v1750
  %v9069 = vadd.f32 %v9068, %v1757
  %v9070 = vadd.f32 %v9069, %v1764
  %v9071 = vadd.f32 %v9070, %v1771
  %v9072 = vadd.f32 %v9071, %v1778
  %v9073 = vadd.f32 %v9072, %v1785
  %v9074 = vadd.f32 %v9073, %v1792
  %v9075 = vadd.f32 %v9074, %v1799
  %v9076 = vadd.f32 %v9075, %v1806
  %v9077 = vadd.f32 %v9076, %v1813
  %v9078 = vrot.slane %v9077, 4
  %v9079 = vadd.f32 %v9077, %v9078
  %v9080 = vrot.slane %v9079, 2
  %v9081 = vadd.f32 %v9079, %v9080
  %v9082 = vrot.slane %v9081, 1
  %v9083 = vadd.f32 %v9081, %v9082
  %v9084 = vadd.f32 %v3837, %v3846
  %v9085 = vadd.f32 %v9084, %v3855
  %v9086 = vadd.f32 %v9085, %v3864
  %v9087 = vadd.f32 %v9086, %v3873
  %v9088 = vadd.f32 %v9087, %v3882
  %v9089 = vadd.f32 %v9088, %v3891
  %v9090 = vadd.f32 %v9089, %v3900
  %v9091 = vadd.f32 %v9090, %v3909
  %v9092 = vadd.f32 %v9091, %v3918
  %v9093 = vadd.f32 %v9092, %v3927
  %v9094 = vadd.f32 %v9093, %v3936
  %v9095 = vadd.f32 %v9094, %v3945
  %v9096 = vadd.f32 %v9095, %v3954
  %v9097 = vadd.f32 %v9096, %v3963
  %v9098 = vadd.f32 %v9097, %v3972
  %v9099 = vadd.f32 %v9098, %v3981
  %v9100 = vadd.f32 %v9099, %v3990
  %v9101 = vadd.f32 %v9100, %v3999
  %v9102 = vadd.f32 %v9101, %v4008
  %v9103 = vadd.f32 %v9102, %v4017
  %v9104 = vadd.f32 %v9103, %v4026
  %v9105 = vadd.f32 %v9104, %v4035
  %v9106 = vadd.f32 %v9105, %v4044
  %v9107 = vadd.f32 %v9106, %v4053
  %v9108 = vadd.f32 %v9107, %v4062
  %v9109 = vadd.f32 %v9108, %v4071
  %v9110 = vadd.f32 %v9109, %v4080
  %v9111 = vadd.f32 %v9110, %v4089
  %v9112 = vadd.f32 %v9111, %v4098
  %v9113 = vadd.f32 %v9112, %v4107
  %v9114 = vadd.f32 %v9113, %v4116
  %v9115 = vrot.slane %v9114, 4
  %v9116 = vadd.f32 %v9114, %v9115
  %v9117 = vrot.slane %v9116, 2
  %v9118 = vadd.f32 %v9116, %v9117
  %v9119 = vrot.slane %v9118, 1
  %v9120 = vadd.f32 %v9118, %v9119
  %v9177 = vsel %vm6079, %v7344, %v7085
  %v9178 = vsel %vm6081, %v7603, %v9177
  %v9179 = vsel %vm6083, %v7862, %v9178
  %v9180 = vsel %vm6085, %v8121, %v9179
  %v9181 = vsel %vm6087, %v8380, %v9180
  %v9182 = vsel %vm6089, %v8639, %v9181
  %v9183 = vsel %vm6091, %v8898, %v9182
  %v9184 = vsel %vm6079, %v7381, %v7122
  %v9185 = vsel %vm6081, %v7640, %v9184
  %v9186 = vsel %vm6083, %v7899, %v9185
  %v9187 = vsel %vm6085, %v8158, %v9186
  %v9188 = vsel %vm6087, %v8417, %v9187
  %v9189 = vsel %vm6089, %v8676, %v9188
  %v9190 = vsel %vm6091, %v8935, %v9189
  %v9191 = vsel %vm6079, %v7418, %v7159
  %v9192 = vsel %vm6081, %v7677, %v9191
  %v9193 = vsel %vm6083, %v7936, %v9192
  %v9194 = vsel %vm6085, %v8195, %v9193
  %v9195 = vsel %vm6087, %v8454, %v9194
  %v9196 = vsel %vm6089, %v8713, %v9195
  %v9197 = vsel %vm6091, %v8972, %v9196
  %v9198 = vsel %vm6079, %v7455, %v7196
  %v9199 = vsel %vm6081, %v7714, %v9198
  %v9200 = vsel %vm6083, %v7973, %v9199
  %v9201 = vsel %vm6085, %v8232, %v9200
  %v9202 = vsel %vm6087, %v8491, %v9201
  %v9203 = vsel %vm6089, %v8750, %v9202
  %v9204 = vsel %vm6091, %v9009, %v9203
  %v9205 = vsel %vm6079, %v7492, %v7233
  %v9206 = vsel %vm6081, %v7751, %v9205
  %v9207 = vsel %vm6083, %v8010, %v9206
  %v9208 = vsel %vm6085, %v8269, %v9207
  %v9209 = vsel %vm6087, %v8528, %v9208
  %v9210 = vsel %vm6089, %v8787, %v9209
  %v9211 = vsel %vm6091, %v9046, %v9210
  %v9212 = vsel %vm6079, %v7529, %v7270
  %v9213 = vsel %vm6081, %v7788, %v9212
  %v9214 = vsel %vm6083, %v8047, %v9213
  %v9215 = vsel %vm6085, %v8306, %v9214
  %v9216 = vsel %vm6087, %v8565, %v9215
  %v9217 = vsel %vm6089, %v8824, %v9216
  %v9218 = vsel %vm6091, %v9083, %v9217
  %v9219 = vsel %vm6079, %v7566, %v7307
  %v9220 = vsel %vm6081, %v7825, %v9219
  %v9221 = vsel %vm6083, %v8084, %v9220
  %v9222 = vsel %vm6085, %v8343, %v9221
  %v9223 = vsel %vm6087, %v8602, %v9222
  %v9224 = vsel %vm6089, %v8861, %v9223
  %v9225 = vsel %vm6091, %v9120, %v9224
  %v9233 = vmul.f32 %v6833, %v9183
  %v9234 = vmul.f32 %v6835, %v9190
  %v9235 = vmul.f32 %v6904, %v9197
  %v9236 = vmul.f32 %v6906, %v9204
  %v9237 = vmul.f32 %v6975, %v9211
  %v9238 = vmul.f32 %v6977, %v9218
  %v9239 = vmul.f32 %v7046, %v9225
  %v9240 = vmax.f32 %v9233, %v9237
  %v9241 = vmax.f32 %v9234, %v9238
  %v9242 = vsel %vm1820, %v9239, -inf
  %v9243 = vmax.f32 %v9235, %v9242
  %v9244 = vmax.f32 %v9240, %v9241
  %v9245 = vmax.f32 %v9243, %v9236
  %v9246 = vmax.f32 %v9244, %v9245
  %9247 = vmax.xlane.f32.xlu0 %v9246
  %v9248 = vpop.xlane.xlu0 %9247
  %v9249 = vsub.f32 %v9233, %v9248
  %v9250 = vsub.f32 %v9234, %v9248
  %v9251 = vsub.f32 %v9235, %v9248
  %v9252 = vsub.f32 %v9236, %v9248
  %v9253 = vsub.f32 %v9237, %v9248
  %v9254 = vsub.f32 %v9238, %v9248
  %v9255 = vsub.f32 %v9239, %v9248
  %v9256 = vmul.f32 %v9249, 1.442695
  %v9257 = vpow.pop %v9256
  %v9258 = vmul.f32 %v9250, 1.442695
  %v9259 = vpow.pop %v9258
  %v9260 = vmul.f32 %v9251, 1.442695
  %v9261 = vpow.pop %v9260
  %v9262 = vmul.f32 %v9252, 1.442695
  %v9263 = vpow.pop %v9262
  %v9264 = vmul.f32 %v9253, 1.442695
  %v9265 = vpow.pop %v9264
  %v9266 = vmul.f32 %v9254, 1.442695
  %v9267 = vpow.pop %v9266
  %v9268 = vmul.f32 %v9255, 1.442695
  %v9269 = vpow.pop %v9268
  %v9270 = vadd.f32 %v9257, %v9259
  %v9271 = vadd.f32 %v9270, %v9261
  %v9272 = vadd.f32 %v9271, %v9263
  %v9273 = vadd.f32 %v9272, %v9265
  %v9274 = vadd.f32 %v9273, %v9267
  %v9275 = vsel %vm1820, %v9269, 0.0
  %v9276 = vadd.f32 %v9274, %v9275
  %9277 = vadd.xlane.f32.xlu0 %v9276
  %v9278 = vpop.xlane.xlu0 %9277
  %v9279 = vrcp.pop %v9278
  %v9280 = vmul.f32 %v9257, %v9279
  %v9281 = vmul.f32 %v9259, %v9279
  %v9282 = vmul.f32 %v9261, %v9279
  %v9283 = vmul.f32 %v9263, %v9279
  %v9284 = vmul.f32 %v9265, %v9279
  %v9285 = vmul.f32 %v9267, %v9279
  %v9286 = vmul.f32 %v9269, %v9279
  %v9287 = vmul.f32 %v9280, 1.442695
  %v9288 = vpow.pop %v9287
  %v9289 = vmul.f32 %v9281, 1.442695
  %v9290 = vpow.pop %v9289
  %v9291 = vmul.f32 %v9282, 1.442695
  %v9292 = vpow.pop %v9291
  %v9293 = vmul.f32 %v9283, 1.442695
  %v9294 = vpow.pop %v9293
  %v9295 = vmul.f32 %v9284, 1.442695
  %v9296 = vpow.pop %v9295
  %v9297 = vmul.f32 %v9285, 1.442695
  %v9298 = vpow.pop %v9297
  %v9299 = vmul.f32 %v9286, 1.442695
  %v9300 = vpow.pop %v9299
  %v9301 = vadd.f32 %v9288, 1.0
  %v9302 = vadd.f32 %v9290, 1.0
  %v9303 = vadd.f32 %v9292, 1.0
  %v9304 = vadd.f32 %v9294, 1.0
  %v9305 = vadd.f32 %v9296, 1.0
  %v9306 = vadd.f32 %v9298, 1.0
  %v9307 = vadd.f32 %v9300, 1.0
  %v9308 = vlog2.pop %v9301
  %v9309 = vmul.f32 %v9308, 0.6931472
  %v9310 = vlog2.pop %v9302
  %v9311 = vmul.f32 %v9310, 0.6931472
  %v9312 = vlog2.pop %v9303
  %v9313 = vmul.f32 %v9312, 0.6931472
  %v9314 = vlog2.pop %v9304
  %v9315 = vmul.f32 %v9314, 0.6931472
  %v9316 = vlog2.pop %v9305
  %v9317 = vmul.f32 %v9316, 0.6931472
  %v9318 = vlog2.pop %v9306
  %v9319 = vmul.f32 %v9318, 0.6931472
  %v9320 = vlog2.pop %v9307
  %v9321 = vmul.f32 %v9320, 0.6931472
  %v9322 = vmul.f32 %v9309, 4.0
  %v9323 = vmul.f32 %v9311, 4.0
  %v9324 = vmul.f32 %v9313, 4.0
  %v9325 = vmul.f32 %v9315, 4.0
  %v9326 = vmul.f32 %v9317, 4.0
  %v9327 = vmul.f32 %v9319, 4.0
  %v9328 = vmul.f32 %v9321, 4.0
  %9329 = vst [vmem:[%s6] sm:$0xff] %v9322
  %9330 = vst [vmem:[%s6 + $0x8] sm:$0xff] %v9323
  %9331 = vst [vmem:[%s6 + $0x10] sm:$0xff] %v9324
  %9332 = vst [vmem:[%s6 + $0x18] sm:$0xff] %v9325
  %9333 = vst [vmem:[%s6 + $0x20] sm:$0xff] %v9326
  %9334 = vst [vmem:[%s6 + $0x28] sm:$0xff] %v9327
  %9335 = vst.msk [vmem:[%s6 + $0x30] sm:$0xff] %vm1820, %v9328
  // Predicated region
  $region26: #{_part_forward_impl.1} parent=0 // pred_check
    _
  $region27: #{_part_forward_impl.1} parent=0 // pred_check_branch
    %9337 = sbr.rel (0) target = $region29
  $region28: #{_part_forward_impl.1} parent=0 // pred_region
    _
  $region29: #{_part_forward_impl.1} parent=0 // pred_fallthru
    _
  // Predicated region
  $region30: #{_part_forward_impl.1} parent=0 // pred_check
    _
  $region31: #{_part_forward_impl.1} parent=0 // pred_check_branch
    %9339 = sbr.rel (0) target = $region33
  $region32: #{_part_forward_impl.1} parent=0 // pred_region
    _
  $region33: #{_part_forward_impl.1} parent=0 // pred_fallthru
    _

</llo_original>
